<compile_context>
chip_gen: v5e
topology: v5e:2x2
jax: 0.10.0
libtpu: 0.0.40
codegen_flags: <defaults>
</compile_context>

<pallas_src>
import functools

import numpy as np
import jax
import jax.numpy as jnp
from jax import lax
from jax.experimental import pallas as pl
from jax.experimental.pallas import tpu as pltpu

SQRT2 = float(np.sqrt(2.0))
_HIGH = jax.lax.Precision.HIGHEST


# ------------------------------------------------------------------------------------ kernel 1
def conv0_blend_kernel(s0_ref, d0_ref, s1_ref, x_ref, ew_ref, b0_ref, wv_ref, bm_ref, bg_ref,
                       xo_ref, seg_ref, xq_ref, *, H, W, Cin, Cout):
    """Modulated 3x3 up=2 conv (FIR folded into the weight) + bias + lrelu*sqrt2 + sigmoid blend.

    Emits the blended feature map — already pre-modulated by conv1's style s1 — in phase layout
    into a 1-pixel zero-padded buffer (directly consumable by kernel 2) plus the blend mask.
    """
    f32 = jnp.float32

    # --- pre-modulated, 1-px zero-padded input staged ONCE in a VMEM scratch (items 1, 8) ---
    xq_ref[0:1, :, :] = jnp.zeros((1, W + 2, Cin), f32)
    xq_ref[H + 1:H + 2, :, :] = jnp.zeros((1, W + 2, Cin), f32)
    xq_ref[1:H + 1, 0:1, :] = jnp.zeros((H, 1, Cin), f32)
    xq_ref[1:H + 1, W + 1:W + 2, :] = jnp.zeros((H, 1, Cin), f32)
    xq_ref[1:H + 1, 1:W + 1, :] = x_ref[0] * s0_ref[0]

    # --- conv0(+folded FIR): 9 shifted matmuls, acc seeded by the first tap (item 10) ---
    # TODO(synk): flat-offset slicing (accept junk pad columns) would cut the remaining 9 relayouts.
    acc = None
    for t in range(9):
        dy, dx = t // 3, t % 3
        patch = xq_ref[dy:dy + H, dx:dx + W, :].reshape(H * W, Cin)
        contrib = jnp.dot(patch, ew_ref[t], preferred_element_type=f32)
        acc = contrib if acc is None else acc + contrib

    # --- zero only the 1-px halo of the padded phase-layout output (item 4); interior is
    #     fully overwritten below (disjoint regions -> no ordering hazard) ---
    xo_ref[0, 0:1, :, :] = jnp.zeros((1, W + 2, 4 * Cout), f32)
    xo_ref[0, H + 1:H + 2, :, :] = jnp.zeros((1, W + 2, 4 * Cout), f32)
    xo_ref[0, 1:H + 1, 0:1, :] = jnp.zeros((H, 1, 4 * Cout), f32)
    xo_ref[0, 1:H + 1, W + 1:W + 2, :] = jnp.zeros((H, 1, 4 * Cout), f32)

    d0 = d0_ref[0]          # (1, Cout) demod
    b0 = b0_ref[...]
    wv = wv_ref[...]
    bm = bm_ref[...]
    s1 = s1_ref[0]          # (1, Cout) conv1 input modulation, folded here (item 1)

    for p in range(4):
        a_p = acc[:, p * Cout:(p + 1) * Cout] * d0 + b0
        a_p = jnp.where(a_p >= 0.0, a_p, 0.2 * a_p) * SQRT2                  # lrelu * sqrt(2)
        # BlendBlock: mask = sigmoid(1x1 conv(fg)); out = fg*(1-mask) + bg*mask
        logit = jnp.sum(a_p * wv, axis=-1, keepdims=True) + bm
        m = jax.nn.sigmoid(logit)                                            # (H*W, 1)
        out_p = a_p * (1.0 - m) + bg_ref[0, :, p * Cout:(p + 1) * Cout] * m
        xo_ref[0, 1:H + 1, 1:W + 1, p * Cout:(p + 1) * Cout] = (out_p * s1).reshape(H, W, Cout)
        seg_ref[0, :, p:p + 1] = m


# ------------------------------------------------------------------------------------ kernel 2
def conv1_torgb_img_kernel(d1_ref, xb_ref, w1g_ref, b1_ref, wrgbm_ref, brgb_ref, img_ref,
                           x1_ref, imgo_ref, iq_ref, *, H, W, C, Crgb, segs):
    """Modulated 3x3 conv (pad 1) + bias + lrelu*sqrt2, fused torgb (1x1, no demod) and the
    phase-decomposed img upsample + add.  Input is already style-modulated (done in kernel 1)."""
    f32 = jnp.float32

    # --- 1-px zero-padded img staged in a VMEM scratch (pad moved out of the wrapper; item 8) ---
    iq_ref[0:1, :, :] = jnp.zeros((1, W + 2, Crgb), f32)
    iq_ref[H + 1:H + 2, :, :] = jnp.zeros((1, W + 2, Crgb), f32)
    iq_ref[1:H + 1, 0:1, :] = jnp.zeros((H, 1, Crgb), f32)
    iq_ref[1:H + 1, W + 1:W + 2, :] = jnp.zeros((H, 1, Crgb), f32)
    iq_ref[1:H + 1, 1:W + 1, :] = img_ref[0]

    d1 = d1_ref[0]
    b1 = b1_ref[...]
    wrgbm = wrgbm_ref[0]          # (C, Crgb), torgb modulation already folded in (item 1/12)
    brgb = brgb_ref[...]

    for pi in range(2):
        rtaps = ((0, 0.25), (1, 0.75)) if pi == 0 else ((1, 0.75), (2, 0.25))
        for pj in range(2):
            ctaps = ((0, 0.25), (1, 0.75)) if pj == 0 else ((1, 0.75), (2, 0.25))
            p = pi * 2 + pj
            # ---- conv1 for this output phase: <=5 coarse-offset-grouped matmuls,
            #      K in {C, 2C, 4C}, exact MAC count (items 2, 3, 10)
            acc = None
            for (oy, ox, cs, K, ro) in segs[p]:
                blk = xb_ref[0, oy:oy + H, ox:ox + W, cs:cs + K].reshape(H * W, K)
                contrib = jnp.dot(blk, w1g_ref[ro:ro + K, :], preferred_element_type=f32)
                acc = contrib if acc is None else acc + contrib
            x1p = acc * d1 + b1
            x1p = jnp.where(x1p >= 0.0, x1p, 0.2 * x1p) * SQRT2
            x1_ref[0, :, p * C:(p + 1) * C] = x1p
            # ---- torgb (modulated 1x1 conv, no demodulation), modulation pre-folded
            y = jnp.dot(x1p, wrgbm, preferred_element_type=f32) + brgb
            # ---- img upsample for this phase (only the 4 nonzero FIR taps; gain folded in) + add
            up = None
            for (ro_, rc) in rtaps:
                for (co_, cc) in ctaps:
                    t = float(rc * cc) * iq_ref[ro_:ro_ + H, co_:co_ + W, :]
                    up = t if up is None else up + t
            imgo_ref[0, :, p * Crgb:(p + 1) * Crgb] = y + up.reshape(H * W, Crgb)


# ------------------------------------------------------------------------------------ weight prep
def _conv0_effective_weight(w0):
    """Fold the stride-2 transposed conv (flipped 3x3) and the [1,3,3,1] FIR (gain=4) into one
    3x3 kernel per 2x2 output phase.  Returns (9, Cin, 4*Cout) with phase-major columns."""
    ft = np.array([1.0, 3.0, 3.0, 1.0], np.float32)
    ft = ft / ft.sum() * 2.0                                   # per-axis taps incl. gain: [.25,.75,.75,.25]
    R = np.zeros((2, 3, 3), np.float32)                        # [out row-phase, du+1, ky]
    for pi in range(2):
        for dui, du in enumerate((-1, 0, 1)):
            for ky in range(3):
                a = 2 * du + 1 + ky - pi
                if 0 <= a <= 3:
                    R[pi, dui, ky] = ft[a]
    cout, cin = w0.shape[0], w0.shape[1]
    ew = jnp.einsum('pyk,qxl,ockl->yxcpqo', R, R, w0, precision=_HIGH)   # (3,3,Cin,2,2,Cout)
    return ew.reshape(9, cin, 4 * cout)


def _axis_groups(pp):
    """For output phase `pp` along one axis, group the 3 conv taps by coarse (padded) offset.
    Returns sorted list of (offset, [(input_phase q, tap index k), ...])."""
    groups = {}
    for k in range(3):
        r = pp + k - 1
        q, o = r & 1, (r >> 1) + 1
        groups.setdefault(o, []).append((q, k))
    return sorted(groups.items())


def _conv1_grouped_weights(w1):
    """Group conv1's 9 taps per output phase by coarse spatial offset, concatenating the tap
    weights of each group along K (input-phase channel blocks).  Returns the concatenated weight
    slab (36*C, C) and a static per-phase segment table (oy, ox, ch_start, K, row_offset)."""
    C = w1.shape[1]
    wt = jnp.transpose(w1, (2, 3, 1, 0))                       # (3,3,Cin,Cout): wt[ky,kx] is (C, C)
    blocks, segs = [], []
    row_off = 0
    for pi in range(2):
        rg = _axis_groups(pi)
        for pj in range(2):
            cg = _axis_groups(pj)
            ps = []
            for oy, rtaps in rg:
                rtaps = sorted(rtaps)
                for ox, ctaps in cg:
                    ctaps = sorted(ctaps)
                    if len(rtaps) == 1:
                        # 1 row tap x {1,2} col taps: contiguous channel run starting at 2*qi*C
                        qi, ky = rtaps[0]
                        sub = [wt[ky, kx] for (_qj, kx) in ctaps]
                        cs = (2 * qi + ctaps[0][0]) * C
                        K = len(ctaps) * C
                        blocks.append(jnp.concatenate(sub, axis=0))
                        ps.append((oy, ox, cs, K, row_off))
                        row_off += K
                    elif len(ctaps) == 2:
                        # 2 row taps x 2 col taps: all four input phases, full 4C run
                        sub = [wt[ky, kx] for (_qi, ky) in rtaps for (_qj, kx) in ctaps]
                        blocks.append(jnp.concatenate(sub, axis=0))
                        ps.append((oy, ox, 0, 4 * C, row_off))
                        row_off += 4 * C
                    else:
                        # 2 row taps x 1 col tap: the two phase blocks are not channel-contiguous
                        qj, kx = ctaps[0]
                        for qi, ky in rtaps:
                            blocks.append(wt[ky, kx])
                            ps.append((oy, ox, (2 * qi + qj) * C, C, row_off))
                            row_off += C
            segs.append(tuple(ps))
    return jnp.concatenate(blocks, axis=0), tuple(segs)


# ------------------------------------------------------------------------------------ wrapper
def blend_synthesis_block(params, bg, x, img, ws):
    """Forward pass of BlendSynthesisBlock (NCHW in/out, fp32, eval / fused_modconv path)."""
    f32 = jnp.float32
    N, Cin, H, W = x.shape
    Cout = params['conv0_w'].shape[0]
    Crgb = params['torgb_w'].shape[0]
    Wd = ws.shape[-1]

    # ---- layout plumbing (NCHW -> NHWC / phase layout); 1-px pads now happen inside the kernels
    xn = jnp.transpose(x, (0, 2, 3, 1)).astype(f32)                                 # (N, H, W, Cin)
    imgn = jnp.transpose(img, (0, 2, 3, 1)).astype(f32)                             # (N, H, W, Crgb)
    bg_ph = jnp.transpose(bg.astype(f32).reshape(N, Cout, H, 2, W, 2),
                          (0, 2, 4, 3, 5, 1)).reshape(N, H * W, 4 * Cout)           # (N, H*W, 4*Cout)
    wsf = ws.astype(f32)

    # ---- per-sample style affines + demod coefficients, batched in XLA (item 12)
    inv_wd = 1.0 / float(np.sqrt(Wd))
    s0 = jnp.dot(wsf[:, 0], jnp.transpose(params['conv0_aff_w']), precision=_HIGH) * inv_wd \
        + params['conv0_aff_b']                                                      # (N, Cin)
    w2s0 = jnp.transpose(jnp.sum(params['conv0_w'] ** 2, axis=(2, 3)))               # (Cin, Cout)
    d0 = lax.rsqrt(jnp.dot(s0 * s0, w2s0, precision=_HIGH) + 1e-8)                   # (N, Cout)
    s1 = jnp.dot(wsf[:, 1], jnp.transpose(params['conv1_aff_w']), precision=_HIGH) * inv_wd \
        + params['conv1_aff_b']                                                      # (N, Cout)
    w2s1 = jnp.transpose(jnp.sum(params['conv1_w'] ** 2, axis=(2, 3)))
    d1 = lax.rsqrt(jnp.dot(s1 * s1, w2s1, precision=_HIGH) + 1e-8)                   # (N, Cout)
    s2 = (jnp.dot(wsf[:, 2], jnp.transpose(params['torgb_aff_w']), precision=_HIGH) * inv_wd
          + params['torgb_aff_b']) * (1.0 / float(np.sqrt(Cout)))                    # (N, Cout)

    s0_in = s0.reshape(N, 1, Cin)
    d0_in = d0.reshape(N, 1, Cout)
    s1_in = s1.reshape(N, 1, Cout)
    d1_in = d1.reshape(N, 1, Cout)

    # torgb modulation folded into a per-sample, weight-sized matrix (item 1/12)
    wrgb = jnp.transpose(params['torgb_w'][:, :, 0, 0])                              # (Cout, Crgb)
    wrgb_mod = wrgb[None, :, :] * s2[:, :, None]                                     # (N, Cout, Crgb)

    # ---- weight-sized precomputation (done once at trace time)
    ew0 = _conv0_effective_weight(params['conv0_w'])                                 # (9, Cin, 4*Cout)
    b0 = params['conv0_b'].reshape(1, Cout)
    wv = (params['mask_w'][0, :, 0, 0] * (1.0 / float(np.sqrt(Cout)))).reshape(1, Cout)
    bm = params['mask_b'].reshape(1, 1)
    b1 = params['conv1_b'].reshape(1, Cout)
    brgb = params['torgb_b'].reshape(1, Crgb)
    w1g, segs = _conv1_grouped_weights(params['conv1_w'])                            # (36*Cout, Cout)

    par = pltpu.CompilerParams(dimension_semantics=("parallel",),
                               vmem_limit_bytes=48 * 1024 * 1024)

    # ---- kernel 1: conv0 (+folded FIR) + bias + lrelu + blend (+ conv1 pre-modulation) ----------
    xbp, seg_ph = pl.pallas_call(
        functools.partial(conv0_blend_kernel, H=H, W=W, Cin=Cin, Cout=Cout),
        out_shape=(jax.ShapeDtypeStruct((N, H + 2, W + 2, 4 * Cout), f32),
                   jax.ShapeDtypeStruct((N, H * W, 4), f32)),
        grid=(N,),
        in_specs=[
            pl.BlockSpec((1, 1, Cin), lambda n: (n, 0, 0)),                          # s0
            pl.BlockSpec((1, 1, Cout), lambda n: (n, 0, 0)),                         # d0
            pl.BlockSpec((1, 1, Cout), lambda n: (n, 0, 0)),                         # s1 (folded here)
            pl.BlockSpec((1, H, W, Cin), lambda n: (n, 0, 0, 0)),                    # x (unpadded NHWC)
            pl.BlockSpec((9, Cin, 4 * Cout), lambda n: (0, 0, 0)),                   # FIR-folded conv0 weight
            pl.BlockSpec((1, Cout), lambda n: (0, 0)),                               # conv0 bias
            pl.BlockSpec((1, Cout), lambda n: (0, 0)),                               # blend mask weight
            pl.BlockSpec((1, 1), lambda n: (0, 0)),                                  # blend mask bias
            pl.BlockSpec((1, H * W, 4 * Cout), lambda n: (n, 0, 0)),                 # bg (phase layout)
        ],
        out_specs=(pl.BlockSpec((1, H + 2, W + 2, 4 * Cout), lambda n: (n, 0, 0, 0)),
                   pl.BlockSpec((1, H * W, 4), lambda n: (n, 0, 0))),
        scratch_shapes=[pltpu.VMEM((H + 2, W + 2, Cin), f32)],
        compiler_params=par,
    )(s0_in, d0_in, s1_in, xn, ew0, b0, wv, bm, bg_ph)

    # ---- kernel 2: conv1 (grouped taps) + bias + lrelu + torgb + img upsample/add ---------------
    x1_ph, imgo_ph = pl.pallas_call(
        functools.partial(conv1_torgb_img_kernel, H=H, W=W, C=Cout, Crgb=Crgb, segs=segs),
        out_shape=(jax.ShapeDtypeStruct((N, H * W, 4 * Cout), f32),
                   jax.ShapeDtypeStruct((N, H * W, 4 * Crgb), f32)),
        grid=(N,),
        in_specs=[
            pl.BlockSpec((1, 1, Cout), lambda n: (n, 0, 0)),                         # d1
            pl.BlockSpec((1, H + 2, W + 2, 4 * Cout), lambda n: (n, 0, 0, 0)),       # padded pre-modulated blend
            pl.BlockSpec((36 * Cout, Cout), lambda n: (0, 0)),                       # grouped conv1 taps
            pl.BlockSpec((1, Cout), lambda n: (0, 0)),                               # conv1 bias
            pl.BlockSpec((1, Cout, Crgb), lambda n: (n, 0, 0)),                      # per-sample modulated torgb w
            pl.BlockSpec((1, Crgb), lambda n: (0, 0)),                               # torgb bias
            pl.BlockSpec((1, H, W, Crgb), lambda n: (n, 0, 0, 0)),                   # img (unpadded NHWC)
        ],
        out_specs=(pl.BlockSpec((1, H * W, 4 * Cout), lambda n: (n, 0, 0)),
                   pl.BlockSpec((1, H * W, 4 * Crgb), lambda n: (n, 0, 0))),
        scratch_shapes=[pltpu.VMEM((H + 2, W + 2, Crgb), f32)],
        compiler_params=par,
    )(d1_in, xbp, w1g, b1, wrgb_mod, brgb, imgn)

    # ---- phase layout -> NCHW (API contract; see TODO about chained blocks)
    def phase_to_nchw(t, K):
        t = t.reshape(N, H, W, 2, 2, K)
        t = jnp.transpose(t, (0, 5, 1, 3, 2, 4))
        return t.reshape(N, K, 2 * H, 2 * W)

    return phase_to_nchw(x1_ph, Cout), phase_to_nchw(imgo_ph, Crgb), phase_to_nchw(seg_ph, 1)


# ------------------------------------------------------------------------------------ params / ref
def init_params(key, in_ch, out_ch, w_dim, img_ch):
    ks = jax.random.split(key, 8)
    f32 = jnp.float32
    return dict(
        conv0_w=jax.random.normal(ks[0], (out_ch, in_ch, 3, 3), f32),
        conv0_b=jnp.zeros((out_ch,), f32),
        conv0_aff_w=jax.random.normal(ks[1], (in_ch, w_dim), f32),
        conv0_aff_b=jnp.ones((in_ch,), f32),
        conv1_w=jax.random.normal(ks[2], (out_ch, out_ch, 3, 3), f32),
        conv1_b=jnp.zeros((out_ch,), f32),
        conv1_aff_w=jax.random.normal(ks[3], (out_ch, w_dim), f32),
        conv1_aff_b=jnp.ones((out_ch,), f32),
        torgb_w=jax.random.normal(ks[4], (img_ch, out_ch, 1, 1), f32),
        torgb_b=jnp.zeros((img_ch,), f32),
        torgb_aff_w=jax.random.normal(ks[5], (out_ch, w_dim), f32),
        torgb_aff_b=jnp.ones((out_ch,), f32),
        mask_w=jax.random.normal(ks[6], (1, out_ch, 1, 1), f32),
        mask_b=jnp.zeros((1,), f32),
    )


def reference_forward(params, bg, x, img, ws):
    """Pure-JAX/XLA reference (im2col / zero-upsample formulation) of the same StyleGAN2 math."""
    f32 = jnp.float32
    N, Cin, H, W = x.shape
    Cout = params['conv0_w'].shape[0]
    Crgb = params['torgb_w'].shape[0]
    Wd = ws.shape[-1]
    res = 2 * H

    xn = jnp.transpose(x, (0, 2, 3, 1)).astype(f32)
    bgn = jnp.transpose(bg, (0, 2, 3, 1)).astype(f32)
    imgn = jnp.transpose(img, (0, 2, 3, 1)).astype(f32)

    f = np.outer([1.0, 3.0, 3.0, 1.0], [1.0, 3.0, 3.0, 1.0]).astype(np.float32)
    f = f / f.sum() * 4.0

    def affine(wv, A, b):
        return jnp.dot(wv, jnp.transpose(A), precision=_HIGH) * (1.0 / float(np.sqrt(Wd))) + b

    def im2col(xp, oh):
        cols = []
        for a in range(3):
            for b_ in range(3):
                cols.append(xp[:, a:a + oh, b_:b_ + oh, :])
        return jnp.stack(cols, axis=3).reshape(xp.shape[0], oh * oh, 9 * xp.shape[-1])

    def w2mat(w, flip):
        if flip:
            w = w[:, :, ::-1, ::-1]
        return jnp.transpose(w, (2, 3, 1, 0)).reshape(9 * w.shape[1], w.shape[0])

    w0v, w1v, w2v = ws[:, 0].astype(f32), ws[:, 1].astype(f32), ws[:, 2].astype(f32)

    # conv0
    s0 = affine(w0v, params['conv0_aff_w'], params['conv0_aff_b'])
    wm0 = w2mat(params['conv0_w'], True)[None] * jnp.tile(s0, (1, 9))[:, :, None]
    wm0 = wm0 * lax.rsqrt(jnp.sum(wm0 ** 2, axis=1, keepdims=True) + 1e-8)
    xu = jnp.zeros((N, 2 * H - 1, 2 * W - 1, Cin), f32).at[:, ::2, ::2, :].set(xn)
    xu = jnp.pad(xu, ((0, 0), (2, 2), (2, 2), (0, 0)))
    oh0 = 2 * H + 1
    y0 = jnp.einsum('npk,nko->npo', im2col(xu, oh0), wm0, precision=_HIGH).reshape(N, oh0, oh0, Cout)
    y0 = jnp.pad(y0, ((0, 0), (1, 1), (1, 1), (0, 0)))
    x0 = jnp.zeros((N, res, res, Cout), f32)
    for a in range(4):
        for b_ in range(4):
            x0 = x0 + f[a, b_] * y0[:, a:a + res, b_:b_ + res, :]
    x0 = x0 + params['conv0_b']
    x0 = jnp.where(x0 >= 0.0, x0, 0.2 * x0) * SQRT2
    # blend
    wvm = params['mask_w'][0, :, 0, 0] * (1.0 / float(np.sqrt(Cout)))
    m = jax.nn.sigmoid(jnp.sum(x0 * wvm, axis=-1, keepdims=True) + params['mask_b'])
    xbl = x0 * (1.0 - m) + bgn * m
    # conv1
    s1 = affine(w1v, params['conv1_aff_w'], params['conv1_aff_b'])
    wm1 = w2mat(params['conv1_w'], False)[None] * jnp.tile(s1, (1, 9))[:, :, None]
    wm1 = wm1 * lax.rsqrt(jnp.sum(wm1 ** 2, axis=1, keepdims=True) + 1e-8)
    xp1 = jnp.pad(xbl, ((0, 0), (1, 1), (1, 1), (0, 0)))
    x1 = jnp.einsum('npk,nko->npo', im2col(xp1, res), wm1, precision=_HIGH) + params['conv1_b']
    x1 = (jnp.where(x1 >= 0.0, x1, 0.2 * x1) * SQRT2).reshape(N, res, res, Cout)
    # torgb
    s2 = affine(w2v, params['torgb_aff_w'], params['torgb_aff_b']) * (1.0 / float(np.sqrt(Cout)))
    y = jnp.einsum('nhwc,nc,rc->nhwr', x1, s2, params['torgb_w'][:, :, 0, 0], precision=_HIGH)
    y = y + params['torgb_b']
    # img = upsample2d(img) + y
    iu = jnp.zeros((N, H, 2, W, 2, Crgb), f32).at[:, :, 0, :, 0, :].set(imgn).reshape(N, res, res, Crgb)
    iu = jnp.pad(iu, ((0, 0), (2, 1), (2, 1), (0, 0)))
    io = y
    for a in range(4):
        for b_ in range(4):
            io = io + f[a, b_] * iu[:, a:a + res, b_:b_ + res, :]

    to_nchw = lambda t: jnp.transpose(t, (0, 3, 1, 2))
    return to_nchw(x1), to_nchw(io), to_nchw(m)


# ------------------------------------------------------------------------------------ main
if __name__ == "__main__":
    N, IN_CH, OUT_CH, W_DIM, RES, IMG_CH = 2, 8, 8, 16, 16, 3

    key = jax.random.PRNGKey(0)
    k1, k2, k3, k4 = jax.random.split(key, 4)
    x = jax.random.normal(k1, (N, IN_CH, RES // 2, RES // 2), jnp.float32)
    bg = jax.random.normal(k2, (N, OUT_CH, RES, RES), jnp.float32)
    img = jax.random.normal(k3, (N, IMG_CH, RES // 2, RES // 2), jnp.float32)
    ws = jax.random.normal(k4, (N, 3, W_DIM), jnp.float32)

    params = init_params(jax.random.PRNGKey(42), IN_CH, OUT_CH, W_DIM, IMG_CH)

    fwd = jax.jit(blend_synthesis_block)
    x_out, img_out, seg = jax.block_until_ready(fwd(params, bg, x, img, ws))

    assert x_out.shape == (N, OUT_CH, RES, RES), x_out.shape
    assert img_out.shape == (N, IMG_CH, RES, RES), img_out.shape
    assert seg.shape == (N, 1, RES, RES), seg.shape
    assert x_out.dtype == jnp.float32 and img_out.dtype == jnp.float32 and seg.dtype == jnp.float32
    assert bool(jnp.isfinite(x_out).all())
    assert bool(jnp.isfinite(img_out).all())
    assert bool(jnp.isfinite(seg).all())
    assert bool((seg >= 0.0).all()) and bool((seg <= 1.0).all())

    # numerical check vs. a pure-JAX (XLA) reference of the same StyleGAN2 blend-block math
    x_r, img_r, seg_r = jax.block_until_ready(jax.jit(reference_forward)(params, bg, x, img, ws))
    np.testing.assert_allclose(np.asarray(x_out), np.asarray(x_r), rtol=5e-3, atol=5e-3)
    np.testing.assert_allclose(np.asarray(img_out), np.asarray(img_r), rtol=5e-3, atol=5e-3)
    np.testing.assert_allclose(np.asarray(seg), np.asarray(seg_r), rtol=5e-3, atol=5e-3)

    print("KERNEL_OK")
</pallas_src>

<mosaic_0001>
module attributes {stable_mosaic.version = 11 : i64} {
  func.func @conv0_blend_kernel(%arg0: i32, %arg1: memref<1x1x8xf32, #tpu.memory_space<vmem>>, %arg2: memref<1x1x8xf32, #tpu.memory_space<vmem>>, %arg3: memref<1x1x8xf32, #tpu.memory_space<vmem>>, %arg4: memref<1x8x8x8xf32, #tpu.memory_space<vmem>>, %arg5: memref<9x8x32xf32, #tpu.memory_space<vmem>>, %arg6: memref<1x8xf32, #tpu.memory_space<vmem>>, %arg7: memref<1x8xf32, #tpu.memory_space<vmem>>, %arg8: memref<1x1xf32, #tpu.memory_space<vmem>>, %arg9: memref<1x64x32xf32, #tpu.memory_space<vmem>>, %arg10: memref<1x10x10x32xf32, #tpu.memory_space<vmem>>, %arg11: memref<1x64x4xf32, #tpu.memory_space<vmem>>, %arg12: memref<10x10x8xf32, #tpu.memory_space<vmem>>) attributes {dimension_semantics = [#tpu.dimension_semantics<parallel>], iteration_bounds = array<i64: 2>, scalar_prefetch = 0 : i64, scratch_operands = 1 : i64, tpu.core_type = #tpu.core_type<tc>, window_params = [{transform_indices = @transform_0, window_bounds = array<i64: 1, 1, 8>}, {transform_indices = @transform_1, window_bounds = array<i64: 1, 1, 8>}, {transform_indices = @transform_2, window_bounds = array<i64: 1, 1, 8>}, {transform_indices = @transform_3, window_bounds = array<i64: 1, 8, 8, 8>}, {pipeline_mode = #tpu.pipeline_mode<synchronous>, transform_indices = @transform_4, window_bounds = array<i64: 9, 8, 32>}, {pipeline_mode = #tpu.pipeline_mode<synchronous>, transform_indices = @transform_5, window_bounds = array<i64: 1, 8>}, {pipeline_mode = #tpu.pipeline_mode<synchronous>, transform_indices = @transform_6, window_bounds = array<i64: 1, 8>}, {pipeline_mode = #tpu.pipeline_mode<synchronous>, transform_indices = @transform_7, window_bounds = array<i64: 1, 1>}, {transform_indices = @transform_8, window_bounds = array<i64: 1, 64, 32>}, {transform_indices = @transform_9, window_bounds = array<i64: 1, 10, 10, 32>}, {transform_indices = @transform_10, window_bounds = array<i64: 1, 64, 4>}]} {
    %cst = arith.constant 0.000000e+00 : f32
    %0 = vector.broadcast %cst : f32 to vector<1x10x8xf32>
    %c0 = arith.constant 0 : index
    %c0_0 = arith.constant 0 : index
    %c0_1 = arith.constant 0 : index
    %1 = vector.load %arg12[%c0, %c0_0, %c0_1] : memref<10x10x8xf32, #tpu.memory_space<vmem>>, vector<1x10x8xf32>
    tpu.vector_store %arg12[%c0, %c0_0, %c0_1], %0 {strides = array<i32>} : memref<10x10x8xf32, #tpu.memory_space<vmem>>, vector<1x10x8xf32>,
    %cst_2 = arith.constant 0.000000e+00 : f32
    %2 = vector.broadcast %cst_2 : f32 to vector<1x10x8xf32>
    %c9 = arith.constant 9 : index
    %c0_3 = arith.constant 0 : index
    %c0_4 = arith.constant 0 : index
    %3 = vector.load %arg12[%c9, %c0_3, %c0_4] : memref<10x10x8xf32, #tpu.memory_space<vmem>>, vector<1x10x8xf32>
    tpu.vector_store %arg12[%c9, %c0_3, %c0_4], %2 {strides = array<i32>} : memref<10x10x8xf32, #tpu.memory_space<vmem>>, vector<1x10x8xf32>,
    %cst_5 = arith.constant 0.000000e+00 : f32
    %4 = vector.broadcast %cst_5 : f32 to vector<8x1x8xf32>
    %c1 = arith.constant 1 : index
    %c0_6 = arith.constant 0 : index
    %c0_7 = arith.constant 0 : index
    %5 = vector.load %arg12[%c1, %c0_6, %c0_7] : memref<10x10x8xf32, #tpu.memory_space<vmem>>, vector<8x1x8xf32>
    tpu.vector_store %arg12[%c1, %c0_6, %c0_7], %4 {strides = array<i32>} : memref<10x10x8xf32, #tpu.memory_space<vmem>>, vector<8x1x8xf32>,
    %cst_8 = arith.constant 0.000000e+00 : f32
    %6 = vector.broadcast %cst_8 : f32 to vector<8x1x8xf32>
    %c1_9 = arith.constant 1 : index
    %c9_10 = arith.constant 9 : index
    %c0_11 = arith.constant 0 : index
    %7 = vector.load %arg12[%c1_9, %c9_10, %c0_11] : memref<10x10x8xf32, #tpu.memory_space<vmem>>, vector<8x1x8xf32>
    tpu.vector_store %arg12[%c1_9, %c9_10, %c0_11], %6 {strides = array<i32>} : memref<10x10x8xf32, #tpu.memory_space<vmem>>, vector<8x1x8xf32>,
    %c0_12 = arith.constant 0 : index
    %c0_13 = arith.constant 0 : index
    %c0_14 = arith.constant 0 : index
    %c0_15 = arith.constant 0 : index
    %8 = vector.load %arg4[%c0_12, %c0_13, %c0_14, %c0_15] : memref<1x8x8x8xf32, #tpu.memory_space<vmem>>, vector<1x8x8x8xf32>
    %9 = vector.shape_cast %8 : vector<1x8x8x8xf32> to vector<8x8x8xf32>
    %c0_16 = arith.constant 0 : index
    %c0_17 = arith.constant 0 : index
    %c0_18 = arith.constant 0 : index
    %10 = vector.load %arg1[%c0_16, %c0_17, %c0_18] : memref<1x1x8xf32, #tpu.memory_space<vmem>>, vector<1x1x8xf32>
    %11 = vector.shape_cast %10 : vector<1x1x8xf32> to vector<1x8xf32>
    %12 = vector.shape_cast %11 : vector<1x8xf32> to vector<1x1x8xf32>
    %13 = vector.broadcast %12 : vector<1x1x8xf32> to vector<8x8x8xf32>
    %14 = arith.mulf %9, %13 : vector<8x8x8xf32>
    %c1_19 = arith.constant 1 : index
    %c1_20 = arith.constant 1 : index
    %c0_21 = arith.constant 0 : index
    %15 = vector.load %arg12[%c1_19, %c1_20, %c0_21] : memref<10x10x8xf32, #tpu.memory_space<vmem>>, vector<8x8x8xf32>
    tpu.vector_store %arg12[%c1_19, %c1_20, %c0_21], %14 {strides = array<i32>} : memref<10x10x8xf32, #tpu.memory_space<vmem>>, vector<8x8x8xf32>,
    %c0_22 = arith.constant 0 : index
    %c0_23 = arith.constant 0 : index
    %c0_24 = arith.constant 0 : index
    %16 = vector.load %arg12[%c0_22, %c0_23, %c0_24] : memref<10x10x8xf32, #tpu.memory_space<vmem>>, vector<8x8x8xf32>
    %17 = vector.shape_cast %16 : vector<8x8x8xf32> to vector<64x8xf32>
    %c0_25 = arith.constant 0 : index
    %c0_26 = arith.constant 0 : index
    %c0_27 = arith.constant 0 : index
    %18 = vector.load %arg5[%c0_25, %c0_26, %c0_27] : memref<9x8x32xf32, #tpu.memory_space<vmem>>, vector<1x8x32xf32>
    %19 = vector.shape_cast %18 : vector<1x8x32xf32> to vector<8x32xf32>
    %cst_28 = arith.constant dense<0.000000e+00> : vector<64x32xf32>
    %20 = tpu.matmul %17, %19, %cst_28 {dimension_numbers = #tpu.dot_dimension_numbers<[1], [0], [0], [1], [0, 0, 1, 1], [], []>} : vector<64x8xf32>, vector<8x32xf32>, vector<64x32xf32> -> vector<64x32xf32>
    %c0_29 = arith.constant 0 : index
    %c1_30 = arith.constant 1 : index
    %c0_31 = arith.constant 0 : index
    %21 = vector.load %arg12[%c0_29, %c1_30, %c0_31] : memref<10x10x8xf32, #tpu.memory_space<vmem>>, vector<8x8x8xf32>
    %22 = vector.shape_cast %21 : vector<8x8x8xf32> to vector<64x8xf32>
    %c1_32 = arith.constant 1 : index
    %c0_33 = arith.constant 0 : index
    %c0_34 = arith.constant 0 : index
    %23 = vector.load %arg5[%c1_32, %c0_33, %c0_34] : memref<9x8x32xf32, #tpu.memory_space<vmem>>, vector<1x8x32xf32>
    %24 = vector.shape_cast %23 : vector<1x8x32xf32> to vector<8x32xf32>
    %cst_35 = arith.constant dense<0.000000e+00> : vector<64x32xf32>
    %25 = tpu.matmul %22, %24, %cst_35 {dimension_numbers = #tpu.dot_dimension_numbers<[1], [0], [0], [1], [0, 0, 1, 1], [], []>} : vector<64x8xf32>, vector<8x32xf32>, vector<64x32xf32> -> vector<64x32xf32>
    %26 = arith.addf %20, %25 : vector<64x32xf32>
    %c0_36 = arith.constant 0 : index
    %c2 = arith.constant 2 : index
    %c0_37 = arith.constant 0 : index
    %27 = vector.load %arg12[%c0_36, %c2, %c0_37] : memref<10x10x8xf32, #tpu.memory_space<vmem>>, vector<8x8x8xf32>
    %28 = vector.shape_cast %27 : vector<8x8x8xf32> to vector<64x8xf32>
    %c2_38 = arith.constant 2 : index
    %c0_39 = arith.constant 0 : index
    %c0_40 = arith.constant 0 : index
    %29 = vector.load %arg5[%c2_38, %c0_39, %c0_40] : memref<9x8x32xf32, #tpu.memory_space<vmem>>, vector<1x8x32xf32>
    %30 = vector.shape_cast %29 : vector<1x8x32xf32> to vector<8x32xf32>
    %cst_41 = arith.constant dense<0.000000e+00> : vector<64x32xf32>
    %31 = tpu.matmul %28, %30, %cst_41 {dimension_numbers = #tpu.dot_dimension_numbers<[1], [0], [0], [1], [0, 0, 1, 1], [], []>} : vector<64x8xf32>, vector<8x32xf32>, vector<64x32xf32> -> vector<64x32xf32>
    %32 = arith.addf %26, %31 : vector<64x32xf32>
    %c1_42 = arith.constant 1 : index
    %c0_43 = arith.constant 0 : index
    %c0_44 = arith.constant 0 : index
    %33 = vector.load %arg12[%c1_42, %c0_43, %c0_44] : memref<10x10x8xf32, #tpu.memory_space<vmem>>, vector<8x8x8xf32>
    %34 = vector.shape_cast %33 : vector<8x8x8xf32> to vector<64x8xf32>
    %c3 = arith.constant 3 : index
    %c0_45 = arith.constant 0 : index
    %c0_46 = arith.constant 0 : index
    %35 = vector.load %arg5[%c3, %c0_45, %c0_46] : memref<9x8x32xf32, #tpu.memory_space<vmem>>, vector<1x8x32xf32>
    %36 = vector.shape_cast %35 : vector<1x8x32xf32> to vector<8x32xf32>
    %cst_47 = arith.constant dense<0.000000e+00> : vector<64x32xf32>
    %37 = tpu.matmul %34, %36, %cst_47 {dimension_numbers = #tpu.dot_dimension_numbers<[1], [0], [0], [1], [0, 0, 1, 1], [], []>} : vector<64x8xf32>, vector<8x32xf32>, vector<64x32xf32> -> vector<64x32xf32>
    %38 = arith.addf %32, %37 : vector<64x32xf32>
    %c1_48 = arith.constant 1 : index
    %c1_49 = arith.constant 1 : index
    %c0_50 = arith.constant 0 : index
    %39 = vector.load %arg12[%c1_48, %c1_49, %c0_50] : memref<10x10x8xf32, #tpu.memory_space<vmem>>, vector<8x8x8xf32>
    %40 = vector.shape_cast %39 : vector<8x8x8xf32> to vector<64x8xf32>
    %c4 = arith.constant 4 : index
    %c0_51 = arith.constant 0 : index
    %c0_52 = arith.constant 0 : index
    %41 = vector.load %arg5[%c4, %c0_51, %c0_52] : memref<9x8x32xf32, #tpu.memory_space<vmem>>, vector<1x8x32xf32>
    %42 = vector.shape_cast %41 : vector<1x8x32xf32> to vector<8x32xf32>
    %cst_53 = arith.constant dense<0.000000e+00> : vector<64x32xf32>
    %43 = tpu.matmul %40, %42, %cst_53 {dimension_numbers = #tpu.dot_dimension_numbers<[1], [0], [0], [1], [0, 0, 1, 1], [], []>} : vector<64x8xf32>, vector<8x32xf32>, vector<64x32xf32> -> vector<64x32xf32>
    %44 = arith.addf %38, %43 : vector<64x32xf32>
    %c1_54 = arith.constant 1 : index
    %c2_55 = arith.constant 2 : index
    %c0_56 = arith.constant 0 : index
    %45 = vector.load %arg12[%c1_54, %c2_55, %c0_56] : memref<10x10x8xf32, #tpu.memory_space<vmem>>, vector<8x8x8xf32>
    %46 = vector.shape_cast %45 : vector<8x8x8xf32> to vector<64x8xf32>
    %c5 = arith.constant 5 : index
    %c0_57 = arith.constant 0 : index
    %c0_58 = arith.constant 0 : index
    %47 = vector.load %arg5[%c5, %c0_57, %c0_58] : memref<9x8x32xf32, #tpu.memory_space<vmem>>, vector<1x8x32xf32>
    %48 = vector.shape_cast %47 : vector<1x8x32xf32> to vector<8x32xf32>
    %cst_59 = arith.constant dense<0.000000e+00> : vector<64x32xf32>
    %49 = tpu.matmul %46, %48, %cst_59 {dimension_numbers = #tpu.dot_dimension_numbers<[1], [0], [0], [1], [0, 0, 1, 1], [], []>} : vector<64x8xf32>, vector<8x32xf32>, vector<64x32xf32> -> vector<64x32xf32>
    %50 = arith.addf %44, %49 : vector<64x32xf32>
    %c2_60 = arith.constant 2 : index
    %c0_61 = arith.constant 0 : index
    %c0_62 = arith.constant 0 : index
    %51 = vector.load %arg12[%c2_60, %c0_61, %c0_62] : memref<10x10x8xf32, #tpu.memory_space<vmem>>, vector<8x8x8xf32>
    %52 = vector.shape_cast %51 : vector<8x8x8xf32> to vector<64x8xf32>
    %c6 = arith.constant 6 : index
    %c0_63 = arith.constant 0 : index
    %c0_64 = arith.constant 0 : index
    %53 = vector.load %arg5[%c6, %c0_63, %c0_64] : memref<9x8x32xf32, #tpu.memory_space<vmem>>, vector<1x8x32xf32>
    %54 = vector.shape_cast %53 : vector<1x8x32xf32> to vector<8x32xf32>
    %cst_65 = arith.constant dense<0.000000e+00> : vector<64x32xf32>
    %55 = tpu.matmul %52, %54, %cst_65 {dimension_numbers = #tpu.dot_dimension_numbers<[1], [0], [0], [1], [0, 0, 1, 1], [], []>} : vector<64x8xf32>, vector<8x32xf32>, vector<64x32xf32> -> vector<64x32xf32>
    %56 = arith.addf %50, %55 : vector<64x32xf32>
    %c2_66 = arith.constant 2 : index
    %c1_67 = arith.constant 1 : index
    %c0_68 = arith.constant 0 : index
    %57 = vector.load %arg12[%c2_66, %c1_67, %c0_68] : memref<10x10x8xf32, #tpu.memory_space<vmem>>, vector<8x8x8xf32>
    %58 = vector.shape_cast %57 : vector<8x8x8xf32> to vector<64x8xf32>
    %c7 = arith.constant 7 : index
    %c0_69 = arith.constant 0 : index
    %c0_70 = arith.constant 0 : index
    %59 = vector.load %arg5[%c7, %c0_69, %c0_70] : memref<9x8x32xf32, #tpu.memory_space<vmem>>, vector<1x8x32xf32>
    %60 = vector.shape_cast %59 : vector<1x8x32xf32> to vector<8x32xf32>
    %cst_71 = arith.constant dense<0.000000e+00> : vector<64x32xf32>
    %61 = tpu.matmul %58, %60, %cst_71 {dimension_numbers = #tpu.dot_dimension_numbers<[1], [0], [0], [1], [0, 0, 1, 1], [], []>} : vector<64x8xf32>, vector<8x32xf32>, vector<64x32xf32> -> vector<64x32xf32>
    %62 = arith.addf %56, %61 : vector<64x32xf32>
    %c2_72 = arith.constant 2 : index
    %c2_73 = arith.constant 2 : index
    %c0_74 = arith.constant 0 : index
    %63 = vector.load %arg12[%c2_72, %c2_73, %c0_74] : memref<10x10x8xf32, #tpu.memory_space<vmem>>, vector<8x8x8xf32>
    %64 = vector.shape_cast %63 : vector<8x8x8xf32> to vector<64x8xf32>
    %c8 = arith.constant 8 : index
    %c0_75 = arith.constant 0 : index
    %c0_76 = arith.constant 0 : index
    %65 = vector.load %arg5[%c8, %c0_75, %c0_76] : memref<9x8x32xf32, #tpu.memory_space<vmem>>, vector<1x8x32xf32>
    %66 = vector.shape_cast %65 : vector<1x8x32xf32> to vector<8x32xf32>
    %cst_77 = arith.constant dense<0.000000e+00> : vector<64x32xf32>
    %67 = tpu.matmul %64, %66, %cst_77 {dimension_numbers = #tpu.dot_dimension_numbers<[1], [0], [0], [1], [0, 0, 1, 1], [], []>} : vector<64x8xf32>, vector<8x32xf32>, vector<64x32xf32> -> vector<64x32xf32>
    %68 = arith.addf %62, %67 : vector<64x32xf32>
    %cst_78 = arith.constant 0.000000e+00 : f32
    %69 = vector.broadcast %cst_78 : f32 to vector<1x10x32xf32>
    %c0_79 = arith.constant 0 : index
    %c0_80 = arith.constant 0 : index
    %c0_81 = arith.constant 0 : index
    %c0_82 = arith.constant 0 : index
    %70 = vector.load %arg10[%c0_79, %c0_80, %c0_81, %c0_82] : memref<1x10x10x32xf32, #tpu.memory_space<vmem>>, vector<1x1x10x32xf32>
    %71 = vector.shape_cast %70 : vector<1x1x10x32xf32> to vector<1x10x32xf32>
    %72 = vector.shape_cast %69 : vector<1x10x32xf32> to vector<1x1x10x32xf32>
    tpu.vector_store %arg10[%c0_79, %c0_80, %c0_81, %c0_82], %72 {strides = array<i32>} : memref<1x10x10x32xf32, #tpu.memory_space<vmem>>, vector<1x1x10x32xf32>,
    %cst_83 = arith.constant 0.000000e+00 : f32
    %73 = vector.broadcast %cst_83 : f32 to vector<1x10x32xf32>
    %c0_84 = arith.constant 0 : index
    %c9_85 = arith.constant 9 : index
    %c0_86 = arith.constant 0 : index
    %c0_87 = arith.constant 0 : index
    %74 = vector.load %arg10[%c0_84, %c9_85, %c0_86, %c0_87] : memref<1x10x10x32xf32, #tpu.memory_space<vmem>>, vector<1x1x10x32xf32>
    %75 = vector.shape_cast %74 : vector<1x1x10x32xf32> to vector<1x10x32xf32>
    %76 = vector.shape_cast %73 : vector<1x10x32xf32> to vector<1x1x10x32xf32>
    tpu.vector_store %arg10[%c0_84, %c9_85, %c0_86, %c0_87], %76 {strides = array<i32>} : memref<1x10x10x32xf32, #tpu.memory_space<vmem>>, vector<1x1x10x32xf32>,
    %cst_88 = arith.constant 0.000000e+00 : f32
    %77 = vector.broadcast %cst_88 : f32 to vector<8x1x32xf32>
    %c0_89 = arith.constant 0 : index
    %c1_90 = arith.constant 1 : index
    %c0_91 = arith.constant 0 : index
    %c0_92 = arith.constant 0 : index
    %78 = vector.load %arg10[%c0_89, %c1_90, %c0_91, %c0_92] : memref<1x10x10x32xf32, #tpu.memory_space<vmem>>, vector<1x8x1x32xf32>
    %79 = vector.shape_cast %78 : vector<1x8x1x32xf32> to vector<8x1x32xf32>
    %80 = vector.shape_cast %77 : vector<8x1x32xf32> to vector<1x8x1x32xf32>
    tpu.vector_store %arg10[%c0_89, %c1_90, %c0_91, %c0_92], %80 {strides = array<i32>} : memref<1x10x10x32xf32, #tpu.memory_space<vmem>>, vector<1x8x1x32xf32>,
    %cst_93 = arith.constant 0.000000e+00 : f32
    %81 = vector.broadcast %cst_93 : f32 to vector<8x1x32xf32>
    %c0_94 = arith.constant 0 : index
    %c1_95 = arith.constant 1 : index
    %c9_96 = arith.constant 9 : index
    %c0_97 = arith.constant 0 : index
    %82 = vector.load %arg10[%c0_94, %c1_95, %c9_96, %c0_97] : memref<1x10x10x32xf32, #tpu.memory_space<vmem>>, vector<1x8x1x32xf32>
    %83 = vector.shape_cast %82 : vector<1x8x1x32xf32> to vector<8x1x32xf32>
    %84 = vector.shape_cast %81 : vector<8x1x32xf32> to vector<1x8x1x32xf32>
    tpu.vector_store %arg10[%c0_94, %c1_95, %c9_96, %c0_97], %84 {strides = array<i32>} : memref<1x10x10x32xf32, #tpu.memory_space<vmem>>, vector<1x8x1x32xf32>,
    %c0_98 = arith.constant 0 : index
    %c0_99 = arith.constant 0 : index
    %c0_100 = arith.constant 0 : index
    %85 = vector.load %arg2[%c0_98, %c0_99, %c0_100] : memref<1x1x8xf32, #tpu.memory_space<vmem>>, vector<1x1x8xf32>
    %86 = vector.shape_cast %85 : vector<1x1x8xf32> to vector<1x8xf32>
    %c0_101 = arith.constant 0 : index
    %c0_102 = arith.constant 0 : index
    %87 = vector.load %arg6[%c0_101, %c0_102] : memref<1x8xf32, #tpu.memory_space<vmem>>, vector<1x8xf32>
    %c0_103 = arith.constant 0 : index
    %c0_104 = arith.constant 0 : index
    %88 = vector.load %arg7[%c0_103, %c0_104] : memref<1x8xf32, #tpu.memory_space<vmem>>, vector<1x8xf32>
    %c0_105 = arith.constant 0 : index
    %c0_106 = arith.constant 0 : index
    %89 = vector.load %arg8[%c0_105, %c0_106] : memref<1x1xf32, #tpu.memory_space<vmem>>, vector<1x1xf32>
    %c0_107 = arith.constant 0 : index
    %c0_108 = arith.constant 0 : index
    %c0_109 = arith.constant 0 : index
    %90 = vector.load %arg3[%c0_107, %c0_108, %c0_109] : memref<1x1x8xf32, #tpu.memory_space<vmem>>, vector<1x1x8xf32>
    %91 = vector.shape_cast %90 : vector<1x1x8xf32> to vector<1x8xf32>
    %92 = vector.extract_strided_slice %68 {offsets = [0, 0], sizes = [64, 8], strides = [1, 1]} : vector<64x32xf32> to vector<64x8xf32>
    %93 = vector.broadcast %86 : vector<1x8xf32> to vector<64x8xf32>
    %94 = arith.mulf %92, %93 : vector<64x8xf32>
    %95 = vector.broadcast %87 : vector<1x8xf32> to vector<64x8xf32>
    %96 = arith.addf %94, %95 : vector<64x8xf32>
    %cst_110 = arith.constant 0.000000e+00 : f32
    %97 = vector.broadcast %cst_110 : f32 to vector<64x8xf32>
    %98 = arith.cmpf oge, %96, %97 : vector<64x8xf32>
    %cst_111 = arith.constant 2.000000e-01 : f32
    %99 = vector.broadcast %cst_111 : f32 to vector<64x8xf32>
    %100 = arith.mulf %99, %96 : vector<64x8xf32>
    %101 = arith.select %98, %96, %100 : vector<64x8xi1>, vector<64x8xf32>
    %cst_112 = arith.constant 1.41421354 : f32
    %102 = vector.broadcast %cst_112 : f32 to vector<64x8xf32>
    %103 = arith.mulf %101, %102 : vector<64x8xf32>
    %104 = vector.broadcast %88 : vector<1x8xf32> to vector<64x8xf32>
    %105 = arith.mulf %103, %104 : vector<64x8xf32>
    %cst_113 = arith.constant dense<0.000000e+00> : vector<64xf32>
    %106 = vector.multi_reduction <add>, %105, %cst_113 [1] : vector<64x8xf32> to vector<64xf32>
    %107 = vector.shape_cast %106 : vector<64xf32> to vector<64x1xf32>
    %108 = vector.broadcast %89 : vector<1x1xf32> to vector<64x1xf32>
    %109 = arith.addf %107, %108 : vector<64x1xf32>
    %110 = arith.negf %109 : vector<64x1xf32>
    %111 = math.exp %110 : vector<64x1xf32>
    %cst_114 = arith.constant 1.000000e+00 : f32
    %112 = vector.broadcast %cst_114 : f32 to vector<64x1xf32>
    %113 = arith.addf %112, %111 : vector<64x1xf32>
    %114 = arith.divf %112, %113 : vector<64x1xf32>
    %cst_115 = arith.constant 1.000000e+00 : f32
    %115 = vector.broadcast %cst_115 : f32 to vector<64x1xf32>
    %116 = arith.subf %115, %114 : vector<64x1xf32>
    %117 = vector.broadcast %116 : vector<64x1xf32> to vector<64x8xf32>
    %118 = arith.mulf %103, %117 : vector<64x8xf32>
    %c0_116 = arith.constant 0 : index
    %c0_117 = arith.constant 0 : index
    %c0_118 = arith.constant 0 : index
    %119 = vector.load %arg9[%c0_116, %c0_117, %c0_118] : memref<1x64x32xf32, #tpu.memory_space<vmem>>, vector<1x64x8xf32>
    %120 = vector.shape_cast %119 : vector<1x64x8xf32> to vector<64x8xf32>
    %121 = vector.broadcast %114 : vector<64x1xf32> to vector<64x8xf32>
    %122 = arith.mulf %120, %121 : vector<64x8xf32>
    %123 = arith.addf %118, %122 : vector<64x8xf32>
    %124 = vector.broadcast %91 : vector<1x8xf32> to vector<64x8xf32>
    %125 = arith.mulf %123, %124 : vector<64x8xf32>
    %126 = vector.shape_cast %125 : vector<64x8xf32> to vector<8x8x8xf32>
    %c0_119 = arith.constant 0 : index
    %c1_120 = arith.constant 1 : index
    %c1_121 = arith.constant 1 : index
    %c0_122 = arith.constant 0 : index
    %127 = vector.load %arg10[%c0_119, %c1_120, %c1_121, %c0_122] : memref<1x10x10x32xf32, #tpu.memory_space<vmem>>, vector<1x8x8x8xf32>
    %128 = vector.shape_cast %127 : vector<1x8x8x8xf32> to vector<8x8x8xf32>
    %129 = vector.shape_cast %126 : vector<8x8x8xf32> to vector<1x8x8x8xf32>
    tpu.vector_store %arg10[%c0_119, %c1_120, %c1_121, %c0_122], %129 {strides = array<i32>} : memref<1x10x10x32xf32, #tpu.memory_space<vmem>>, vector<1x8x8x8xf32>,
    %c0_123 = arith.constant 0 : index
    %c0_124 = arith.constant 0 : index
    %c0_125 = arith.constant 0 : index
    %130 = vector.load %arg11[%c0_123, %c0_124, %c0_125] : memref<1x64x4xf32, #tpu.memory_space<vmem>>, vector<1x64x1xf32>
    %131 = vector.shape_cast %130 : vector<1x64x1xf32> to vector<64x1xf32>
    %132 = vector.shape_cast %114 : vector<64x1xf32> to vector<1x64x1xf32>
    tpu.vector_store %arg11[%c0_123, %c0_124, %c0_125], %132 {strides = array<i32>} : memref<1x64x4xf32, #tpu.memory_space<vmem>>, vector<1x64x1xf32>,
    %133 = vector.extract_strided_slice %68 {offsets = [0, 8], sizes = [64, 8], strides = [1, 1]} : vector<64x32xf32> to vector<64x8xf32>
    %134 = vector.broadcast %86 : vector<1x8xf32> to vector<64x8xf32>
    %135 = arith.mulf %133, %134 : vector<64x8xf32>
    %136 = vector.broadcast %87 : vector<1x8xf32> to vector<64x8xf32>
    %137 = arith.addf %135, %136 : vector<64x8xf32>
    %cst_126 = arith.constant 0.000000e+00 : f32
    %138 = vector.broadcast %cst_126 : f32 to vector<64x8xf32>
    %139 = arith.cmpf oge, %137, %138 : vector<64x8xf32>
    %cst_127 = arith.constant 2.000000e-01 : f32
    %140 = vector.broadcast %cst_127 : f32 to vector<64x8xf32>
    %141 = arith.mulf %140, %137 : vector<64x8xf32>
    %142 = arith.select %139, %137, %141 : vector<64x8xi1>, vector<64x8xf32>
    %cst_128 = arith.constant 1.41421354 : f32
    %143 = vector.broadcast %cst_128 : f32 to vector<64x8xf32>
    %144 = arith.mulf %142, %143 : vector<64x8xf32>
    %145 = vector.broadcast %88 : vector<1x8xf32> to vector<64x8xf32>
    %146 = arith.mulf %144, %145 : vector<64x8xf32>
    %cst_129 = arith.constant dense<0.000000e+00> : vector<64xf32>
    %147 = vector.multi_reduction <add>, %146, %cst_129 [1] : vector<64x8xf32> to vector<64xf32>
    %148 = vector.shape_cast %147 : vector<64xf32> to vector<64x1xf32>
    %149 = vector.broadcast %89 : vector<1x1xf32> to vector<64x1xf32>
    %150 = arith.addf %148, %149 : vector<64x1xf32>
    %151 = arith.negf %150 : vector<64x1xf32>
    %152 = math.exp %151 : vector<64x1xf32>
    %cst_130 = arith.constant 1.000000e+00 : f32
    %153 = vector.broadcast %cst_130 : f32 to vector<64x1xf32>
    %154 = arith.addf %153, %152 : vector<64x1xf32>
    %155 = arith.divf %153, %154 : vector<64x1xf32>
    %cst_131 = arith.constant 1.000000e+00 : f32
    %156 = vector.broadcast %cst_131 : f32 to vector<64x1xf32>
    %157 = arith.subf %156, %155 : vector<64x1xf32>
    %158 = vector.broadcast %157 : vector<64x1xf32> to vector<64x8xf32>
    %159 = arith.mulf %144, %158 : vector<64x8xf32>
    %c0_132 = arith.constant 0 : index
    %c0_133 = arith.constant 0 : index
    %c8_134 = arith.constant 8 : index
    %160 = vector.load %arg9[%c0_132, %c0_133, %c8_134] : memref<1x64x32xf32, #tpu.memory_space<vmem>>, vector<1x64x8xf32>
    %161 = vector.shape_cast %160 : vector<1x64x8xf32> to vector<64x8xf32>
    %162 = vector.broadcast %155 : vector<64x1xf32> to vector<64x8xf32>
    %163 = arith.mulf %161, %162 : vector<64x8xf32>
    %164 = arith.addf %159, %163 : vector<64x8xf32>
    %165 = vector.broadcast %91 : vector<1x8xf32> to vector<64x8xf32>
    %166 = arith.mulf %164, %165 : vector<64x8xf32>
    %167 = vector.shape_cast %166 : vector<64x8xf32> to vector<8x8x8xf32>
    %c0_135 = arith.constant 0 : index
    %c1_136 = arith.constant 1 : index
    %c1_137 = arith.constant 1 : index
    %c8_138 = arith.constant 8 : index
    %168 = vector.load %arg10[%c0_135, %c1_136, %c1_137, %c8_138] : memref<1x10x10x32xf32, #tpu.memory_space<vmem>>, vector<1x8x8x8xf32>
    %169 = vector.shape_cast %168 : vector<1x8x8x8xf32> to vector<8x8x8xf32>
    %170 = vector.shape_cast %167 : vector<8x8x8xf32> to vector<1x8x8x8xf32>
    tpu.vector_store %arg10[%c0_135, %c1_136, %c1_137, %c8_138], %170 {strides = array<i32>} : memref<1x10x10x32xf32, #tpu.memory_space<vmem>>, vector<1x8x8x8xf32>,
    %c0_139 = arith.constant 0 : index
    %c0_140 = arith.constant 0 : index
    %c1_141 = arith.constant 1 : index
    %171 = vector.load %arg11[%c0_139, %c0_140, %c1_141] : memref<1x64x4xf32, #tpu.memory_space<vmem>>, vector<1x64x1xf32>
    %172 = vector.shape_cast %171 : vector<1x64x1xf32> to vector<64x1xf32>
    %173 = vector.shape_cast %155 : vector<64x1xf32> to vector<1x64x1xf32>
    tpu.vector_store %arg11[%c0_139, %c0_140, %c1_141], %173 {strides = array<i32>} : memref<1x64x4xf32, #tpu.memory_space<vmem>>, vector<1x64x1xf32>,
    %174 = vector.extract_strided_slice %68 {offsets = [0, 16], sizes = [64, 8], strides = [1, 1]} : vector<64x32xf32> to vector<64x8xf32>
    %175 = vector.broadcast %86 : vector<1x8xf32> to vector<64x8xf32>
    %176 = arith.mulf %174, %175 : vector<64x8xf32>
    %177 = vector.broadcast %87 : vector<1x8xf32> to vector<64x8xf32>
    %178 = arith.addf %176, %177 : vector<64x8xf32>
    %cst_142 = arith.constant 0.000000e+00 : f32
    %179 = vector.broadcast %cst_142 : f32 to vector<64x8xf32>
    %180 = arith.cmpf oge, %178, %179 : vector<64x8xf32>
    %cst_143 = arith.constant 2.000000e-01 : f32
    %181 = vector.broadcast %cst_143 : f32 to vector<64x8xf32>
    %182 = arith.mulf %181, %178 : vector<64x8xf32>
    %183 = arith.select %180, %178, %182 : vector<64x8xi1>, vector<64x8xf32>
    %cst_144 = arith.constant 1.41421354 : f32
    %184 = vector.broadcast %cst_144 : f32 to vector<64x8xf32>
    %185 = arith.mulf %183, %184 : vector<64x8xf32>
    %186 = vector.broadcast %88 : vector<1x8xf32> to vector<64x8xf32>
    %187 = arith.mulf %185, %186 : vector<64x8xf32>
    %cst_145 = arith.constant dense<0.000000e+00> : vector<64xf32>
    %188 = vector.multi_reduction <add>, %187, %cst_145 [1] : vector<64x8xf32> to vector<64xf32>
    %189 = vector.shape_cast %188 : vector<64xf32> to vector<64x1xf32>
    %190 = vector.broadcast %89 : vector<1x1xf32> to vector<64x1xf32>
    %191 = arith.addf %189, %190 : vector<64x1xf32>
    %192 = arith.negf %191 : vector<64x1xf32>
    %193 = math.exp %192 : vector<64x1xf32>
    %cst_146 = arith.constant 1.000000e+00 : f32
    %194 = vector.broadcast %cst_146 : f32 to vector<64x1xf32>
    %195 = arith.addf %194, %193 : vector<64x1xf32>
    %196 = arith.divf %194, %195 : vector<64x1xf32>
    %cst_147 = arith.constant 1.000000e+00 : f32
    %197 = vector.broadcast %cst_147 : f32 to vector<64x1xf32>
    %198 = arith.subf %197, %196 : vector<64x1xf32>
    %199 = vector.broadcast %198 : vector<64x1xf32> to vector<64x8xf32>
    %200 = arith.mulf %185, %199 : vector<64x8xf32>
    %c0_148 = arith.constant 0 : index
    %c0_149 = arith.constant 0 : index
    %c16 = arith.constant 16 : index
    %201 = vector.load %arg9[%c0_148, %c0_149, %c16] : memref<1x64x32xf32, #tpu.memory_space<vmem>>, vector<1x64x8xf32>
    %202 = vector.shape_cast %201 : vector<1x64x8xf32> to vector<64x8xf32>
    %203 = vector.broadcast %196 : vector<64x1xf32> to vector<64x8xf32>
    %204 = arith.mulf %202, %203 : vector<64x8xf32>
    %205 = arith.addf %200, %204 : vector<64x8xf32>
    %206 = vector.broadcast %91 : vector<1x8xf32> to vector<64x8xf32>
    %207 = arith.mulf %205, %206 : vector<64x8xf32>
    %208 = vector.shape_cast %207 : vector<64x8xf32> to vector<8x8x8xf32>
    %c0_150 = arith.constant 0 : index
    %c1_151 = arith.constant 1 : index
    %c1_152 = arith.constant 1 : index
    %c16_153 = arith.constant 16 : index
    %209 = vector.load %arg10[%c0_150, %c1_151, %c1_152, %c16_153] : memref<1x10x10x32xf32, #tpu.memory_space<vmem>>, vector<1x8x8x8xf32>
    %210 = vector.shape_cast %209 : vector<1x8x8x8xf32> to vector<8x8x8xf32>
    %211 = vector.shape_cast %208 : vector<8x8x8xf32> to vector<1x8x8x8xf32>
    tpu.vector_store %arg10[%c0_150, %c1_151, %c1_152, %c16_153], %211 {strides = array<i32>} : memref<1x10x10x32xf32, #tpu.memory_space<vmem>>, vector<1x8x8x8xf32>,
    %c0_154 = arith.constant 0 : index
    %c0_155 = arith.constant 0 : index
    %c2_156 = arith.constant 2 : index
    %212 = vector.load %arg11[%c0_154, %c0_155, %c2_156] : memref<1x64x4xf32, #tpu.memory_space<vmem>>, vector<1x64x1xf32>
    %213 = vector.shape_cast %212 : vector<1x64x1xf32> to vector<64x1xf32>
    %214 = vector.shape_cast %196 : vector<64x1xf32> to vector<1x64x1xf32>
    tpu.vector_store %arg11[%c0_154, %c0_155, %c2_156], %214 {strides = array<i32>} : memref<1x64x4xf32, #tpu.memory_space<vmem>>, vector<1x64x1xf32>,
    %215 = vector.extract_strided_slice %68 {offsets = [0, 24], sizes = [64, 8], strides = [1, 1]} : vector<64x32xf32> to vector<64x8xf32>
    %216 = vector.broadcast %86 : vector<1x8xf32> to vector<64x8xf32>
    %217 = arith.mulf %215, %216 : vector<64x8xf32>
    %218 = vector.broadcast %87 : vector<1x8xf32> to vector<64x8xf32>
    %219 = arith.addf %217, %218 : vector<64x8xf32>
    %cst_157 = arith.constant 0.000000e+00 : f32
    %220 = vector.broadcast %cst_157 : f32 to vector<64x8xf32>
    %221 = arith.cmpf oge, %219, %220 : vector<64x8xf32>
    %cst_158 = arith.constant 2.000000e-01 : f32
    %222 = vector.broadcast %cst_158 : f32 to vector<64x8xf32>
    %223 = arith.mulf %222, %219 : vector<64x8xf32>
    %224 = arith.select %221, %219, %223 : vector<64x8xi1>, vector<64x8xf32>
    %cst_159 = arith.constant 1.41421354 : f32
    %225 = vector.broadcast %cst_159 : f32 to vector<64x8xf32>
    %226 = arith.mulf %224, %225 : vector<64x8xf32>
    %227 = vector.broadcast %88 : vector<1x8xf32> to vector<64x8xf32>
    %228 = arith.mulf %226, %227 : vector<64x8xf32>
    %cst_160 = arith.constant dense<0.000000e+00> : vector<64xf32>
    %229 = vector.multi_reduction <add>, %228, %cst_160 [1] : vector<64x8xf32> to vector<64xf32>
    %230 = vector.shape_cast %229 : vector<64xf32> to vector<64x1xf32>
    %231 = vector.broadcast %89 : vector<1x1xf32> to vector<64x1xf32>
    %232 = arith.addf %230, %231 : vector<64x1xf32>
    %233 = arith.negf %232 : vector<64x1xf32>
    %234 = math.exp %233 : vector<64x1xf32>
    %cst_161 = arith.constant 1.000000e+00 : f32
    %235 = vector.broadcast %cst_161 : f32 to vector<64x1xf32>
    %236 = arith.addf %235, %234 : vector<64x1xf32>
    %237 = arith.divf %235, %236 : vector<64x1xf32>
    %cst_162 = arith.constant 1.000000e+00 : f32
    %238 = vector.broadcast %cst_162 : f32 to vector<64x1xf32>
    %239 = arith.subf %238, %237 : vector<64x1xf32>
    %240 = vector.broadcast %239 : vector<64x1xf32> to vector<64x8xf32>
    %241 = arith.mulf %226, %240 : vector<64x8xf32>
    %c0_163 = arith.constant 0 : index
    %c0_164 = arith.constant 0 : index
    %c24 = arith.constant 24 : index
    %242 = vector.load %arg9[%c0_163, %c0_164, %c24] : memref<1x64x32xf32, #tpu.memory_space<vmem>>, vector<1x64x8xf32>
    %243 = vector.shape_cast %242 : vector<1x64x8xf32> to vector<64x8xf32>
    %244 = vector.broadcast %237 : vector<64x1xf32> to vector<64x8xf32>
    %245 = arith.mulf %243, %244 : vector<64x8xf32>
    %246 = arith.addf %241, %245 : vector<64x8xf32>
    %247 = vector.broadcast %91 : vector<1x8xf32> to vector<64x8xf32>
    %248 = arith.mulf %246, %247 : vector<64x8xf32>
    %249 = vector.shape_cast %248 : vector<64x8xf32> to vector<8x8x8xf32>
    %c0_165 = arith.constant 0 : index
    %c1_166 = arith.constant 1 : index
    %c1_167 = arith.constant 1 : index
    %c24_168 = arith.constant 24 : index
    %250 = vector.load %arg10[%c0_165, %c1_166, %c1_167, %c24_168] : memref<1x10x10x32xf32, #tpu.memory_space<vmem>>, vector<1x8x8x8xf32>
    %251 = vector.shape_cast %250 : vector<1x8x8x8xf32> to vector<8x8x8xf32>
    %252 = vector.shape_cast %249 : vector<8x8x8xf32> to vector<1x8x8x8xf32>
    tpu.vector_store %arg10[%c0_165, %c1_166, %c1_167, %c24_168], %252 {strides = array<i32>} : memref<1x10x10x32xf32, #tpu.memory_space<vmem>>, vector<1x8x8x8xf32>,
    %c0_169 = arith.constant 0 : index
    %c0_170 = arith.constant 0 : index
    %c3_171 = arith.constant 3 : index
    %253 = vector.load %arg11[%c0_169, %c0_170, %c3_171] : memref<1x64x4xf32, #tpu.memory_space<vmem>>, vector<1x64x1xf32>
    %254 = vector.shape_cast %253 : vector<1x64x1xf32> to vector<64x1xf32>
    %255 = vector.shape_cast %237 : vector<64x1xf32> to vector<1x64x1xf32>
    tpu.vector_store %arg11[%c0_169, %c0_170, %c3_171], %255 {strides = array<i32>} : memref<1x64x4xf32, #tpu.memory_space<vmem>>, vector<1x64x1xf32>,
    return
  }
  func.func @transform_0(%arg0: i32) -> (i32, i32, i32) {
    %c0_i32 = arith.constant 0 : i32
    %c0_i32_0 = arith.constant 0 : i32
    %c0_i32_1 = arith.constant 0 : i32
    return %arg0, %c0_i32, %c0_i32_0 : i32, i32, i32
  }
  func.func @transform_1(%arg0: i32) -> (i32, i32, i32) {
    %c0_i32 = arith.constant 0 : i32
    %c0_i32_0 = arith.constant 0 : i32
    %c0_i32_1 = arith.constant 0 : i32
    return %arg0, %c0_i32, %c0_i32_0 : i32, i32, i32
  }
  func.func @transform_2(%arg0: i32) -> (i32, i32, i32) {
    %c0_i32 = arith.constant 0 : i32
    %c0_i32_0 = arith.constant 0 : i32
    %c0_i32_1 = arith.constant 0 : i32
    return %arg0, %c0_i32, %c0_i32_0 : i32, i32, i32
  }
  func.func @transform_3(%arg0: i32) -> (i32, i32, i32, i32) {
    %c0_i32 = arith.constant 0 : i32
    %c0_i32_0 = arith.constant 0 : i32
    %c0_i32_1 = arith.constant 0 : i32
    %c0_i32_2 = arith.constant 0 : i32
    return %arg0, %c0_i32, %c0_i32_0, %c0_i32_1 : i32, i32, i32, i32
  }
  func.func @transform_4(%arg0: i32) -> (i32, i32, i32) {
    %c0_i32 = arith.constant 0 : i32
    %c0_i32_0 = arith.constant 0 : i32
    %c0_i32_1 = arith.constant 0 : i32
    %c0_i32_2 = arith.constant 0 : i32
    return %c0_i32, %c0_i32_0, %c0_i32_1 : i32, i32, i32
  }
  func.func @transform_5(%arg0: i32) -> (i32, i32) {
    %c0_i32 = arith.constant 0 : i32
    %c0_i32_0 = arith.constant 0 : i32
    %c0_i32_1 = arith.constant 0 : i32
    return %c0_i32, %c0_i32_0 : i32, i32
  }
  func.func @transform_6(%arg0: i32) -> (i32, i32) {
    %c0_i32 = arith.constant 0 : i32
    %c0_i32_0 = arith.constant 0 : i32
    %c0_i32_1 = arith.constant 0 : i32
    return %c0_i32, %c0_i32_0 : i32, i32
  }
  func.func @transform_7(%arg0: i32) -> (i32, i32) {
    %c0_i32 = arith.constant 0 : i32
    %c0_i32_0 = arith.constant 0 : i32
    %c0_i32_1 = arith.constant 0 : i32
    return %c0_i32, %c0_i32_0 : i32, i32
  }
  func.func @transform_8(%arg0: i32) -> (i32, i32, i32) {
    %c0_i32 = arith.constant 0 : i32
    %c0_i32_0 = arith.constant 0 : i32
    %c0_i32_1 = arith.constant 0 : i32
    return %arg0, %c0_i32, %c0_i32_0 : i32, i32, i32
  }
  func.func @transform_9(%arg0: i32) -> (i32, i32, i32, i32) {
    %c0_i32 = arith.constant 0 : i32
    %c0_i32_0 = arith.constant 0 : i32
    %c0_i32_1 = arith.constant 0 : i32
    %c0_i32_2 = arith.constant 0 : i32
    return %arg0, %c0_i32, %c0_i32_0, %c0_i32_1 : i32, i32, i32, i32
  }
  func.func @transform_10(%arg0: i32) -> (i32, i32, i32) {
    %c0_i32 = arith.constant 0 : i32
    %c0_i32_0 = arith.constant 0 : i32
    %c0_i32_1 = arith.constant 0 : i32
    return %arg0, %c0_i32, %c0_i32_0 : i32, i32, i32
  }
}

module attributes {stable_mosaic.version = 11 : i64} {
  func.func @conv1_torgb_img_kernel(%arg0: i32, %arg1: memref<1x1x8xf32, #tpu.memory_space<vmem>>, %arg2: memref<1x10x10x32xf32, #tpu.memory_space<vmem>>, %arg3: memref<288x8xf32, #tpu.memory_space<vmem>>, %arg4: memref<1x8xf32, #tpu.memory_space<vmem>>, %arg5: memref<1x8x3xf32, #tpu.memory_space<vmem>>, %arg6: memref<1x3xf32, #tpu.memory_space<vmem>>, %arg7: memref<1x8x8x3xf32, #tpu.memory_space<vmem>>, %arg8: memref<1x64x32xf32, #tpu.memory_space<vmem>>, %arg9: memref<1x64x12xf32, #tpu.memory_space<vmem>>, %arg10: memref<10x10x3xf32, #tpu.memory_space<vmem>>) attributes {dimension_semantics = [#tpu.dimension_semantics<parallel>], iteration_bounds = array<i64: 2>, scalar_prefetch = 0 : i64, scratch_operands = 1 : i64, tpu.core_type = #tpu.core_type<tc>, window_params = [{transform_indices = @transform_0, window_bounds = array<i64: 1, 1, 8>}, {transform_indices = @transform_1, window_bounds = array<i64: 1, 10, 10, 32>}, {pipeline_mode = #tpu.pipeline_mode<synchronous>, transform_indices = @transform_2, window_bounds = array<i64: 288, 8>}, {pipeline_mode = #tpu.pipeline_mode<synchronous>, transform_indices = @transform_3, window_bounds = array<i64: 1, 8>}, {transform_indices = @transform_4, window_bounds = array<i64: 1, 8, 3>}, {pipeline_mode = #tpu.pipeline_mode<synchronous>, transform_indices = @transform_5, window_bounds = array<i64: 1, 3>}, {transform_indices = @transform_6, window_bounds = array<i64: 1, 8, 8, 3>}, {transform_indices = @transform_7, window_bounds = array<i64: 1, 64, 32>}, {transform_indices = @transform_8, window_bounds = array<i64: 1, 64, 12>}]} {
    %cst = arith.constant 0.000000e+00 : f32
    %0 = vector.broadcast %cst : f32 to vector<1x10x3xf32>
    %c0 = arith.constant 0 : index
    %c0_0 = arith.constant 0 : index
    %c0_1 = arith.constant 0 : index
    %1 = vector.load %arg10[%c0, %c0_0, %c0_1] : memref<10x10x3xf32, #tpu.memory_space<vmem>>, vector<1x10x3xf32>
    tpu.vector_store %arg10[%c0, %c0_0, %c0_1], %0 {strides = array<i32>} : memref<10x10x3xf32, #tpu.memory_space<vmem>>, vector<1x10x3xf32>,
    %cst_2 = arith.constant 0.000000e+00 : f32
    %2 = vector.broadcast %cst_2 : f32 to vector<1x10x3xf32>
    %c9 = arith.constant 9 : index
    %c0_3 = arith.constant 0 : index
    %c0_4 = arith.constant 0 : index
    %3 = vector.load %arg10[%c9, %c0_3, %c0_4] : memref<10x10x3xf32, #tpu.memory_space<vmem>>, vector<1x10x3xf32>
    tpu.vector_store %arg10[%c9, %c0_3, %c0_4], %2 {strides = array<i32>} : memref<10x10x3xf32, #tpu.memory_space<vmem>>, vector<1x10x3xf32>,
    %cst_5 = arith.constant 0.000000e+00 : f32
    %4 = vector.broadcast %cst_5 : f32 to vector<8x1x3xf32>
    %c1 = arith.constant 1 : index
    %c0_6 = arith.constant 0 : index
    %c0_7 = arith.constant 0 : index
    %5 = vector.load %arg10[%c1, %c0_6, %c0_7] : memref<10x10x3xf32, #tpu.memory_space<vmem>>, vector<8x1x3xf32>
    tpu.vector_store %arg10[%c1, %c0_6, %c0_7], %4 {strides = array<i32>} : memref<10x10x3xf32, #tpu.memory_space<vmem>>, vector<8x1x3xf32>,
    %cst_8 = arith.constant 0.000000e+00 : f32
    %6 = vector.broadcast %cst_8 : f32 to vector<8x1x3xf32>
    %c1_9 = arith.constant 1 : index
    %c9_10 = arith.constant 9 : index
    %c0_11 = arith.constant 0 : index
    %7 = vector.load %arg10[%c1_9, %c9_10, %c0_11] : memref<10x10x3xf32, #tpu.memory_space<vmem>>, vector<8x1x3xf32>
    tpu.vector_store %arg10[%c1_9, %c9_10, %c0_11], %6 {strides = array<i32>} : memref<10x10x3xf32, #tpu.memory_space<vmem>>, vector<8x1x3xf32>,
    %c0_12 = arith.constant 0 : index
    %c0_13 = arith.constant 0 : index
    %c0_14 = arith.constant 0 : index
    %c0_15 = arith.constant 0 : index
    %8 = vector.load %arg7[%c0_12, %c0_13, %c0_14, %c0_15] : memref<1x8x8x3xf32, #tpu.memory_space<vmem>>, vector<1x8x8x3xf32>
    %9 = vector.shape_cast %8 : vector<1x8x8x3xf32> to vector<8x8x3xf32>
    %c1_16 = arith.constant 1 : index
    %c1_17 = arith.constant 1 : index
    %c0_18 = arith.constant 0 : index
    %10 = vector.load %arg10[%c1_16, %c1_17, %c0_18] : memref<10x10x3xf32, #tpu.memory_space<vmem>>, vector<8x8x3xf32>
    tpu.vector_store %arg10[%c1_16, %c1_17, %c0_18], %9 {strides = array<i32>} : memref<10x10x3xf32, #tpu.memory_space<vmem>>, vector<8x8x3xf32>,
    %c0_19 = arith.constant 0 : index
    %c0_20 = arith.constant 0 : index
    %c0_21 = arith.constant 0 : index
    %11 = vector.load %arg1[%c0_19, %c0_20, %c0_21] : memref<1x1x8xf32, #tpu.memory_space<vmem>>, vector<1x1x8xf32>
    %12 = vector.shape_cast %11 : vector<1x1x8xf32> to vector<1x8xf32>
    %c0_22 = arith.constant 0 : index
    %c0_23 = arith.constant 0 : index
    %13 = vector.load %arg4[%c0_22, %c0_23] : memref<1x8xf32, #tpu.memory_space<vmem>>, vector<1x8xf32>
    %c0_24 = arith.constant 0 : index
    %c0_25 = arith.constant 0 : index
    %c0_26 = arith.constant 0 : index
    %14 = vector.load %arg5[%c0_24, %c0_25, %c0_26] : memref<1x8x3xf32, #tpu.memory_space<vmem>>, vector<1x8x3xf32>
    %15 = vector.shape_cast %14 : vector<1x8x3xf32> to vector<8x3xf32>
    %c0_27 = arith.constant 0 : index
    %c0_28 = arith.constant 0 : index
    %16 = vector.load %arg6[%c0_27, %c0_28] : memref<1x3xf32, #tpu.memory_space<vmem>>, vector<1x3xf32>
    %c0_29 = arith.constant 0 : index
    %c0_30 = arith.constant 0 : index
    %c0_31 = arith.constant 0 : index
    %c24 = arith.constant 24 : index
    %17 = vector.load %arg2[%c0_29, %c0_30, %c0_31, %c24] : memref<1x10x10x32xf32, #tpu.memory_space<vmem>>, vector<1x8x8x8xf32>
    %18 = vector.shape_cast %17 : vector<1x8x8x8xf32> to vector<8x8x8xf32>
    %19 = vector.shape_cast %18 : vector<8x8x8xf32> to vector<64x8xf32>
    %c0_32 = arith.constant 0 : index
    %c0_33 = arith.constant 0 : index
    %20 = vector.load %arg3[%c0_32, %c0_33] : memref<288x8xf32, #tpu.memory_space<vmem>>, vector<8x8xf32>
    %cst_34 = arith.constant dense<0.000000e+00> : vector<64x8xf32>
    %21 = tpu.matmul %19, %20, %cst_34 {dimension_numbers = #tpu.dot_dimension_numbers<[1], [0], [0], [1], [0, 0, 1, 1], [], []>} : vector<64x8xf32>, vector<8x8xf32>, vector<64x8xf32> -> vector<64x8xf32>
    %c0_35 = arith.constant 0 : index
    %c0_36 = arith.constant 0 : index
    %c1_37 = arith.constant 1 : index
    %c16 = arith.constant 16 : index
    %22 = vector.load %arg2[%c0_35, %c0_36, %c1_37, %c16] : memref<1x10x10x32xf32, #tpu.memory_space<vmem>>, vector<1x8x8x16xf32>
    %23 = vector.shape_cast %22 : vector<1x8x8x16xf32> to vector<8x8x16xf32>
    %24 = vector.shape_cast %23 : vector<8x8x16xf32> to vector<64x16xf32>
    %c8 = arith.constant 8 : index
    %c0_38 = arith.constant 0 : index
    %25 = vector.load %arg3[%c8, %c0_38] : memref<288x8xf32, #tpu.memory_space<vmem>>, vector<16x8xf32>
    %cst_39 = arith.constant dense<0.000000e+00> : vector<64x8xf32>
    %26 = tpu.matmul %24, %25, %cst_39 {dimension_numbers = #tpu.dot_dimension_numbers<[1], [0], [0], [1], [0, 0, 1, 1], [], []>} : vector<64x16xf32>, vector<16x8xf32>, vector<64x8xf32> -> vector<64x8xf32>
    %27 = arith.addf %21, %26 : vector<64x8xf32>
    %c0_40 = arith.constant 0 : index
    %c1_41 = arith.constant 1 : index
    %c0_42 = arith.constant 0 : index
    %c8_43 = arith.constant 8 : index
    %28 = vector.load %arg2[%c0_40, %c1_41, %c0_42, %c8_43] : memref<1x10x10x32xf32, #tpu.memory_space<vmem>>, vector<1x8x8x8xf32>
    %29 = vector.shape_cast %28 : vector<1x8x8x8xf32> to vector<8x8x8xf32>
    %30 = vector.shape_cast %29 : vector<8x8x8xf32> to vector<64x8xf32>
    %c24_44 = arith.constant 24 : index
    %c0_45 = arith.constant 0 : index
    %31 = vector.load %arg3[%c24_44, %c0_45] : memref<288x8xf32, #tpu.memory_space<vmem>>, vector<8x8xf32>
    %cst_46 = arith.constant dense<0.000000e+00> : vector<64x8xf32>
    %32 = tpu.matmul %30, %31, %cst_46 {dimension_numbers = #tpu.dot_dimension_numbers<[1], [0], [0], [1], [0, 0, 1, 1], [], []>} : vector<64x8xf32>, vector<8x8xf32>, vector<64x8xf32> -> vector<64x8xf32>
    %33 = arith.addf %27, %32 : vector<64x8xf32>
    %c0_47 = arith.constant 0 : index
    %c1_48 = arith.constant 1 : index
    %c0_49 = arith.constant 0 : index
    %c24_50 = arith.constant 24 : index
    %34 = vector.load %arg2[%c0_47, %c1_48, %c0_49, %c24_50] : memref<1x10x10x32xf32, #tpu.memory_space<vmem>>, vector<1x8x8x8xf32>
    %35 = vector.shape_cast %34 : vector<1x8x8x8xf32> to vector<8x8x8xf32>
    %36 = vector.shape_cast %35 : vector<8x8x8xf32> to vector<64x8xf32>
    %c32 = arith.constant 32 : index
    %c0_51 = arith.constant 0 : index
    %37 = vector.load %arg3[%c32, %c0_51] : memref<288x8xf32, #tpu.memory_space<vmem>>, vector<8x8xf32>
    %cst_52 = arith.constant dense<0.000000e+00> : vector<64x8xf32>
    %38 = tpu.matmul %36, %37, %cst_52 {dimension_numbers = #tpu.dot_dimension_numbers<[1], [0], [0], [1], [0, 0, 1, 1], [], []>} : vector<64x8xf32>, vector<8x8xf32>, vector<64x8xf32> -> vector<64x8xf32>
    %39 = arith.addf %33, %38 : vector<64x8xf32>
    %c0_53 = arith.constant 0 : index
    %c1_54 = arith.constant 1 : index
    %c1_55 = arith.constant 1 : index
    %c0_56 = arith.constant 0 : index
    %40 = vector.load %arg2[%c0_53, %c1_54, %c1_55, %c0_56] : memref<1x10x10x32xf32, #tpu.memory_space<vmem>>, vector<1x8x8x32xf32>
    %41 = vector.shape_cast %40 : vector<1x8x8x32xf32> to vector<8x8x32xf32>
    %42 = vector.shape_cast %41 : vector<8x8x32xf32> to vector<64x32xf32>
    %c40 = arith.constant 40 : index
    %c0_57 = arith.constant 0 : index
    %43 = vector.load %arg3[%c40, %c0_57] : memref<288x8xf32, #tpu.memory_space<vmem>>, vector<32x8xf32>
    %cst_58 = arith.constant dense<0.000000e+00> : vector<64x8xf32>
    %44 = tpu.matmul %42, %43, %cst_58 {dimension_numbers = #tpu.dot_dimension_numbers<[1], [0], [0], [1], [0, 0, 1, 1], [], []>} : vector<64x32xf32>, vector<32x8xf32>, vector<64x8xf32> -> vector<64x8xf32>
    %45 = arith.addf %39, %44 : vector<64x8xf32>
    %46 = vector.broadcast %12 : vector<1x8xf32> to vector<64x8xf32>
    %47 = arith.mulf %45, %46 : vector<64x8xf32>
    %48 = vector.broadcast %13 : vector<1x8xf32> to vector<64x8xf32>
    %49 = arith.addf %47, %48 : vector<64x8xf32>
    %cst_59 = arith.constant 0.000000e+00 : f32
    %50 = vector.broadcast %cst_59 : f32 to vector<64x8xf32>
    %51 = arith.cmpf oge, %49, %50 : vector<64x8xf32>
    %cst_60 = arith.constant 2.000000e-01 : f32
    %52 = vector.broadcast %cst_60 : f32 to vector<64x8xf32>
    %53 = arith.mulf %52, %49 : vector<64x8xf32>
    %54 = arith.select %51, %49, %53 : vector<64x8xi1>, vector<64x8xf32>
    %cst_61 = arith.constant 1.41421354 : f32
    %55 = vector.broadcast %cst_61 : f32 to vector<64x8xf32>
    %56 = arith.mulf %54, %55 : vector<64x8xf32>
    %c0_62 = arith.constant 0 : index
    %c0_63 = arith.constant 0 : index
    %c0_64 = arith.constant 0 : index
    %57 = vector.load %arg8[%c0_62, %c0_63, %c0_64] : memref<1x64x32xf32, #tpu.memory_space<vmem>>, vector<1x64x8xf32>
    %58 = vector.shape_cast %57 : vector<1x64x8xf32> to vector<64x8xf32>
    %59 = vector.shape_cast %56 : vector<64x8xf32> to vector<1x64x8xf32>
    tpu.vector_store %arg8[%c0_62, %c0_63, %c0_64], %59 {strides = array<i32>} : memref<1x64x32xf32, #tpu.memory_space<vmem>>, vector<1x64x8xf32>,
    %cst_65 = arith.constant dense<0.000000e+00> : vector<64x3xf32>
    %60 = tpu.matmul %56, %15, %cst_65 {dimension_numbers = #tpu.dot_dimension_numbers<[1], [0], [0], [1], [0, 0, 1, 1], [], []>} : vector<64x8xf32>, vector<8x3xf32>, vector<64x3xf32> -> vector<64x3xf32>
    %61 = vector.broadcast %16 : vector<1x3xf32> to vector<64x3xf32>
    %62 = arith.addf %60, %61 : vector<64x3xf32>
    %c0_66 = arith.constant 0 : index
    %c0_67 = arith.constant 0 : index
    %c0_68 = arith.constant 0 : index
    %63 = vector.load %arg10[%c0_66, %c0_67, %c0_68] : memref<10x10x3xf32, #tpu.memory_space<vmem>>, vector<8x8x3xf32>
    %cst_69 = arith.constant 6.250000e-02 : f32
    %64 = vector.broadcast %cst_69 : f32 to vector<8x8x3xf32>
    %65 = arith.mulf %64, %63 : vector<8x8x3xf32>
    %c0_70 = arith.constant 0 : index
    %c1_71 = arith.constant 1 : index
    %c0_72 = arith.constant 0 : index
    %66 = vector.load %arg10[%c0_70, %c1_71, %c0_72] : memref<10x10x3xf32, #tpu.memory_space<vmem>>, vector<8x8x3xf32>
    %cst_73 = arith.constant 1.875000e-01 : f32
    %67 = vector.broadcast %cst_73 : f32 to vector<8x8x3xf32>
    %68 = arith.mulf %67, %66 : vector<8x8x3xf32>
    %69 = arith.addf %65, %68 : vector<8x8x3xf32>
    %c1_74 = arith.constant 1 : index
    %c0_75 = arith.constant 0 : index
    %c0_76 = arith.constant 0 : index
    %70 = vector.load %arg10[%c1_74, %c0_75, %c0_76] : memref<10x10x3xf32, #tpu.memory_space<vmem>>, vector<8x8x3xf32>
    %cst_77 = arith.constant 1.875000e-01 : f32
    %71 = vector.broadcast %cst_77 : f32 to vector<8x8x3xf32>
    %72 = arith.mulf %71, %70 : vector<8x8x3xf32>
    %73 = arith.addf %69, %72 : vector<8x8x3xf32>
    %c1_78 = arith.constant 1 : index
    %c1_79 = arith.constant 1 : index
    %c0_80 = arith.constant 0 : index
    %74 = vector.load %arg10[%c1_78, %c1_79, %c0_80] : memref<10x10x3xf32, #tpu.memory_space<vmem>>, vector<8x8x3xf32>
    %cst_81 = arith.constant 5.625000e-01 : f32
    %75 = vector.broadcast %cst_81 : f32 to vector<8x8x3xf32>
    %76 = arith.mulf %75, %74 : vector<8x8x3xf32>
    %77 = arith.addf %73, %76 : vector<8x8x3xf32>
    %78 = vector.shape_cast %77 : vector<8x8x3xf32> to vector<64x3xf32>
    %79 = arith.addf %62, %78 : vector<64x3xf32>
    %c0_82 = arith.constant 0 : index
    %c0_83 = arith.constant 0 : index
    %c0_84 = arith.constant 0 : index
    %80 = vector.load %arg9[%c0_82, %c0_83, %c0_84] : memref<1x64x12xf32, #tpu.memory_space<vmem>>, vector<1x64x3xf32>
    %81 = vector.shape_cast %80 : vector<1x64x3xf32> to vector<64x3xf32>
    %82 = vector.shape_cast %79 : vector<64x3xf32> to vector<1x64x3xf32>
    tpu.vector_store %arg9[%c0_82, %c0_83, %c0_84], %82 {strides = array<i32>} : memref<1x64x12xf32, #tpu.memory_space<vmem>>, vector<1x64x3xf32>,
    %c0_85 = arith.constant 0 : index
    %c0_86 = arith.constant 0 : index
    %c1_87 = arith.constant 1 : index
    %c16_88 = arith.constant 16 : index
    %83 = vector.load %arg2[%c0_85, %c0_86, %c1_87, %c16_88] : memref<1x10x10x32xf32, #tpu.memory_space<vmem>>, vector<1x8x8x16xf32>
    %84 = vector.shape_cast %83 : vector<1x8x8x16xf32> to vector<8x8x16xf32>
    %85 = vector.shape_cast %84 : vector<8x8x16xf32> to vector<64x16xf32>
    %c72 = arith.constant 72 : index
    %c0_89 = arith.constant 0 : index
    %86 = vector.load %arg3[%c72, %c0_89] : memref<288x8xf32, #tpu.memory_space<vmem>>, vector<16x8xf32>
    %cst_90 = arith.constant dense<0.000000e+00> : vector<64x8xf32>
    %87 = tpu.matmul %85, %86, %cst_90 {dimension_numbers = #tpu.dot_dimension_numbers<[1], [0], [0], [1], [0, 0, 1, 1], [], []>} : vector<64x16xf32>, vector<16x8xf32>, vector<64x8xf32> -> vector<64x8xf32>
    %c0_91 = arith.constant 0 : index
    %c0_92 = arith.constant 0 : index
    %c2 = arith.constant 2 : index
    %c16_93 = arith.constant 16 : index
    %88 = vector.load %arg2[%c0_91, %c0_92, %c2, %c16_93] : memref<1x10x10x32xf32, #tpu.memory_space<vmem>>, vector<1x8x8x8xf32>
    %89 = vector.shape_cast %88 : vector<1x8x8x8xf32> to vector<8x8x8xf32>
    %90 = vector.shape_cast %89 : vector<8x8x8xf32> to vector<64x8xf32>
    %c88 = arith.constant 88 : index
    %c0_94 = arith.constant 0 : index
    %91 = vector.load %arg3[%c88, %c0_94] : memref<288x8xf32, #tpu.memory_space<vmem>>, vector<8x8xf32>
    %cst_95 = arith.constant dense<0.000000e+00> : vector<64x8xf32>
    %92 = tpu.matmul %90, %91, %cst_95 {dimension_numbers = #tpu.dot_dimension_numbers<[1], [0], [0], [1], [0, 0, 1, 1], [], []>} : vector<64x8xf32>, vector<8x8xf32>, vector<64x8xf32> -> vector<64x8xf32>
    %93 = arith.addf %87, %92 : vector<64x8xf32>
    %c0_96 = arith.constant 0 : index
    %c1_97 = arith.constant 1 : index
    %c1_98 = arith.constant 1 : index
    %c0_99 = arith.constant 0 : index
    %94 = vector.load %arg2[%c0_96, %c1_97, %c1_98, %c0_99] : memref<1x10x10x32xf32, #tpu.memory_space<vmem>>, vector<1x8x8x32xf32>
    %95 = vector.shape_cast %94 : vector<1x8x8x32xf32> to vector<8x8x32xf32>
    %96 = vector.shape_cast %95 : vector<8x8x32xf32> to vector<64x32xf32>
    %c96 = arith.constant 96 : index
    %c0_100 = arith.constant 0 : index
    %97 = vector.load %arg3[%c96, %c0_100] : memref<288x8xf32, #tpu.memory_space<vmem>>, vector<32x8xf32>
    %cst_101 = arith.constant dense<0.000000e+00> : vector<64x8xf32>
    %98 = tpu.matmul %96, %97, %cst_101 {dimension_numbers = #tpu.dot_dimension_numbers<[1], [0], [0], [1], [0, 0, 1, 1], [], []>} : vector<64x32xf32>, vector<32x8xf32>, vector<64x8xf32> -> vector<64x8xf32>
    %99 = arith.addf %93, %98 : vector<64x8xf32>
    %c0_102 = arith.constant 0 : index
    %c1_103 = arith.constant 1 : index
    %c2_104 = arith.constant 2 : index
    %c0_105 = arith.constant 0 : index
    %100 = vector.load %arg2[%c0_102, %c1_103, %c2_104, %c0_105] : memref<1x10x10x32xf32, #tpu.memory_space<vmem>>, vector<1x8x8x8xf32>
    %101 = vector.shape_cast %100 : vector<1x8x8x8xf32> to vector<8x8x8xf32>
    %102 = vector.shape_cast %101 : vector<8x8x8xf32> to vector<64x8xf32>
    %c128 = arith.constant 128 : index
    %c0_106 = arith.constant 0 : index
    %103 = vector.load %arg3[%c128, %c0_106] : memref<288x8xf32, #tpu.memory_space<vmem>>, vector<8x8xf32>
    %cst_107 = arith.constant dense<0.000000e+00> : vector<64x8xf32>
    %104 = tpu.matmul %102, %103, %cst_107 {dimension_numbers = #tpu.dot_dimension_numbers<[1], [0], [0], [1], [0, 0, 1, 1], [], []>} : vector<64x8xf32>, vector<8x8xf32>, vector<64x8xf32> -> vector<64x8xf32>
    %105 = arith.addf %99, %104 : vector<64x8xf32>
    %c0_108 = arith.constant 0 : index
    %c1_109 = arith.constant 1 : index
    %c2_110 = arith.constant 2 : index
    %c16_111 = arith.constant 16 : index
    %106 = vector.load %arg2[%c0_108, %c1_109, %c2_110, %c16_111] : memref<1x10x10x32xf32, #tpu.memory_space<vmem>>, vector<1x8x8x8xf32>
    %107 = vector.shape_cast %106 : vector<1x8x8x8xf32> to vector<8x8x8xf32>
    %108 = vector.shape_cast %107 : vector<8x8x8xf32> to vector<64x8xf32>
    %c136 = arith.constant 136 : index
    %c0_112 = arith.constant 0 : index
    %109 = vector.load %arg3[%c136, %c0_112] : memref<288x8xf32, #tpu.memory_space<vmem>>, vector<8x8xf32>
    %cst_113 = arith.constant dense<0.000000e+00> : vector<64x8xf32>
    %110 = tpu.matmul %108, %109, %cst_113 {dimension_numbers = #tpu.dot_dimension_numbers<[1], [0], [0], [1], [0, 0, 1, 1], [], []>} : vector<64x8xf32>, vector<8x8xf32>, vector<64x8xf32> -> vector<64x8xf32>
    %111 = arith.addf %105, %110 : vector<64x8xf32>
    %112 = vector.broadcast %12 : vector<1x8xf32> to vector<64x8xf32>
    %113 = arith.mulf %111, %112 : vector<64x8xf32>
    %114 = vector.broadcast %13 : vector<1x8xf32> to vector<64x8xf32>
    %115 = arith.addf %113, %114 : vector<64x8xf32>
    %cst_114 = arith.constant 0.000000e+00 : f32
    %116 = vector.broadcast %cst_114 : f32 to vector<64x8xf32>
    %117 = arith.cmpf oge, %115, %116 : vector<64x8xf32>
    %cst_115 = arith.constant 2.000000e-01 : f32
    %118 = vector.broadcast %cst_115 : f32 to vector<64x8xf32>
    %119 = arith.mulf %118, %115 : vector<64x8xf32>
    %120 = arith.select %117, %115, %119 : vector<64x8xi1>, vector<64x8xf32>
    %cst_116 = arith.constant 1.41421354 : f32
    %121 = vector.broadcast %cst_116 : f32 to vector<64x8xf32>
    %122 = arith.mulf %120, %121 : vector<64x8xf32>
    %c0_117 = arith.constant 0 : index
    %c0_118 = arith.constant 0 : index
    %c8_119 = arith.constant 8 : index
    %123 = vector.load %arg8[%c0_117, %c0_118, %c8_119] : memref<1x64x32xf32, #tpu.memory_space<vmem>>, vector<1x64x8xf32>
    %124 = vector.shape_cast %123 : vector<1x64x8xf32> to vector<64x8xf32>
    %125 = vector.shape_cast %122 : vector<64x8xf32> to vector<1x64x8xf32>
    tpu.vector_store %arg8[%c0_117, %c0_118, %c8_119], %125 {strides = array<i32>} : memref<1x64x32xf32, #tpu.memory_space<vmem>>, vector<1x64x8xf32>,
    %cst_120 = arith.constant dense<0.000000e+00> : vector<64x3xf32>
    %126 = tpu.matmul %122, %15, %cst_120 {dimension_numbers = #tpu.dot_dimension_numbers<[1], [0], [0], [1], [0, 0, 1, 1], [], []>} : vector<64x8xf32>, vector<8x3xf32>, vector<64x3xf32> -> vector<64x3xf32>
    %127 = vector.broadcast %16 : vector<1x3xf32> to vector<64x3xf32>
    %128 = arith.addf %126, %127 : vector<64x3xf32>
    %c0_121 = arith.constant 0 : index
    %c1_122 = arith.constant 1 : index
    %c0_123 = arith.constant 0 : index
    %129 = vector.load %arg10[%c0_121, %c1_122, %c0_123] : memref<10x10x3xf32, #tpu.memory_space<vmem>>, vector<8x8x3xf32>
    %cst_124 = arith.constant 1.875000e-01 : f32
    %130 = vector.broadcast %cst_124 : f32 to vector<8x8x3xf32>
    %131 = arith.mulf %130, %129 : vector<8x8x3xf32>
    %c0_125 = arith.constant 0 : index
    %c2_126 = arith.constant 2 : index
    %c0_127 = arith.constant 0 : index
    %132 = vector.load %arg10[%c0_125, %c2_126, %c0_127] : memref<10x10x3xf32, #tpu.memory_space<vmem>>, vector<8x8x3xf32>
    %cst_128 = arith.constant 6.250000e-02 : f32
    %133 = vector.broadcast %cst_128 : f32 to vector<8x8x3xf32>
    %134 = arith.mulf %133, %132 : vector<8x8x3xf32>
    %135 = arith.addf %131, %134 : vector<8x8x3xf32>
    %c1_129 = arith.constant 1 : index
    %c1_130 = arith.constant 1 : index
    %c0_131 = arith.constant 0 : index
    %136 = vector.load %arg10[%c1_129, %c1_130, %c0_131] : memref<10x10x3xf32, #tpu.memory_space<vmem>>, vector<8x8x3xf32>
    %cst_132 = arith.constant 5.625000e-01 : f32
    %137 = vector.broadcast %cst_132 : f32 to vector<8x8x3xf32>
    %138 = arith.mulf %137, %136 : vector<8x8x3xf32>
    %139 = arith.addf %135, %138 : vector<8x8x3xf32>
    %c1_133 = arith.constant 1 : index
    %c2_134 = arith.constant 2 : index
    %c0_135 = arith.constant 0 : index
    %140 = vector.load %arg10[%c1_133, %c2_134, %c0_135] : memref<10x10x3xf32, #tpu.memory_space<vmem>>, vector<8x8x3xf32>
    %cst_136 = arith.constant 1.875000e-01 : f32
    %141 = vector.broadcast %cst_136 : f32 to vector<8x8x3xf32>
    %142 = arith.mulf %141, %140 : vector<8x8x3xf32>
    %143 = arith.addf %139, %142 : vector<8x8x3xf32>
    %144 = vector.shape_cast %143 : vector<8x8x3xf32> to vector<64x3xf32>
    %145 = arith.addf %128, %144 : vector<64x3xf32>
    %c0_137 = arith.constant 0 : index
    %c0_138 = arith.constant 0 : index
    %c3 = arith.constant 3 : index
    %146 = vector.load %arg9[%c0_137, %c0_138, %c3] : memref<1x64x12xf32, #tpu.memory_space<vmem>>, vector<1x64x3xf32>
    %147 = vector.shape_cast %146 : vector<1x64x3xf32> to vector<64x3xf32>
    %148 = vector.shape_cast %145 : vector<64x3xf32> to vector<1x64x3xf32>
    tpu.vector_store %arg9[%c0_137, %c0_138, %c3], %148 {strides = array<i32>} : memref<1x64x12xf32, #tpu.memory_space<vmem>>, vector<1x64x3xf32>,
    %c0_139 = arith.constant 0 : index
    %c1_140 = arith.constant 1 : index
    %c0_141 = arith.constant 0 : index
    %c8_142 = arith.constant 8 : index
    %149 = vector.load %arg2[%c0_139, %c1_140, %c0_141, %c8_142] : memref<1x10x10x32xf32, #tpu.memory_space<vmem>>, vector<1x8x8x8xf32>
    %150 = vector.shape_cast %149 : vector<1x8x8x8xf32> to vector<8x8x8xf32>
    %151 = vector.shape_cast %150 : vector<8x8x8xf32> to vector<64x8xf32>
    %c144 = arith.constant 144 : index
    %c0_143 = arith.constant 0 : index
    %152 = vector.load %arg3[%c144, %c0_143] : memref<288x8xf32, #tpu.memory_space<vmem>>, vector<8x8xf32>
    %cst_144 = arith.constant dense<0.000000e+00> : vector<64x8xf32>
    %153 = tpu.matmul %151, %152, %cst_144 {dimension_numbers = #tpu.dot_dimension_numbers<[1], [0], [0], [1], [0, 0, 1, 1], [], []>} : vector<64x8xf32>, vector<8x8xf32>, vector<64x8xf32> -> vector<64x8xf32>
    %c0_145 = arith.constant 0 : index
    %c1_146 = arith.constant 1 : index
    %c0_147 = arith.constant 0 : index
    %c24_148 = arith.constant 24 : index
    %154 = vector.load %arg2[%c0_145, %c1_146, %c0_147, %c24_148] : memref<1x10x10x32xf32, #tpu.memory_space<vmem>>, vector<1x8x8x8xf32>
    %155 = vector.shape_cast %154 : vector<1x8x8x8xf32> to vector<8x8x8xf32>
    %156 = vector.shape_cast %155 : vector<8x8x8xf32> to vector<64x8xf32>
    %c152 = arith.constant 152 : index
    %c0_149 = arith.constant 0 : index
    %157 = vector.load %arg3[%c152, %c0_149] : memref<288x8xf32, #tpu.memory_space<vmem>>, vector<8x8xf32>
    %cst_150 = arith.constant dense<0.000000e+00> : vector<64x8xf32>
    %158 = tpu.matmul %156, %157, %cst_150 {dimension_numbers = #tpu.dot_dimension_numbers<[1], [0], [0], [1], [0, 0, 1, 1], [], []>} : vector<64x8xf32>, vector<8x8xf32>, vector<64x8xf32> -> vector<64x8xf32>
    %159 = arith.addf %153, %158 : vector<64x8xf32>
    %c0_151 = arith.constant 0 : index
    %c1_152 = arith.constant 1 : index
    %c1_153 = arith.constant 1 : index
    %c0_154 = arith.constant 0 : index
    %160 = vector.load %arg2[%c0_151, %c1_152, %c1_153, %c0_154] : memref<1x10x10x32xf32, #tpu.memory_space<vmem>>, vector<1x8x8x32xf32>
    %161 = vector.shape_cast %160 : vector<1x8x8x32xf32> to vector<8x8x32xf32>
    %162 = vector.shape_cast %161 : vector<8x8x32xf32> to vector<64x32xf32>
    %c160 = arith.constant 160 : index
    %c0_155 = arith.constant 0 : index
    %163 = vector.load %arg3[%c160, %c0_155] : memref<288x8xf32, #tpu.memory_space<vmem>>, vector<32x8xf32>
    %cst_156 = arith.constant dense<0.000000e+00> : vector<64x8xf32>
    %164 = tpu.matmul %162, %163, %cst_156 {dimension_numbers = #tpu.dot_dimension_numbers<[1], [0], [0], [1], [0, 0, 1, 1], [], []>} : vector<64x32xf32>, vector<32x8xf32>, vector<64x8xf32> -> vector<64x8xf32>
    %165 = arith.addf %159, %164 : vector<64x8xf32>
    %c0_157 = arith.constant 0 : index
    %c2_158 = arith.constant 2 : index
    %c0_159 = arith.constant 0 : index
    %c8_160 = arith.constant 8 : index
    %166 = vector.load %arg2[%c0_157, %c2_158, %c0_159, %c8_160] : memref<1x10x10x32xf32, #tpu.memory_space<vmem>>, vector<1x8x8x8xf32>
    %167 = vector.shape_cast %166 : vector<1x8x8x8xf32> to vector<8x8x8xf32>
    %168 = vector.shape_cast %167 : vector<8x8x8xf32> to vector<64x8xf32>
    %c192 = arith.constant 192 : index
    %c0_161 = arith.constant 0 : index
    %169 = vector.load %arg3[%c192, %c0_161] : memref<288x8xf32, #tpu.memory_space<vmem>>, vector<8x8xf32>
    %cst_162 = arith.constant dense<0.000000e+00> : vector<64x8xf32>
    %170 = tpu.matmul %168, %169, %cst_162 {dimension_numbers = #tpu.dot_dimension_numbers<[1], [0], [0], [1], [0, 0, 1, 1], [], []>} : vector<64x8xf32>, vector<8x8xf32>, vector<64x8xf32> -> vector<64x8xf32>
    %171 = arith.addf %165, %170 : vector<64x8xf32>
    %c0_163 = arith.constant 0 : index
    %c2_164 = arith.constant 2 : index
    %c1_165 = arith.constant 1 : index
    %c0_166 = arith.constant 0 : index
    %172 = vector.load %arg2[%c0_163, %c2_164, %c1_165, %c0_166] : memref<1x10x10x32xf32, #tpu.memory_space<vmem>>, vector<1x8x8x16xf32>
    %173 = vector.shape_cast %172 : vector<1x8x8x16xf32> to vector<8x8x16xf32>
    %174 = vector.shape_cast %173 : vector<8x8x16xf32> to vector<64x16xf32>
    %c200 = arith.constant 200 : index
    %c0_167 = arith.constant 0 : index
    %175 = vector.load %arg3[%c200, %c0_167] : memref<288x8xf32, #tpu.memory_space<vmem>>, vector<16x8xf32>
    %cst_168 = arith.constant dense<0.000000e+00> : vector<64x8xf32>
    %176 = tpu.matmul %174, %175, %cst_168 {dimension_numbers = #tpu.dot_dimension_numbers<[1], [0], [0], [1], [0, 0, 1, 1], [], []>} : vector<64x16xf32>, vector<16x8xf32>, vector<64x8xf32> -> vector<64x8xf32>
    %177 = arith.addf %171, %176 : vector<64x8xf32>
    %178 = vector.broadcast %12 : vector<1x8xf32> to vector<64x8xf32>
    %179 = arith.mulf %177, %178 : vector<64x8xf32>
    %180 = vector.broadcast %13 : vector<1x8xf32> to vector<64x8xf32>
    %181 = arith.addf %179, %180 : vector<64x8xf32>
    %cst_169 = arith.constant 0.000000e+00 : f32
    %182 = vector.broadcast %cst_169 : f32 to vector<64x8xf32>
    %183 = arith.cmpf oge, %181, %182 : vector<64x8xf32>
    %cst_170 = arith.constant 2.000000e-01 : f32
    %184 = vector.broadcast %cst_170 : f32 to vector<64x8xf32>
    %185 = arith.mulf %184, %181 : vector<64x8xf32>
    %186 = arith.select %183, %181, %185 : vector<64x8xi1>, vector<64x8xf32>
    %cst_171 = arith.constant 1.41421354 : f32
    %187 = vector.broadcast %cst_171 : f32 to vector<64x8xf32>
    %188 = arith.mulf %186, %187 : vector<64x8xf32>
    %c0_172 = arith.constant 0 : index
    %c0_173 = arith.constant 0 : index
    %c16_174 = arith.constant 16 : index
    %189 = vector.load %arg8[%c0_172, %c0_173, %c16_174] : memref<1x64x32xf32, #tpu.memory_space<vmem>>, vector<1x64x8xf32>
    %190 = vector.shape_cast %189 : vector<1x64x8xf32> to vector<64x8xf32>
    %191 = vector.shape_cast %188 : vector<64x8xf32> to vector<1x64x8xf32>
    tpu.vector_store %arg8[%c0_172, %c0_173, %c16_174], %191 {strides = array<i32>} : memref<1x64x32xf32, #tpu.memory_space<vmem>>, vector<1x64x8xf32>,
    %cst_175 = arith.constant dense<0.000000e+00> : vector<64x3xf32>
    %192 = tpu.matmul %188, %15, %cst_175 {dimension_numbers = #tpu.dot_dimension_numbers<[1], [0], [0], [1], [0, 0, 1, 1], [], []>} : vector<64x8xf32>, vector<8x3xf32>, vector<64x3xf32> -> vector<64x3xf32>
    %193 = vector.broadcast %16 : vector<1x3xf32> to vector<64x3xf32>
    %194 = arith.addf %192, %193 : vector<64x3xf32>
    %c1_176 = arith.constant 1 : index
    %c0_177 = arith.constant 0 : index
    %c0_178 = arith.constant 0 : index
    %195 = vector.load %arg10[%c1_176, %c0_177, %c0_178] : memref<10x10x3xf32, #tpu.memory_space<vmem>>, vector<8x8x3xf32>
    %cst_179 = arith.constant 1.875000e-01 : f32
    %196 = vector.broadcast %cst_179 : f32 to vector<8x8x3xf32>
    %197 = arith.mulf %196, %195 : vector<8x8x3xf32>
    %c1_180 = arith.constant 1 : index
    %c1_181 = arith.constant 1 : index
    %c0_182 = arith.constant 0 : index
    %198 = vector.load %arg10[%c1_180, %c1_181, %c0_182] : memref<10x10x3xf32, #tpu.memory_space<vmem>>, vector<8x8x3xf32>
    %cst_183 = arith.constant 5.625000e-01 : f32
    %199 = vector.broadcast %cst_183 : f32 to vector<8x8x3xf32>
    %200 = arith.mulf %199, %198 : vector<8x8x3xf32>
    %201 = arith.addf %197, %200 : vector<8x8x3xf32>
    %c2_184 = arith.constant 2 : index
    %c0_185 = arith.constant 0 : index
    %c0_186 = arith.constant 0 : index
    %202 = vector.load %arg10[%c2_184, %c0_185, %c0_186] : memref<10x10x3xf32, #tpu.memory_space<vmem>>, vector<8x8x3xf32>
    %cst_187 = arith.constant 6.250000e-02 : f32
    %203 = vector.broadcast %cst_187 : f32 to vector<8x8x3xf32>
    %204 = arith.mulf %203, %202 : vector<8x8x3xf32>
    %205 = arith.addf %201, %204 : vector<8x8x3xf32>
    %c2_188 = arith.constant 2 : index
    %c1_189 = arith.constant 1 : index
    %c0_190 = arith.constant 0 : index
    %206 = vector.load %arg10[%c2_188, %c1_189, %c0_190] : memref<10x10x3xf32, #tpu.memory_space<vmem>>, vector<8x8x3xf32>
    %cst_191 = arith.constant 1.875000e-01 : f32
    %207 = vector.broadcast %cst_191 : f32 to vector<8x8x3xf32>
    %208 = arith.mulf %207, %206 : vector<8x8x3xf32>
    %209 = arith.addf %205, %208 : vector<8x8x3xf32>
    %210 = vector.shape_cast %209 : vector<8x8x3xf32> to vector<64x3xf32>
    %211 = arith.addf %194, %210 : vector<64x3xf32>
    %c0_192 = arith.constant 0 : index
    %c0_193 = arith.constant 0 : index
    %c6 = arith.constant 6 : index
    %212 = vector.load %arg9[%c0_192, %c0_193, %c6] : memref<1x64x12xf32, #tpu.memory_space<vmem>>, vector<1x64x3xf32>
    %213 = vector.shape_cast %212 : vector<1x64x3xf32> to vector<64x3xf32>
    %214 = vector.shape_cast %211 : vector<64x3xf32> to vector<1x64x3xf32>
    tpu.vector_store %arg9[%c0_192, %c0_193, %c6], %214 {strides = array<i32>} : memref<1x64x12xf32, #tpu.memory_space<vmem>>, vector<1x64x3xf32>,
    %c0_194 = arith.constant 0 : index
    %c1_195 = arith.constant 1 : index
    %c1_196 = arith.constant 1 : index
    %c0_197 = arith.constant 0 : index
    %215 = vector.load %arg2[%c0_194, %c1_195, %c1_196, %c0_197] : memref<1x10x10x32xf32, #tpu.memory_space<vmem>>, vector<1x8x8x32xf32>
    %216 = vector.shape_cast %215 : vector<1x8x8x32xf32> to vector<8x8x32xf32>
    %217 = vector.shape_cast %216 : vector<8x8x32xf32> to vector<64x32xf32>
    %c216 = arith.constant 216 : index
    %c0_198 = arith.constant 0 : index
    %218 = vector.load %arg3[%c216, %c0_198] : memref<288x8xf32, #tpu.memory_space<vmem>>, vector<32x8xf32>
    %cst_199 = arith.constant dense<0.000000e+00> : vector<64x8xf32>
    %219 = tpu.matmul %217, %218, %cst_199 {dimension_numbers = #tpu.dot_dimension_numbers<[1], [0], [0], [1], [0, 0, 1, 1], [], []>} : vector<64x32xf32>, vector<32x8xf32>, vector<64x8xf32> -> vector<64x8xf32>
    %c0_200 = arith.constant 0 : index
    %c1_201 = arith.constant 1 : index
    %c2_202 = arith.constant 2 : index
    %c0_203 = arith.constant 0 : index
    %220 = vector.load %arg2[%c0_200, %c1_201, %c2_202, %c0_203] : memref<1x10x10x32xf32, #tpu.memory_space<vmem>>, vector<1x8x8x8xf32>
    %221 = vector.shape_cast %220 : vector<1x8x8x8xf32> to vector<8x8x8xf32>
    %222 = vector.shape_cast %221 : vector<8x8x8xf32> to vector<64x8xf32>
    %c248 = arith.constant 248 : index
    %c0_204 = arith.constant 0 : index
    %223 = vector.load %arg3[%c248, %c0_204] : memref<288x8xf32, #tpu.memory_space<vmem>>, vector<8x8xf32>
    %cst_205 = arith.constant dense<0.000000e+00> : vector<64x8xf32>
    %224 = tpu.matmul %222, %223, %cst_205 {dimension_numbers = #tpu.dot_dimension_numbers<[1], [0], [0], [1], [0, 0, 1, 1], [], []>} : vector<64x8xf32>, vector<8x8xf32>, vector<64x8xf32> -> vector<64x8xf32>
    %225 = arith.addf %219, %224 : vector<64x8xf32>
    %c0_206 = arith.constant 0 : index
    %c1_207 = arith.constant 1 : index
    %c2_208 = arith.constant 2 : index
    %c16_209 = arith.constant 16 : index
    %226 = vector.load %arg2[%c0_206, %c1_207, %c2_208, %c16_209] : memref<1x10x10x32xf32, #tpu.memory_space<vmem>>, vector<1x8x8x8xf32>
    %227 = vector.shape_cast %226 : vector<1x8x8x8xf32> to vector<8x8x8xf32>
    %228 = vector.shape_cast %227 : vector<8x8x8xf32> to vector<64x8xf32>
    %c256 = arith.constant 256 : index
    %c0_210 = arith.constant 0 : index
    %229 = vector.load %arg3[%c256, %c0_210] : memref<288x8xf32, #tpu.memory_space<vmem>>, vector<8x8xf32>
    %cst_211 = arith.constant dense<0.000000e+00> : vector<64x8xf32>
    %230 = tpu.matmul %228, %229, %cst_211 {dimension_numbers = #tpu.dot_dimension_numbers<[1], [0], [0], [1], [0, 0, 1, 1], [], []>} : vector<64x8xf32>, vector<8x8xf32>, vector<64x8xf32> -> vector<64x8xf32>
    %231 = arith.addf %225, %230 : vector<64x8xf32>
    %c0_212 = arith.constant 0 : index
    %c2_213 = arith.constant 2 : index
    %c1_214 = arith.constant 1 : index
    %c0_215 = arith.constant 0 : index
    %232 = vector.load %arg2[%c0_212, %c2_213, %c1_214, %c0_215] : memref<1x10x10x32xf32, #tpu.memory_space<vmem>>, vector<1x8x8x16xf32>
    %233 = vector.shape_cast %232 : vector<1x8x8x16xf32> to vector<8x8x16xf32>
    %234 = vector.shape_cast %233 : vector<8x8x16xf32> to vector<64x16xf32>
    %c264 = arith.constant 264 : index
    %c0_216 = arith.constant 0 : index
    %235 = vector.load %arg3[%c264, %c0_216] : memref<288x8xf32, #tpu.memory_space<vmem>>, vector<16x8xf32>
    %cst_217 = arith.constant dense<0.000000e+00> : vector<64x8xf32>
    %236 = tpu.matmul %234, %235, %cst_217 {dimension_numbers = #tpu.dot_dimension_numbers<[1], [0], [0], [1], [0, 0, 1, 1], [], []>} : vector<64x16xf32>, vector<16x8xf32>, vector<64x8xf32> -> vector<64x8xf32>
    %237 = arith.addf %231, %236 : vector<64x8xf32>
    %c0_218 = arith.constant 0 : index
    %c2_219 = arith.constant 2 : index
    %c2_220 = arith.constant 2 : index
    %c0_221 = arith.constant 0 : index
    %238 = vector.load %arg2[%c0_218, %c2_219, %c2_220, %c0_221] : memref<1x10x10x32xf32, #tpu.memory_space<vmem>>, vector<1x8x8x8xf32>
    %239 = vector.shape_cast %238 : vector<1x8x8x8xf32> to vector<8x8x8xf32>
    %240 = vector.shape_cast %239 : vector<8x8x8xf32> to vector<64x8xf32>
    %c280 = arith.constant 280 : index
    %c0_222 = arith.constant 0 : index
    %241 = vector.load %arg3[%c280, %c0_222] : memref<288x8xf32, #tpu.memory_space<vmem>>, vector<8x8xf32>
    %cst_223 = arith.constant dense<0.000000e+00> : vector<64x8xf32>
    %242 = tpu.matmul %240, %241, %cst_223 {dimension_numbers = #tpu.dot_dimension_numbers<[1], [0], [0], [1], [0, 0, 1, 1], [], []>} : vector<64x8xf32>, vector<8x8xf32>, vector<64x8xf32> -> vector<64x8xf32>
    %243 = arith.addf %237, %242 : vector<64x8xf32>
    %244 = vector.broadcast %12 : vector<1x8xf32> to vector<64x8xf32>
    %245 = arith.mulf %243, %244 : vector<64x8xf32>
    %246 = vector.broadcast %13 : vector<1x8xf32> to vector<64x8xf32>
    %247 = arith.addf %245, %246 : vector<64x8xf32>
    %cst_224 = arith.constant 0.000000e+00 : f32
    %248 = vector.broadcast %cst_224 : f32 to vector<64x8xf32>
    %249 = arith.cmpf oge, %247, %248 : vector<64x8xf32>
    %cst_225 = arith.constant 2.000000e-01 : f32
    %250 = vector.broadcast %cst_225 : f32 to vector<64x8xf32>
    %251 = arith.mulf %250, %247 : vector<64x8xf32>
    %252 = arith.select %249, %247, %251 : vector<64x8xi1>, vector<64x8xf32>
    %cst_226 = arith.constant 1.41421354 : f32
    %253 = vector.broadcast %cst_226 : f32 to vector<64x8xf32>
    %254 = arith.mulf %252, %253 : vector<64x8xf32>
    %c0_227 = arith.constant 0 : index
    %c0_228 = arith.constant 0 : index
    %c24_229 = arith.constant 24 : index
    %255 = vector.load %arg8[%c0_227, %c0_228, %c24_229] : memref<1x64x32xf32, #tpu.memory_space<vmem>>, vector<1x64x8xf32>
    %256 = vector.shape_cast %255 : vector<1x64x8xf32> to vector<64x8xf32>
    %257 = vector.shape_cast %254 : vector<64x8xf32> to vector<1x64x8xf32>
    tpu.vector_store %arg8[%c0_227, %c0_228, %c24_229], %257 {strides = array<i32>} : memref<1x64x32xf32, #tpu.memory_space<vmem>>, vector<1x64x8xf32>,
    %cst_230 = arith.constant dense<0.000000e+00> : vector<64x3xf32>
    %258 = tpu.matmul %254, %15, %cst_230 {dimension_numbers = #tpu.dot_dimension_numbers<[1], [0], [0], [1], [0, 0, 1, 1], [], []>} : vector<64x8xf32>, vector<8x3xf32>, vector<64x3xf32> -> vector<64x3xf32>
    %259 = vector.broadcast %16 : vector<1x3xf32> to vector<64x3xf32>
    %260 = arith.addf %258, %259 : vector<64x3xf32>
    %c1_231 = arith.constant 1 : index
    %c1_232 = arith.constant 1 : index
    %c0_233 = arith.constant 0 : index
    %261 = vector.load %arg10[%c1_231, %c1_232, %c0_233] : memref<10x10x3xf32, #tpu.memory_space<vmem>>, vector<8x8x3xf32>
    %cst_234 = arith.constant 5.625000e-01 : f32
    %262 = vector.broadcast %cst_234 : f32 to vector<8x8x3xf32>
    %263 = arith.mulf %262, %261 : vector<8x8x3xf32>
    %c1_235 = arith.constant 1 : index
    %c2_236 = arith.constant 2 : index
    %c0_237 = arith.constant 0 : index
    %264 = vector.load %arg10[%c1_235, %c2_236, %c0_237] : memref<10x10x3xf32, #tpu.memory_space<vmem>>, vector<8x8x3xf32>
    %cst_238 = arith.constant 1.875000e-01 : f32
    %265 = vector.broadcast %cst_238 : f32 to vector<8x8x3xf32>
    %266 = arith.mulf %265, %264 : vector<8x8x3xf32>
    %267 = arith.addf %263, %266 : vector<8x8x3xf32>
    %c2_239 = arith.constant 2 : index
    %c1_240 = arith.constant 1 : index
    %c0_241 = arith.constant 0 : index
    %268 = vector.load %arg10[%c2_239, %c1_240, %c0_241] : memref<10x10x3xf32, #tpu.memory_space<vmem>>, vector<8x8x3xf32>
    %cst_242 = arith.constant 1.875000e-01 : f32
    %269 = vector.broadcast %cst_242 : f32 to vector<8x8x3xf32>
    %270 = arith.mulf %269, %268 : vector<8x8x3xf32>
    %271 = arith.addf %267, %270 : vector<8x8x3xf32>
    %c2_243 = arith.constant 2 : index
    %c2_244 = arith.constant 2 : index
    %c0_245 = arith.constant 0 : index
    %272 = vector.load %arg10[%c2_243, %c2_244, %c0_245] : memref<10x10x3xf32, #tpu.memory_space<vmem>>, vector<8x8x3xf32>
    %cst_246 = arith.constant 6.250000e-02 : f32
    %273 = vector.broadcast %cst_246 : f32 to vector<8x8x3xf32>
    %274 = arith.mulf %273, %272 : vector<8x8x3xf32>
    %275 = arith.addf %271, %274 : vector<8x8x3xf32>
    %276 = vector.shape_cast %275 : vector<8x8x3xf32> to vector<64x3xf32>
    %277 = arith.addf %260, %276 : vector<64x3xf32>
    %c0_247 = arith.constant 0 : index
    %c0_248 = arith.constant 0 : index
    %c9_249 = arith.constant 9 : index
    %278 = vector.load %arg9[%c0_247, %c0_248, %c9_249] : memref<1x64x12xf32, #tpu.memory_space<vmem>>, vector<1x64x3xf32>
    %279 = vector.shape_cast %278 : vector<1x64x3xf32> to vector<64x3xf32>
    %280 = vector.shape_cast %277 : vector<64x3xf32> to vector<1x64x3xf32>
    tpu.vector_store %arg9[%c0_247, %c0_248, %c9_249], %280 {strides = array<i32>} : memref<1x64x12xf32, #tpu.memory_space<vmem>>, vector<1x64x3xf32>,
    return
  }
  func.func @transform_0(%arg0: i32) -> (i32, i32, i32) {
    %c0_i32 = arith.constant 0 : i32
    %c0_i32_0 = arith.constant 0 : i32
    %c0_i32_1 = arith.constant 0 : i32
    return %arg0, %c0_i32, %c0_i32_0 : i32, i32, i32
  }
  func.func @transform_1(%arg0: i32) -> (i32, i32, i32, i32) {
    %c0_i32 = arith.constant 0 : i32
    %c0_i32_0 = arith.constant 0 : i32
    %c0_i32_1 = arith.constant 0 : i32
    %c0_i32_2 = arith.constant 0 : i32
    return %arg0, %c0_i32, %c0_i32_0, %c0_i32_1 : i32, i32, i32, i32
  }
  func.func @transform_2(%arg0: i32) -> (i32, i32) {
    %c0_i32 = arith.constant 0 : i32
    %c0_i32_0 = arith.constant 0 : i32
    %c0_i32_1 = arith.constant 0 : i32
    return %c0_i32, %c0_i32_0 : i32, i32
  }
  func.func @transform_3(%arg0: i32) -> (i32, i32) {
    %c0_i32 = arith.constant 0 : i32
    %c0_i32_0 = arith.constant 0 : i32
    %c0_i32_1 = arith.constant 0 : i32
    return %c0_i32, %c0_i32_0 : i32, i32
  }
  func.func @transform_4(%arg0: i32) -> (i32, i32, i32) {
    %c0_i32 = arith.constant 0 : i32
    %c0_i32_0 = arith.constant 0 : i32
    %c0_i32_1 = arith.constant 0 : i32
    return %arg0, %c0_i32, %c0_i32_0 : i32, i32, i32
  }
  func.func @transform_5(%arg0: i32) -> (i32, i32) {
    %c0_i32 = arith.constant 0 : i32
    %c0_i32_0 = arith.constant 0 : i32
    %c0_i32_1 = arith.constant 0 : i32
    return %c0_i32, %c0_i32_0 : i32, i32
  }
  func.func @transform_6(%arg0: i32) -> (i32, i32, i32, i32) {
    %c0_i32 = arith.constant 0 : i32
    %c0_i32_0 = arith.constant 0 : i32
    %c0_i32_1 = arith.constant 0 : i32
    %c0_i32_2 = arith.constant 0 : i32
    return %arg0, %c0_i32, %c0_i32_0, %c0_i32_1 : i32, i32, i32, i32
  }
  func.func @transform_7(%arg0: i32) -> (i32, i32, i32) {
    %c0_i32 = arith.constant 0 : i32
    %c0_i32_0 = arith.constant 0 : i32
    %c0_i32_1 = arith.constant 0 : i32
    return %arg0, %c0_i32, %c0_i32_0 : i32, i32, i32
  }
  func.func @transform_8(%arg0: i32) -> (i32, i32, i32) {
    %c0_i32 = arith.constant 0 : i32
    %c0_i32_0 = arith.constant 0 : i32
    %c0_i32_1 = arith.constant 0 : i32
    return %arg0, %c0_i32, %c0_i32_0 : i32, i32, i32
  }
}

</mosaic_0001>

<llo_original>
// kernel: blend_synthesis_block.2
$region0: #{blend_synthesis_block.2}
  #allocation0 [shape = 'u32[]', space=smem, size = 0x4, offset = 0x4, fixed_abs, tag = 'smem constant byte address 0x4 - core index']
  #allocation1 [shape = 'u32[72,128]{1,0:T(1,128)}', space=vmem, size = 0x9000, scoped, tag = 'internal scratch']
  #allocation2 [shape = 'f32[10,10,8]{2,1,0:T(8,128)}', space=vmem, size = 0x14000, scoped, tag = 'scratch operand']
  #allocation3 [shape = 'f32[1,1]{1,0:T(1,128)S(1)}', space=vmem, size = 0x200, scoped, tag = 'scoped memory for blend_synthesis_block.2']
  %s0 = inlined_call_operand.vmem [shape: f32[2,1,8], index: 0, kind: input, shape index: {}]
  %s1 = inlined_call_operand.vmem [shape: f32[2,1,8], index: 1, kind: input, shape index: {}]
  %s2 = inlined_call_operand.vmem [shape: f32[2,1,8], index: 2, kind: input, shape index: {}]
  %s3 = inlined_call_operand.vmem [shape: f32[2,8,8,8], index: 3, kind: input, shape index: {}]
  %s4 = inlined_call_operand.vmem [shape: f32[9,8,32], index: 4, kind: input, shape index: {}]
  %s5 = inlined_call_operand.vmem [shape: f32[1,8], index: 5, kind: input, shape index: {}]
  %s6 = inlined_call_operand.vmem [shape: f32[1,8], index: 6, kind: input, shape index: {}]
  %s7 = inlined_call_operand.<no memory space> [shape: f32[1,1], index: 7, kind: input, shape index: {}]
  %s8 = inlined_call_operand.vmem [shape: f32[2,64,32], index: 8, kind: input, shape index: {}]
  %s9 = inlined_call_operand.vmem [shape: f32[2,10,10,32], index: 9, kind: output, shape index: {0}]
  %s10 = inlined_call_operand.vmem [shape: f32[2,64,4], index: 10, kind: output, shape index: {1}]
  %11 = xla_tuple %s9, %s10
  %s12 = sld [smem:[#allocation0]]
  $region77: #{blend_synthesis_block.2} parent=0
    _
  %s14 = ssub.s32 1, %s12
  %s15 = scalar_select 0, %s14, %s12
  %v16 = vstv %s7
  %17 = vst [vmem:[#allocation3] sm:$0x1] %v16
  loop: start=0, step=1, limit=4
  $region2: #{blend_synthesis_block.2} parent=0 // loop_pre_header
    _
  $region3: #{blend_synthesis_block.2} parent=0 // loop_header
    %s19 = sphi 0, %s23
    %p20 = scmp.ge.s32.totalorder %s19, 4
    %s29 = sphi 0, %s31
    %s32 = sphi 0, %s29
    %s33 = sphi 0, %s32
    %s49 = sphi 0, %s33
    %s55 = sphi 0, %s57
    %s58 = sphi 0, %s55
    %s59 = sphi 0, %s58
    %s75 = sphi 0, %s59
    %s81 = sphi 0, %s83
    %s84 = sphi 0, %s81
    %s85 = sphi 0, %s84
    %s101 = sphi 0, %s85
    %s107 = sphi 0, %s109
    %s110 = sphi 0, %s107
    %s111 = sphi 0, %s110
    %s127 = sphi 0, %s111
    %s131 = sphi 0, %s131
    %s133 = sphi 0, %s131
    %s134 = sphi 0, %s133
    %s148 = sphi 0, %s134
    %s152 = sphi 0, %s152
    %s154 = sphi 0, %s152
    %s155 = sphi 0, %s154
    %s169 = sphi 0, %s155
    %s173 = sphi 0, %s173
    %s175 = sphi 0, %s173
    %s176 = sphi 0, %s175
    %s190 = sphi 0, %s176
    %s194 = sphi 0, %s194
    %s196 = sphi 0, %s194
    %s197 = sphi 0, %s196
    %s211 = sphi 0, %s197
    %s217 = sphi 0, %s219
    %s220 = sphi 0, %s217
    %s221 = sphi 0, %s220
    %s237 = sphi 0, %s221
    %s243 = sphi 0, %s245
    %s246 = sphi 0, %s243
    %s247 = sphi 0, %s246
    %s263 = sphi 0, %s247
    %s269 = sphi 0, %s271
    %s272 = sphi 0, %s269
    %s273 = sphi 0, %s272
    %s289 = sphi 0, %s273
  $region4: #{blend_synthesis_block.2} parent=0 // loop_header_branch
    %22 = sbr.rel (%p20) target = $region8
  $region5: #{blend_synthesis_block.2} parent=0 // loop_body
    %s24 = ssub.s32 %s19, 1
    %s25 = ssub.s32 %s19, 2
    %s26 = sadd.s32 %s19, 1
    %s27 = ssub.s32 %s19, %s26
    %p28 = scmp.eq.s32.totalorder %s27, 0
    %s30 = sadd.s32 %s29, 1
    %s31 = scalar_select %p28, %s29, %s30
    %p34 = pneg %p28
    %p35 = scmp.eq.s32.totalorder %s19, 1
    %p36 = por %p34, %p35
    %p37 = scmp.ne.s32.totalorder %s29, %s32
    %p38 = scmp.eq.s32.totalorder %s19, 0
    %p39 = por %p37, %p38
    %p40 = scmp.ne.s32.totalorder %s29, %s32
    %p41 = scmp.eq.s32.totalorder %s24, 1
    %p42 = por %p40, %p41
    %p43 = scmp.ne.s32.totalorder %s32, %s33
    %p44 = scmp.eq.s32.totalorder %s24, 0
    %p45 = por %p43, %p44
    %p46 = scmp.ne.s32.totalorder %s32, %s33
    %p47 = scmp.eq.s32.totalorder %s25, 1
    %p48 = por %p46, %p47
    %p50 = scmp.ne.s32.totalorder %s33, %s49
    %p51 = scmp.eq.s32.totalorder %s25, 0
    %p52 = por %p50, %p51
    %s53 = ssub.s32 %s19, %s26
    %p54 = scmp.eq.s32.totalorder %s53, 0
    %s56 = sadd.s32 %s55, 1
    %s57 = scalar_select %p54, %s55, %s56
    %p60 = pneg %p54
    %p61 = scmp.eq.s32.totalorder %s19, 1
    %p62 = por %p60, %p61
    %p63 = scmp.ne.s32.totalorder %s55, %s58
    %p64 = scmp.eq.s32.totalorder %s19, 0
    %p65 = por %p63, %p64
    %p66 = scmp.ne.s32.totalorder %s55, %s58
    %p67 = scmp.eq.s32.totalorder %s24, 1
    %p68 = por %p66, %p67
    %p69 = scmp.ne.s32.totalorder %s58, %s59
    %p70 = scmp.eq.s32.totalorder %s24, 0
    %p71 = por %p69, %p70
    %p72 = scmp.ne.s32.totalorder %s58, %s59
    %p73 = scmp.eq.s32.totalorder %s25, 1
    %p74 = por %p72, %p73
    %p76 = scmp.ne.s32.totalorder %s59, %s75
    %p77 = scmp.eq.s32.totalorder %s25, 0
    %p78 = por %p76, %p77
    %s79 = ssub.s32 %s19, %s26
    %p80 = scmp.eq.s32.totalorder %s79, 0
    %s82 = sadd.s32 %s81, 1
    %s83 = scalar_select %p80, %s81, %s82
    %p86 = pneg %p80
    %p87 = scmp.eq.s32.totalorder %s19, 1
    %p88 = por %p86, %p87
    %p89 = scmp.ne.s32.totalorder %s81, %s84
    %p90 = scmp.eq.s32.totalorder %s19, 0
    %p91 = por %p89, %p90
    %p92 = scmp.ne.s32.totalorder %s81, %s84
    %p93 = scmp.eq.s32.totalorder %s24, 1
    %p94 = por %p92, %p93
    %p95 = scmp.ne.s32.totalorder %s84, %s85
    %p96 = scmp.eq.s32.totalorder %s24, 0
    %p97 = por %p95, %p96
    %p98 = scmp.ne.s32.totalorder %s84, %s85
    %p99 = scmp.eq.s32.totalorder %s25, 1
    %p100 = por %p98, %p99
    %p102 = scmp.ne.s32.totalorder %s85, %s101
    %p103 = scmp.eq.s32.totalorder %s25, 0
    %p104 = por %p102, %p103
    %s105 = ssub.s32 %s19, %s26
    %p106 = scmp.eq.s32.totalorder %s105, 0
    %s108 = sadd.s32 %s107, 1
    %s109 = scalar_select %p106, %s107, %s108
    %p112 = pneg %p106
    %p113 = scmp.eq.s32.totalorder %s19, 1
    %p114 = por %p112, %p113
    %p115 = scmp.ne.s32.totalorder %s107, %s110
    %p116 = scmp.eq.s32.totalorder %s19, 0
    %p117 = por %p115, %p116
    %p118 = scmp.ne.s32.totalorder %s107, %s110
    %p119 = scmp.eq.s32.totalorder %s24, 1
    %p120 = por %p118, %p119
    %p121 = scmp.ne.s32.totalorder %s110, %s111
    %p122 = scmp.eq.s32.totalorder %s24, 0
    %p123 = por %p121, %p122
    %p124 = scmp.ne.s32.totalorder %s110, %s111
    %p125 = scmp.eq.s32.totalorder %s25, 1
    %p126 = por %p124, %p125
    %p128 = scmp.ne.s32.totalorder %s111, %s127
    %p129 = scmp.eq.s32.totalorder %s25, 0
    %p130 = por %p128, %p129
    %s132 = sadd.s32 %s131, 1
    %p135 = scmp.eq.s32.totalorder %s19, 1
    %p136 = scmp.ne.s32.totalorder %s131, %s133
    %p137 = scmp.eq.s32.totalorder %s19, 0
    %p138 = por %p136, %p137
    %p139 = scmp.ne.s32.totalorder %s131, %s133
    %p140 = scmp.eq.s32.totalorder %s24, 1
    %p141 = por %p139, %p140
    %p142 = scmp.ne.s32.totalorder %s133, %s134
    %p143 = scmp.eq.s32.totalorder %s24, 0
    %p144 = por %p142, %p143
    %p145 = scmp.ne.s32.totalorder %s133, %s134
    %p146 = scmp.eq.s32.totalorder %s25, 1
    %p147 = por %p145, %p146
    %p149 = scmp.ne.s32.totalorder %s134, %s148
    %p150 = scmp.eq.s32.totalorder %s25, 0
    %p151 = por %p149, %p150
    %s153 = sadd.s32 %s152, 1
    %p156 = scmp.eq.s32.totalorder %s19, 1
    %p157 = scmp.ne.s32.totalorder %s152, %s154
    %p158 = scmp.eq.s32.totalorder %s19, 0
    %p159 = por %p157, %p158
    %p160 = scmp.ne.s32.totalorder %s152, %s154
    %p161 = scmp.eq.s32.totalorder %s24, 1
    %p162 = por %p160, %p161
    %p163 = scmp.ne.s32.totalorder %s154, %s155
    %p164 = scmp.eq.s32.totalorder %s24, 0
    %p165 = por %p163, %p164
    %p166 = scmp.ne.s32.totalorder %s154, %s155
    %p167 = scmp.eq.s32.totalorder %s25, 1
    %p168 = por %p166, %p167
    %p170 = scmp.ne.s32.totalorder %s155, %s169
    %p171 = scmp.eq.s32.totalorder %s25, 0
    %p172 = por %p170, %p171
    %s174 = sadd.s32 %s173, 1
    %p177 = scmp.eq.s32.totalorder %s19, 1
    %p178 = scmp.ne.s32.totalorder %s173, %s175
    %p179 = scmp.eq.s32.totalorder %s19, 0
    %p180 = por %p178, %p179
    %p181 = scmp.ne.s32.totalorder %s173, %s175
    %p182 = scmp.eq.s32.totalorder %s24, 1
    %p183 = por %p181, %p182
    %p184 = scmp.ne.s32.totalorder %s175, %s176
    %p185 = scmp.eq.s32.totalorder %s24, 0
    %p186 = por %p184, %p185
    %p187 = scmp.ne.s32.totalorder %s175, %s176
    %p188 = scmp.eq.s32.totalorder %s25, 1
    %p189 = por %p187, %p188
    %p191 = scmp.ne.s32.totalorder %s176, %s190
    %p192 = scmp.eq.s32.totalorder %s25, 0
    %p193 = por %p191, %p192
    %s195 = sadd.s32 %s194, 1
    %p198 = scmp.eq.s32.totalorder %s19, 1
    %p199 = scmp.ne.s32.totalorder %s194, %s196
    %p200 = scmp.eq.s32.totalorder %s19, 0
    %p201 = por %p199, %p200
    %p202 = scmp.ne.s32.totalorder %s194, %s196
    %p203 = scmp.eq.s32.totalorder %s24, 1
    %p204 = por %p202, %p203
    %p205 = scmp.ne.s32.totalorder %s196, %s197
    %p206 = scmp.eq.s32.totalorder %s24, 0
    %p207 = por %p205, %p206
    %p208 = scmp.ne.s32.totalorder %s196, %s197
    %p209 = scmp.eq.s32.totalorder %s25, 1
    %p210 = por %p208, %p209
    %p212 = scmp.ne.s32.totalorder %s197, %s211
    %p213 = scmp.eq.s32.totalorder %s25, 0
    %p214 = por %p212, %p213
    %s215 = ssub.s32 %s19, %s26
    %p216 = scmp.eq.s32.totalorder %s215, 0
    %s218 = sadd.s32 %s217, 1
    %s219 = scalar_select %p216, %s217, %s218
    %p222 = pneg %p216
    %p223 = scmp.eq.s32.totalorder %s19, 1
    %p224 = por %p222, %p223
    %p225 = scmp.ne.s32.totalorder %s217, %s220
    %p226 = scmp.eq.s32.totalorder %s19, 0
    %p227 = por %p225, %p226
    %p228 = scmp.ne.s32.totalorder %s217, %s220
    %p229 = scmp.eq.s32.totalorder %s24, 1
    %p230 = por %p228, %p229
    %p231 = scmp.ne.s32.totalorder %s220, %s221
    %p232 = scmp.eq.s32.totalorder %s24, 0
    %p233 = por %p231, %p232
    %p234 = scmp.ne.s32.totalorder %s220, %s221
    %p235 = scmp.eq.s32.totalorder %s25, 1
    %p236 = por %p234, %p235
    %p238 = scmp.ne.s32.totalorder %s221, %s237
    %p239 = scmp.eq.s32.totalorder %s25, 0
    %p240 = por %p238, %p239
    %s241 = ssub.s32 %s19, %s26
    %p242 = scmp.eq.s32.totalorder %s241, 0
    %s244 = sadd.s32 %s243, 1
    %s245 = scalar_select %p242, %s243, %s244
    %p248 = pneg %p242
    %p249 = scmp.eq.s32.totalorder %s19, 1
    %p250 = por %p248, %p249
    %p251 = scmp.ne.s32.totalorder %s243, %s246
    %p252 = scmp.eq.s32.totalorder %s19, 0
    %p253 = por %p251, %p252
    %p254 = scmp.ne.s32.totalorder %s243, %s246
    %p255 = scmp.eq.s32.totalorder %s24, 1
    %p256 = por %p254, %p255
    %p257 = scmp.ne.s32.totalorder %s246, %s247
    %p258 = scmp.eq.s32.totalorder %s24, 0
    %p259 = por %p257, %p258
    %p260 = scmp.ne.s32.totalorder %s246, %s247
    %p261 = scmp.eq.s32.totalorder %s25, 1
    %p262 = por %p260, %p261
    %p264 = scmp.ne.s32.totalorder %s247, %s263
    %p265 = scmp.eq.s32.totalorder %s25, 0
    %p266 = por %p264, %p265
    %s267 = ssub.s32 %s19, %s26
    %p268 = scmp.eq.s32.totalorder %s267, 0
    %s270 = sadd.s32 %s269, 1
    %s271 = scalar_select %p268, %s269, %s270
    %p274 = pneg %p268
    %p275 = scmp.eq.s32.totalorder %s19, 1
    %p276 = por %p274, %p275
    %p277 = scmp.ne.s32.totalorder %s269, %s272
    %p278 = scmp.eq.s32.totalorder %s19, 0
    %p279 = por %p277, %p278
    %p280 = scmp.ne.s32.totalorder %s269, %s272
    %p281 = scmp.eq.s32.totalorder %s24, 1
    %p282 = por %p280, %p281
    %p283 = scmp.ne.s32.totalorder %s272, %s273
    %p284 = scmp.eq.s32.totalorder %s24, 0
    %p285 = por %p283, %p284
    %p286 = scmp.ne.s32.totalorder %s272, %s273
    %p287 = scmp.eq.s32.totalorder %s25, 1
    %p288 = por %p286, %p287
    %p290 = scmp.ne.s32.totalorder %s273, %s289
    %p291 = scmp.eq.s32.totalorder %s25, 0
    %p292 = por %p290, %p291
    %p293 = scmp.le.s32.totalorder 1, %s19
    %p294 = scmp.lt.s32.totalorder %s19, 3
    %p295 = pnand %p293, %p294
    %p296 = pneg %p295
    // Predicated region
    $region9: #{blend_synthesis_block.2} parent=5 // pred_check
      _
    $region10: #{blend_synthesis_block.2} parent=5 // pred_check_branch
      %298 = sbr.rel (%p295) target = $region12
    $region11: #{blend_synthesis_block.2} parent=5 // pred_region
      %s299 = ssub.s32 %s19, 1
      // Predicated region
      $region13: #{blend_synthesis_block.2} parent=11 // pred_check
        %p300 = pneg %p144
      $region14: #{blend_synthesis_block.2} parent=11 // pred_check_branch
        %302 = sbr.rel (%p300) target = $region16
      $region15: #{blend_synthesis_block.2} parent=11 // pred_region
        _
      $region16: #{blend_synthesis_block.2} parent=11 // pred_fallthru
        _
      // Predicated region
      $region17: #{blend_synthesis_block.2} parent=11 // pred_check
        %p303 = pneg %p165
      $region18: #{blend_synthesis_block.2} parent=11 // pred_check_branch
        %305 = sbr.rel (%p303) target = $region20
      $region19: #{blend_synthesis_block.2} parent=11 // pred_region
        _
      $region20: #{blend_synthesis_block.2} parent=11 // pred_fallthru
        _
      // Predicated region
      $region21: #{blend_synthesis_block.2} parent=11 // pred_check
        %p306 = pneg %p186
      $region22: #{blend_synthesis_block.2} parent=11 // pred_check_branch
        %308 = sbr.rel (%p306) target = $region24
      $region23: #{blend_synthesis_block.2} parent=11 // pred_region
        _
      $region24: #{blend_synthesis_block.2} parent=11 // pred_fallthru
        _
      // Predicated region
      $region25: #{blend_synthesis_block.2} parent=11 // pred_check
        %p309 = pneg %p207
      $region26: #{blend_synthesis_block.2} parent=11 // pred_check_branch
        %311 = sbr.rel (%p309) target = $region28
      $region27: #{blend_synthesis_block.2} parent=11 // pred_region
        _
      $region28: #{blend_synthesis_block.2} parent=11 // pred_fallthru
        _
    $region12: #{blend_synthesis_block.2} parent=5 // pred_fallthru
      _
    %p312 = scmp.lt.s32.totalorder %s19, 2
    // Predicated region
    $region29: #{blend_synthesis_block.2} parent=5 // pred_check
      %p313 = pneg %p312
    $region30: #{blend_synthesis_block.2} parent=5 // pred_check_branch
      %315 = sbr.rel (%p313) target = $region32
    $region31: #{blend_synthesis_block.2} parent=5 // pred_region
      // Predicated region
      $region33: #{blend_synthesis_block.2} parent=31 // pred_check
        %p316 = pneg %p39
      $region34: #{blend_synthesis_block.2} parent=31 // pred_check_branch
        %318 = sbr.rel (%p316) target = $region36
      $region35: #{blend_synthesis_block.2} parent=31 // pred_region
        %p319 = scmp.lt.s32.totalorder %s19, 1
        %s320 = scalar_select %p319, %s19, 1
        %s321 = scalar_lea.vmem %s0, %s320
      $region36: #{blend_synthesis_block.2} parent=31 // pred_fallthru
        _
      // Predicated region
      $region37: #{blend_synthesis_block.2} parent=31 // pred_check
        %p322 = pneg %p65
      $region38: #{blend_synthesis_block.2} parent=31 // pred_check_branch
        %324 = sbr.rel (%p322) target = $region40
      $region39: #{blend_synthesis_block.2} parent=31 // pred_region
        %p325 = scmp.lt.s32.totalorder %s19, 1
        %s326 = scalar_select %p325, %s19, 1
        %s327 = scalar_lea.vmem %s1, %s326
      $region40: #{blend_synthesis_block.2} parent=31 // pred_fallthru
        _
      // Predicated region
      $region41: #{blend_synthesis_block.2} parent=31 // pred_check
        %p328 = pneg %p91
      $region42: #{blend_synthesis_block.2} parent=31 // pred_check_branch
        %330 = sbr.rel (%p328) target = $region44
      $region43: #{blend_synthesis_block.2} parent=31 // pred_region
        %p331 = scmp.lt.s32.totalorder %s19, 1
        %s332 = scalar_select %p331, %s19, 1
        %s333 = scalar_lea.vmem %s2, %s332
      $region44: #{blend_synthesis_block.2} parent=31 // pred_fallthru
        _
      // Predicated region
      $region45: #{blend_synthesis_block.2} parent=31 // pred_check
        %p334 = pneg %p117
      $region46: #{blend_synthesis_block.2} parent=31 // pred_check_branch
        %336 = sbr.rel (%p334) target = $region48
      $region47: #{blend_synthesis_block.2} parent=31 // pred_region
        %p337 = scmp.lt.s32.totalorder %s19, 1
        %s338 = scalar_select %p337, %s19, 1
        %s339 = smul.addr %s338, 8
        %s340 = smul.addr %s339, 8
        %s341 = scalar_lea.vmem %s3, %s340
      $region48: #{blend_synthesis_block.2} parent=31 // pred_fallthru
        _
      // Predicated region
      $region49: #{blend_synthesis_block.2} parent=31 // pred_check
        %p342 = pneg %p227
      $region50: #{blend_synthesis_block.2} parent=31 // pred_check_branch
        %344 = sbr.rel (%p342) target = $region52
      $region51: #{blend_synthesis_block.2} parent=31 // pred_region
        %p345 = scmp.lt.s32.totalorder %s19, 1
        %s346 = scalar_select %p345, %s19, 1
        %s347 = smul.addr %s346, 8
        %s348 = smul.addr %s347, 8
        %s349 = scalar_lea.vmem %s8, %s348
      $region52: #{blend_synthesis_block.2} parent=31 // pred_fallthru
        _
    $region32: #{blend_synthesis_block.2} parent=5 // pred_fallthru
      _
    %p350 = scmp.le.s32.totalorder 1, %s19
    %p351 = scmp.lt.s32.totalorder %s19, 3
    %p352 = pnand %p350, %p351
    %p353 = pneg %p352
    // Predicated region
    $region53: #{blend_synthesis_block.2} parent=5 // pred_check
      _
    $region54: #{blend_synthesis_block.2} parent=5 // pred_check_branch
      %355 = sbr.rel (%p352) target = $region56
    $region55: #{blend_synthesis_block.2} parent=5 // pred_region
      %s356 = ssub.s32 %s19, 1
      %p357 = scmp.lt.s32.totalorder %s24, 1
      %s358 = scalar_select %p357, %s24, 1
      %s359 = scalar_lea.vmem %s0, %s358
      %p360 = pneg %p45
      %p361 = pneg %p42
      %p362 = scmp.lt.s32.totalorder %s24, 1
      %s363 = scalar_select %p362, %s24, 1
      %s364 = scalar_lea.vmem %s1, %s363
      %p365 = pneg %p71
      %p366 = pneg %p68
      %p367 = scmp.lt.s32.totalorder %s24, 1
      %s368 = scalar_select %p367, %s24, 1
      %s369 = scalar_lea.vmem %s2, %s368
      %p370 = pneg %p97
      %p371 = pneg %p94
      %p372 = scmp.lt.s32.totalorder %s24, 1
      %s373 = scalar_select %p372, %s24, 1
      %s374 = smul.addr %s373, 8
      %s375 = smul.addr %s374, 8
      %s376 = scalar_lea.vmem %s3, %s375
      %p377 = pneg %p123
      %p378 = pneg %p120
      %p379 = pneg %p144
      %p380 = pneg %p141
      %p381 = pneg %p165
      %p382 = pneg %p162
      %p383 = pneg %p186
      %p384 = pneg %p183
      %p385 = pneg %p207
      %p386 = pneg %p204
      %p387 = scmp.lt.s32.totalorder %s24, 1
      %s388 = scalar_select %p387, %s24, 1
      %s389 = smul.addr %s388, 8
      %s390 = smul.addr %s389, 8
      %s391 = scalar_lea.vmem %s8, %s390
      %p392 = pneg %p233
      %p393 = pneg %p230
      %p394 = pneg %p259
      %p395 = pneg %p256
      %p396 = scmp.lt.s32.totalorder %s24, 1
      %s397 = scalar_select %p396, %s24, 1
      %s398 = smul.addr %s397, 20
      %s399 = smul.addr %s398, 8
      %s400 = scalar_lea.vmem %s9, %s399
      %p401 = pneg %p285
      %p402 = pneg %p282
      %p403 = scmp.lt.s32.totalorder %s24, 1
      %s404 = scalar_select %p403, %s24, 1
      %s405 = smul.addr %s404, 8
      %s406 = smul.addr %s405, 8
      %s407 = scalar_lea.vmem %s10, %s406
      %p408 = scmp.lt.s32.totalorder %s24, 1
      %s409 = scalar_select %p408, %s24, 1
      %s410 = scalar_lea.vmem %s0, %s409
      %p411 = scmp.lt.s32.totalorder %s24, 1
      %s412 = scalar_select %p411, %s24, 1
      %s413 = scalar_lea.vmem %s1, %s412
      %p414 = scmp.lt.s32.totalorder %s24, 1
      %s415 = scalar_select %p414, %s24, 1
      %s416 = scalar_lea.vmem %s2, %s415
      %p417 = scmp.lt.s32.totalorder %s24, 1
      %s418 = scalar_select %p417, %s24, 1
      %s419 = smul.addr %s418, 8
      %s420 = smul.addr %s419, 8
      %s421 = scalar_lea.vmem %s3, %s420
      %p422 = scmp.lt.s32.totalorder %s24, 1
      %s423 = scalar_select %p422, %s24, 1
      %s424 = smul.addr %s423, 8
      %s425 = smul.addr %s424, 8
      %s426 = scalar_lea.vmem %s8, %s425
      %p427 = scmp.lt.s32.totalorder %s24, 1
      %s428 = scalar_select %p427, %s24, 1
      %s429 = smul.addr %s428, 20
      %s430 = smul.addr %s429, 8
      %s431 = scalar_lea.vmem %s9, %s430
      %p432 = scmp.lt.s32.totalorder %s24, 1
      %s433 = scalar_select %p432, %s24, 1
      %s434 = smul.addr %s433, 8
      %s435 = smul.addr %s434, 8
      %s436 = scalar_lea.vmem %s10, %s435
      %vm437 = vcmask 64512
      %438 = vst.msk [vmem:[#allocation2] sm:$0xff] %vm437, 0.0
      %vm439 = vcmask 58368
      %440 = vst.msk [vmem:[#allocation2 + $0x8] sm:$0x3] %vm439, 0.0
      %s441 = scalar_lea.vmem [#allocation2], 144
      %442 = vst.msk [vmem:[%s441] sm:$0xff] %vm437, 0.0
      %443 = vst.msk [vmem:[%s441 + $0x8] sm:$0x3] %vm439, 0.0
      %s444 = scalar_lea.vmem [#allocation2], 16
      %vm445 = vcmask 57344
      %446 = vst.msk [vmem:[%s444] sm:$0x1] %vm445, 0.0
      %447 = vst.msk [vmem:[%s444 + $0x10] sm:$0x1] %vm445, 0.0
      %448 = vst.msk [vmem:[%s444 + $0x20] sm:$0x1] %vm445, 0.0
      %449 = vst.msk [vmem:[%s444 + $0x30] sm:$0x1] %vm445, 0.0
      %450 = vst.msk [vmem:[%s444 + $0x40] sm:$0x1] %vm445, 0.0
      %451 = vst.msk [vmem:[%s444 + $0x50] sm:$0x1] %vm445, 0.0
      %452 = vst.msk [vmem:[%s444 + $0x60] sm:$0x1] %vm445, 0.0
      %453 = vst.msk [vmem:[%s444 + $0x70] sm:$0x1] %vm445, 0.0
      %454 = vst.msk [vmem:[%s444 + $0x9] sm:$0x1] %vm445, 0.0
      %455 = vst.msk [vmem:[%s444 + $0x19] sm:$0x1] %vm445, 0.0
      %456 = vst.msk [vmem:[%s444 + $0x29] sm:$0x1] %vm445, 0.0
      %457 = vst.msk [vmem:[%s444 + $0x39] sm:$0x1] %vm445, 0.0
      %458 = vst.msk [vmem:[%s444 + $0x49] sm:$0x1] %vm445, 0.0
      %459 = vst.msk [vmem:[%s444 + $0x59] sm:$0x1] %vm445, 0.0
      %460 = vst.msk [vmem:[%s444 + $0x69] sm:$0x1] %vm445, 0.0
      %461 = vst.msk [vmem:[%s444 + $0x79] sm:$0x1] %vm445, 0.0
      %v462 = vld [vmem:[%s421] sm:$0xff]
      %v463 = vld [vmem:[%s421 + $0x8] sm:$0xff]
      %v464 = vld [vmem:[%s421 + $0x10] sm:$0xff]
      %v465 = vld [vmem:[%s421 + $0x18] sm:$0xff]
      %v466 = vld [vmem:[%s421 + $0x20] sm:$0xff]
      %v467 = vld [vmem:[%s421 + $0x28] sm:$0xff]
      %v468 = vld [vmem:[%s421 + $0x30] sm:$0xff]
      %v469 = vld [vmem:[%s421 + $0x38] sm:$0xff]
      %v470 = vld [vmem:[%s410] sm:$0x1]
      %v472 = vperm.slane %v470, 0
      %v474 = vmul.f32 %v462, %v472
      %v475 = vmul.f32 %v463, %v472
      %v476 = vmul.f32 %v464, %v472
      %v477 = vmul.f32 %v465, %v472
      %v478 = vmul.f32 %v466, %v472
      %v479 = vmul.f32 %v467, %v472
      %v480 = vmul.f32 %v468, %v472
      %v481 = vmul.f32 %v469, %v472
      %482 = vst.msk [vmem:[%s444 + $0x1] sm:$0xff] %vm437, %v474
      %483 = vst.msk [vmem:[%s444 + $0x11] sm:$0xff] %vm437, %v475
      %484 = vst.msk [vmem:[%s444 + $0x21] sm:$0xff] %vm437, %v476
      %485 = vst.msk [vmem:[%s444 + $0x31] sm:$0xff] %vm437, %v477
      %486 = vst.msk [vmem:[%s444 + $0x41] sm:$0xff] %vm437, %v478
      %487 = vst.msk [vmem:[%s444 + $0x51] sm:$0xff] %vm437, %v479
      %488 = vst.msk [vmem:[%s444 + $0x61] sm:$0xff] %vm437, %v480
      %489 = vst.msk [vmem:[%s444 + $0x71] sm:$0xff] %vm437, %v481
      %v490 = vld [vmem:[#allocation2] sm:$0xff]
      %v491 = vld [vmem:[#allocation2 + $0x10] sm:$0xff]
      %v492 = vld [vmem:[#allocation2 + $0x20] sm:$0xff]
      %v493 = vld [vmem:[#allocation2 + $0x30] sm:$0xff]
      %v494 = vld [vmem:[#allocation2 + $0x40] sm:$0xff]
      %v495 = vld [vmem:[#allocation2 + $0x50] sm:$0xff]
      %v496 = vld [vmem:[#allocation2 + $0x60] sm:$0xff]
      %v497 = vld [vmem:[#allocation2 + $0x70] sm:$0xff]
      %v498 = vld [vmem:[%s4] sm:$0xff]
      %v499 = vld [vmem:[#allocation2 + $0x1] sm:$0xff]
      %v500 = vld [vmem:[#allocation2 + $0x11] sm:$0xff]
      %v501 = vld [vmem:[#allocation2 + $0x21] sm:$0xff]
      %v502 = vld [vmem:[#allocation2 + $0x31] sm:$0xff]
      %v503 = vld [vmem:[#allocation2 + $0x41] sm:$0xff]
      %v504 = vld [vmem:[#allocation2 + $0x51] sm:$0xff]
      %v505 = vld [vmem:[#allocation2 + $0x61] sm:$0xff]
      %v506 = vld [vmem:[#allocation2 + $0x71] sm:$0xff]
      %s507 = scalar_lea.vmem %s4, 8
      %v508 = vld [vmem:[%s507] sm:$0xff]
      %v510 = vsel %vm437, %v499, 0
      %v513 = vsel %vm437, %v500, 0
      %v516 = vsel %vm437, %v501, 0
      %v519 = vsel %vm437, %v502, 0
      %v522 = vsel %vm437, %v503, 0
      %v525 = vsel %vm437, %v504, 0
      %v528 = vsel %vm437, %v505, 0
      %v531 = vsel %vm437, %v506, 0
      %533 = vmatpush.msra.mxu0 0.0
      %534 = vmatpush.msra.mxu0 0.0
      %535 = vmatpush.msra.mxu0 0.0
      %536 = vmatpush.msra.mxu0 0.0
      %537 = vmatpush.msra.mxu0 0.0
      %538 = vmatpush.msra.mxu0 0.0
      %539 = vmatpush.msra.mxu0 0.0
      %540 = vmatpush.msra.mxu0 0.0
      %541 = vmatpush.msra.mxu0 0.0
      %542 = vmatpush.msra.mxu0 0.0
      %543 = vmatpush.msra.mxu0 0.0
      %544 = vmatpush.msra.mxu0 0.0
      %545 = vmatpush.msra.mxu0 0.0
      %546 = vmatpush.msra.mxu0 0.0
      %547 = vmatpush.msra.mxu0 0.0
      %548 = vmatpush.msra.mxu0 %v508
      %549 = vmatmul.f32.gmra.mxu0 %v510
      %v550 = vpop.f32.mrf.mxu0
      %v551 = vadd.f32 0.0, %v550
      %552 = vmatmul.f32.gmra.mxu0 %v513
      %v553 = vpop.f32.mrf.mxu0
      %v554 = vadd.f32 0.0, %v553
      %555 = vmatmul.f32.gmra.mxu0 %v516
      %v556 = vpop.f32.mrf.mxu0
      %v557 = vadd.f32 0.0, %v556
      %558 = vmatmul.f32.gmra.mxu0 %v519
      %v559 = vpop.f32.mrf.mxu0
      %v560 = vadd.f32 0.0, %v559
      %561 = vmatmul.f32.gmra.mxu0 %v522
      %v562 = vpop.f32.mrf.mxu0
      %v563 = vadd.f32 0.0, %v562
      %564 = vmatmul.f32.gmra.mxu0 %v525
      %v565 = vpop.f32.mrf.mxu0
      %v566 = vadd.f32 0.0, %v565
      %567 = vmatmul.f32.gmra.mxu0 %v528
      %v568 = vpop.f32.mrf.mxu0
      %v569 = vadd.f32 0.0, %v568
      %570 = vmatmul.f32.gmra.mxu0 %v531
      %v571 = vpop.f32.mrf.mxu0
      %v572 = vadd.f32 0.0, %v571
      %573 = vdwg.mxu0
      %v575 = vsel %vm437, %v490, 0
      %v578 = vsel %vm437, %v491, 0
      %v581 = vsel %vm437, %v492, 0
      %v584 = vsel %vm437, %v493, 0
      %v587 = vsel %vm437, %v494, 0
      %v590 = vsel %vm437, %v495, 0
      %v593 = vsel %vm437, %v496, 0
      %v596 = vsel %vm437, %v497, 0
      %598 = vmatpush.msra.mxu0 0.0
      %599 = vmatpush.msra.mxu0 0.0
      %600 = vmatpush.msra.mxu0 0.0
      %601 = vmatpush.msra.mxu0 0.0
      %602 = vmatpush.msra.mxu0 0.0
      %603 = vmatpush.msra.mxu0 0.0
      %604 = vmatpush.msra.mxu0 0.0
      %605 = vmatpush.msra.mxu0 0.0
      %606 = vmatpush.msra.mxu0 0.0
      %607 = vmatpush.msra.mxu0 0.0
      %608 = vmatpush.msra.mxu0 0.0
      %609 = vmatpush.msra.mxu0 0.0
      %610 = vmatpush.msra.mxu0 0.0
      %611 = vmatpush.msra.mxu0 0.0
      %612 = vmatpush.msra.mxu0 0.0
      %613 = vmatpush.msra.mxu0 %v498
      %614 = vmatmul.f32.gmra.mxu0 %v575
      %v615 = vpop.f32.mrf.mxu0
      %v616 = vadd.f32 %v551, %v615
      %617 = vmatmul.f32.gmra.mxu0 %v578
      %v618 = vpop.f32.mrf.mxu0
      %v619 = vadd.f32 %v554, %v618
      %620 = vmatmul.f32.gmra.mxu0 %v581
      %v621 = vpop.f32.mrf.mxu0
      %v622 = vadd.f32 %v557, %v621
      %623 = vmatmul.f32.gmra.mxu0 %v584
      %v624 = vpop.f32.mrf.mxu0
      %v625 = vadd.f32 %v560, %v624
      %626 = vmatmul.f32.gmra.mxu0 %v587
      %v627 = vpop.f32.mrf.mxu0
      %v628 = vadd.f32 %v563, %v627
      %629 = vmatmul.f32.gmra.mxu0 %v590
      %v630 = vpop.f32.mrf.mxu0
      %v631 = vadd.f32 %v566, %v630
      %632 = vmatmul.f32.gmra.mxu0 %v593
      %v633 = vpop.f32.mrf.mxu0
      %v634 = vadd.f32 %v569, %v633
      %635 = vmatmul.f32.gmra.mxu0 %v596
      %v636 = vpop.f32.mrf.mxu0
      %v637 = vadd.f32 %v572, %v636
      %638 = vdwg.mxu0
      %v639 = vld [vmem:[#allocation2 + $0x2] sm:$0xff]
      %v640 = vld [vmem:[#allocation2 + $0x12] sm:$0xff]
      %v641 = vld [vmem:[#allocation2 + $0x22] sm:$0xff]
      %v642 = vld [vmem:[#allocation2 + $0x32] sm:$0xff]
      %v643 = vld [vmem:[#allocation2 + $0x42] sm:$0xff]
      %v644 = vld [vmem:[#allocation2 + $0x52] sm:$0xff]
      %v645 = vld [vmem:[#allocation2 + $0x62] sm:$0xff]
      %v646 = vld [vmem:[#allocation2 + $0x72] sm:$0xff]
      %s647 = scalar_lea.vmem %s4, 16
      %v648 = vld [vmem:[%s647] sm:$0xff]
      %v650 = vsel %vm437, %v639, 0
      %v653 = vsel %vm437, %v640, 0
      %v656 = vsel %vm437, %v641, 0
      %v659 = vsel %vm437, %v642, 0
      %v662 = vsel %vm437, %v643, 0
      %v665 = vsel %vm437, %v644, 0
      %v668 = vsel %vm437, %v645, 0
      %v671 = vsel %vm437, %v646, 0
      %673 = vmatpush.msra.mxu0 0.0
      %674 = vmatpush.msra.mxu0 0.0
      %675 = vmatpush.msra.mxu0 0.0
      %676 = vmatpush.msra.mxu0 0.0
      %677 = vmatpush.msra.mxu0 0.0
      %678 = vmatpush.msra.mxu0 0.0
      %679 = vmatpush.msra.mxu0 0.0
      %680 = vmatpush.msra.mxu0 0.0
      %681 = vmatpush.msra.mxu0 0.0
      %682 = vmatpush.msra.mxu0 0.0
      %683 = vmatpush.msra.mxu0 0.0
      %684 = vmatpush.msra.mxu0 0.0
      %685 = vmatpush.msra.mxu0 0.0
      %686 = vmatpush.msra.mxu0 0.0
      %687 = vmatpush.msra.mxu0 0.0
      %688 = vmatpush.msra.mxu0 %v648
      %689 = vmatmul.f32.gmra.mxu0 %v650
      %v690 = vpop.f32.mrf.mxu0
      %v691 = vadd.f32 0.0, %v690
      %692 = vmatmul.f32.gmra.mxu0 %v653
      %v693 = vpop.f32.mrf.mxu0
      %v694 = vadd.f32 0.0, %v693
      %695 = vmatmul.f32.gmra.mxu0 %v656
      %v696 = vpop.f32.mrf.mxu0
      %v697 = vadd.f32 0.0, %v696
      %698 = vmatmul.f32.gmra.mxu0 %v659
      %v699 = vpop.f32.mrf.mxu0
      %v700 = vadd.f32 0.0, %v699
      %701 = vmatmul.f32.gmra.mxu0 %v662
      %v702 = vpop.f32.mrf.mxu0
      %v703 = vadd.f32 0.0, %v702
      %704 = vmatmul.f32.gmra.mxu0 %v665
      %v705 = vpop.f32.mrf.mxu0
      %v706 = vadd.f32 0.0, %v705
      %707 = vmatmul.f32.gmra.mxu0 %v668
      %v708 = vpop.f32.mrf.mxu0
      %v709 = vadd.f32 0.0, %v708
      %710 = vmatmul.f32.gmra.mxu0 %v671
      %v711 = vpop.f32.mrf.mxu0
      %v712 = vadd.f32 0.0, %v711
      %713 = vdwg.mxu0
      %v714 = vadd.f32 %v616, %v691
      %v715 = vadd.f32 %v619, %v694
      %v716 = vadd.f32 %v622, %v697
      %v717 = vadd.f32 %v625, %v700
      %v718 = vadd.f32 %v628, %v703
      %v719 = vadd.f32 %v631, %v706
      %v720 = vadd.f32 %v634, %v709
      %v721 = vadd.f32 %v637, %v712
      %v722 = vld [vmem:[%s444] sm:$0xff]
      %v723 = vld [vmem:[%s444 + $0x10] sm:$0xff]
      %v724 = vld [vmem:[%s444 + $0x20] sm:$0xff]
      %v725 = vld [vmem:[%s444 + $0x30] sm:$0xff]
      %v726 = vld [vmem:[%s444 + $0x40] sm:$0xff]
      %v727 = vld [vmem:[%s444 + $0x50] sm:$0xff]
      %v728 = vld [vmem:[%s444 + $0x60] sm:$0xff]
      %v729 = vld [vmem:[%s444 + $0x70] sm:$0xff]
      %s730 = scalar_lea.vmem %s4, 24
      %v731 = vld [vmem:[%s730] sm:$0xff]
      %v733 = vsel %vm437, %v722, 0
      %v736 = vsel %vm437, %v723, 0
      %v739 = vsel %vm437, %v724, 0
      %v742 = vsel %vm437, %v725, 0
      %v745 = vsel %vm437, %v726, 0
      %v748 = vsel %vm437, %v727, 0
      %v751 = vsel %vm437, %v728, 0
      %v754 = vsel %vm437, %v729, 0
      %756 = vmatpush.msra.mxu0 0.0
      %757 = vmatpush.msra.mxu0 0.0
      %758 = vmatpush.msra.mxu0 0.0
      %759 = vmatpush.msra.mxu0 0.0
      %760 = vmatpush.msra.mxu0 0.0
      %761 = vmatpush.msra.mxu0 0.0
      %762 = vmatpush.msra.mxu0 0.0
      %763 = vmatpush.msra.mxu0 0.0
      %764 = vmatpush.msra.mxu0 0.0
      %765 = vmatpush.msra.mxu0 0.0
      %766 = vmatpush.msra.mxu0 0.0
      %767 = vmatpush.msra.mxu0 0.0
      %768 = vmatpush.msra.mxu0 0.0
      %769 = vmatpush.msra.mxu0 0.0
      %770 = vmatpush.msra.mxu0 0.0
      %771 = vmatpush.msra.mxu0 %v731
      %772 = vmatmul.f32.gmra.mxu0 %v733
      %v773 = vpop.f32.mrf.mxu0
      %v774 = vadd.f32 0.0, %v773
      %775 = vmatmul.f32.gmra.mxu0 %v736
      %v776 = vpop.f32.mrf.mxu0
      %v777 = vadd.f32 0.0, %v776
      %778 = vmatmul.f32.gmra.mxu0 %v739
      %v779 = vpop.f32.mrf.mxu0
      %v780 = vadd.f32 0.0, %v779
      %781 = vmatmul.f32.gmra.mxu0 %v742
      %v782 = vpop.f32.mrf.mxu0
      %v783 = vadd.f32 0.0, %v782
      %784 = vmatmul.f32.gmra.mxu0 %v745
      %v785 = vpop.f32.mrf.mxu0
      %v786 = vadd.f32 0.0, %v785
      %787 = vmatmul.f32.gmra.mxu0 %v748
      %v788 = vpop.f32.mrf.mxu0
      %v789 = vadd.f32 0.0, %v788
      %790 = vmatmul.f32.gmra.mxu0 %v751
      %v791 = vpop.f32.mrf.mxu0
      %v792 = vadd.f32 0.0, %v791
      %793 = vmatmul.f32.gmra.mxu0 %v754
      %v794 = vpop.f32.mrf.mxu0
      %v795 = vadd.f32 0.0, %v794
      %796 = vdwg.mxu0
      %v797 = vadd.f32 %v714, %v774
      %v798 = vadd.f32 %v715, %v777
      %v799 = vadd.f32 %v716, %v780
      %v800 = vadd.f32 %v717, %v783
      %v801 = vadd.f32 %v718, %v786
      %v802 = vadd.f32 %v719, %v789
      %v803 = vadd.f32 %v720, %v792
      %v804 = vadd.f32 %v721, %v795
      %v805 = vld [vmem:[%s444 + $0x1] sm:$0xff]
      %v806 = vld [vmem:[%s444 + $0x11] sm:$0xff]
      %v807 = vld [vmem:[%s444 + $0x21] sm:$0xff]
      %v808 = vld [vmem:[%s444 + $0x31] sm:$0xff]
      %v809 = vld [vmem:[%s444 + $0x41] sm:$0xff]
      %v810 = vld [vmem:[%s444 + $0x51] sm:$0xff]
      %v811 = vld [vmem:[%s444 + $0x61] sm:$0xff]
      %v812 = vld [vmem:[%s444 + $0x71] sm:$0xff]
      %s813 = scalar_lea.vmem %s4, 32
      %v814 = vld [vmem:[%s813] sm:$0xff]
      %v816 = vsel %vm437, %v805, 0
      %v819 = vsel %vm437, %v806, 0
      %v822 = vsel %vm437, %v807, 0
      %v825 = vsel %vm437, %v808, 0
      %v828 = vsel %vm437, %v809, 0
      %v831 = vsel %vm437, %v810, 0
      %v834 = vsel %vm437, %v811, 0
      %v837 = vsel %vm437, %v812, 0
      %839 = vmatpush.msra.mxu0 0.0
      %840 = vmatpush.msra.mxu0 0.0
      %841 = vmatpush.msra.mxu0 0.0
      %842 = vmatpush.msra.mxu0 0.0
      %843 = vmatpush.msra.mxu0 0.0
      %844 = vmatpush.msra.mxu0 0.0
      %845 = vmatpush.msra.mxu0 0.0
      %846 = vmatpush.msra.mxu0 0.0
      %847 = vmatpush.msra.mxu0 0.0
      %848 = vmatpush.msra.mxu0 0.0
      %849 = vmatpush.msra.mxu0 0.0
      %850 = vmatpush.msra.mxu0 0.0
      %851 = vmatpush.msra.mxu0 0.0
      %852 = vmatpush.msra.mxu0 0.0
      %853 = vmatpush.msra.mxu0 0.0
      %854 = vmatpush.msra.mxu0 %v814
      %855 = vmatmul.f32.gmra.mxu0 %v816
      %v856 = vpop.f32.mrf.mxu0
      %v857 = vadd.f32 0.0, %v856
      %858 = vmatmul.f32.gmra.mxu0 %v819
      %v859 = vpop.f32.mrf.mxu0
      %v860 = vadd.f32 0.0, %v859
      %861 = vmatmul.f32.gmra.mxu0 %v822
      %v862 = vpop.f32.mrf.mxu0
      %v863 = vadd.f32 0.0, %v862
      %864 = vmatmul.f32.gmra.mxu0 %v825
      %v865 = vpop.f32.mrf.mxu0
      %v866 = vadd.f32 0.0, %v865
      %867 = vmatmul.f32.gmra.mxu0 %v828
      %v868 = vpop.f32.mrf.mxu0
      %v869 = vadd.f32 0.0, %v868
      %870 = vmatmul.f32.gmra.mxu0 %v831
      %v871 = vpop.f32.mrf.mxu0
      %v872 = vadd.f32 0.0, %v871
      %873 = vmatmul.f32.gmra.mxu0 %v834
      %v874 = vpop.f32.mrf.mxu0
      %v875 = vadd.f32 0.0, %v874
      %876 = vmatmul.f32.gmra.mxu0 %v837
      %v877 = vpop.f32.mrf.mxu0
      %v878 = vadd.f32 0.0, %v877
      %879 = vdwg.mxu0
      %v880 = vadd.f32 %v797, %v857
      %v881 = vadd.f32 %v798, %v860
      %v882 = vadd.f32 %v799, %v863
      %v883 = vadd.f32 %v800, %v866
      %v884 = vadd.f32 %v801, %v869
      %v885 = vadd.f32 %v802, %v872
      %v886 = vadd.f32 %v803, %v875
      %v887 = vadd.f32 %v804, %v878
      %v888 = vld [vmem:[%s444 + $0x2] sm:$0xff]
      %v889 = vld [vmem:[%s444 + $0x12] sm:$0xff]
      %v890 = vld [vmem:[%s444 + $0x22] sm:$0xff]
      %v891 = vld [vmem:[%s444 + $0x32] sm:$0xff]
      %v892 = vld [vmem:[%s444 + $0x42] sm:$0xff]
      %v893 = vld [vmem:[%s444 + $0x52] sm:$0xff]
      %v894 = vld [vmem:[%s444 + $0x62] sm:$0xff]
      %v895 = vld [vmem:[%s444 + $0x72] sm:$0xff]
      %s896 = scalar_lea.vmem %s4, 40
      %v897 = vld [vmem:[%s896] sm:$0xff]
      %v899 = vsel %vm437, %v888, 0
      %v902 = vsel %vm437, %v889, 0
      %v905 = vsel %vm437, %v890, 0
      %v908 = vsel %vm437, %v891, 0
      %v911 = vsel %vm437, %v892, 0
      %v914 = vsel %vm437, %v893, 0
      %v917 = vsel %vm437, %v894, 0
      %v920 = vsel %vm437, %v895, 0
      %922 = vmatpush.msra.mxu0 0.0
      %923 = vmatpush.msra.mxu0 0.0
      %924 = vmatpush.msra.mxu0 0.0
      %925 = vmatpush.msra.mxu0 0.0
      %926 = vmatpush.msra.mxu0 0.0
      %927 = vmatpush.msra.mxu0 0.0
      %928 = vmatpush.msra.mxu0 0.0
      %929 = vmatpush.msra.mxu0 0.0
      %930 = vmatpush.msra.mxu0 0.0
      %931 = vmatpush.msra.mxu0 0.0
      %932 = vmatpush.msra.mxu0 0.0
      %933 = vmatpush.msra.mxu0 0.0
      %934 = vmatpush.msra.mxu0 0.0
      %935 = vmatpush.msra.mxu0 0.0
      %936 = vmatpush.msra.mxu0 0.0
      %937 = vmatpush.msra.mxu0 %v897
      %938 = vmatmul.f32.gmra.mxu0 %v899
      %v939 = vpop.f32.mrf.mxu0
      %v940 = vadd.f32 0.0, %v939
      %941 = vmatmul.f32.gmra.mxu0 %v902
      %v942 = vpop.f32.mrf.mxu0
      %v943 = vadd.f32 0.0, %v942
      %944 = vmatmul.f32.gmra.mxu0 %v905
      %v945 = vpop.f32.mrf.mxu0
      %v946 = vadd.f32 0.0, %v945
      %947 = vmatmul.f32.gmra.mxu0 %v908
      %v948 = vpop.f32.mrf.mxu0
      %v949 = vadd.f32 0.0, %v948
      %950 = vmatmul.f32.gmra.mxu0 %v911
      %v951 = vpop.f32.mrf.mxu0
      %v952 = vadd.f32 0.0, %v951
      %953 = vmatmul.f32.gmra.mxu0 %v914
      %v954 = vpop.f32.mrf.mxu0
      %v955 = vadd.f32 0.0, %v954
      %956 = vmatmul.f32.gmra.mxu0 %v917
      %v957 = vpop.f32.mrf.mxu0
      %v958 = vadd.f32 0.0, %v957
      %959 = vmatmul.f32.gmra.mxu0 %v920
      %v960 = vpop.f32.mrf.mxu0
      %v961 = vadd.f32 0.0, %v960
      %962 = vdwg.mxu0
      %v963 = vadd.f32 %v880, %v940
      %v964 = vadd.f32 %v881, %v943
      %v965 = vadd.f32 %v882, %v946
      %v966 = vadd.f32 %v883, %v949
      %v967 = vadd.f32 %v884, %v952
      %v968 = vadd.f32 %v885, %v955
      %v969 = vadd.f32 %v886, %v958
      %v970 = vadd.f32 %v887, %v961
      %s971 = scalar_lea.vmem [#allocation2], 32
      %v972 = vld [vmem:[%s971] sm:$0xff]
      %v973 = vld [vmem:[%s971 + $0x10] sm:$0xff]
      %v974 = vld [vmem:[%s971 + $0x20] sm:$0xff]
      %v975 = vld [vmem:[%s971 + $0x30] sm:$0xff]
      %v976 = vld [vmem:[%s971 + $0x40] sm:$0xff]
      %v977 = vld [vmem:[%s971 + $0x50] sm:$0xff]
      %v978 = vld [vmem:[%s971 + $0x60] sm:$0xff]
      %v979 = vld [vmem:[%s971 + $0x70] sm:$0xff]
      %s980 = scalar_lea.vmem %s4, 48
      %v981 = vld [vmem:[%s980] sm:$0xff]
      %v983 = vsel %vm437, %v972, 0
      %v986 = vsel %vm437, %v973, 0
      %v989 = vsel %vm437, %v974, 0
      %v992 = vsel %vm437, %v975, 0
      %v995 = vsel %vm437, %v976, 0
      %v998 = vsel %vm437, %v977, 0
      %v1001 = vsel %vm437, %v978, 0
      %v1004 = vsel %vm437, %v979, 0
      %1006 = vmatpush.msra.mxu0 0.0
      %1007 = vmatpush.msra.mxu0 0.0
      %1008 = vmatpush.msra.mxu0 0.0
      %1009 = vmatpush.msra.mxu0 0.0
      %1010 = vmatpush.msra.mxu0 0.0
      %1011 = vmatpush.msra.mxu0 0.0
      %1012 = vmatpush.msra.mxu0 0.0
      %1013 = vmatpush.msra.mxu0 0.0
      %1014 = vmatpush.msra.mxu0 0.0
      %1015 = vmatpush.msra.mxu0 0.0
      %1016 = vmatpush.msra.mxu0 0.0
      %1017 = vmatpush.msra.mxu0 0.0
      %1018 = vmatpush.msra.mxu0 0.0
      %1019 = vmatpush.msra.mxu0 0.0
      %1020 = vmatpush.msra.mxu0 0.0
      %1021 = vmatpush.msra.mxu0 %v981
      %1022 = vmatmul.f32.gmra.mxu0 %v983
      %v1023 = vpop.f32.mrf.mxu0
      %v1024 = vadd.f32 0.0, %v1023
      %1025 = vmatmul.f32.gmra.mxu0 %v986
      %v1026 = vpop.f32.mrf.mxu0
      %v1027 = vadd.f32 0.0, %v1026
      %1028 = vmatmul.f32.gmra.mxu0 %v989
      %v1029 = vpop.f32.mrf.mxu0
      %v1030 = vadd.f32 0.0, %v1029
      %1031 = vmatmul.f32.gmra.mxu0 %v992
      %v1032 = vpop.f32.mrf.mxu0
      %v1033 = vadd.f32 0.0, %v1032
      %1034 = vmatmul.f32.gmra.mxu0 %v995
      %v1035 = vpop.f32.mrf.mxu0
      %v1036 = vadd.f32 0.0, %v1035
      %1037 = vmatmul.f32.gmra.mxu0 %v998
      %v1038 = vpop.f32.mrf.mxu0
      %v1039 = vadd.f32 0.0, %v1038
      %1040 = vmatmul.f32.gmra.mxu0 %v1001
      %v1041 = vpop.f32.mrf.mxu0
      %v1042 = vadd.f32 0.0, %v1041
      %1043 = vmatmul.f32.gmra.mxu0 %v1004
      %v1044 = vpop.f32.mrf.mxu0
      %v1045 = vadd.f32 0.0, %v1044
      %1046 = vdwg.mxu0
      %v1047 = vadd.f32 %v963, %v1024
      %v1048 = vadd.f32 %v964, %v1027
      %v1049 = vadd.f32 %v965, %v1030
      %v1050 = vadd.f32 %v966, %v1033
      %v1051 = vadd.f32 %v967, %v1036
      %v1052 = vadd.f32 %v968, %v1039
      %v1053 = vadd.f32 %v969, %v1042
      %v1054 = vadd.f32 %v970, %v1045
      %v1055 = vld [vmem:[%s971 + $0x1] sm:$0xff]
      %v1056 = vld [vmem:[%s971 + $0x11] sm:$0xff]
      %v1057 = vld [vmem:[%s971 + $0x21] sm:$0xff]
      %v1058 = vld [vmem:[%s971 + $0x31] sm:$0xff]
      %v1059 = vld [vmem:[%s971 + $0x41] sm:$0xff]
      %v1060 = vld [vmem:[%s971 + $0x51] sm:$0xff]
      %v1061 = vld [vmem:[%s971 + $0x61] sm:$0xff]
      %v1062 = vld [vmem:[%s971 + $0x71] sm:$0xff]
      %s1063 = scalar_lea.vmem %s4, 56
      %v1064 = vld [vmem:[%s1063] sm:$0xff]
      %v1066 = vsel %vm437, %v1055, 0
      %v1069 = vsel %vm437, %v1056, 0
      %v1072 = vsel %vm437, %v1057, 0
      %v1075 = vsel %vm437, %v1058, 0
      %v1078 = vsel %vm437, %v1059, 0
      %v1081 = vsel %vm437, %v1060, 0
      %v1084 = vsel %vm437, %v1061, 0
      %v1087 = vsel %vm437, %v1062, 0
      %1089 = vmatpush.msra.mxu0 0.0
      %1090 = vmatpush.msra.mxu0 0.0
      %1091 = vmatpush.msra.mxu0 0.0
      %1092 = vmatpush.msra.mxu0 0.0
      %1093 = vmatpush.msra.mxu0 0.0
      %1094 = vmatpush.msra.mxu0 0.0
      %1095 = vmatpush.msra.mxu0 0.0
      %1096 = vmatpush.msra.mxu0 0.0
      %1097 = vmatpush.msra.mxu0 0.0
      %1098 = vmatpush.msra.mxu0 0.0
      %1099 = vmatpush.msra.mxu0 0.0
      %1100 = vmatpush.msra.mxu0 0.0
      %1101 = vmatpush.msra.mxu0 0.0
      %1102 = vmatpush.msra.mxu0 0.0
      %1103 = vmatpush.msra.mxu0 0.0
      %1104 = vmatpush.msra.mxu0 %v1064
      %1105 = vmatmul.f32.gmra.mxu0 %v1066
      %v1106 = vpop.f32.mrf.mxu0
      %v1107 = vadd.f32 0.0, %v1106
      %1108 = vmatmul.f32.gmra.mxu0 %v1069
      %v1109 = vpop.f32.mrf.mxu0
      %v1110 = vadd.f32 0.0, %v1109
      %1111 = vmatmul.f32.gmra.mxu0 %v1072
      %v1112 = vpop.f32.mrf.mxu0
      %v1113 = vadd.f32 0.0, %v1112
      %1114 = vmatmul.f32.gmra.mxu0 %v1075
      %v1115 = vpop.f32.mrf.mxu0
      %v1116 = vadd.f32 0.0, %v1115
      %1117 = vmatmul.f32.gmra.mxu0 %v1078
      %v1118 = vpop.f32.mrf.mxu0
      %v1119 = vadd.f32 0.0, %v1118
      %1120 = vmatmul.f32.gmra.mxu0 %v1081
      %v1121 = vpop.f32.mrf.mxu0
      %v1122 = vadd.f32 0.0, %v1121
      %1123 = vmatmul.f32.gmra.mxu0 %v1084
      %v1124 = vpop.f32.mrf.mxu0
      %v1125 = vadd.f32 0.0, %v1124
      %1126 = vmatmul.f32.gmra.mxu0 %v1087
      %v1127 = vpop.f32.mrf.mxu0
      %v1128 = vadd.f32 0.0, %v1127
      %1129 = vdwg.mxu0
      %v1130 = vadd.f32 %v1047, %v1107
      %v1131 = vadd.f32 %v1048, %v1110
      %v1132 = vadd.f32 %v1049, %v1113
      %v1133 = vadd.f32 %v1050, %v1116
      %v1134 = vadd.f32 %v1051, %v1119
      %v1135 = vadd.f32 %v1052, %v1122
      %v1136 = vadd.f32 %v1053, %v1125
      %v1137 = vadd.f32 %v1054, %v1128
      %v1138 = vld [vmem:[%s971 + $0x2] sm:$0xff]
      %v1139 = vld [vmem:[%s971 + $0x12] sm:$0xff]
      %v1140 = vld [vmem:[%s971 + $0x22] sm:$0xff]
      %v1141 = vld [vmem:[%s971 + $0x32] sm:$0xff]
      %v1142 = vld [vmem:[%s971 + $0x42] sm:$0xff]
      %v1143 = vld [vmem:[%s971 + $0x52] sm:$0xff]
      %v1144 = vld [vmem:[%s971 + $0x62] sm:$0xff]
      %v1145 = vld [vmem:[%s971 + $0x72] sm:$0xff]
      %s1146 = scalar_lea.vmem %s4, 64
      %v1147 = vld [vmem:[%s1146] sm:$0xff]
      %v1149 = vsel %vm437, %v1138, 0
      %v1152 = vsel %vm437, %v1139, 0
      %v1155 = vsel %vm437, %v1140, 0
      %v1158 = vsel %vm437, %v1141, 0
      %v1161 = vsel %vm437, %v1142, 0
      %v1164 = vsel %vm437, %v1143, 0
      %v1167 = vsel %vm437, %v1144, 0
      %v1170 = vsel %vm437, %v1145, 0
      %1172 = vmatpush.msra.mxu0 0.0
      %1173 = vmatpush.msra.mxu0 0.0
      %1174 = vmatpush.msra.mxu0 0.0
      %1175 = vmatpush.msra.mxu0 0.0
      %1176 = vmatpush.msra.mxu0 0.0
      %1177 = vmatpush.msra.mxu0 0.0
      %1178 = vmatpush.msra.mxu0 0.0
      %1179 = vmatpush.msra.mxu0 0.0
      %1180 = vmatpush.msra.mxu0 0.0
      %1181 = vmatpush.msra.mxu0 0.0
      %1182 = vmatpush.msra.mxu0 0.0
      %1183 = vmatpush.msra.mxu0 0.0
      %1184 = vmatpush.msra.mxu0 0.0
      %1185 = vmatpush.msra.mxu0 0.0
      %1186 = vmatpush.msra.mxu0 0.0
      %1187 = vmatpush.msra.mxu0 %v1147
      %1188 = vmatmul.f32.gmra.mxu0 %v1149
      %v1189 = vpop.f32.mrf.mxu0
      %v1190 = vadd.f32 0.0, %v1189
      %1191 = vmatmul.f32.gmra.mxu0 %v1152
      %v1192 = vpop.f32.mrf.mxu0
      %v1193 = vadd.f32 0.0, %v1192
      %1194 = vmatmul.f32.gmra.mxu0 %v1155
      %v1195 = vpop.f32.mrf.mxu0
      %v1196 = vadd.f32 0.0, %v1195
      %1197 = vmatmul.f32.gmra.mxu0 %v1158
      %v1198 = vpop.f32.mrf.mxu0
      %v1199 = vadd.f32 0.0, %v1198
      %1200 = vmatmul.f32.gmra.mxu0 %v1161
      %v1201 = vpop.f32.mrf.mxu0
      %v1202 = vadd.f32 0.0, %v1201
      %1203 = vmatmul.f32.gmra.mxu0 %v1164
      %v1204 = vpop.f32.mrf.mxu0
      %v1205 = vadd.f32 0.0, %v1204
      %1206 = vmatmul.f32.gmra.mxu0 %v1167
      %v1207 = vpop.f32.mrf.mxu0
      %v1208 = vadd.f32 0.0, %v1207
      %1209 = vmatmul.f32.gmra.mxu0 %v1170
      %v1210 = vpop.f32.mrf.mxu0
      %v1211 = vadd.f32 0.0, %v1210
      %1212 = vdwg.mxu0
      %v1213 = vadd.f32 %v1130, %v1190
      %v1214 = vadd.f32 %v1131, %v1193
      %v1215 = vadd.f32 %v1132, %v1196
      %v1216 = vadd.f32 %v1133, %v1199
      %v1217 = vadd.f32 %v1134, %v1202
      %v1218 = vadd.f32 %v1135, %v1205
      %v1219 = vadd.f32 %v1136, %v1208
      %v1220 = vadd.f32 %v1137, %v1211
      %vm1221 = vcmask 261120
      %1222 = vst.msk [vmem:[%s431] sm:$0xff] %vm1221, 0.0
      %vm1223 = vcmask 254976
      %1224 = vst.msk [vmem:[%s431 + $0x8] sm:$0x3] %vm1223, 0.0
      %s1225 = scalar_lea.vmem %s431, 144
      %1226 = vst.msk [vmem:[%s1225] sm:$0xff] %vm1221, 0.0
      %1227 = vst.msk [vmem:[%s1225 + $0x8] sm:$0x3] %vm1223, 0.0
      %s1228 = scalar_lea.vmem %s431, 16
      %vm1229 = vcmask 253952
      %1230 = vst.msk [vmem:[%s1228] sm:$0x1] %vm1229, 0.0
      %1231 = vst.msk [vmem:[%s1228 + $0x10] sm:$0x1] %vm1229, 0.0
      %1232 = vst.msk [vmem:[%s1228 + $0x20] sm:$0x1] %vm1229, 0.0
      %1233 = vst.msk [vmem:[%s1228 + $0x30] sm:$0x1] %vm1229, 0.0
      %1234 = vst.msk [vmem:[%s1228 + $0x40] sm:$0x1] %vm1229, 0.0
      %1235 = vst.msk [vmem:[%s1228 + $0x50] sm:$0x1] %vm1229, 0.0
      %1236 = vst.msk [vmem:[%s1228 + $0x60] sm:$0x1] %vm1229, 0.0
      %1237 = vst.msk [vmem:[%s1228 + $0x70] sm:$0x1] %vm1229, 0.0
      %1238 = vst.msk [vmem:[%s1228 + $0x9] sm:$0x1] %vm1229, 0.0
      %1239 = vst.msk [vmem:[%s1228 + $0x19] sm:$0x1] %vm1229, 0.0
      %1240 = vst.msk [vmem:[%s1228 + $0x29] sm:$0x1] %vm1229, 0.0
      %1241 = vst.msk [vmem:[%s1228 + $0x39] sm:$0x1] %vm1229, 0.0
      %1242 = vst.msk [vmem:[%s1228 + $0x49] sm:$0x1] %vm1229, 0.0
      %1243 = vst.msk [vmem:[%s1228 + $0x59] sm:$0x1] %vm1229, 0.0
      %1244 = vst.msk [vmem:[%s1228 + $0x69] sm:$0x1] %vm1229, 0.0
      %1245 = vst.msk [vmem:[%s1228 + $0x79] sm:$0x1] %vm1229, 0.0
      %v1246 = vld [vmem:[%s413] sm:$0x1]
      %v1247 = vld [vmem:[%s5] sm:$0x1]
      %v1248 = vld [vmem:[%s6] sm:$0x1]
      %v1249 = vld [vmem:[#allocation3] sm:$0x1]
      %v1250 = vld [vmem:[%s416] sm:$0x1]
      %v1252 = vperm.slane %v1246, 0
      %v1254 = vmul.f32 %v1213, %v1252
      %v1255 = vmul.f32 %v1214, %v1252
      %v1256 = vmul.f32 %v1215, %v1252
      %v1257 = vmul.f32 %v1216, %v1252
      %v1258 = vmul.f32 %v1217, %v1252
      %v1259 = vmul.f32 %v1218, %v1252
      %v1260 = vmul.f32 %v1219, %v1252
      %v1261 = vmul.f32 %v1220, %v1252
      %v1263 = vperm.slane %v1247, 0
      %v1265 = vadd.f32 %v1254, %v1263
      %v1266 = vadd.f32 %v1255, %v1263
      %v1267 = vadd.f32 %v1256, %v1263
      %v1268 = vadd.f32 %v1257, %v1263
      %v1269 = vadd.f32 %v1258, %v1263
      %v1270 = vadd.f32 %v1259, %v1263
      %v1271 = vadd.f32 %v1260, %v1263
      %v1272 = vadd.f32 %v1261, %v1263
      %vm1273 = vcmp.ge.f32.partialorder %v1265, 0.0
      %vm1274 = vcmp.ge.f32.partialorder %v1266, 0.0
      %vm1275 = vcmp.ge.f32.partialorder %v1267, 0.0
      %vm1276 = vcmp.ge.f32.partialorder %v1268, 0.0
      %vm1277 = vcmp.ge.f32.partialorder %v1269, 0.0
      %vm1278 = vcmp.ge.f32.partialorder %v1270, 0.0
      %vm1279 = vcmp.ge.f32.partialorder %v1271, 0.0
      %vm1280 = vcmp.ge.f32.partialorder %v1272, 0.0
      %v1281 = vmul.f32 %v1265, 0.2
      %v1282 = vmul.f32 %v1266, 0.2
      %v1283 = vmul.f32 %v1267, 0.2
      %v1284 = vmul.f32 %v1268, 0.2
      %v1285 = vmul.f32 %v1269, 0.2
      %v1286 = vmul.f32 %v1270, 0.2
      %v1287 = vmul.f32 %v1271, 0.2
      %v1288 = vmul.f32 %v1272, 0.2
      %v1289 = vsel %vm1273, %v1265, %v1281
      %v1290 = vsel %vm1274, %v1266, %v1282
      %v1291 = vsel %vm1275, %v1267, %v1283
      %v1292 = vsel %vm1276, %v1268, %v1284
      %v1293 = vsel %vm1277, %v1269, %v1285
      %v1294 = vsel %vm1278, %v1270, %v1286
      %v1295 = vsel %vm1279, %v1271, %v1287
      %v1296 = vsel %vm1280, %v1272, %v1288
      %v1297 = vmul.f32 %v1289, 1.4142135
      %v1298 = vmul.f32 %v1290, 1.4142135
      %v1299 = vmul.f32 %v1291, 1.4142135
      %v1300 = vmul.f32 %v1292, 1.4142135
      %v1301 = vmul.f32 %v1293, 1.4142135
      %v1302 = vmul.f32 %v1294, 1.4142135
      %v1303 = vmul.f32 %v1295, 1.4142135
      %v1304 = vmul.f32 %v1296, 1.4142135
      %v1306 = vperm.slane %v1248, 0
      %v1308 = vmul.f32 %v1297, %v1306
      %v1309 = vmul.f32 %v1298, %v1306
      %v1310 = vmul.f32 %v1299, %v1306
      %v1311 = vmul.f32 %v1300, %v1306
      %v1312 = vmul.f32 %v1301, %v1306
      %v1313 = vmul.f32 %v1302, %v1306
      %v1314 = vmul.f32 %v1303, %v1306
      %v1315 = vmul.f32 %v1304, %v1306
      %v1316 = vsel %vm437, %v1308, 0.0
      %1317 = vadd.xlane.f32.xlu0 %v1316
      %v1318 = vpop.xlane.xlu0 %1317
      %v1319 = vsel %vm437, %v1309, 0.0
      %1320 = vadd.xlane.f32.xlu0 %v1319
      %v1321 = vpop.xlane.xlu0 %1320
      %v1322 = vsel %vm437, %v1310, 0.0
      %1323 = vadd.xlane.f32.xlu0 %v1322
      %v1324 = vpop.xlane.xlu0 %1323
      %v1325 = vsel %vm437, %v1311, 0.0
      %1326 = vadd.xlane.f32.xlu0 %v1325
      %v1327 = vpop.xlane.xlu0 %1326
      %v1328 = vsel %vm437, %v1312, 0.0
      %1329 = vadd.xlane.f32.xlu0 %v1328
      %v1330 = vpop.xlane.xlu0 %1329
      %v1331 = vsel %vm437, %v1313, 0.0
      %1332 = vadd.xlane.f32.xlu0 %v1331
      %v1333 = vpop.xlane.xlu0 %1332
      %v1334 = vsel %vm437, %v1314, 0.0
      %1335 = vadd.xlane.f32.xlu0 %v1334
      %v1336 = vpop.xlane.xlu0 %1335
      %v1337 = vsel %vm437, %v1315, 0.0
      %1338 = vadd.xlane.f32.xlu0 %v1337
      %v1339 = vpop.xlane.xlu0 %1338
      %v1341 = vperm.slane %v1249, 0
      %v1343 = vadd.f32 %v1318, %v1341
      %v1344 = vadd.f32 %v1321, %v1341
      %v1345 = vadd.f32 %v1324, %v1341
      %v1346 = vadd.f32 %v1327, %v1341
      %v1347 = vadd.f32 %v1330, %v1341
      %v1348 = vadd.f32 %v1333, %v1341
      %v1349 = vadd.f32 %v1336, %v1341
      %v1350 = vadd.f32 %v1339, %v1341
      %v1351 = vxor.u32 %v1343, 2147483648
      %v1352 = vxor.u32 %v1344, 2147483648
      %v1353 = vxor.u32 %v1345, 2147483648
      %v1354 = vxor.u32 %v1346, 2147483648
      %v1355 = vxor.u32 %v1347, 2147483648
      %v1356 = vxor.u32 %v1348, 2147483648
      %v1357 = vxor.u32 %v1349, 2147483648
      %v1358 = vxor.u32 %v1350, 2147483648
      %v1359 = vmul.f32 %v1351, 1.442695
      %v1360 = vpow.pop %v1359
      %v1361 = vmul.f32 %v1352, 1.442695
      %v1362 = vpow.pop %v1361
      %v1363 = vmul.f32 %v1353, 1.442695
      %v1364 = vpow.pop %v1363
      %v1365 = vmul.f32 %v1354, 1.442695
      %v1366 = vpow.pop %v1365
      %v1367 = vmul.f32 %v1355, 1.442695
      %v1368 = vpow.pop %v1367
      %v1369 = vmul.f32 %v1356, 1.442695
      %v1370 = vpow.pop %v1369
      %v1371 = vmul.f32 %v1357, 1.442695
      %v1372 = vpow.pop %v1371
      %v1373 = vmul.f32 %v1358, 1.442695
      %v1374 = vpow.pop %v1373
      %v1375 = vadd.f32 %v1360, 1.0
      %v1376 = vadd.f32 %v1362, 1.0
      %v1377 = vadd.f32 %v1364, 1.0
      %v1378 = vadd.f32 %v1366, 1.0
      %v1379 = vadd.f32 %v1368, 1.0
      %v1380 = vadd.f32 %v1370, 1.0
      %v1381 = vadd.f32 %v1372, 1.0
      %v1382 = vadd.f32 %v1374, 1.0
      %v1383 = vrcp.pop %v1375
      %v1384 = vmul.f32 %v1375, %v1383
      %v1385 = vsub.f32 1.0, %v1384
      %v1386 = vmul.f32 %v1383, %v1385
      %v1387 = vadd.f32 %v1383, %v1386
      %vm1388 = vweird.f32 %v1375
      %vm1389 = vweird.f32 %v1383
      %vm1390 = vmor %vm1388, %vm1389
      %v1391 = vsel %vm1390, %v1383, %v1387
      %v1392 = vand.u32 2147483647, %v1375
      %vm1393 = vcmp.eq.f32.partialorder %v1392, 8.507059e+37
      %v1394 = vand.u32 %v1375, 2147483648
      %v1395 = vor.u32 1.1754944e-38, %v1394
      %v1396 = vsel %vm1393, %v1395, %v1391
      %v1397 = vmul.f32 1.0, %v1396
      %v1398 = vrcp.pop %v1376
      %v1399 = vmul.f32 %v1376, %v1398
      %v1400 = vsub.f32 1.0, %v1399
      %v1401 = vmul.f32 %v1398, %v1400
      %v1402 = vadd.f32 %v1398, %v1401
      %vm1403 = vweird.f32 %v1376
      %vm1404 = vweird.f32 %v1398
      %vm1405 = vmor %vm1403, %vm1404
      %v1406 = vsel %vm1405, %v1398, %v1402
      %v1407 = vand.u32 2147483647, %v1376
      %vm1408 = vcmp.eq.f32.partialorder %v1407, 8.507059e+37
      %v1409 = vand.u32 %v1376, 2147483648
      %v1410 = vor.u32 1.1754944e-38, %v1409
      %v1411 = vsel %vm1408, %v1410, %v1406
      %v1412 = vmul.f32 1.0, %v1411
      %v1413 = vrcp.pop %v1377
      %v1414 = vmul.f32 %v1377, %v1413
      %v1415 = vsub.f32 1.0, %v1414
      %v1416 = vmul.f32 %v1413, %v1415
      %v1417 = vadd.f32 %v1413, %v1416
      %vm1418 = vweird.f32 %v1377
      %vm1419 = vweird.f32 %v1413
      %vm1420 = vmor %vm1418, %vm1419
      %v1421 = vsel %vm1420, %v1413, %v1417
      %v1422 = vand.u32 2147483647, %v1377
      %vm1423 = vcmp.eq.f32.partialorder %v1422, 8.507059e+37
      %v1424 = vand.u32 %v1377, 2147483648
      %v1425 = vor.u32 1.1754944e-38, %v1424
      %v1426 = vsel %vm1423, %v1425, %v1421
      %v1427 = vmul.f32 1.0, %v1426
      %v1428 = vrcp.pop %v1378
      %v1429 = vmul.f32 %v1378, %v1428
      %v1430 = vsub.f32 1.0, %v1429
      %v1431 = vmul.f32 %v1428, %v1430
      %v1432 = vadd.f32 %v1428, %v1431
      %vm1433 = vweird.f32 %v1378
      %vm1434 = vweird.f32 %v1428
      %vm1435 = vmor %vm1433, %vm1434
      %v1436 = vsel %vm1435, %v1428, %v1432
      %v1437 = vand.u32 2147483647, %v1378
      %vm1438 = vcmp.eq.f32.partialorder %v1437, 8.507059e+37
      %v1439 = vand.u32 %v1378, 2147483648
      %v1440 = vor.u32 1.1754944e-38, %v1439
      %v1441 = vsel %vm1438, %v1440, %v1436
      %v1442 = vmul.f32 1.0, %v1441
      %v1443 = vrcp.pop %v1379
      %v1444 = vmul.f32 %v1379, %v1443
      %v1445 = vsub.f32 1.0, %v1444
      %v1446 = vmul.f32 %v1443, %v1445
      %v1447 = vadd.f32 %v1443, %v1446
      %vm1448 = vweird.f32 %v1379
      %vm1449 = vweird.f32 %v1443
      %vm1450 = vmor %vm1448, %vm1449
      %v1451 = vsel %vm1450, %v1443, %v1447
      %v1452 = vand.u32 2147483647, %v1379
      %vm1453 = vcmp.eq.f32.partialorder %v1452, 8.507059e+37
      %v1454 = vand.u32 %v1379, 2147483648
      %v1455 = vor.u32 1.1754944e-38, %v1454
      %v1456 = vsel %vm1453, %v1455, %v1451
      %v1457 = vmul.f32 1.0, %v1456
      %v1458 = vrcp.pop %v1380
      %v1459 = vmul.f32 %v1380, %v1458
      %v1460 = vsub.f32 1.0, %v1459
      %v1461 = vmul.f32 %v1458, %v1460
      %v1462 = vadd.f32 %v1458, %v1461
      %vm1463 = vweird.f32 %v1380
      %vm1464 = vweird.f32 %v1458
      %vm1465 = vmor %vm1463, %vm1464
      %v1466 = vsel %vm1465, %v1458, %v1462
      %v1467 = vand.u32 2147483647, %v1380
      %vm1468 = vcmp.eq.f32.partialorder %v1467, 8.507059e+37
      %v1469 = vand.u32 %v1380, 2147483648
      %v1470 = vor.u32 1.1754944e-38, %v1469
      %v1471 = vsel %vm1468, %v1470, %v1466
      %v1472 = vmul.f32 1.0, %v1471
      %v1473 = vrcp.pop %v1381
      %v1474 = vmul.f32 %v1381, %v1473
      %v1475 = vsub.f32 1.0, %v1474
      %v1476 = vmul.f32 %v1473, %v1475
      %v1477 = vadd.f32 %v1473, %v1476
      %vm1478 = vweird.f32 %v1381
      %vm1479 = vweird.f32 %v1473
      %vm1480 = vmor %vm1478, %vm1479
      %v1481 = vsel %vm1480, %v1473, %v1477
      %v1482 = vand.u32 2147483647, %v1381
      %vm1483 = vcmp.eq.f32.partialorder %v1482, 8.507059e+37
      %v1484 = vand.u32 %v1381, 2147483648
      %v1485 = vor.u32 1.1754944e-38, %v1484
      %v1486 = vsel %vm1483, %v1485, %v1481
      %v1487 = vmul.f32 1.0, %v1486
      %v1488 = vrcp.pop %v1382
      %v1489 = vmul.f32 %v1382, %v1488
      %v1490 = vsub.f32 1.0, %v1489
      %v1491 = vmul.f32 %v1488, %v1490
      %v1492 = vadd.f32 %v1488, %v1491
      %vm1493 = vweird.f32 %v1382
      %vm1494 = vweird.f32 %v1488
      %vm1495 = vmor %vm1493, %vm1494
      %v1496 = vsel %vm1495, %v1488, %v1492
      %v1497 = vand.u32 2147483647, %v1382
      %vm1498 = vcmp.eq.f32.partialorder %v1497, 8.507059e+37
      %v1499 = vand.u32 %v1382, 2147483648
      %v1500 = vor.u32 1.1754944e-38, %v1499
      %v1501 = vsel %vm1498, %v1500, %v1496
      %v1502 = vmul.f32 1.0, %v1501
      %v1503 = vsub.f32 1.0, %v1397
      %v1504 = vsub.f32 1.0, %v1412
      %v1505 = vsub.f32 1.0, %v1427
      %v1506 = vsub.f32 1.0, %v1442
      %v1507 = vsub.f32 1.0, %v1457
      %v1508 = vsub.f32 1.0, %v1472
      %v1509 = vsub.f32 1.0, %v1487
      %v1510 = vsub.f32 1.0, %v1502
      %1512 = vset.pattern.permute.xlu0 0
      %1513 = vperm.xlu0 %1512, %v1503
      %v1514 = vpop.permute.xlu0 %1513
      %1517 = vset.pattern.permute.xlu0 0
      %1518 = vperm.xlu0 %1517, %v1504
      %v1519 = vpop.permute.xlu0 %1518
      %1522 = vset.pattern.permute.xlu0 0
      %1523 = vperm.xlu0 %1522, %v1505
      %v1524 = vpop.permute.xlu0 %1523
      %1527 = vset.pattern.permute.xlu0 0
      %1528 = vperm.xlu0 %1527, %v1506
      %v1529 = vpop.permute.xlu0 %1528
      %1532 = vset.pattern.permute.xlu0 0
      %1533 = vperm.xlu0 %1532, %v1507
      %v1534 = vpop.permute.xlu0 %1533
      %1537 = vset.pattern.permute.xlu0 0
      %1538 = vperm.xlu0 %1537, %v1508
      %v1539 = vpop.permute.xlu0 %1538
      %1542 = vset.pattern.permute.xlu0 0
      %1543 = vperm.xlu0 %1542, %v1509
      %v1544 = vpop.permute.xlu0 %1543
      %1547 = vset.pattern.permute.xlu0 0
      %1548 = vperm.xlu0 %1547, %v1510
      %v1549 = vpop.permute.xlu0 %1548
      %v1551 = vmul.f32 %v1297, %v1514
      %v1552 = vmul.f32 %v1298, %v1519
      %v1553 = vmul.f32 %v1299, %v1524
      %v1554 = vmul.f32 %v1300, %v1529
      %v1555 = vmul.f32 %v1301, %v1534
      %v1556 = vmul.f32 %v1302, %v1539
      %v1557 = vmul.f32 %v1303, %v1544
      %v1558 = vmul.f32 %v1304, %v1549
      %v1559 = vld [vmem:[%s426] sm:$0xff]
      %v1560 = vld [vmem:[%s426 + $0x8] sm:$0xff]
      %v1561 = vld [vmem:[%s426 + $0x10] sm:$0xff]
      %v1562 = vld [vmem:[%s426 + $0x18] sm:$0xff]
      %v1563 = vld [vmem:[%s426 + $0x20] sm:$0xff]
      %v1564 = vld [vmem:[%s426 + $0x28] sm:$0xff]
      %v1565 = vld [vmem:[%s426 + $0x30] sm:$0xff]
      %v1566 = vld [vmem:[%s426 + $0x38] sm:$0xff]
      %1568 = vset.pattern.permute.xlu0 0
      %1569 = vperm.xlu0 %1568, %v1397
      %v1570 = vpop.permute.xlu0 %1569
      %1573 = vset.pattern.permute.xlu0 0
      %1574 = vperm.xlu0 %1573, %v1412
      %v1575 = vpop.permute.xlu0 %1574
      %1578 = vset.pattern.permute.xlu0 0
      %1579 = vperm.xlu0 %1578, %v1427
      %v1580 = vpop.permute.xlu0 %1579
      %1583 = vset.pattern.permute.xlu0 0
      %1584 = vperm.xlu0 %1583, %v1442
      %v1585 = vpop.permute.xlu0 %1584
      %1588 = vset.pattern.permute.xlu0 0
      %1589 = vperm.xlu0 %1588, %v1457
      %v1590 = vpop.permute.xlu0 %1589
      %1593 = vset.pattern.permute.xlu0 0
      %1594 = vperm.xlu0 %1593, %v1472
      %v1595 = vpop.permute.xlu0 %1594
      %1598 = vset.pattern.permute.xlu0 0
      %1599 = vperm.xlu0 %1598, %v1487
      %v1600 = vpop.permute.xlu0 %1599
      %1603 = vset.pattern.permute.xlu0 0
      %1604 = vperm.xlu0 %1603, %v1502
      %v1605 = vpop.permute.xlu0 %1604
      %v1607 = vmul.f32 %v1559, %v1570
      %v1608 = vmul.f32 %v1560, %v1575
      %v1609 = vmul.f32 %v1561, %v1580
      %v1610 = vmul.f32 %v1562, %v1585
      %v1611 = vmul.f32 %v1563, %v1590
      %v1612 = vmul.f32 %v1564, %v1595
      %v1613 = vmul.f32 %v1565, %v1600
      %v1614 = vmul.f32 %v1566, %v1605
      %v1615 = vadd.f32 %v1551, %v1607
      %v1616 = vadd.f32 %v1552, %v1608
      %v1617 = vadd.f32 %v1553, %v1609
      %v1618 = vadd.f32 %v1554, %v1610
      %v1619 = vadd.f32 %v1555, %v1611
      %v1620 = vadd.f32 %v1556, %v1612
      %v1621 = vadd.f32 %v1557, %v1613
      %v1622 = vadd.f32 %v1558, %v1614
      %v1624 = vperm.slane %v1250, 0
      %v1626 = vmul.f32 %v1615, %v1624
      %v1627 = vmul.f32 %v1616, %v1624
      %v1628 = vmul.f32 %v1617, %v1624
      %v1629 = vmul.f32 %v1618, %v1624
      %v1630 = vmul.f32 %v1619, %v1624
      %v1631 = vmul.f32 %v1620, %v1624
      %v1632 = vmul.f32 %v1621, %v1624
      %v1633 = vmul.f32 %v1622, %v1624
      %1634 = vst.msk [vmem:[%s1228 + $0x1] sm:$0xff] %vm437, %v1626
      %1635 = vst.msk [vmem:[%s1228 + $0x11] sm:$0xff] %vm437, %v1627
      %1636 = vst.msk [vmem:[%s1228 + $0x21] sm:$0xff] %vm437, %v1628
      %1637 = vst.msk [vmem:[%s1228 + $0x31] sm:$0xff] %vm437, %v1629
      %1638 = vst.msk [vmem:[%s1228 + $0x41] sm:$0xff] %vm437, %v1630
      %1639 = vst.msk [vmem:[%s1228 + $0x51] sm:$0xff] %vm437, %v1631
      %1640 = vst.msk [vmem:[%s1228 + $0x61] sm:$0xff] %vm437, %v1632
      %1641 = vst.msk [vmem:[%s1228 + $0x71] sm:$0xff] %vm437, %v1633
      %vm1642 = vcmask 7168
      %1643 = vst.msk [vmem:[%s436] sm:$0xff] %vm1642, %v1397
      %1644 = vst.msk [vmem:[%s436 + $0x8] sm:$0xff] %vm1642, %v1412
      %1645 = vst.msk [vmem:[%s436 + $0x10] sm:$0xff] %vm1642, %v1427
      %1646 = vst.msk [vmem:[%s436 + $0x18] sm:$0xff] %vm1642, %v1442
      %1647 = vst.msk [vmem:[%s436 + $0x20] sm:$0xff] %vm1642, %v1457
      %1648 = vst.msk [vmem:[%s436 + $0x28] sm:$0xff] %vm1642, %v1472
      %1649 = vst.msk [vmem:[%s436 + $0x30] sm:$0xff] %vm1642, %v1487
      %1650 = vst.msk [vmem:[%s436 + $0x38] sm:$0xff] %vm1642, %v1502
      %1651 = vrot.lane.b32.xlu0 %v1252, 8
      %v1652 = vpop.permute.xlu0 %1651
      %v1654 = vmul.f32 %v1213, %v1652
      %v1655 = vmul.f32 %v1214, %v1652
      %v1656 = vmul.f32 %v1215, %v1652
      %v1657 = vmul.f32 %v1216, %v1652
      %v1658 = vmul.f32 %v1217, %v1652
      %v1659 = vmul.f32 %v1218, %v1652
      %v1660 = vmul.f32 %v1219, %v1652
      %v1661 = vmul.f32 %v1220, %v1652
      %1662 = vrot.lane.b32.xlu0 %v1263, 8
      %v1663 = vpop.permute.xlu0 %1662
      %v1665 = vadd.f32 %v1654, %v1663
      %v1666 = vadd.f32 %v1655, %v1663
      %v1667 = vadd.f32 %v1656, %v1663
      %v1668 = vadd.f32 %v1657, %v1663
      %v1669 = vadd.f32 %v1658, %v1663
      %v1670 = vadd.f32 %v1659, %v1663
      %v1671 = vadd.f32 %v1660, %v1663
      %v1672 = vadd.f32 %v1661, %v1663
      %vm1673 = vcmp.ge.f32.partialorder %v1665, 0.0
      %vm1674 = vcmp.ge.f32.partialorder %v1666, 0.0
      %vm1675 = vcmp.ge.f32.partialorder %v1667, 0.0
      %vm1676 = vcmp.ge.f32.partialorder %v1668, 0.0
      %vm1677 = vcmp.ge.f32.partialorder %v1669, 0.0
      %vm1678 = vcmp.ge.f32.partialorder %v1670, 0.0
      %vm1679 = vcmp.ge.f32.partialorder %v1671, 0.0
      %vm1680 = vcmp.ge.f32.partialorder %v1672, 0.0
      %v1681 = vmul.f32 %v1665, 0.2
      %v1682 = vmul.f32 %v1666, 0.2
      %v1683 = vmul.f32 %v1667, 0.2
      %v1684 = vmul.f32 %v1668, 0.2
      %v1685 = vmul.f32 %v1669, 0.2
      %v1686 = vmul.f32 %v1670, 0.2
      %v1687 = vmul.f32 %v1671, 0.2
      %v1688 = vmul.f32 %v1672, 0.2
      %v1689 = vsel %vm1673, %v1665, %v1681
      %v1690 = vsel %vm1674, %v1666, %v1682
      %v1691 = vsel %vm1675, %v1667, %v1683
      %v1692 = vsel %vm1676, %v1668, %v1684
      %v1693 = vsel %vm1677, %v1669, %v1685
      %v1694 = vsel %vm1678, %v1670, %v1686
      %v1695 = vsel %vm1679, %v1671, %v1687
      %v1696 = vsel %vm1680, %v1672, %v1688
      %v1697 = vmul.f32 %v1689, 1.4142135
      %v1698 = vmul.f32 %v1690, 1.4142135
      %v1699 = vmul.f32 %v1691, 1.4142135
      %v1700 = vmul.f32 %v1692, 1.4142135
      %v1701 = vmul.f32 %v1693, 1.4142135
      %v1702 = vmul.f32 %v1694, 1.4142135
      %v1703 = vmul.f32 %v1695, 1.4142135
      %v1704 = vmul.f32 %v1696, 1.4142135
      %1705 = vrot.lane.b32.xlu0 %v1306, 8
      %v1706 = vpop.permute.xlu0 %1705
      %v1708 = vmul.f32 %v1697, %v1706
      %v1709 = vmul.f32 %v1698, %v1706
      %v1710 = vmul.f32 %v1699, %v1706
      %v1711 = vmul.f32 %v1700, %v1706
      %v1712 = vmul.f32 %v1701, %v1706
      %v1713 = vmul.f32 %v1702, %v1706
      %v1714 = vmul.f32 %v1703, %v1706
      %v1715 = vmul.f32 %v1704, %v1706
      %1724 = vrot.lane.b32.xlu0 %v1708, 120
      %v1725 = vpop.permute.xlu0 %1724
      %1726 = vrot.lane.b32.xlu0 %v1709, 120
      %v1727 = vpop.permute.xlu0 %1726
      %1728 = vrot.lane.b32.xlu0 %v1710, 120
      %v1729 = vpop.permute.xlu0 %1728
      %1730 = vrot.lane.b32.xlu0 %v1711, 120
      %v1731 = vpop.permute.xlu0 %1730
      %1732 = vrot.lane.b32.xlu0 %v1712, 120
      %v1733 = vpop.permute.xlu0 %1732
      %1734 = vrot.lane.b32.xlu0 %v1713, 120
      %v1735 = vpop.permute.xlu0 %1734
      %1736 = vrot.lane.b32.xlu0 %v1714, 120
      %v1737 = vpop.permute.xlu0 %1736
      %1738 = vrot.lane.b32.xlu0 %v1715, 120
      %v1739 = vpop.permute.xlu0 %1738
      %v1748 = vsel %vm437, %v1725, 0.0
      %1749 = vadd.xlane.f32.xlu0 %v1748
      %v1750 = vpop.xlane.xlu0 %1749
      %v1751 = vsel %vm437, %v1727, 0.0
      %1752 = vadd.xlane.f32.xlu0 %v1751
      %v1753 = vpop.xlane.xlu0 %1752
      %v1754 = vsel %vm437, %v1729, 0.0
      %1755 = vadd.xlane.f32.xlu0 %v1754
      %v1756 = vpop.xlane.xlu0 %1755
      %v1757 = vsel %vm437, %v1731, 0.0
      %1758 = vadd.xlane.f32.xlu0 %v1757
      %v1759 = vpop.xlane.xlu0 %1758
      %v1760 = vsel %vm437, %v1733, 0.0
      %1761 = vadd.xlane.f32.xlu0 %v1760
      %v1762 = vpop.xlane.xlu0 %1761
      %v1763 = vsel %vm437, %v1735, 0.0
      %1764 = vadd.xlane.f32.xlu0 %v1763
      %v1765 = vpop.xlane.xlu0 %1764
      %v1766 = vsel %vm437, %v1737, 0.0
      %1767 = vadd.xlane.f32.xlu0 %v1766
      %v1768 = vpop.xlane.xlu0 %1767
      %v1769 = vsel %vm437, %v1739, 0.0
      %1770 = vadd.xlane.f32.xlu0 %v1769
      %v1771 = vpop.xlane.xlu0 %1770
      %v1772 = vadd.f32 %v1750, %v1341
      %v1773 = vadd.f32 %v1753, %v1341
      %v1774 = vadd.f32 %v1756, %v1341
      %v1775 = vadd.f32 %v1759, %v1341
      %v1776 = vadd.f32 %v1762, %v1341
      %v1777 = vadd.f32 %v1765, %v1341
      %v1778 = vadd.f32 %v1768, %v1341
      %v1779 = vadd.f32 %v1771, %v1341
      %v1780 = vxor.u32 %v1772, 2147483648
      %v1781 = vxor.u32 %v1773, 2147483648
      %v1782 = vxor.u32 %v1774, 2147483648
      %v1783 = vxor.u32 %v1775, 2147483648
      %v1784 = vxor.u32 %v1776, 2147483648
      %v1785 = vxor.u32 %v1777, 2147483648
      %v1786 = vxor.u32 %v1778, 2147483648
      %v1787 = vxor.u32 %v1779, 2147483648
      %v1788 = vmul.f32 %v1780, 1.442695
      %v1789 = vpow.pop %v1788
      %v1790 = vmul.f32 %v1781, 1.442695
      %v1791 = vpow.pop %v1790
      %v1792 = vmul.f32 %v1782, 1.442695
      %v1793 = vpow.pop %v1792
      %v1794 = vmul.f32 %v1783, 1.442695
      %v1795 = vpow.pop %v1794
      %v1796 = vmul.f32 %v1784, 1.442695
      %v1797 = vpow.pop %v1796
      %v1798 = vmul.f32 %v1785, 1.442695
      %v1799 = vpow.pop %v1798
      %v1800 = vmul.f32 %v1786, 1.442695
      %v1801 = vpow.pop %v1800
      %v1802 = vmul.f32 %v1787, 1.442695
      %v1803 = vpow.pop %v1802
      %v1804 = vadd.f32 %v1789, 1.0
      %v1805 = vadd.f32 %v1791, 1.0
      %v1806 = vadd.f32 %v1793, 1.0
      %v1807 = vadd.f32 %v1795, 1.0
      %v1808 = vadd.f32 %v1797, 1.0
      %v1809 = vadd.f32 %v1799, 1.0
      %v1810 = vadd.f32 %v1801, 1.0
      %v1811 = vadd.f32 %v1803, 1.0
      %v1812 = vrcp.pop %v1804
      %v1813 = vmul.f32 %v1804, %v1812
      %v1814 = vsub.f32 1.0, %v1813
      %v1815 = vmul.f32 %v1812, %v1814
      %v1816 = vadd.f32 %v1812, %v1815
      %vm1817 = vweird.f32 %v1804
      %vm1818 = vweird.f32 %v1812
      %vm1819 = vmor %vm1817, %vm1818
      %v1820 = vsel %vm1819, %v1812, %v1816
      %v1821 = vand.u32 2147483647, %v1804
      %vm1822 = vcmp.eq.f32.partialorder %v1821, 8.507059e+37
      %v1823 = vand.u32 %v1804, 2147483648
      %v1824 = vor.u32 1.1754944e-38, %v1823
      %v1825 = vsel %vm1822, %v1824, %v1820
      %v1826 = vmul.f32 1.0, %v1825
      %v1827 = vrcp.pop %v1805
      %v1828 = vmul.f32 %v1805, %v1827
      %v1829 = vsub.f32 1.0, %v1828
      %v1830 = vmul.f32 %v1827, %v1829
      %v1831 = vadd.f32 %v1827, %v1830
      %vm1832 = vweird.f32 %v1805
      %vm1833 = vweird.f32 %v1827
      %vm1834 = vmor %vm1832, %vm1833
      %v1835 = vsel %vm1834, %v1827, %v1831
      %v1836 = vand.u32 2147483647, %v1805
      %vm1837 = vcmp.eq.f32.partialorder %v1836, 8.507059e+37
      %v1838 = vand.u32 %v1805, 2147483648
      %v1839 = vor.u32 1.1754944e-38, %v1838
      %v1840 = vsel %vm1837, %v1839, %v1835
      %v1841 = vmul.f32 1.0, %v1840
      %v1842 = vrcp.pop %v1806
      %v1843 = vmul.f32 %v1806, %v1842
      %v1844 = vsub.f32 1.0, %v1843
      %v1845 = vmul.f32 %v1842, %v1844
      %v1846 = vadd.f32 %v1842, %v1845
      %vm1847 = vweird.f32 %v1806
      %vm1848 = vweird.f32 %v1842
      %vm1849 = vmor %vm1847, %vm1848
      %v1850 = vsel %vm1849, %v1842, %v1846
      %v1851 = vand.u32 2147483647, %v1806
      %vm1852 = vcmp.eq.f32.partialorder %v1851, 8.507059e+37
      %v1853 = vand.u32 %v1806, 2147483648
      %v1854 = vor.u32 1.1754944e-38, %v1853
      %v1855 = vsel %vm1852, %v1854, %v1850
      %v1856 = vmul.f32 1.0, %v1855
      %v1857 = vrcp.pop %v1807
      %v1858 = vmul.f32 %v1807, %v1857
      %v1859 = vsub.f32 1.0, %v1858
      %v1860 = vmul.f32 %v1857, %v1859
      %v1861 = vadd.f32 %v1857, %v1860
      %vm1862 = vweird.f32 %v1807
      %vm1863 = vweird.f32 %v1857
      %vm1864 = vmor %vm1862, %vm1863
      %v1865 = vsel %vm1864, %v1857, %v1861
      %v1866 = vand.u32 2147483647, %v1807
      %vm1867 = vcmp.eq.f32.partialorder %v1866, 8.507059e+37
      %v1868 = vand.u32 %v1807, 2147483648
      %v1869 = vor.u32 1.1754944e-38, %v1868
      %v1870 = vsel %vm1867, %v1869, %v1865
      %v1871 = vmul.f32 1.0, %v1870
      %v1872 = vrcp.pop %v1808
      %v1873 = vmul.f32 %v1808, %v1872
      %v1874 = vsub.f32 1.0, %v1873
      %v1875 = vmul.f32 %v1872, %v1874
      %v1876 = vadd.f32 %v1872, %v1875
      %vm1877 = vweird.f32 %v1808
      %vm1878 = vweird.f32 %v1872
      %vm1879 = vmor %vm1877, %vm1878
      %v1880 = vsel %vm1879, %v1872, %v1876
      %v1881 = vand.u32 2147483647, %v1808
      %vm1882 = vcmp.eq.f32.partialorder %v1881, 8.507059e+37
      %v1883 = vand.u32 %v1808, 2147483648
      %v1884 = vor.u32 1.1754944e-38, %v1883
      %v1885 = vsel %vm1882, %v1884, %v1880
      %v1886 = vmul.f32 1.0, %v1885
      %v1887 = vrcp.pop %v1809
      %v1888 = vmul.f32 %v1809, %v1887
      %v1889 = vsub.f32 1.0, %v1888
      %v1890 = vmul.f32 %v1887, %v1889
      %v1891 = vadd.f32 %v1887, %v1890
      %vm1892 = vweird.f32 %v1809
      %vm1893 = vweird.f32 %v1887
      %vm1894 = vmor %vm1892, %vm1893
      %v1895 = vsel %vm1894, %v1887, %v1891
      %v1896 = vand.u32 2147483647, %v1809
      %vm1897 = vcmp.eq.f32.partialorder %v1896, 8.507059e+37
      %v1898 = vand.u32 %v1809, 2147483648
      %v1899 = vor.u32 1.1754944e-38, %v1898
      %v1900 = vsel %vm1897, %v1899, %v1895
      %v1901 = vmul.f32 1.0, %v1900
      %v1902 = vrcp.pop %v1810
      %v1903 = vmul.f32 %v1810, %v1902
      %v1904 = vsub.f32 1.0, %v1903
      %v1905 = vmul.f32 %v1902, %v1904
      %v1906 = vadd.f32 %v1902, %v1905
      %vm1907 = vweird.f32 %v1810
      %vm1908 = vweird.f32 %v1902
      %vm1909 = vmor %vm1907, %vm1908
      %v1910 = vsel %vm1909, %v1902, %v1906
      %v1911 = vand.u32 2147483647, %v1810
      %vm1912 = vcmp.eq.f32.partialorder %v1911, 8.507059e+37
      %v1913 = vand.u32 %v1810, 2147483648
      %v1914 = vor.u32 1.1754944e-38, %v1913
      %v1915 = vsel %vm1912, %v1914, %v1910
      %v1916 = vmul.f32 1.0, %v1915
      %v1917 = vrcp.pop %v1811
      %v1918 = vmul.f32 %v1811, %v1917
      %v1919 = vsub.f32 1.0, %v1918
      %v1920 = vmul.f32 %v1917, %v1919
      %v1921 = vadd.f32 %v1917, %v1920
      %vm1922 = vweird.f32 %v1811
      %vm1923 = vweird.f32 %v1917
      %vm1924 = vmor %vm1922, %vm1923
      %v1925 = vsel %vm1924, %v1917, %v1921
      %v1926 = vand.u32 2147483647, %v1811
      %vm1927 = vcmp.eq.f32.partialorder %v1926, 8.507059e+37
      %v1928 = vand.u32 %v1811, 2147483648
      %v1929 = vor.u32 1.1754944e-38, %v1928
      %v1930 = vsel %vm1927, %v1929, %v1925
      %v1931 = vmul.f32 1.0, %v1930
      %v1932 = vsub.f32 1.0, %v1826
      %v1933 = vsub.f32 1.0, %v1841
      %v1934 = vsub.f32 1.0, %v1856
      %v1935 = vsub.f32 1.0, %v1871
      %v1936 = vsub.f32 1.0, %v1886
      %v1937 = vsub.f32 1.0, %v1901
      %v1938 = vsub.f32 1.0, %v1916
      %v1939 = vsub.f32 1.0, %v1931
      %1941 = vset.pattern.permute.xlu0 0
      %1942 = vperm.xlu0 %1941, %v1932
      %v1943 = vpop.permute.xlu0 %1942
      %1946 = vset.pattern.permute.xlu0 0
      %1947 = vperm.xlu0 %1946, %v1933
      %v1948 = vpop.permute.xlu0 %1947
      %1951 = vset.pattern.permute.xlu0 0
      %1952 = vperm.xlu0 %1951, %v1934
      %v1953 = vpop.permute.xlu0 %1952
      %1956 = vset.pattern.permute.xlu0 0
      %1957 = vperm.xlu0 %1956, %v1935
      %v1958 = vpop.permute.xlu0 %1957
      %1961 = vset.pattern.permute.xlu0 0
      %1962 = vperm.xlu0 %1961, %v1936
      %v1963 = vpop.permute.xlu0 %1962
      %1966 = vset.pattern.permute.xlu0 0
      %1967 = vperm.xlu0 %1966, %v1937
      %v1968 = vpop.permute.xlu0 %1967
      %1971 = vset.pattern.permute.xlu0 0
      %1972 = vperm.xlu0 %1971, %v1938
      %v1973 = vpop.permute.xlu0 %1972
      %1976 = vset.pattern.permute.xlu0 0
      %1977 = vperm.xlu0 %1976, %v1939
      %v1978 = vpop.permute.xlu0 %1977
      %v1980 = vmul.f32 %v1697, %v1943
      %v1981 = vmul.f32 %v1698, %v1948
      %v1982 = vmul.f32 %v1699, %v1953
      %v1983 = vmul.f32 %v1700, %v1958
      %v1984 = vmul.f32 %v1701, %v1963
      %v1985 = vmul.f32 %v1702, %v1968
      %v1986 = vmul.f32 %v1703, %v1973
      %v1987 = vmul.f32 %v1704, %v1978
      %v1988 = vld [vmem:[%s426] sm:$0xff]
      %v1989 = vld [vmem:[%s426 + $0x8] sm:$0xff]
      %v1990 = vld [vmem:[%s426 + $0x10] sm:$0xff]
      %v1991 = vld [vmem:[%s426 + $0x18] sm:$0xff]
      %v1992 = vld [vmem:[%s426 + $0x20] sm:$0xff]
      %v1993 = vld [vmem:[%s426 + $0x28] sm:$0xff]
      %v1994 = vld [vmem:[%s426 + $0x30] sm:$0xff]
      %v1995 = vld [vmem:[%s426 + $0x38] sm:$0xff]
      %1997 = vset.pattern.permute.xlu0 0
      %1998 = vperm.xlu0 %1997, %v1826
      %v1999 = vpop.permute.xlu0 %1998
      %2002 = vset.pattern.permute.xlu0 0
      %2003 = vperm.xlu0 %2002, %v1841
      %v2004 = vpop.permute.xlu0 %2003
      %2007 = vset.pattern.permute.xlu0 0
      %2008 = vperm.xlu0 %2007, %v1856
      %v2009 = vpop.permute.xlu0 %2008
      %2012 = vset.pattern.permute.xlu0 0
      %2013 = vperm.xlu0 %2012, %v1871
      %v2014 = vpop.permute.xlu0 %2013
      %2017 = vset.pattern.permute.xlu0 0
      %2018 = vperm.xlu0 %2017, %v1886
      %v2019 = vpop.permute.xlu0 %2018
      %2022 = vset.pattern.permute.xlu0 0
      %2023 = vperm.xlu0 %2022, %v1901
      %v2024 = vpop.permute.xlu0 %2023
      %2027 = vset.pattern.permute.xlu0 0
      %2028 = vperm.xlu0 %2027, %v1916
      %v2029 = vpop.permute.xlu0 %2028
      %2032 = vset.pattern.permute.xlu0 0
      %2033 = vperm.xlu0 %2032, %v1931
      %v2034 = vpop.permute.xlu0 %2033
      %v2036 = vmul.f32 %v1988, %v1999
      %v2037 = vmul.f32 %v1989, %v2004
      %v2038 = vmul.f32 %v1990, %v2009
      %v2039 = vmul.f32 %v1991, %v2014
      %v2040 = vmul.f32 %v1992, %v2019
      %v2041 = vmul.f32 %v1993, %v2024
      %v2042 = vmul.f32 %v1994, %v2029
      %v2043 = vmul.f32 %v1995, %v2034
      %v2044 = vadd.f32 %v1980, %v2036
      %v2045 = vadd.f32 %v1981, %v2037
      %v2046 = vadd.f32 %v1982, %v2038
      %v2047 = vadd.f32 %v1983, %v2039
      %v2048 = vadd.f32 %v1984, %v2040
      %v2049 = vadd.f32 %v1985, %v2041
      %v2050 = vadd.f32 %v1986, %v2042
      %v2051 = vadd.f32 %v1987, %v2043
      %2052 = vrot.lane.b32.xlu0 %v1624, 8
      %v2053 = vpop.permute.xlu0 %2052
      %v2055 = vmul.f32 %v2044, %v2053
      %v2056 = vmul.f32 %v2045, %v2053
      %v2057 = vmul.f32 %v2046, %v2053
      %v2058 = vmul.f32 %v2047, %v2053
      %v2059 = vmul.f32 %v2048, %v2053
      %v2060 = vmul.f32 %v2049, %v2053
      %v2061 = vmul.f32 %v2050, %v2053
      %v2062 = vmul.f32 %v2051, %v2053
      %vm2063 = vcmask 130112
      %2064 = vst.msk [vmem:[%s1228 + $0x1] sm:$0xff] %vm2063, %v2055
      %2065 = vst.msk [vmem:[%s1228 + $0x11] sm:$0xff] %vm2063, %v2056
      %2066 = vst.msk [vmem:[%s1228 + $0x21] sm:$0xff] %vm2063, %v2057
      %2067 = vst.msk [vmem:[%s1228 + $0x31] sm:$0xff] %vm2063, %v2058
      %2068 = vst.msk [vmem:[%s1228 + $0x41] sm:$0xff] %vm2063, %v2059
      %2069 = vst.msk [vmem:[%s1228 + $0x51] sm:$0xff] %vm2063, %v2060
      %2070 = vst.msk [vmem:[%s1228 + $0x61] sm:$0xff] %vm2063, %v2061
      %2071 = vst.msk [vmem:[%s1228 + $0x71] sm:$0xff] %vm2063, %v2062
      %2072 = vrot.lane.b32.xlu0 %v1826, 1
      %v2073 = vpop.permute.xlu0 %2072
      %2074 = vrot.lane.b32.xlu0 %v1841, 1
      %v2075 = vpop.permute.xlu0 %2074
      %2076 = vrot.lane.b32.xlu0 %v1856, 1
      %v2077 = vpop.permute.xlu0 %2076
      %2078 = vrot.lane.b32.xlu0 %v1871, 1
      %v2079 = vpop.permute.xlu0 %2078
      %2080 = vrot.lane.b32.xlu0 %v1886, 1
      %v2081 = vpop.permute.xlu0 %2080
      %2082 = vrot.lane.b32.xlu0 %v1901, 1
      %v2083 = vpop.permute.xlu0 %2082
      %2084 = vrot.lane.b32.xlu0 %v1916, 1
      %v2085 = vpop.permute.xlu0 %2084
      %2086 = vrot.lane.b32.xlu0 %v1931, 1
      %v2087 = vpop.permute.xlu0 %2086
      %vm2096 = vcmask 15368
      %2097 = vst.msk [vmem:[%s436] sm:$0xff] %vm2096, %v2073
      %2098 = vst.msk [vmem:[%s436 + $0x8] sm:$0xff] %vm2096, %v2075
      %2099 = vst.msk [vmem:[%s436 + $0x10] sm:$0xff] %vm2096, %v2077
      %2100 = vst.msk [vmem:[%s436 + $0x18] sm:$0xff] %vm2096, %v2079
      %2101 = vst.msk [vmem:[%s436 + $0x20] sm:$0xff] %vm2096, %v2081
      %2102 = vst.msk [vmem:[%s436 + $0x28] sm:$0xff] %vm2096, %v2083
      %2103 = vst.msk [vmem:[%s436 + $0x30] sm:$0xff] %vm2096, %v2085
      %2104 = vst.msk [vmem:[%s436 + $0x38] sm:$0xff] %vm2096, %v2087
      %2105 = vrot.lane.b32.xlu0 %v1252, 16
      %v2106 = vpop.permute.xlu0 %2105
      %v2108 = vmul.f32 %v1213, %v2106
      %v2109 = vmul.f32 %v1214, %v2106
      %v2110 = vmul.f32 %v1215, %v2106
      %v2111 = vmul.f32 %v1216, %v2106
      %v2112 = vmul.f32 %v1217, %v2106
      %v2113 = vmul.f32 %v1218, %v2106
      %v2114 = vmul.f32 %v1219, %v2106
      %v2115 = vmul.f32 %v1220, %v2106
      %2116 = vrot.lane.b32.xlu0 %v1263, 16
      %v2117 = vpop.permute.xlu0 %2116
      %v2119 = vadd.f32 %v2108, %v2117
      %v2120 = vadd.f32 %v2109, %v2117
      %v2121 = vadd.f32 %v2110, %v2117
      %v2122 = vadd.f32 %v2111, %v2117
      %v2123 = vadd.f32 %v2112, %v2117
      %v2124 = vadd.f32 %v2113, %v2117
      %v2125 = vadd.f32 %v2114, %v2117
      %v2126 = vadd.f32 %v2115, %v2117
      %vm2127 = vcmp.ge.f32.partialorder %v2119, 0.0
      %vm2128 = vcmp.ge.f32.partialorder %v2120, 0.0
      %vm2129 = vcmp.ge.f32.partialorder %v2121, 0.0
      %vm2130 = vcmp.ge.f32.partialorder %v2122, 0.0
      %vm2131 = vcmp.ge.f32.partialorder %v2123, 0.0
      %vm2132 = vcmp.ge.f32.partialorder %v2124, 0.0
      %vm2133 = vcmp.ge.f32.partialorder %v2125, 0.0
      %vm2134 = vcmp.ge.f32.partialorder %v2126, 0.0
      %v2135 = vmul.f32 %v2119, 0.2
      %v2136 = vmul.f32 %v2120, 0.2
      %v2137 = vmul.f32 %v2121, 0.2
      %v2138 = vmul.f32 %v2122, 0.2
      %v2139 = vmul.f32 %v2123, 0.2
      %v2140 = vmul.f32 %v2124, 0.2
      %v2141 = vmul.f32 %v2125, 0.2
      %v2142 = vmul.f32 %v2126, 0.2
      %v2143 = vsel %vm2127, %v2119, %v2135
      %v2144 = vsel %vm2128, %v2120, %v2136
      %v2145 = vsel %vm2129, %v2121, %v2137
      %v2146 = vsel %vm2130, %v2122, %v2138
      %v2147 = vsel %vm2131, %v2123, %v2139
      %v2148 = vsel %vm2132, %v2124, %v2140
      %v2149 = vsel %vm2133, %v2125, %v2141
      %v2150 = vsel %vm2134, %v2126, %v2142
      %v2151 = vmul.f32 %v2143, 1.4142135
      %v2152 = vmul.f32 %v2144, 1.4142135
      %v2153 = vmul.f32 %v2145, 1.4142135
      %v2154 = vmul.f32 %v2146, 1.4142135
      %v2155 = vmul.f32 %v2147, 1.4142135
      %v2156 = vmul.f32 %v2148, 1.4142135
      %v2157 = vmul.f32 %v2149, 1.4142135
      %v2158 = vmul.f32 %v2150, 1.4142135
      %2159 = vrot.lane.b32.xlu0 %v1306, 16
      %v2160 = vpop.permute.xlu0 %2159
      %v2162 = vmul.f32 %v2151, %v2160
      %v2163 = vmul.f32 %v2152, %v2160
      %v2164 = vmul.f32 %v2153, %v2160
      %v2165 = vmul.f32 %v2154, %v2160
      %v2166 = vmul.f32 %v2155, %v2160
      %v2167 = vmul.f32 %v2156, %v2160
      %v2168 = vmul.f32 %v2157, %v2160
      %v2169 = vmul.f32 %v2158, %v2160
      %2178 = vrot.lane.b32.xlu0 %v2162, 112
      %v2179 = vpop.permute.xlu0 %2178
      %2180 = vrot.lane.b32.xlu0 %v2163, 112
      %v2181 = vpop.permute.xlu0 %2180
      %2182 = vrot.lane.b32.xlu0 %v2164, 112
      %v2183 = vpop.permute.xlu0 %2182
      %2184 = vrot.lane.b32.xlu0 %v2165, 112
      %v2185 = vpop.permute.xlu0 %2184
      %2186 = vrot.lane.b32.xlu0 %v2166, 112
      %v2187 = vpop.permute.xlu0 %2186
      %2188 = vrot.lane.b32.xlu0 %v2167, 112
      %v2189 = vpop.permute.xlu0 %2188
      %2190 = vrot.lane.b32.xlu0 %v2168, 112
      %v2191 = vpop.permute.xlu0 %2190
      %2192 = vrot.lane.b32.xlu0 %v2169, 112
      %v2193 = vpop.permute.xlu0 %2192
      %v2202 = vsel %vm437, %v2179, 0.0
      %2203 = vadd.xlane.f32.xlu0 %v2202
      %v2204 = vpop.xlane.xlu0 %2203
      %v2205 = vsel %vm437, %v2181, 0.0
      %2206 = vadd.xlane.f32.xlu0 %v2205
      %v2207 = vpop.xlane.xlu0 %2206
      %v2208 = vsel %vm437, %v2183, 0.0
      %2209 = vadd.xlane.f32.xlu0 %v2208
      %v2210 = vpop.xlane.xlu0 %2209
      %v2211 = vsel %vm437, %v2185, 0.0
      %2212 = vadd.xlane.f32.xlu0 %v2211
      %v2213 = vpop.xlane.xlu0 %2212
      %v2214 = vsel %vm437, %v2187, 0.0
      %2215 = vadd.xlane.f32.xlu0 %v2214
      %v2216 = vpop.xlane.xlu0 %2215
      %v2217 = vsel %vm437, %v2189, 0.0
      %2218 = vadd.xlane.f32.xlu0 %v2217
      %v2219 = vpop.xlane.xlu0 %2218
      %v2220 = vsel %vm437, %v2191, 0.0
      %2221 = vadd.xlane.f32.xlu0 %v2220
      %v2222 = vpop.xlane.xlu0 %2221
      %v2223 = vsel %vm437, %v2193, 0.0
      %2224 = vadd.xlane.f32.xlu0 %v2223
      %v2225 = vpop.xlane.xlu0 %2224
      %v2226 = vadd.f32 %v2204, %v1341
      %v2227 = vadd.f32 %v2207, %v1341
      %v2228 = vadd.f32 %v2210, %v1341
      %v2229 = vadd.f32 %v2213, %v1341
      %v2230 = vadd.f32 %v2216, %v1341
      %v2231 = vadd.f32 %v2219, %v1341
      %v2232 = vadd.f32 %v2222, %v1341
      %v2233 = vadd.f32 %v2225, %v1341
      %v2234 = vxor.u32 %v2226, 2147483648
      %v2235 = vxor.u32 %v2227, 2147483648
      %v2236 = vxor.u32 %v2228, 2147483648
      %v2237 = vxor.u32 %v2229, 2147483648
      %v2238 = vxor.u32 %v2230, 2147483648
      %v2239 = vxor.u32 %v2231, 2147483648
      %v2240 = vxor.u32 %v2232, 2147483648
      %v2241 = vxor.u32 %v2233, 2147483648
      %v2242 = vmul.f32 %v2234, 1.442695
      %v2243 = vpow.pop %v2242
      %v2244 = vmul.f32 %v2235, 1.442695
      %v2245 = vpow.pop %v2244
      %v2246 = vmul.f32 %v2236, 1.442695
      %v2247 = vpow.pop %v2246
      %v2248 = vmul.f32 %v2237, 1.442695
      %v2249 = vpow.pop %v2248
      %v2250 = vmul.f32 %v2238, 1.442695
      %v2251 = vpow.pop %v2250
      %v2252 = vmul.f32 %v2239, 1.442695
      %v2253 = vpow.pop %v2252
      %v2254 = vmul.f32 %v2240, 1.442695
      %v2255 = vpow.pop %v2254
      %v2256 = vmul.f32 %v2241, 1.442695
      %v2257 = vpow.pop %v2256
      %v2258 = vadd.f32 %v2243, 1.0
      %v2259 = vadd.f32 %v2245, 1.0
      %v2260 = vadd.f32 %v2247, 1.0
      %v2261 = vadd.f32 %v2249, 1.0
      %v2262 = vadd.f32 %v2251, 1.0
      %v2263 = vadd.f32 %v2253, 1.0
      %v2264 = vadd.f32 %v2255, 1.0
      %v2265 = vadd.f32 %v2257, 1.0
      %v2266 = vrcp.pop %v2258
      %v2267 = vmul.f32 %v2258, %v2266
      %v2268 = vsub.f32 1.0, %v2267
      %v2269 = vmul.f32 %v2266, %v2268
      %v2270 = vadd.f32 %v2266, %v2269
      %vm2271 = vweird.f32 %v2258
      %vm2272 = vweird.f32 %v2266
      %vm2273 = vmor %vm2271, %vm2272
      %v2274 = vsel %vm2273, %v2266, %v2270
      %v2275 = vand.u32 2147483647, %v2258
      %vm2276 = vcmp.eq.f32.partialorder %v2275, 8.507059e+37
      %v2277 = vand.u32 %v2258, 2147483648
      %v2278 = vor.u32 1.1754944e-38, %v2277
      %v2279 = vsel %vm2276, %v2278, %v2274
      %v2280 = vmul.f32 1.0, %v2279
      %v2281 = vrcp.pop %v2259
      %v2282 = vmul.f32 %v2259, %v2281
      %v2283 = vsub.f32 1.0, %v2282
      %v2284 = vmul.f32 %v2281, %v2283
      %v2285 = vadd.f32 %v2281, %v2284
      %vm2286 = vweird.f32 %v2259
      %vm2287 = vweird.f32 %v2281
      %vm2288 = vmor %vm2286, %vm2287
      %v2289 = vsel %vm2288, %v2281, %v2285
      %v2290 = vand.u32 2147483647, %v2259
      %vm2291 = vcmp.eq.f32.partialorder %v2290, 8.507059e+37
      %v2292 = vand.u32 %v2259, 2147483648
      %v2293 = vor.u32 1.1754944e-38, %v2292
      %v2294 = vsel %vm2291, %v2293, %v2289
      %v2295 = vmul.f32 1.0, %v2294
      %v2296 = vrcp.pop %v2260
      %v2297 = vmul.f32 %v2260, %v2296
      %v2298 = vsub.f32 1.0, %v2297
      %v2299 = vmul.f32 %v2296, %v2298
      %v2300 = vadd.f32 %v2296, %v2299
      %vm2301 = vweird.f32 %v2260
      %vm2302 = vweird.f32 %v2296
      %vm2303 = vmor %vm2301, %vm2302
      %v2304 = vsel %vm2303, %v2296, %v2300
      %v2305 = vand.u32 2147483647, %v2260
      %vm2306 = vcmp.eq.f32.partialorder %v2305, 8.507059e+37
      %v2307 = vand.u32 %v2260, 2147483648
      %v2308 = vor.u32 1.1754944e-38, %v2307
      %v2309 = vsel %vm2306, %v2308, %v2304
      %v2310 = vmul.f32 1.0, %v2309
      %v2311 = vrcp.pop %v2261
      %v2312 = vmul.f32 %v2261, %v2311
      %v2313 = vsub.f32 1.0, %v2312
      %v2314 = vmul.f32 %v2311, %v2313
      %v2315 = vadd.f32 %v2311, %v2314
      %vm2316 = vweird.f32 %v2261
      %vm2317 = vweird.f32 %v2311
      %vm2318 = vmor %vm2316, %vm2317
      %v2319 = vsel %vm2318, %v2311, %v2315
      %v2320 = vand.u32 2147483647, %v2261
      %vm2321 = vcmp.eq.f32.partialorder %v2320, 8.507059e+37
      %v2322 = vand.u32 %v2261, 2147483648
      %v2323 = vor.u32 1.1754944e-38, %v2322
      %v2324 = vsel %vm2321, %v2323, %v2319
      %v2325 = vmul.f32 1.0, %v2324
      %v2326 = vrcp.pop %v2262
      %v2327 = vmul.f32 %v2262, %v2326
      %v2328 = vsub.f32 1.0, %v2327
      %v2329 = vmul.f32 %v2326, %v2328
      %v2330 = vadd.f32 %v2326, %v2329
      %vm2331 = vweird.f32 %v2262
      %vm2332 = vweird.f32 %v2326
      %vm2333 = vmor %vm2331, %vm2332
      %v2334 = vsel %vm2333, %v2326, %v2330
      %v2335 = vand.u32 2147483647, %v2262
      %vm2336 = vcmp.eq.f32.partialorder %v2335, 8.507059e+37
      %v2337 = vand.u32 %v2262, 2147483648
      %v2338 = vor.u32 1.1754944e-38, %v2337
      %v2339 = vsel %vm2336, %v2338, %v2334
      %v2340 = vmul.f32 1.0, %v2339
      %v2341 = vrcp.pop %v2263
      %v2342 = vmul.f32 %v2263, %v2341
      %v2343 = vsub.f32 1.0, %v2342
      %v2344 = vmul.f32 %v2341, %v2343
      %v2345 = vadd.f32 %v2341, %v2344
      %vm2346 = vweird.f32 %v2263
      %vm2347 = vweird.f32 %v2341
      %vm2348 = vmor %vm2346, %vm2347
      %v2349 = vsel %vm2348, %v2341, %v2345
      %v2350 = vand.u32 2147483647, %v2263
      %vm2351 = vcmp.eq.f32.partialorder %v2350, 8.507059e+37
      %v2352 = vand.u32 %v2263, 2147483648
      %v2353 = vor.u32 1.1754944e-38, %v2352
      %v2354 = vsel %vm2351, %v2353, %v2349
      %v2355 = vmul.f32 1.0, %v2354
      %v2356 = vrcp.pop %v2264
      %v2357 = vmul.f32 %v2264, %v2356
      %v2358 = vsub.f32 1.0, %v2357
      %v2359 = vmul.f32 %v2356, %v2358
      %v2360 = vadd.f32 %v2356, %v2359
      %vm2361 = vweird.f32 %v2264
      %vm2362 = vweird.f32 %v2356
      %vm2363 = vmor %vm2361, %vm2362
      %v2364 = vsel %vm2363, %v2356, %v2360
      %v2365 = vand.u32 2147483647, %v2264
      %vm2366 = vcmp.eq.f32.partialorder %v2365, 8.507059e+37
      %v2367 = vand.u32 %v2264, 2147483648
      %v2368 = vor.u32 1.1754944e-38, %v2367
      %v2369 = vsel %vm2366, %v2368, %v2364
      %v2370 = vmul.f32 1.0, %v2369
      %v2371 = vrcp.pop %v2265
      %v2372 = vmul.f32 %v2265, %v2371
      %v2373 = vsub.f32 1.0, %v2372
      %v2374 = vmul.f32 %v2371, %v2373
      %v2375 = vadd.f32 %v2371, %v2374
      %vm2376 = vweird.f32 %v2265
      %vm2377 = vweird.f32 %v2371
      %vm2378 = vmor %vm2376, %vm2377
      %v2379 = vsel %vm2378, %v2371, %v2375
      %v2380 = vand.u32 2147483647, %v2265
      %vm2381 = vcmp.eq.f32.partialorder %v2380, 8.507059e+37
      %v2382 = vand.u32 %v2265, 2147483648
      %v2383 = vor.u32 1.1754944e-38, %v2382
      %v2384 = vsel %vm2381, %v2383, %v2379
      %v2385 = vmul.f32 1.0, %v2384
      %v2386 = vsub.f32 1.0, %v2280
      %v2387 = vsub.f32 1.0, %v2295
      %v2388 = vsub.f32 1.0, %v2310
      %v2389 = vsub.f32 1.0, %v2325
      %v2390 = vsub.f32 1.0, %v2340
      %v2391 = vsub.f32 1.0, %v2355
      %v2392 = vsub.f32 1.0, %v2370
      %v2393 = vsub.f32 1.0, %v2385
      %2395 = vset.pattern.permute.xlu0 0
      %2396 = vperm.xlu0 %2395, %v2386
      %v2397 = vpop.permute.xlu0 %2396
      %2400 = vset.pattern.permute.xlu0 0
      %2401 = vperm.xlu0 %2400, %v2387
      %v2402 = vpop.permute.xlu0 %2401
      %2405 = vset.pattern.permute.xlu0 0
      %2406 = vperm.xlu0 %2405, %v2388
      %v2407 = vpop.permute.xlu0 %2406
      %2410 = vset.pattern.permute.xlu0 0
      %2411 = vperm.xlu0 %2410, %v2389
      %v2412 = vpop.permute.xlu0 %2411
      %2415 = vset.pattern.permute.xlu0 0
      %2416 = vperm.xlu0 %2415, %v2390
      %v2417 = vpop.permute.xlu0 %2416
      %2420 = vset.pattern.permute.xlu0 0
      %2421 = vperm.xlu0 %2420, %v2391
      %v2422 = vpop.permute.xlu0 %2421
      %2425 = vset.pattern.permute.xlu0 0
      %2426 = vperm.xlu0 %2425, %v2392
      %v2427 = vpop.permute.xlu0 %2426
      %2430 = vset.pattern.permute.xlu0 0
      %2431 = vperm.xlu0 %2430, %v2393
      %v2432 = vpop.permute.xlu0 %2431
      %v2434 = vmul.f32 %v2151, %v2397
      %v2435 = vmul.f32 %v2152, %v2402
      %v2436 = vmul.f32 %v2153, %v2407
      %v2437 = vmul.f32 %v2154, %v2412
      %v2438 = vmul.f32 %v2155, %v2417
      %v2439 = vmul.f32 %v2156, %v2422
      %v2440 = vmul.f32 %v2157, %v2427
      %v2441 = vmul.f32 %v2158, %v2432
      %v2442 = vld [vmem:[%s426] sm:$0xff]
      %v2443 = vld [vmem:[%s426 + $0x8] sm:$0xff]
      %v2444 = vld [vmem:[%s426 + $0x10] sm:$0xff]
      %v2445 = vld [vmem:[%s426 + $0x18] sm:$0xff]
      %v2446 = vld [vmem:[%s426 + $0x20] sm:$0xff]
      %v2447 = vld [vmem:[%s426 + $0x28] sm:$0xff]
      %v2448 = vld [vmem:[%s426 + $0x30] sm:$0xff]
      %v2449 = vld [vmem:[%s426 + $0x38] sm:$0xff]
      %2451 = vset.pattern.permute.xlu0 0
      %2452 = vperm.xlu0 %2451, %v2280
      %v2453 = vpop.permute.xlu0 %2452
      %2456 = vset.pattern.permute.xlu0 0
      %2457 = vperm.xlu0 %2456, %v2295
      %v2458 = vpop.permute.xlu0 %2457
      %2461 = vset.pattern.permute.xlu0 0
      %2462 = vperm.xlu0 %2461, %v2310
      %v2463 = vpop.permute.xlu0 %2462
      %2466 = vset.pattern.permute.xlu0 0
      %2467 = vperm.xlu0 %2466, %v2325
      %v2468 = vpop.permute.xlu0 %2467
      %2471 = vset.pattern.permute.xlu0 0
      %2472 = vperm.xlu0 %2471, %v2340
      %v2473 = vpop.permute.xlu0 %2472
      %2476 = vset.pattern.permute.xlu0 0
      %2477 = vperm.xlu0 %2476, %v2355
      %v2478 = vpop.permute.xlu0 %2477
      %2481 = vset.pattern.permute.xlu0 0
      %2482 = vperm.xlu0 %2481, %v2370
      %v2483 = vpop.permute.xlu0 %2482
      %2486 = vset.pattern.permute.xlu0 0
      %2487 = vperm.xlu0 %2486, %v2385
      %v2488 = vpop.permute.xlu0 %2487
      %v2490 = vmul.f32 %v2442, %v2453
      %v2491 = vmul.f32 %v2443, %v2458
      %v2492 = vmul.f32 %v2444, %v2463
      %v2493 = vmul.f32 %v2445, %v2468
      %v2494 = vmul.f32 %v2446, %v2473
      %v2495 = vmul.f32 %v2447, %v2478
      %v2496 = vmul.f32 %v2448, %v2483
      %v2497 = vmul.f32 %v2449, %v2488
      %v2498 = vadd.f32 %v2434, %v2490
      %v2499 = vadd.f32 %v2435, %v2491
      %v2500 = vadd.f32 %v2436, %v2492
      %v2501 = vadd.f32 %v2437, %v2493
      %v2502 = vadd.f32 %v2438, %v2494
      %v2503 = vadd.f32 %v2439, %v2495
      %v2504 = vadd.f32 %v2440, %v2496
      %v2505 = vadd.f32 %v2441, %v2497
      %2506 = vrot.lane.b32.xlu0 %v1624, 16
      %v2507 = vpop.permute.xlu0 %2506
      %v2509 = vmul.f32 %v2498, %v2507
      %v2510 = vmul.f32 %v2499, %v2507
      %v2511 = vmul.f32 %v2500, %v2507
      %v2512 = vmul.f32 %v2501, %v2507
      %v2513 = vmul.f32 %v2502, %v2507
      %v2514 = vmul.f32 %v2503, %v2507
      %v2515 = vmul.f32 %v2504, %v2507
      %v2516 = vmul.f32 %v2505, %v2507
      %vm2517 = vcmask 195712
      %2518 = vst.msk [vmem:[%s1228 + $0x1] sm:$0xff] %vm2517, %v2509
      %2519 = vst.msk [vmem:[%s1228 + $0x11] sm:$0xff] %vm2517, %v2510
      %2520 = vst.msk [vmem:[%s1228 + $0x21] sm:$0xff] %vm2517, %v2511
      %2521 = vst.msk [vmem:[%s1228 + $0x31] sm:$0xff] %vm2517, %v2512
      %2522 = vst.msk [vmem:[%s1228 + $0x41] sm:$0xff] %vm2517, %v2513
      %2523 = vst.msk [vmem:[%s1228 + $0x51] sm:$0xff] %vm2517, %v2514
      %2524 = vst.msk [vmem:[%s1228 + $0x61] sm:$0xff] %vm2517, %v2515
      %2525 = vst.msk [vmem:[%s1228 + $0x71] sm:$0xff] %vm2517, %v2516
      %2526 = vrot.lane.b32.xlu0 %v2280, 2
      %v2527 = vpop.permute.xlu0 %2526
      %2528 = vrot.lane.b32.xlu0 %v2295, 2
      %v2529 = vpop.permute.xlu0 %2528
      %2530 = vrot.lane.b32.xlu0 %v2310, 2
      %v2531 = vpop.permute.xlu0 %2530
      %2532 = vrot.lane.b32.xlu0 %v2325, 2
      %v2533 = vpop.permute.xlu0 %2532
      %2534 = vrot.lane.b32.xlu0 %v2340, 2
      %v2535 = vpop.permute.xlu0 %2534
      %2536 = vrot.lane.b32.xlu0 %v2355, 2
      %v2537 = vpop.permute.xlu0 %2536
      %2538 = vrot.lane.b32.xlu0 %v2370, 2
      %v2539 = vpop.permute.xlu0 %2538
      %2540 = vrot.lane.b32.xlu0 %v2385, 2
      %v2541 = vpop.permute.xlu0 %2540
      %vm2550 = vcmask 23568
      %2551 = vst.msk [vmem:[%s436] sm:$0xff] %vm2550, %v2527
      %2552 = vst.msk [vmem:[%s436 + $0x8] sm:$0xff] %vm2550, %v2529
      %2553 = vst.msk [vmem:[%s436 + $0x10] sm:$0xff] %vm2550, %v2531
      %2554 = vst.msk [vmem:[%s436 + $0x18] sm:$0xff] %vm2550, %v2533
      %2555 = vst.msk [vmem:[%s436 + $0x20] sm:$0xff] %vm2550, %v2535
      %2556 = vst.msk [vmem:[%s436 + $0x28] sm:$0xff] %vm2550, %v2537
      %2557 = vst.msk [vmem:[%s436 + $0x30] sm:$0xff] %vm2550, %v2539
      %2558 = vst.msk [vmem:[%s436 + $0x38] sm:$0xff] %vm2550, %v2541
      %2559 = vrot.lane.b32.xlu0 %v1252, 24
      %v2560 = vpop.permute.xlu0 %2559
      %v2562 = vmul.f32 %v1213, %v2560
      %v2563 = vmul.f32 %v1214, %v2560
      %v2564 = vmul.f32 %v1215, %v2560
      %v2565 = vmul.f32 %v1216, %v2560
      %v2566 = vmul.f32 %v1217, %v2560
      %v2567 = vmul.f32 %v1218, %v2560
      %v2568 = vmul.f32 %v1219, %v2560
      %v2569 = vmul.f32 %v1220, %v2560
      %2570 = vrot.lane.b32.xlu0 %v1263, 24
      %v2571 = vpop.permute.xlu0 %2570
      %v2573 = vadd.f32 %v2562, %v2571
      %v2574 = vadd.f32 %v2563, %v2571
      %v2575 = vadd.f32 %v2564, %v2571
      %v2576 = vadd.f32 %v2565, %v2571
      %v2577 = vadd.f32 %v2566, %v2571
      %v2578 = vadd.f32 %v2567, %v2571
      %v2579 = vadd.f32 %v2568, %v2571
      %v2580 = vadd.f32 %v2569, %v2571
      %vm2581 = vcmp.ge.f32.partialorder %v2573, 0.0
      %vm2582 = vcmp.ge.f32.partialorder %v2574, 0.0
      %vm2583 = vcmp.ge.f32.partialorder %v2575, 0.0
      %vm2584 = vcmp.ge.f32.partialorder %v2576, 0.0
      %vm2585 = vcmp.ge.f32.partialorder %v2577, 0.0
      %vm2586 = vcmp.ge.f32.partialorder %v2578, 0.0
      %vm2587 = vcmp.ge.f32.partialorder %v2579, 0.0
      %vm2588 = vcmp.ge.f32.partialorder %v2580, 0.0
      %v2589 = vmul.f32 %v2573, 0.2
      %v2590 = vmul.f32 %v2574, 0.2
      %v2591 = vmul.f32 %v2575, 0.2
      %v2592 = vmul.f32 %v2576, 0.2
      %v2593 = vmul.f32 %v2577, 0.2
      %v2594 = vmul.f32 %v2578, 0.2
      %v2595 = vmul.f32 %v2579, 0.2
      %v2596 = vmul.f32 %v2580, 0.2
      %v2597 = vsel %vm2581, %v2573, %v2589
      %v2598 = vsel %vm2582, %v2574, %v2590
      %v2599 = vsel %vm2583, %v2575, %v2591
      %v2600 = vsel %vm2584, %v2576, %v2592
      %v2601 = vsel %vm2585, %v2577, %v2593
      %v2602 = vsel %vm2586, %v2578, %v2594
      %v2603 = vsel %vm2587, %v2579, %v2595
      %v2604 = vsel %vm2588, %v2580, %v2596
      %v2605 = vmul.f32 %v2597, 1.4142135
      %v2606 = vmul.f32 %v2598, 1.4142135
      %v2607 = vmul.f32 %v2599, 1.4142135
      %v2608 = vmul.f32 %v2600, 1.4142135
      %v2609 = vmul.f32 %v2601, 1.4142135
      %v2610 = vmul.f32 %v2602, 1.4142135
      %v2611 = vmul.f32 %v2603, 1.4142135
      %v2612 = vmul.f32 %v2604, 1.4142135
      %2613 = vrot.lane.b32.xlu0 %v1306, 24
      %v2614 = vpop.permute.xlu0 %2613
      %v2616 = vmul.f32 %v2605, %v2614
      %v2617 = vmul.f32 %v2606, %v2614
      %v2618 = vmul.f32 %v2607, %v2614
      %v2619 = vmul.f32 %v2608, %v2614
      %v2620 = vmul.f32 %v2609, %v2614
      %v2621 = vmul.f32 %v2610, %v2614
      %v2622 = vmul.f32 %v2611, %v2614
      %v2623 = vmul.f32 %v2612, %v2614
      %2632 = vrot.lane.b32.xlu0 %v2616, 104
      %v2633 = vpop.permute.xlu0 %2632
      %2634 = vrot.lane.b32.xlu0 %v2617, 104
      %v2635 = vpop.permute.xlu0 %2634
      %2636 = vrot.lane.b32.xlu0 %v2618, 104
      %v2637 = vpop.permute.xlu0 %2636
      %2638 = vrot.lane.b32.xlu0 %v2619, 104
      %v2639 = vpop.permute.xlu0 %2638
      %2640 = vrot.lane.b32.xlu0 %v2620, 104
      %v2641 = vpop.permute.xlu0 %2640
      %2642 = vrot.lane.b32.xlu0 %v2621, 104
      %v2643 = vpop.permute.xlu0 %2642
      %2644 = vrot.lane.b32.xlu0 %v2622, 104
      %v2645 = vpop.permute.xlu0 %2644
      %2646 = vrot.lane.b32.xlu0 %v2623, 104
      %v2647 = vpop.permute.xlu0 %2646
      %v2656 = vsel %vm437, %v2633, 0.0
      %2657 = vadd.xlane.f32.xlu0 %v2656
      %v2658 = vpop.xlane.xlu0 %2657
      %v2659 = vsel %vm437, %v2635, 0.0
      %2660 = vadd.xlane.f32.xlu0 %v2659
      %v2661 = vpop.xlane.xlu0 %2660
      %v2662 = vsel %vm437, %v2637, 0.0
      %2663 = vadd.xlane.f32.xlu0 %v2662
      %v2664 = vpop.xlane.xlu0 %2663
      %v2665 = vsel %vm437, %v2639, 0.0
      %2666 = vadd.xlane.f32.xlu0 %v2665
      %v2667 = vpop.xlane.xlu0 %2666
      %v2668 = vsel %vm437, %v2641, 0.0
      %2669 = vadd.xlane.f32.xlu0 %v2668
      %v2670 = vpop.xlane.xlu0 %2669
      %v2671 = vsel %vm437, %v2643, 0.0
      %2672 = vadd.xlane.f32.xlu0 %v2671
      %v2673 = vpop.xlane.xlu0 %2672
      %v2674 = vsel %vm437, %v2645, 0.0
      %2675 = vadd.xlane.f32.xlu0 %v2674
      %v2676 = vpop.xlane.xlu0 %2675
      %v2677 = vsel %vm437, %v2647, 0.0
      %2678 = vadd.xlane.f32.xlu0 %v2677
      %v2679 = vpop.xlane.xlu0 %2678
      %v2680 = vadd.f32 %v2658, %v1341
      %v2681 = vadd.f32 %v2661, %v1341
      %v2682 = vadd.f32 %v2664, %v1341
      %v2683 = vadd.f32 %v2667, %v1341
      %v2684 = vadd.f32 %v2670, %v1341
      %v2685 = vadd.f32 %v2673, %v1341
      %v2686 = vadd.f32 %v2676, %v1341
      %v2687 = vadd.f32 %v2679, %v1341
      %v2688 = vxor.u32 %v2680, 2147483648
      %v2689 = vxor.u32 %v2681, 2147483648
      %v2690 = vxor.u32 %v2682, 2147483648
      %v2691 = vxor.u32 %v2683, 2147483648
      %v2692 = vxor.u32 %v2684, 2147483648
      %v2693 = vxor.u32 %v2685, 2147483648
      %v2694 = vxor.u32 %v2686, 2147483648
      %v2695 = vxor.u32 %v2687, 2147483648
      %v2696 = vmul.f32 %v2688, 1.442695
      %v2697 = vpow.pop %v2696
      %v2698 = vmul.f32 %v2689, 1.442695
      %v2699 = vpow.pop %v2698
      %v2700 = vmul.f32 %v2690, 1.442695
      %v2701 = vpow.pop %v2700
      %v2702 = vmul.f32 %v2691, 1.442695
      %v2703 = vpow.pop %v2702
      %v2704 = vmul.f32 %v2692, 1.442695
      %v2705 = vpow.pop %v2704
      %v2706 = vmul.f32 %v2693, 1.442695
      %v2707 = vpow.pop %v2706
      %v2708 = vmul.f32 %v2694, 1.442695
      %v2709 = vpow.pop %v2708
      %v2710 = vmul.f32 %v2695, 1.442695
      %v2711 = vpow.pop %v2710
      %v2712 = vadd.f32 %v2697, 1.0
      %v2713 = vadd.f32 %v2699, 1.0
      %v2714 = vadd.f32 %v2701, 1.0
      %v2715 = vadd.f32 %v2703, 1.0
      %v2716 = vadd.f32 %v2705, 1.0
      %v2717 = vadd.f32 %v2707, 1.0
      %v2718 = vadd.f32 %v2709, 1.0
      %v2719 = vadd.f32 %v2711, 1.0
      %v2720 = vrcp.pop %v2712
      %v2721 = vmul.f32 %v2712, %v2720
      %v2722 = vsub.f32 1.0, %v2721
      %v2723 = vmul.f32 %v2720, %v2722
      %v2724 = vadd.f32 %v2720, %v2723
      %vm2725 = vweird.f32 %v2712
      %vm2726 = vweird.f32 %v2720
      %vm2727 = vmor %vm2725, %vm2726
      %v2728 = vsel %vm2727, %v2720, %v2724
      %v2729 = vand.u32 2147483647, %v2712
      %vm2730 = vcmp.eq.f32.partialorder %v2729, 8.507059e+37
      %v2731 = vand.u32 %v2712, 2147483648
      %v2732 = vor.u32 1.1754944e-38, %v2731
      %v2733 = vsel %vm2730, %v2732, %v2728
      %v2734 = vmul.f32 1.0, %v2733
      %v2735 = vrcp.pop %v2713
      %v2736 = vmul.f32 %v2713, %v2735
      %v2737 = vsub.f32 1.0, %v2736
      %v2738 = vmul.f32 %v2735, %v2737
      %v2739 = vadd.f32 %v2735, %v2738
      %vm2740 = vweird.f32 %v2713
      %vm2741 = vweird.f32 %v2735
      %vm2742 = vmor %vm2740, %vm2741
      %v2743 = vsel %vm2742, %v2735, %v2739
      %v2744 = vand.u32 2147483647, %v2713
      %vm2745 = vcmp.eq.f32.partialorder %v2744, 8.507059e+37
      %v2746 = vand.u32 %v2713, 2147483648
      %v2747 = vor.u32 1.1754944e-38, %v2746
      %v2748 = vsel %vm2745, %v2747, %v2743
      %v2749 = vmul.f32 1.0, %v2748
      %v2750 = vrcp.pop %v2714
      %v2751 = vmul.f32 %v2714, %v2750
      %v2752 = vsub.f32 1.0, %v2751
      %v2753 = vmul.f32 %v2750, %v2752
      %v2754 = vadd.f32 %v2750, %v2753
      %vm2755 = vweird.f32 %v2714
      %vm2756 = vweird.f32 %v2750
      %vm2757 = vmor %vm2755, %vm2756
      %v2758 = vsel %vm2757, %v2750, %v2754
      %v2759 = vand.u32 2147483647, %v2714
      %vm2760 = vcmp.eq.f32.partialorder %v2759, 8.507059e+37
      %v2761 = vand.u32 %v2714, 2147483648
      %v2762 = vor.u32 1.1754944e-38, %v2761
      %v2763 = vsel %vm2760, %v2762, %v2758
      %v2764 = vmul.f32 1.0, %v2763
      %v2765 = vrcp.pop %v2715
      %v2766 = vmul.f32 %v2715, %v2765
      %v2767 = vsub.f32 1.0, %v2766
      %v2768 = vmul.f32 %v2765, %v2767
      %v2769 = vadd.f32 %v2765, %v2768
      %vm2770 = vweird.f32 %v2715
      %vm2771 = vweird.f32 %v2765
      %vm2772 = vmor %vm2770, %vm2771
      %v2773 = vsel %vm2772, %v2765, %v2769
      %v2774 = vand.u32 2147483647, %v2715
      %vm2775 = vcmp.eq.f32.partialorder %v2774, 8.507059e+37
      %v2776 = vand.u32 %v2715, 2147483648
      %v2777 = vor.u32 1.1754944e-38, %v2776
      %v2778 = vsel %vm2775, %v2777, %v2773
      %v2779 = vmul.f32 1.0, %v2778
      %v2780 = vrcp.pop %v2716
      %v2781 = vmul.f32 %v2716, %v2780
      %v2782 = vsub.f32 1.0, %v2781
      %v2783 = vmul.f32 %v2780, %v2782
      %v2784 = vadd.f32 %v2780, %v2783
      %vm2785 = vweird.f32 %v2716
      %vm2786 = vweird.f32 %v2780
      %vm2787 = vmor %vm2785, %vm2786
      %v2788 = vsel %vm2787, %v2780, %v2784
      %v2789 = vand.u32 2147483647, %v2716
      %vm2790 = vcmp.eq.f32.partialorder %v2789, 8.507059e+37
      %v2791 = vand.u32 %v2716, 2147483648
      %v2792 = vor.u32 1.1754944e-38, %v2791
      %v2793 = vsel %vm2790, %v2792, %v2788
      %v2794 = vmul.f32 1.0, %v2793
      %v2795 = vrcp.pop %v2717
      %v2796 = vmul.f32 %v2717, %v2795
      %v2797 = vsub.f32 1.0, %v2796
      %v2798 = vmul.f32 %v2795, %v2797
      %v2799 = vadd.f32 %v2795, %v2798
      %vm2800 = vweird.f32 %v2717
      %vm2801 = vweird.f32 %v2795
      %vm2802 = vmor %vm2800, %vm2801
      %v2803 = vsel %vm2802, %v2795, %v2799
      %v2804 = vand.u32 2147483647, %v2717
      %vm2805 = vcmp.eq.f32.partialorder %v2804, 8.507059e+37
      %v2806 = vand.u32 %v2717, 2147483648
      %v2807 = vor.u32 1.1754944e-38, %v2806
      %v2808 = vsel %vm2805, %v2807, %v2803
      %v2809 = vmul.f32 1.0, %v2808
      %v2810 = vrcp.pop %v2718
      %v2811 = vmul.f32 %v2718, %v2810
      %v2812 = vsub.f32 1.0, %v2811
      %v2813 = vmul.f32 %v2810, %v2812
      %v2814 = vadd.f32 %v2810, %v2813
      %vm2815 = vweird.f32 %v2718
      %vm2816 = vweird.f32 %v2810
      %vm2817 = vmor %vm2815, %vm2816
      %v2818 = vsel %vm2817, %v2810, %v2814
      %v2819 = vand.u32 2147483647, %v2718
      %vm2820 = vcmp.eq.f32.partialorder %v2819, 8.507059e+37
      %v2821 = vand.u32 %v2718, 2147483648
      %v2822 = vor.u32 1.1754944e-38, %v2821
      %v2823 = vsel %vm2820, %v2822, %v2818
      %v2824 = vmul.f32 1.0, %v2823
      %v2825 = vrcp.pop %v2719
      %v2826 = vmul.f32 %v2719, %v2825
      %v2827 = vsub.f32 1.0, %v2826
      %v2828 = vmul.f32 %v2825, %v2827
      %v2829 = vadd.f32 %v2825, %v2828
      %vm2830 = vweird.f32 %v2719
      %vm2831 = vweird.f32 %v2825
      %vm2832 = vmor %vm2830, %vm2831
      %v2833 = vsel %vm2832, %v2825, %v2829
      %v2834 = vand.u32 2147483647, %v2719
      %vm2835 = vcmp.eq.f32.partialorder %v2834, 8.507059e+37
      %v2836 = vand.u32 %v2719, 2147483648
      %v2837 = vor.u32 1.1754944e-38, %v2836
      %v2838 = vsel %vm2835, %v2837, %v2833
      %v2839 = vmul.f32 1.0, %v2838
      %v2840 = vsub.f32 1.0, %v2734
      %v2841 = vsub.f32 1.0, %v2749
      %v2842 = vsub.f32 1.0, %v2764
      %v2843 = vsub.f32 1.0, %v2779
      %v2844 = vsub.f32 1.0, %v2794
      %v2845 = vsub.f32 1.0, %v2809
      %v2846 = vsub.f32 1.0, %v2824
      %v2847 = vsub.f32 1.0, %v2839
      %2849 = vset.pattern.permute.xlu0 0
      %2850 = vperm.xlu0 %2849, %v2840
      %v2851 = vpop.permute.xlu0 %2850
      %2854 = vset.pattern.permute.xlu0 0
      %2855 = vperm.xlu0 %2854, %v2841
      %v2856 = vpop.permute.xlu0 %2855
      %2859 = vset.pattern.permute.xlu0 0
      %2860 = vperm.xlu0 %2859, %v2842
      %v2861 = vpop.permute.xlu0 %2860
      %2864 = vset.pattern.permute.xlu0 0
      %2865 = vperm.xlu0 %2864, %v2843
      %v2866 = vpop.permute.xlu0 %2865
      %2869 = vset.pattern.permute.xlu0 0
      %2870 = vperm.xlu0 %2869, %v2844
      %v2871 = vpop.permute.xlu0 %2870
      %2874 = vset.pattern.permute.xlu0 0
      %2875 = vperm.xlu0 %2874, %v2845
      %v2876 = vpop.permute.xlu0 %2875
      %2879 = vset.pattern.permute.xlu0 0
      %2880 = vperm.xlu0 %2879, %v2846
      %v2881 = vpop.permute.xlu0 %2880
      %2884 = vset.pattern.permute.xlu0 0
      %2885 = vperm.xlu0 %2884, %v2847
      %v2886 = vpop.permute.xlu0 %2885
      %v2888 = vmul.f32 %v2605, %v2851
      %v2889 = vmul.f32 %v2606, %v2856
      %v2890 = vmul.f32 %v2607, %v2861
      %v2891 = vmul.f32 %v2608, %v2866
      %v2892 = vmul.f32 %v2609, %v2871
      %v2893 = vmul.f32 %v2610, %v2876
      %v2894 = vmul.f32 %v2611, %v2881
      %v2895 = vmul.f32 %v2612, %v2886
      %v2896 = vld [vmem:[%s426] sm:$0xff]
      %v2897 = vld [vmem:[%s426 + $0x8] sm:$0xff]
      %v2898 = vld [vmem:[%s426 + $0x10] sm:$0xff]
      %v2899 = vld [vmem:[%s426 + $0x18] sm:$0xff]
      %v2900 = vld [vmem:[%s426 + $0x20] sm:$0xff]
      %v2901 = vld [vmem:[%s426 + $0x28] sm:$0xff]
      %v2902 = vld [vmem:[%s426 + $0x30] sm:$0xff]
      %v2903 = vld [vmem:[%s426 + $0x38] sm:$0xff]
      %2905 = vset.pattern.permute.xlu0 0
      %2906 = vperm.xlu0 %2905, %v2734
      %v2907 = vpop.permute.xlu0 %2906
      %2910 = vset.pattern.permute.xlu0 0
      %2911 = vperm.xlu0 %2910, %v2749
      %v2912 = vpop.permute.xlu0 %2911
      %2915 = vset.pattern.permute.xlu0 0
      %2916 = vperm.xlu0 %2915, %v2764
      %v2917 = vpop.permute.xlu0 %2916
      %2920 = vset.pattern.permute.xlu0 0
      %2921 = vperm.xlu0 %2920, %v2779
      %v2922 = vpop.permute.xlu0 %2921
      %2925 = vset.pattern.permute.xlu0 0
      %2926 = vperm.xlu0 %2925, %v2794
      %v2927 = vpop.permute.xlu0 %2926
      %2930 = vset.pattern.permute.xlu0 0
      %2931 = vperm.xlu0 %2930, %v2809
      %v2932 = vpop.permute.xlu0 %2931
      %2935 = vset.pattern.permute.xlu0 0
      %2936 = vperm.xlu0 %2935, %v2824
      %v2937 = vpop.permute.xlu0 %2936
      %2940 = vset.pattern.permute.xlu0 0
      %2941 = vperm.xlu0 %2940, %v2839
      %v2942 = vpop.permute.xlu0 %2941
      %v2944 = vmul.f32 %v2896, %v2907
      %v2945 = vmul.f32 %v2897, %v2912
      %v2946 = vmul.f32 %v2898, %v2917
      %v2947 = vmul.f32 %v2899, %v2922
      %v2948 = vmul.f32 %v2900, %v2927
      %v2949 = vmul.f32 %v2901, %v2932
      %v2950 = vmul.f32 %v2902, %v2937
      %v2951 = vmul.f32 %v2903, %v2942
      %v2952 = vadd.f32 %v2888, %v2944
      %v2953 = vadd.f32 %v2889, %v2945
      %v2954 = vadd.f32 %v2890, %v2946
      %v2955 = vadd.f32 %v2891, %v2947
      %v2956 = vadd.f32 %v2892, %v2948
      %v2957 = vadd.f32 %v2893, %v2949
      %v2958 = vadd.f32 %v2894, %v2950
      %v2959 = vadd.f32 %v2895, %v2951
      %2960 = vrot.lane.b32.xlu0 %v1624, 24
      %v2961 = vpop.permute.xlu0 %2960
      %v2963 = vmul.f32 %v2952, %v2961
      %v2964 = vmul.f32 %v2953, %v2961
      %v2965 = vmul.f32 %v2954, %v2961
      %v2966 = vmul.f32 %v2955, %v2961
      %v2967 = vmul.f32 %v2956, %v2961
      %v2968 = vmul.f32 %v2957, %v2961
      %v2969 = vmul.f32 %v2958, %v2961
      %v2970 = vmul.f32 %v2959, %v2961
      %vm2971 = vcmask 261312
      %2972 = vst.msk [vmem:[%s1228 + $0x1] sm:$0xff] %vm2971, %v2963
      %2973 = vst.msk [vmem:[%s1228 + $0x11] sm:$0xff] %vm2971, %v2964
      %2974 = vst.msk [vmem:[%s1228 + $0x21] sm:$0xff] %vm2971, %v2965
      %2975 = vst.msk [vmem:[%s1228 + $0x31] sm:$0xff] %vm2971, %v2966
      %2976 = vst.msk [vmem:[%s1228 + $0x41] sm:$0xff] %vm2971, %v2967
      %2977 = vst.msk [vmem:[%s1228 + $0x51] sm:$0xff] %vm2971, %v2968
      %2978 = vst.msk [vmem:[%s1228 + $0x61] sm:$0xff] %vm2971, %v2969
      %2979 = vst.msk [vmem:[%s1228 + $0x71] sm:$0xff] %vm2971, %v2970
      %2980 = vrot.lane.b32.xlu0 %v2734, 3
      %v2981 = vpop.permute.xlu0 %2980
      %2982 = vrot.lane.b32.xlu0 %v2749, 3
      %v2983 = vpop.permute.xlu0 %2982
      %2984 = vrot.lane.b32.xlu0 %v2764, 3
      %v2985 = vpop.permute.xlu0 %2984
      %2986 = vrot.lane.b32.xlu0 %v2779, 3
      %v2987 = vpop.permute.xlu0 %2986
      %2988 = vrot.lane.b32.xlu0 %v2794, 3
      %v2989 = vpop.permute.xlu0 %2988
      %2990 = vrot.lane.b32.xlu0 %v2809, 3
      %v2991 = vpop.permute.xlu0 %2990
      %2992 = vrot.lane.b32.xlu0 %v2824, 3
      %v2993 = vpop.permute.xlu0 %2992
      %2994 = vrot.lane.b32.xlu0 %v2839, 3
      %v2995 = vpop.permute.xlu0 %2994
      %vm3004 = vcmask 31768
      %3005 = vst.msk [vmem:[%s436] sm:$0xff] %vm3004, %v2981
      %3006 = vst.msk [vmem:[%s436 + $0x8] sm:$0xff] %vm3004, %v2983
      %3007 = vst.msk [vmem:[%s436 + $0x10] sm:$0xff] %vm3004, %v2985
      %3008 = vst.msk [vmem:[%s436 + $0x18] sm:$0xff] %vm3004, %v2987
      %3009 = vst.msk [vmem:[%s436 + $0x20] sm:$0xff] %vm3004, %v2989
      %3010 = vst.msk [vmem:[%s436 + $0x28] sm:$0xff] %vm3004, %v2991
      %3011 = vst.msk [vmem:[%s436 + $0x30] sm:$0xff] %vm3004, %v2993
      %3012 = vst.msk [vmem:[%s436 + $0x38] sm:$0xff] %vm3004, %v2995
      %p3013 = scmp.lt.s32.totalorder %s24, 1
      %s3014 = scalar_select %p3013, %s24, 1
      %s3015 = smul.addr %s3014, 20
      %s3016 = smul.addr %s3015, 8
      %s3017 = scalar_lea.vmem %s9, %s3016
      %p3018 = scmp.lt.s32.totalorder %s24, 1
      %s3019 = scalar_select %p3018, %s24, 1
      %s3020 = smul.addr %s3019, 8
      %s3021 = smul.addr %s3020, 8
      %s3022 = scalar_lea.vmem %s10, %s3021
      // Predicated region
      $region57: #{blend_synthesis_block.2} parent=55 // pred_check
        %p3023 = pneg %p256
      $region58: #{blend_synthesis_block.2} parent=55 // pred_check_branch
        %3025 = sbr.rel (%p3023) target = $region60
      $region59: #{blend_synthesis_block.2} parent=55 // pred_region
        _
      $region60: #{blend_synthesis_block.2} parent=55 // pred_fallthru
        _
      // Predicated region
      $region61: #{blend_synthesis_block.2} parent=55 // pred_check
        %p3026 = pneg %p282
      $region62: #{blend_synthesis_block.2} parent=55 // pred_check_branch
        %3028 = sbr.rel (%p3026) target = $region64
      $region63: #{blend_synthesis_block.2} parent=55 // pred_region
        _
      $region64: #{blend_synthesis_block.2} parent=55 // pred_fallthru
        _
    $region56: #{blend_synthesis_block.2} parent=5 // pred_fallthru
      _
    %p3029 = scmp.le.s32.totalorder 2, %s19
    // Predicated region
    $region65: #{blend_synthesis_block.2} parent=5 // pred_check
      %p3030 = pneg %p3029
    $region66: #{blend_synthesis_block.2} parent=5 // pred_check_branch
      %3032 = sbr.rel (%p3030) target = $region68
    $region67: #{blend_synthesis_block.2} parent=5 // pred_region
      %s3033 = ssub.s32 %s19, 2
      // Predicated region
      $region69: #{blend_synthesis_block.2} parent=67 // pred_check
        %p3034 = pneg %p262
      $region70: #{blend_synthesis_block.2} parent=67 // pred_check_branch
        %3036 = sbr.rel (%p3034) target = $region72
      $region71: #{blend_synthesis_block.2} parent=67 // pred_region
        %p3037 = scmp.lt.s32.totalorder %s25, 1
        %s3038 = scalar_select %p3037, %s25, 1
        %s3039 = smul.addr %s3038, 20
        %s3040 = smul.addr %s3039, 8
        %s3041 = scalar_lea.vmem %s9, %s3040
      $region72: #{blend_synthesis_block.2} parent=67 // pred_fallthru
        _
      // Predicated region
      $region73: #{blend_synthesis_block.2} parent=67 // pred_check
        %p3042 = pneg %p288
      $region74: #{blend_synthesis_block.2} parent=67 // pred_check_branch
        %3044 = sbr.rel (%p3042) target = $region76
      $region75: #{blend_synthesis_block.2} parent=67 // pred_region
        %p3045 = scmp.lt.s32.totalorder %s25, 1
        %s3046 = scalar_select %p3045, %s25, 1
        %s3047 = smul.addr %s3046, 8
        %s3048 = smul.addr %s3047, 8
        %s3049 = scalar_lea.vmem %s10, %s3048
      $region76: #{blend_synthesis_block.2} parent=67 // pred_fallthru
        _
    $region68: #{blend_synthesis_block.2} parent=5 // pred_fallthru
      _
  $region6: #{blend_synthesis_block.2} parent=0 // loop_footer
    %s23 = sadd.s32 1, %s19
  $region7: #{blend_synthesis_block.2} parent=0 // loop_footer_branch
    %18 = sbr.rel target = $region3
  $region8: #{blend_synthesis_block.2} parent=0 // loop_exit
    _

// kernel: blend_synthesis_block.3
$region0: #{blend_synthesis_block.3}
  #allocation0 [shape = 'u32[]', space=smem, size = 0x4, offset = 0x4, fixed_abs, tag = 'smem constant byte address 0x4 - core index']
  #allocation1 [shape = 'u32[72,128]{1,0:T(1,128)}', space=vmem, size = 0x9000, scoped, tag = 'internal scratch']
  #allocation2 [shape = 'f32[10,10,3]{2,1,0:T(8,128)}', space=vmem, size = 0x14000, scoped, tag = 'scratch operand']
  %s0 = inlined_call_operand.vmem [shape: f32[2,1,8], index: 0, kind: input, shape index: {}]
  %s1 = inlined_call_operand.vmem [shape: f32[2,10,10,32], index: 1, kind: input, shape index: {}]
  %s2 = inlined_call_operand.vmem [shape: f32[288,8], index: 2, kind: input, shape index: {}]
  %s3 = inlined_call_operand.vmem [shape: f32[1,8], index: 3, kind: input, shape index: {}]
  %s4 = inlined_call_operand.vmem [shape: f32[2,8,3], index: 4, kind: input, shape index: {}]
  %s5 = inlined_call_operand.vmem [shape: f32[1,3], index: 5, kind: input, shape index: {}]
  %s6 = inlined_call_operand.vmem [shape: f32[2,8,8,3], index: 6, kind: input, shape index: {}]
  %s7 = inlined_call_operand.vmem [shape: f32[2,64,32], index: 7, kind: output, shape index: {0}]
  %s8 = inlined_call_operand.vmem [shape: f32[2,64,12], index: 8, kind: output, shape index: {1}]
  %9 = xla_tuple %s7, %s8
  %s10 = sld [smem:[#allocation0]]
  $region69: #{blend_synthesis_block.3} parent=0
    _
  %s12 = ssub.s32 1, %s10
  %s13 = scalar_select 0, %s12, %s10
  loop: start=0, step=1, limit=4
  $region2: #{blend_synthesis_block.3} parent=0 // loop_pre_header
    _
  $region3: #{blend_synthesis_block.3} parent=0 // loop_header
    %s15 = sphi 0, %s19
    %p16 = scmp.ge.s32.totalorder %s15, 4
    %s25 = sphi 0, %s27
    %s28 = sphi 0, %s25
    %s29 = sphi 0, %s28
    %s45 = sphi 0, %s29
    %s51 = sphi 0, %s53
    %s54 = sphi 0, %s51
    %s55 = sphi 0, %s54
    %s71 = sphi 0, %s55
    %s75 = sphi 0, %s75
    %s77 = sphi 0, %s75
    %s78 = sphi 0, %s77
    %s92 = sphi 0, %s78
    %s96 = sphi 0, %s96
    %s98 = sphi 0, %s96
    %s99 = sphi 0, %s98
    %s113 = sphi 0, %s99
    %s119 = sphi 0, %s121
    %s122 = sphi 0, %s119
    %s123 = sphi 0, %s122
    %s139 = sphi 0, %s123
    %s143 = sphi 0, %s143
    %s145 = sphi 0, %s143
    %s146 = sphi 0, %s145
    %s160 = sphi 0, %s146
    %s166 = sphi 0, %s168
    %s169 = sphi 0, %s166
    %s170 = sphi 0, %s169
    %s186 = sphi 0, %s170
    %s192 = sphi 0, %s194
    %s195 = sphi 0, %s192
    %s196 = sphi 0, %s195
    %s212 = sphi 0, %s196
    %s218 = sphi 0, %s220
    %s221 = sphi 0, %s218
    %s222 = sphi 0, %s221
    %s238 = sphi 0, %s222
  $region4: #{blend_synthesis_block.3} parent=0 // loop_header_branch
    %18 = sbr.rel (%p16) target = $region8
  $region5: #{blend_synthesis_block.3} parent=0 // loop_body
    %s20 = ssub.s32 %s15, 1
    %s21 = ssub.s32 %s15, 2
    %s22 = sadd.s32 %s15, 1
    %s23 = ssub.s32 %s15, %s22
    %p24 = scmp.eq.s32.totalorder %s23, 0
    %s26 = sadd.s32 %s25, 1
    %s27 = scalar_select %p24, %s25, %s26
    %p30 = pneg %p24
    %p31 = scmp.eq.s32.totalorder %s15, 1
    %p32 = por %p30, %p31
    %p33 = scmp.ne.s32.totalorder %s25, %s28
    %p34 = scmp.eq.s32.totalorder %s15, 0
    %p35 = por %p33, %p34
    %p36 = scmp.ne.s32.totalorder %s25, %s28
    %p37 = scmp.eq.s32.totalorder %s20, 1
    %p38 = por %p36, %p37
    %p39 = scmp.ne.s32.totalorder %s28, %s29
    %p40 = scmp.eq.s32.totalorder %s20, 0
    %p41 = por %p39, %p40
    %p42 = scmp.ne.s32.totalorder %s28, %s29
    %p43 = scmp.eq.s32.totalorder %s21, 1
    %p44 = por %p42, %p43
    %p46 = scmp.ne.s32.totalorder %s29, %s45
    %p47 = scmp.eq.s32.totalorder %s21, 0
    %p48 = por %p46, %p47
    %s49 = ssub.s32 %s15, %s22
    %p50 = scmp.eq.s32.totalorder %s49, 0
    %s52 = sadd.s32 %s51, 1
    %s53 = scalar_select %p50, %s51, %s52
    %p56 = pneg %p50
    %p57 = scmp.eq.s32.totalorder %s15, 1
    %p58 = por %p56, %p57
    %p59 = scmp.ne.s32.totalorder %s51, %s54
    %p60 = scmp.eq.s32.totalorder %s15, 0
    %p61 = por %p59, %p60
    %p62 = scmp.ne.s32.totalorder %s51, %s54
    %p63 = scmp.eq.s32.totalorder %s20, 1
    %p64 = por %p62, %p63
    %p65 = scmp.ne.s32.totalorder %s54, %s55
    %p66 = scmp.eq.s32.totalorder %s20, 0
    %p67 = por %p65, %p66
    %p68 = scmp.ne.s32.totalorder %s54, %s55
    %p69 = scmp.eq.s32.totalorder %s21, 1
    %p70 = por %p68, %p69
    %p72 = scmp.ne.s32.totalorder %s55, %s71
    %p73 = scmp.eq.s32.totalorder %s21, 0
    %p74 = por %p72, %p73
    %s76 = sadd.s32 %s75, 1
    %p79 = scmp.eq.s32.totalorder %s15, 1
    %p80 = scmp.ne.s32.totalorder %s75, %s77
    %p81 = scmp.eq.s32.totalorder %s15, 0
    %p82 = por %p80, %p81
    %p83 = scmp.ne.s32.totalorder %s75, %s77
    %p84 = scmp.eq.s32.totalorder %s20, 1
    %p85 = por %p83, %p84
    %p86 = scmp.ne.s32.totalorder %s77, %s78
    %p87 = scmp.eq.s32.totalorder %s20, 0
    %p88 = por %p86, %p87
    %p89 = scmp.ne.s32.totalorder %s77, %s78
    %p90 = scmp.eq.s32.totalorder %s21, 1
    %p91 = por %p89, %p90
    %p93 = scmp.ne.s32.totalorder %s78, %s92
    %p94 = scmp.eq.s32.totalorder %s21, 0
    %p95 = por %p93, %p94
    %s97 = sadd.s32 %s96, 1
    %p100 = scmp.eq.s32.totalorder %s15, 1
    %p101 = scmp.ne.s32.totalorder %s96, %s98
    %p102 = scmp.eq.s32.totalorder %s15, 0
    %p103 = por %p101, %p102
    %p104 = scmp.ne.s32.totalorder %s96, %s98
    %p105 = scmp.eq.s32.totalorder %s20, 1
    %p106 = por %p104, %p105
    %p107 = scmp.ne.s32.totalorder %s98, %s99
    %p108 = scmp.eq.s32.totalorder %s20, 0
    %p109 = por %p107, %p108
    %p110 = scmp.ne.s32.totalorder %s98, %s99
    %p111 = scmp.eq.s32.totalorder %s21, 1
    %p112 = por %p110, %p111
    %p114 = scmp.ne.s32.totalorder %s99, %s113
    %p115 = scmp.eq.s32.totalorder %s21, 0
    %p116 = por %p114, %p115
    %s117 = ssub.s32 %s15, %s22
    %p118 = scmp.eq.s32.totalorder %s117, 0
    %s120 = sadd.s32 %s119, 1
    %s121 = scalar_select %p118, %s119, %s120
    %p124 = pneg %p118
    %p125 = scmp.eq.s32.totalorder %s15, 1
    %p126 = por %p124, %p125
    %p127 = scmp.ne.s32.totalorder %s119, %s122
    %p128 = scmp.eq.s32.totalorder %s15, 0
    %p129 = por %p127, %p128
    %p130 = scmp.ne.s32.totalorder %s119, %s122
    %p131 = scmp.eq.s32.totalorder %s20, 1
    %p132 = por %p130, %p131
    %p133 = scmp.ne.s32.totalorder %s122, %s123
    %p134 = scmp.eq.s32.totalorder %s20, 0
    %p135 = por %p133, %p134
    %p136 = scmp.ne.s32.totalorder %s122, %s123
    %p137 = scmp.eq.s32.totalorder %s21, 1
    %p138 = por %p136, %p137
    %p140 = scmp.ne.s32.totalorder %s123, %s139
    %p141 = scmp.eq.s32.totalorder %s21, 0
    %p142 = por %p140, %p141
    %s144 = sadd.s32 %s143, 1
    %p147 = scmp.eq.s32.totalorder %s15, 1
    %p148 = scmp.ne.s32.totalorder %s143, %s145
    %p149 = scmp.eq.s32.totalorder %s15, 0
    %p150 = por %p148, %p149
    %p151 = scmp.ne.s32.totalorder %s143, %s145
    %p152 = scmp.eq.s32.totalorder %s20, 1
    %p153 = por %p151, %p152
    %p154 = scmp.ne.s32.totalorder %s145, %s146
    %p155 = scmp.eq.s32.totalorder %s20, 0
    %p156 = por %p154, %p155
    %p157 = scmp.ne.s32.totalorder %s145, %s146
    %p158 = scmp.eq.s32.totalorder %s21, 1
    %p159 = por %p157, %p158
    %p161 = scmp.ne.s32.totalorder %s146, %s160
    %p162 = scmp.eq.s32.totalorder %s21, 0
    %p163 = por %p161, %p162
    %s164 = ssub.s32 %s15, %s22
    %p165 = scmp.eq.s32.totalorder %s164, 0
    %s167 = sadd.s32 %s166, 1
    %s168 = scalar_select %p165, %s166, %s167
    %p171 = pneg %p165
    %p172 = scmp.eq.s32.totalorder %s15, 1
    %p173 = por %p171, %p172
    %p174 = scmp.ne.s32.totalorder %s166, %s169
    %p175 = scmp.eq.s32.totalorder %s15, 0
    %p176 = por %p174, %p175
    %p177 = scmp.ne.s32.totalorder %s166, %s169
    %p178 = scmp.eq.s32.totalorder %s20, 1
    %p179 = por %p177, %p178
    %p180 = scmp.ne.s32.totalorder %s169, %s170
    %p181 = scmp.eq.s32.totalorder %s20, 0
    %p182 = por %p180, %p181
    %p183 = scmp.ne.s32.totalorder %s169, %s170
    %p184 = scmp.eq.s32.totalorder %s21, 1
    %p185 = por %p183, %p184
    %p187 = scmp.ne.s32.totalorder %s170, %s186
    %p188 = scmp.eq.s32.totalorder %s21, 0
    %p189 = por %p187, %p188
    %s190 = ssub.s32 %s15, %s22
    %p191 = scmp.eq.s32.totalorder %s190, 0
    %s193 = sadd.s32 %s192, 1
    %s194 = scalar_select %p191, %s192, %s193
    %p197 = pneg %p191
    %p198 = scmp.eq.s32.totalorder %s15, 1
    %p199 = por %p197, %p198
    %p200 = scmp.ne.s32.totalorder %s192, %s195
    %p201 = scmp.eq.s32.totalorder %s15, 0
    %p202 = por %p200, %p201
    %p203 = scmp.ne.s32.totalorder %s192, %s195
    %p204 = scmp.eq.s32.totalorder %s20, 1
    %p205 = por %p203, %p204
    %p206 = scmp.ne.s32.totalorder %s195, %s196
    %p207 = scmp.eq.s32.totalorder %s20, 0
    %p208 = por %p206, %p207
    %p209 = scmp.ne.s32.totalorder %s195, %s196
    %p210 = scmp.eq.s32.totalorder %s21, 1
    %p211 = por %p209, %p210
    %p213 = scmp.ne.s32.totalorder %s196, %s212
    %p214 = scmp.eq.s32.totalorder %s21, 0
    %p215 = por %p213, %p214
    %s216 = ssub.s32 %s15, %s22
    %p217 = scmp.eq.s32.totalorder %s216, 0
    %s219 = sadd.s32 %s218, 1
    %s220 = scalar_select %p217, %s218, %s219
    %p223 = pneg %p217
    %p224 = scmp.eq.s32.totalorder %s15, 1
    %p225 = por %p223, %p224
    %p226 = scmp.ne.s32.totalorder %s218, %s221
    %p227 = scmp.eq.s32.totalorder %s15, 0
    %p228 = por %p226, %p227
    %p229 = scmp.ne.s32.totalorder %s218, %s221
    %p230 = scmp.eq.s32.totalorder %s20, 1
    %p231 = por %p229, %p230
    %p232 = scmp.ne.s32.totalorder %s221, %s222
    %p233 = scmp.eq.s32.totalorder %s20, 0
    %p234 = por %p232, %p233
    %p235 = scmp.ne.s32.totalorder %s221, %s222
    %p236 = scmp.eq.s32.totalorder %s21, 1
    %p237 = por %p235, %p236
    %p239 = scmp.ne.s32.totalorder %s222, %s238
    %p240 = scmp.eq.s32.totalorder %s21, 0
    %p241 = por %p239, %p240
    %p242 = scmp.le.s32.totalorder 1, %s15
    %p243 = scmp.lt.s32.totalorder %s15, 3
    %p244 = pnand %p242, %p243
    %p245 = pneg %p244
    // Predicated region
    $region9: #{blend_synthesis_block.3} parent=5 // pred_check
      _
    $region10: #{blend_synthesis_block.3} parent=5 // pred_check_branch
      %247 = sbr.rel (%p244) target = $region12
    $region11: #{blend_synthesis_block.3} parent=5 // pred_region
      %s248 = ssub.s32 %s15, 1
      // Predicated region
      $region13: #{blend_synthesis_block.3} parent=11 // pred_check
        %p249 = pneg %p88
      $region14: #{blend_synthesis_block.3} parent=11 // pred_check_branch
        %251 = sbr.rel (%p249) target = $region16
      $region15: #{blend_synthesis_block.3} parent=11 // pred_region
        _
      $region16: #{blend_synthesis_block.3} parent=11 // pred_fallthru
        _
      // Predicated region
      $region17: #{blend_synthesis_block.3} parent=11 // pred_check
        %p252 = pneg %p109
      $region18: #{blend_synthesis_block.3} parent=11 // pred_check_branch
        %254 = sbr.rel (%p252) target = $region20
      $region19: #{blend_synthesis_block.3} parent=11 // pred_region
        _
      $region20: #{blend_synthesis_block.3} parent=11 // pred_fallthru
        _
      // Predicated region
      $region21: #{blend_synthesis_block.3} parent=11 // pred_check
        %p255 = pneg %p156
      $region22: #{blend_synthesis_block.3} parent=11 // pred_check_branch
        %257 = sbr.rel (%p255) target = $region24
      $region23: #{blend_synthesis_block.3} parent=11 // pred_region
        _
      $region24: #{blend_synthesis_block.3} parent=11 // pred_fallthru
        _
    $region12: #{blend_synthesis_block.3} parent=5 // pred_fallthru
      _
    %p258 = scmp.lt.s32.totalorder %s15, 2
    // Predicated region
    $region25: #{blend_synthesis_block.3} parent=5 // pred_check
      %p259 = pneg %p258
    $region26: #{blend_synthesis_block.3} parent=5 // pred_check_branch
      %261 = sbr.rel (%p259) target = $region28
    $region27: #{blend_synthesis_block.3} parent=5 // pred_region
      // Predicated region
      $region29: #{blend_synthesis_block.3} parent=27 // pred_check
        %p262 = pneg %p35
      $region30: #{blend_synthesis_block.3} parent=27 // pred_check_branch
        %264 = sbr.rel (%p262) target = $region32
      $region31: #{blend_synthesis_block.3} parent=27 // pred_region
        %p265 = scmp.lt.s32.totalorder %s15, 1
        %s266 = scalar_select %p265, %s15, 1
        %s267 = scalar_lea.vmem %s0, %s266
      $region32: #{blend_synthesis_block.3} parent=27 // pred_fallthru
        _
      // Predicated region
      $region33: #{blend_synthesis_block.3} parent=27 // pred_check
        %p268 = pneg %p61
      $region34: #{blend_synthesis_block.3} parent=27 // pred_check_branch
        %270 = sbr.rel (%p268) target = $region36
      $region35: #{blend_synthesis_block.3} parent=27 // pred_region
        %p271 = scmp.lt.s32.totalorder %s15, 1
        %s272 = scalar_select %p271, %s15, 1
        %s273 = smul.addr %s272, 20
        %s274 = smul.addr %s273, 8
        %s275 = scalar_lea.vmem %s1, %s274
      $region36: #{blend_synthesis_block.3} parent=27 // pred_fallthru
        _
      // Predicated region
      $region37: #{blend_synthesis_block.3} parent=27 // pred_check
        %p276 = pneg %p129
      $region38: #{blend_synthesis_block.3} parent=27 // pred_check_branch
        %278 = sbr.rel (%p276) target = $region40
      $region39: #{blend_synthesis_block.3} parent=27 // pred_region
        %p279 = scmp.lt.s32.totalorder %s15, 1
        %s280 = scalar_select %p279, %s15, 1
        %s281 = smul.addr %s280, 8
        %s282 = scalar_lea.vmem %s4, %s281
      $region40: #{blend_synthesis_block.3} parent=27 // pred_fallthru
        _
      // Predicated region
      $region41: #{blend_synthesis_block.3} parent=27 // pred_check
        %p283 = pneg %p176
      $region42: #{blend_synthesis_block.3} parent=27 // pred_check_branch
        %285 = sbr.rel (%p283) target = $region44
      $region43: #{blend_synthesis_block.3} parent=27 // pred_region
        %p286 = scmp.lt.s32.totalorder %s15, 1
        %s287 = scalar_select %p286, %s15, 1
        %s288 = smul.addr %s287, 8
        %s289 = smul.addr %s288, 8
        %s290 = scalar_lea.vmem %s6, %s289
      $region44: #{blend_synthesis_block.3} parent=27 // pred_fallthru
        _
    $region28: #{blend_synthesis_block.3} parent=5 // pred_fallthru
      _
    %p291 = scmp.le.s32.totalorder 1, %s15
    %p292 = scmp.lt.s32.totalorder %s15, 3
    %p293 = pnand %p291, %p292
    %p294 = pneg %p293
    // Predicated region
    $region45: #{blend_synthesis_block.3} parent=5 // pred_check
      _
    $region46: #{blend_synthesis_block.3} parent=5 // pred_check_branch
      %296 = sbr.rel (%p293) target = $region48
    $region47: #{blend_synthesis_block.3} parent=5 // pred_region
      %s297 = ssub.s32 %s15, 1
      %p298 = scmp.lt.s32.totalorder %s20, 1
      %s299 = scalar_select %p298, %s20, 1
      %s300 = scalar_lea.vmem %s0, %s299
      %p301 = pneg %p41
      %p302 = pneg %p38
      %p303 = scmp.lt.s32.totalorder %s20, 1
      %s304 = scalar_select %p303, %s20, 1
      %s305 = smul.addr %s304, 20
      %s306 = smul.addr %s305, 8
      %s307 = scalar_lea.vmem %s1, %s306
      %p308 = pneg %p67
      %p309 = pneg %p64
      %p310 = pneg %p88
      %p311 = pneg %p85
      %p312 = pneg %p109
      %p313 = pneg %p106
      %p314 = scmp.lt.s32.totalorder %s20, 1
      %s315 = scalar_select %p314, %s20, 1
      %s316 = smul.addr %s315, 8
      %s317 = scalar_lea.vmem %s4, %s316
      %p318 = pneg %p135
      %p319 = pneg %p132
      %p320 = pneg %p156
      %p321 = pneg %p153
      %p322 = scmp.lt.s32.totalorder %s20, 1
      %s323 = scalar_select %p322, %s20, 1
      %s324 = smul.addr %s323, 8
      %s325 = smul.addr %s324, 8
      %s326 = scalar_lea.vmem %s6, %s325
      %p327 = pneg %p182
      %p328 = pneg %p179
      %p329 = pneg %p208
      %p330 = pneg %p205
      %p331 = scmp.lt.s32.totalorder %s20, 1
      %s332 = scalar_select %p331, %s20, 1
      %s333 = smul.addr %s332, 8
      %s334 = smul.addr %s333, 8
      %s335 = scalar_lea.vmem %s7, %s334
      %p336 = pneg %p234
      %p337 = pneg %p231
      %p338 = scmp.lt.s32.totalorder %s20, 1
      %s339 = scalar_select %p338, %s20, 1
      %s340 = smul.addr %s339, 8
      %s341 = smul.addr %s340, 8
      %s342 = scalar_lea.vmem %s8, %s341
      %p343 = scmp.lt.s32.totalorder %s20, 1
      %s344 = scalar_select %p343, %s20, 1
      %s345 = scalar_lea.vmem %s0, %s344
      %p346 = scmp.lt.s32.totalorder %s20, 1
      %s347 = scalar_select %p346, %s20, 1
      %s348 = smul.addr %s347, 20
      %s349 = smul.addr %s348, 8
      %s350 = scalar_lea.vmem %s1, %s349
      %p351 = scmp.lt.s32.totalorder %s20, 1
      %s352 = scalar_select %p351, %s20, 1
      %s353 = smul.addr %s352, 8
      %s354 = scalar_lea.vmem %s4, %s353
      %p355 = scmp.lt.s32.totalorder %s20, 1
      %s356 = scalar_select %p355, %s20, 1
      %s357 = smul.addr %s356, 8
      %s358 = smul.addr %s357, 8
      %s359 = scalar_lea.vmem %s6, %s358
      %p360 = scmp.lt.s32.totalorder %s20, 1
      %s361 = scalar_select %p360, %s20, 1
      %s362 = smul.addr %s361, 8
      %s363 = smul.addr %s362, 8
      %s364 = scalar_lea.vmem %s7, %s363
      %p365 = scmp.lt.s32.totalorder %s20, 1
      %s366 = scalar_select %p365, %s20, 1
      %s367 = smul.addr %s366, 8
      %s368 = smul.addr %s367, 8
      %s369 = scalar_lea.vmem %s8, %s368
      %vm370 = vcmask 23552
      %371 = vst.msk [vmem:[#allocation2] sm:$0xff] %vm370, 0.0
      %vm372 = vcmask 17408
      %373 = vst.msk [vmem:[#allocation2 + $0x8] sm:$0x3] %vm372, 0.0
      %s374 = scalar_lea.vmem [#allocation2], 144
      %375 = vst.msk [vmem:[%s374] sm:$0xff] %vm370, 0.0
      %376 = vst.msk [vmem:[%s374 + $0x8] sm:$0x3] %vm372, 0.0
      %s377 = scalar_lea.vmem [#allocation2], 16
      %vm378 = vcmask 16384
      %379 = vst.msk [vmem:[%s377] sm:$0x1] %vm378, 0.0
      %380 = vst.msk [vmem:[%s377 + $0x10] sm:$0x1] %vm378, 0.0
      %381 = vst.msk [vmem:[%s377 + $0x20] sm:$0x1] %vm378, 0.0
      %382 = vst.msk [vmem:[%s377 + $0x30] sm:$0x1] %vm378, 0.0
      %383 = vst.msk [vmem:[%s377 + $0x40] sm:$0x1] %vm378, 0.0
      %384 = vst.msk [vmem:[%s377 + $0x50] sm:$0x1] %vm378, 0.0
      %385 = vst.msk [vmem:[%s377 + $0x60] sm:$0x1] %vm378, 0.0
      %386 = vst.msk [vmem:[%s377 + $0x70] sm:$0x1] %vm378, 0.0
      %387 = vst.msk [vmem:[%s377 + $0x9] sm:$0x1] %vm378, 0.0
      %388 = vst.msk [vmem:[%s377 + $0x19] sm:$0x1] %vm378, 0.0
      %389 = vst.msk [vmem:[%s377 + $0x29] sm:$0x1] %vm378, 0.0
      %390 = vst.msk [vmem:[%s377 + $0x39] sm:$0x1] %vm378, 0.0
      %391 = vst.msk [vmem:[%s377 + $0x49] sm:$0x1] %vm378, 0.0
      %392 = vst.msk [vmem:[%s377 + $0x59] sm:$0x1] %vm378, 0.0
      %393 = vst.msk [vmem:[%s377 + $0x69] sm:$0x1] %vm378, 0.0
      %394 = vst.msk [vmem:[%s377 + $0x79] sm:$0x1] %vm378, 0.0
      %v395 = vld [vmem:[%s359] sm:$0xff]
      %v396 = vld [vmem:[%s359 + $0x8] sm:$0xff]
      %v397 = vld [vmem:[%s359 + $0x10] sm:$0xff]
      %v398 = vld [vmem:[%s359 + $0x18] sm:$0xff]
      %v399 = vld [vmem:[%s359 + $0x20] sm:$0xff]
      %v400 = vld [vmem:[%s359 + $0x28] sm:$0xff]
      %v401 = vld [vmem:[%s359 + $0x30] sm:$0xff]
      %v402 = vld [vmem:[%s359 + $0x38] sm:$0xff]
      %403 = vst.msk [vmem:[%s377 + $0x1] sm:$0xff] %vm370, %v395
      %404 = vst.msk [vmem:[%s377 + $0x11] sm:$0xff] %vm370, %v396
      %405 = vst.msk [vmem:[%s377 + $0x21] sm:$0xff] %vm370, %v397
      %406 = vst.msk [vmem:[%s377 + $0x31] sm:$0xff] %vm370, %v398
      %407 = vst.msk [vmem:[%s377 + $0x41] sm:$0xff] %vm370, %v399
      %408 = vst.msk [vmem:[%s377 + $0x51] sm:$0xff] %vm370, %v400
      %409 = vst.msk [vmem:[%s377 + $0x61] sm:$0xff] %vm370, %v401
      %410 = vst.msk [vmem:[%s377 + $0x71] sm:$0xff] %vm370, %v402
      %v411 = vld [vmem:[%s345] sm:$0x1]
      %v412 = vld [vmem:[%s3] sm:$0x1]
      %v413 = vld [vmem:[%s354] sm:$0xff]
      %v414 = vld [vmem:[%s5] sm:$0x1]
      %v415 = vld [vmem:[%s350] sm:$0xff]
      %v416 = vld [vmem:[%s350 + $0x10] sm:$0xff]
      %v417 = vld [vmem:[%s350 + $0x20] sm:$0xff]
      %v418 = vld [vmem:[%s350 + $0x30] sm:$0xff]
      %v419 = vld [vmem:[%s350 + $0x40] sm:$0xff]
      %v420 = vld [vmem:[%s350 + $0x50] sm:$0xff]
      %v421 = vld [vmem:[%s350 + $0x60] sm:$0xff]
      %v422 = vld [vmem:[%s350 + $0x70] sm:$0xff]
      %v423 = vld [vmem:[%s2] sm:$0xff]
      %v424 = vld [vmem:[%s350 + $0x1] sm:$0xff]
      %v425 = vld [vmem:[%s350 + $0x11] sm:$0xff]
      %v426 = vld [vmem:[%s350 + $0x21] sm:$0xff]
      %v427 = vld [vmem:[%s350 + $0x31] sm:$0xff]
      %v428 = vld [vmem:[%s350 + $0x41] sm:$0xff]
      %v429 = vld [vmem:[%s350 + $0x51] sm:$0xff]
      %v430 = vld [vmem:[%s350 + $0x61] sm:$0xff]
      %v431 = vld [vmem:[%s350 + $0x71] sm:$0xff]
      %v432 = vld [vmem:[%s2 + $0x8] sm:$0xff]
      %v433 = vld [vmem:[%s2 + $0x10] sm:$0xff]
      %442 = vrot.lane.b32.xlu0 %v424, 112
      %v443 = vpop.permute.xlu0 %442
      %444 = vrot.lane.b32.xlu0 %v425, 112
      %v445 = vpop.permute.xlu0 %444
      %446 = vrot.lane.b32.xlu0 %v426, 112
      %v447 = vpop.permute.xlu0 %446
      %448 = vrot.lane.b32.xlu0 %v427, 112
      %v449 = vpop.permute.xlu0 %448
      %450 = vrot.lane.b32.xlu0 %v428, 112
      %v451 = vpop.permute.xlu0 %450
      %452 = vrot.lane.b32.xlu0 %v429, 112
      %v453 = vpop.permute.xlu0 %452
      %454 = vrot.lane.b32.xlu0 %v430, 112
      %v455 = vpop.permute.xlu0 %454
      %456 = vrot.lane.b32.xlu0 %v431, 112
      %v457 = vpop.permute.xlu0 %456
      %vm458 = vcmask 130048
      %v459 = vsel %vm458, %v443, 0
      %v461 = vsel %vm458, %v445, 0
      %v463 = vsel %vm458, %v447, 0
      %v465 = vsel %vm458, %v449, 0
      %v467 = vsel %vm458, %v451, 0
      %v469 = vsel %vm458, %v453, 0
      %v471 = vsel %vm458, %v455, 0
      %v473 = vsel %vm458, %v457, 0
      %475 = vmatpush.msra.mxu0 0.0
      %476 = vmatpush.msra.mxu0 0.0
      %477 = vmatpush.msra.mxu0 0.0
      %478 = vmatpush.msra.mxu0 0.0
      %479 = vmatpush.msra.mxu0 0.0
      %480 = vmatpush.msra.mxu0 0.0
      %481 = vmatpush.msra.mxu0 0.0
      %482 = vmatpush.msra.mxu0 0.0
      %483 = vmatpush.msra.mxu0 0.0
      %484 = vmatpush.msra.mxu0 0.0
      %485 = vmatpush.msra.mxu0 0.0
      %486 = vmatpush.msra.mxu0 0.0
      %487 = vmatpush.msra.mxu0 0.0
      %488 = vmatpush.msra.mxu0 0.0
      %489 = vmatpush.msra.mxu0 %v433
      %490 = vmatpush.msra.mxu0 %v432
      %491 = vmatmul.f32.gmra.mxu0 %v459
      %v492 = vpop.f32.mrf.mxu0
      %v493 = vadd.f32 0.0, %v492
      %494 = vmatmul.f32.gmra.mxu0 %v461
      %v495 = vpop.f32.mrf.mxu0
      %v496 = vadd.f32 0.0, %v495
      %497 = vmatmul.f32.gmra.mxu0 %v463
      %v498 = vpop.f32.mrf.mxu0
      %v499 = vadd.f32 0.0, %v498
      %500 = vmatmul.f32.gmra.mxu0 %v465
      %v501 = vpop.f32.mrf.mxu0
      %v502 = vadd.f32 0.0, %v501
      %503 = vmatmul.f32.gmra.mxu0 %v467
      %v504 = vpop.f32.mrf.mxu0
      %v505 = vadd.f32 0.0, %v504
      %506 = vmatmul.f32.gmra.mxu0 %v469
      %v507 = vpop.f32.mrf.mxu0
      %v508 = vadd.f32 0.0, %v507
      %509 = vmatmul.f32.gmra.mxu0 %v471
      %v510 = vpop.f32.mrf.mxu0
      %v511 = vadd.f32 0.0, %v510
      %512 = vmatmul.f32.gmra.mxu0 %v473
      %v513 = vpop.f32.mrf.mxu0
      %v514 = vadd.f32 0.0, %v513
      %515 = vdwg.mxu0
      %524 = vrot.lane.b32.xlu0 %v415, 104
      %v525 = vpop.permute.xlu0 %524
      %526 = vrot.lane.b32.xlu0 %v416, 104
      %v527 = vpop.permute.xlu0 %526
      %528 = vrot.lane.b32.xlu0 %v417, 104
      %v529 = vpop.permute.xlu0 %528
      %530 = vrot.lane.b32.xlu0 %v418, 104
      %v531 = vpop.permute.xlu0 %530
      %532 = vrot.lane.b32.xlu0 %v419, 104
      %v533 = vpop.permute.xlu0 %532
      %534 = vrot.lane.b32.xlu0 %v420, 104
      %v535 = vpop.permute.xlu0 %534
      %536 = vrot.lane.b32.xlu0 %v421, 104
      %v537 = vpop.permute.xlu0 %536
      %538 = vrot.lane.b32.xlu0 %v422, 104
      %v539 = vpop.permute.xlu0 %538
      %vm540 = vcmask 64512
      %v541 = vsel %vm540, %v525, 0
      %v543 = vsel %vm540, %v527, 0
      %v545 = vsel %vm540, %v529, 0
      %v547 = vsel %vm540, %v531, 0
      %v549 = vsel %vm540, %v533, 0
      %v551 = vsel %vm540, %v535, 0
      %v553 = vsel %vm540, %v537, 0
      %v555 = vsel %vm540, %v539, 0
      %557 = vmatpush.msra.mxu0 0.0
      %558 = vmatpush.msra.mxu0 0.0
      %559 = vmatpush.msra.mxu0 0.0
      %560 = vmatpush.msra.mxu0 0.0
      %561 = vmatpush.msra.mxu0 0.0
      %562 = vmatpush.msra.mxu0 0.0
      %563 = vmatpush.msra.mxu0 0.0
      %564 = vmatpush.msra.mxu0 0.0
      %565 = vmatpush.msra.mxu0 0.0
      %566 = vmatpush.msra.mxu0 0.0
      %567 = vmatpush.msra.mxu0 0.0
      %568 = vmatpush.msra.mxu0 0.0
      %569 = vmatpush.msra.mxu0 0.0
      %570 = vmatpush.msra.mxu0 0.0
      %571 = vmatpush.msra.mxu0 0.0
      %572 = vmatpush.msra.mxu0 %v423
      %573 = vmatmul.f32.gmra.mxu0 %v541
      %v574 = vpop.f32.mrf.mxu0
      %v575 = vadd.f32 %v493, %v574
      %576 = vmatmul.f32.gmra.mxu0 %v543
      %v577 = vpop.f32.mrf.mxu0
      %v578 = vadd.f32 %v496, %v577
      %579 = vmatmul.f32.gmra.mxu0 %v545
      %v580 = vpop.f32.mrf.mxu0
      %v581 = vadd.f32 %v499, %v580
      %582 = vmatmul.f32.gmra.mxu0 %v547
      %v583 = vpop.f32.mrf.mxu0
      %v584 = vadd.f32 %v502, %v583
      %585 = vmatmul.f32.gmra.mxu0 %v549
      %v586 = vpop.f32.mrf.mxu0
      %v587 = vadd.f32 %v505, %v586
      %588 = vmatmul.f32.gmra.mxu0 %v551
      %v589 = vpop.f32.mrf.mxu0
      %v590 = vadd.f32 %v508, %v589
      %591 = vmatmul.f32.gmra.mxu0 %v553
      %v592 = vpop.f32.mrf.mxu0
      %v593 = vadd.f32 %v511, %v592
      %594 = vmatmul.f32.gmra.mxu0 %v555
      %v595 = vpop.f32.mrf.mxu0
      %v596 = vadd.f32 %v514, %v595
      %597 = vdwg.mxu0
      %s598 = scalar_lea.vmem %s350, 16
      %v599 = vld [vmem:[%s598] sm:$0xff]
      %v600 = vld [vmem:[%s598 + $0x10] sm:$0xff]
      %v601 = vld [vmem:[%s598 + $0x20] sm:$0xff]
      %v602 = vld [vmem:[%s598 + $0x30] sm:$0xff]
      %v603 = vld [vmem:[%s598 + $0x40] sm:$0xff]
      %v604 = vld [vmem:[%s598 + $0x50] sm:$0xff]
      %v605 = vld [vmem:[%s598 + $0x60] sm:$0xff]
      %v606 = vld [vmem:[%s598 + $0x70] sm:$0xff]
      %v607 = vld [vmem:[%s2 + $0x18] sm:$0xff]
      %616 = vrot.lane.b32.xlu0 %v599, 120
      %v617 = vpop.permute.xlu0 %616
      %618 = vrot.lane.b32.xlu0 %v600, 120
      %v619 = vpop.permute.xlu0 %618
      %620 = vrot.lane.b32.xlu0 %v601, 120
      %v621 = vpop.permute.xlu0 %620
      %622 = vrot.lane.b32.xlu0 %v602, 120
      %v623 = vpop.permute.xlu0 %622
      %624 = vrot.lane.b32.xlu0 %v603, 120
      %v625 = vpop.permute.xlu0 %624
      %626 = vrot.lane.b32.xlu0 %v604, 120
      %v627 = vpop.permute.xlu0 %626
      %628 = vrot.lane.b32.xlu0 %v605, 120
      %v629 = vpop.permute.xlu0 %628
      %630 = vrot.lane.b32.xlu0 %v606, 120
      %v631 = vpop.permute.xlu0 %630
      %v632 = vsel %vm540, %v617, 0
      %v634 = vsel %vm540, %v619, 0
      %v636 = vsel %vm540, %v621, 0
      %v638 = vsel %vm540, %v623, 0
      %v640 = vsel %vm540, %v625, 0
      %v642 = vsel %vm540, %v627, 0
      %v644 = vsel %vm540, %v629, 0
      %v646 = vsel %vm540, %v631, 0
      %648 = vmatpush.msra.mxu0 0.0
      %649 = vmatpush.msra.mxu0 0.0
      %650 = vmatpush.msra.mxu0 0.0
      %651 = vmatpush.msra.mxu0 0.0
      %652 = vmatpush.msra.mxu0 0.0
      %653 = vmatpush.msra.mxu0 0.0
      %654 = vmatpush.msra.mxu0 0.0
      %655 = vmatpush.msra.mxu0 0.0
      %656 = vmatpush.msra.mxu0 0.0
      %657 = vmatpush.msra.mxu0 0.0
      %658 = vmatpush.msra.mxu0 0.0
      %659 = vmatpush.msra.mxu0 0.0
      %660 = vmatpush.msra.mxu0 0.0
      %661 = vmatpush.msra.mxu0 0.0
      %662 = vmatpush.msra.mxu0 0.0
      %663 = vmatpush.msra.mxu0 %v607
      %664 = vmatmul.f32.gmra.mxu0 %v632
      %v665 = vpop.f32.mrf.mxu0
      %v666 = vadd.f32 0.0, %v665
      %667 = vmatmul.f32.gmra.mxu0 %v634
      %v668 = vpop.f32.mrf.mxu0
      %v669 = vadd.f32 0.0, %v668
      %670 = vmatmul.f32.gmra.mxu0 %v636
      %v671 = vpop.f32.mrf.mxu0
      %v672 = vadd.f32 0.0, %v671
      %673 = vmatmul.f32.gmra.mxu0 %v638
      %v674 = vpop.f32.mrf.mxu0
      %v675 = vadd.f32 0.0, %v674
      %676 = vmatmul.f32.gmra.mxu0 %v640
      %v677 = vpop.f32.mrf.mxu0
      %v678 = vadd.f32 0.0, %v677
      %679 = vmatmul.f32.gmra.mxu0 %v642
      %v680 = vpop.f32.mrf.mxu0
      %v681 = vadd.f32 0.0, %v680
      %682 = vmatmul.f32.gmra.mxu0 %v644
      %v683 = vpop.f32.mrf.mxu0
      %v684 = vadd.f32 0.0, %v683
      %685 = vmatmul.f32.gmra.mxu0 %v646
      %v686 = vpop.f32.mrf.mxu0
      %v687 = vadd.f32 0.0, %v686
      %688 = vdwg.mxu0
      %v689 = vadd.f32 %v575, %v666
      %v690 = vadd.f32 %v578, %v669
      %v691 = vadd.f32 %v581, %v672
      %v692 = vadd.f32 %v584, %v675
      %v693 = vadd.f32 %v587, %v678
      %v694 = vadd.f32 %v590, %v681
      %v695 = vadd.f32 %v593, %v684
      %v696 = vadd.f32 %v596, %v687
      %v697 = vld [vmem:[%s2 + $0x20] sm:$0xff]
      %698 = vrot.lane.b32.xlu0 %v599, 104
      %v699 = vpop.permute.xlu0 %698
      %700 = vrot.lane.b32.xlu0 %v600, 104
      %v701 = vpop.permute.xlu0 %700
      %702 = vrot.lane.b32.xlu0 %v601, 104
      %v703 = vpop.permute.xlu0 %702
      %704 = vrot.lane.b32.xlu0 %v602, 104
      %v705 = vpop.permute.xlu0 %704
      %706 = vrot.lane.b32.xlu0 %v603, 104
      %v707 = vpop.permute.xlu0 %706
      %708 = vrot.lane.b32.xlu0 %v604, 104
      %v709 = vpop.permute.xlu0 %708
      %710 = vrot.lane.b32.xlu0 %v605, 104
      %v711 = vpop.permute.xlu0 %710
      %712 = vrot.lane.b32.xlu0 %v606, 104
      %v713 = vpop.permute.xlu0 %712
      %v714 = vsel %vm540, %v699, 0
      %v716 = vsel %vm540, %v701, 0
      %v718 = vsel %vm540, %v703, 0
      %v720 = vsel %vm540, %v705, 0
      %v722 = vsel %vm540, %v707, 0
      %v724 = vsel %vm540, %v709, 0
      %v726 = vsel %vm540, %v711, 0
      %v728 = vsel %vm540, %v713, 0
      %730 = vmatpush.msra.mxu0 0.0
      %731 = vmatpush.msra.mxu0 0.0
      %732 = vmatpush.msra.mxu0 0.0
      %733 = vmatpush.msra.mxu0 0.0
      %734 = vmatpush.msra.mxu0 0.0
      %735 = vmatpush.msra.mxu0 0.0
      %736 = vmatpush.msra.mxu0 0.0
      %737 = vmatpush.msra.mxu0 0.0
      %738 = vmatpush.msra.mxu0 0.0
      %739 = vmatpush.msra.mxu0 0.0
      %740 = vmatpush.msra.mxu0 0.0
      %741 = vmatpush.msra.mxu0 0.0
      %742 = vmatpush.msra.mxu0 0.0
      %743 = vmatpush.msra.mxu0 0.0
      %744 = vmatpush.msra.mxu0 0.0
      %745 = vmatpush.msra.mxu0 %v697
      %746 = vmatmul.f32.gmra.mxu0 %v714
      %v747 = vpop.f32.mrf.mxu0
      %v748 = vadd.f32 0.0, %v747
      %749 = vmatmul.f32.gmra.mxu0 %v716
      %v750 = vpop.f32.mrf.mxu0
      %v751 = vadd.f32 0.0, %v750
      %752 = vmatmul.f32.gmra.mxu0 %v718
      %v753 = vpop.f32.mrf.mxu0
      %v754 = vadd.f32 0.0, %v753
      %755 = vmatmul.f32.gmra.mxu0 %v720
      %v756 = vpop.f32.mrf.mxu0
      %v757 = vadd.f32 0.0, %v756
      %758 = vmatmul.f32.gmra.mxu0 %v722
      %v759 = vpop.f32.mrf.mxu0
      %v760 = vadd.f32 0.0, %v759
      %761 = vmatmul.f32.gmra.mxu0 %v724
      %v762 = vpop.f32.mrf.mxu0
      %v763 = vadd.f32 0.0, %v762
      %764 = vmatmul.f32.gmra.mxu0 %v726
      %v765 = vpop.f32.mrf.mxu0
      %v766 = vadd.f32 0.0, %v765
      %767 = vmatmul.f32.gmra.mxu0 %v728
      %v768 = vpop.f32.mrf.mxu0
      %v769 = vadd.f32 0.0, %v768
      %770 = vdwg.mxu0
      %v771 = vadd.f32 %v689, %v748
      %v772 = vadd.f32 %v690, %v751
      %v773 = vadd.f32 %v691, %v754
      %v774 = vadd.f32 %v692, %v757
      %v775 = vadd.f32 %v693, %v760
      %v776 = vadd.f32 %v694, %v763
      %v777 = vadd.f32 %v695, %v766
      %v778 = vadd.f32 %v696, %v769
      %v779 = vld [vmem:[%s598 + $0x1] sm:$0xff]
      %v780 = vld [vmem:[%s598 + $0x11] sm:$0xff]
      %v781 = vld [vmem:[%s598 + $0x21] sm:$0xff]
      %v782 = vld [vmem:[%s598 + $0x31] sm:$0xff]
      %v783 = vld [vmem:[%s598 + $0x41] sm:$0xff]
      %v784 = vld [vmem:[%s598 + $0x51] sm:$0xff]
      %v785 = vld [vmem:[%s598 + $0x61] sm:$0xff]
      %v786 = vld [vmem:[%s598 + $0x71] sm:$0xff]
      %v787 = vld [vmem:[%s2 + $0x28] sm:$0xff]
      %v788 = vld [vmem:[%s2 + $0x30] sm:$0xff]
      %v789 = vld [vmem:[%s2 + $0x38] sm:$0xff]
      %v790 = vld [vmem:[%s2 + $0x40] sm:$0xff]
      %vm791 = vcmask 261120
      %v793 = vsel %vm791, %v779, 0
      %v796 = vsel %vm791, %v780, 0
      %v799 = vsel %vm791, %v781, 0
      %v802 = vsel %vm791, %v782, 0
      %v805 = vsel %vm791, %v783, 0
      %v808 = vsel %vm791, %v784, 0
      %v811 = vsel %vm791, %v785, 0
      %v814 = vsel %vm791, %v786, 0
      %816 = vmatpush.msra.mxu0 0.0
      %817 = vmatpush.msra.mxu0 0.0
      %818 = vmatpush.msra.mxu0 0.0
      %819 = vmatpush.msra.mxu0 0.0
      %820 = vmatpush.msra.mxu0 0.0
      %821 = vmatpush.msra.mxu0 0.0
      %822 = vmatpush.msra.mxu0 0.0
      %823 = vmatpush.msra.mxu0 0.0
      %824 = vmatpush.msra.mxu0 0.0
      %825 = vmatpush.msra.mxu0 0.0
      %826 = vmatpush.msra.mxu0 0.0
      %827 = vmatpush.msra.mxu0 0.0
      %828 = vmatpush.msra.mxu0 %v790
      %829 = vmatpush.msra.mxu0 %v789
      %830 = vmatpush.msra.mxu0 %v788
      %831 = vmatpush.msra.mxu0 %v787
      %832 = vmatmul.f32.gmra.mxu0 %v793
      %v833 = vpop.f32.mrf.mxu0
      %v834 = vadd.f32 0.0, %v833
      %835 = vmatmul.f32.gmra.mxu0 %v796
      %v836 = vpop.f32.mrf.mxu0
      %v837 = vadd.f32 0.0, %v836
      %838 = vmatmul.f32.gmra.mxu0 %v799
      %v839 = vpop.f32.mrf.mxu0
      %v840 = vadd.f32 0.0, %v839
      %841 = vmatmul.f32.gmra.mxu0 %v802
      %v842 = vpop.f32.mrf.mxu0
      %v843 = vadd.f32 0.0, %v842
      %844 = vmatmul.f32.gmra.mxu0 %v805
      %v845 = vpop.f32.mrf.mxu0
      %v846 = vadd.f32 0.0, %v845
      %847 = vmatmul.f32.gmra.mxu0 %v808
      %v848 = vpop.f32.mrf.mxu0
      %v849 = vadd.f32 0.0, %v848
      %850 = vmatmul.f32.gmra.mxu0 %v811
      %v851 = vpop.f32.mrf.mxu0
      %v852 = vadd.f32 0.0, %v851
      %853 = vmatmul.f32.gmra.mxu0 %v814
      %v854 = vpop.f32.mrf.mxu0
      %v855 = vadd.f32 0.0, %v854
      %856 = vdwg.mxu0
      %v857 = vadd.f32 %v771, %v834
      %v858 = vadd.f32 %v772, %v837
      %v859 = vadd.f32 %v773, %v840
      %v860 = vadd.f32 %v774, %v843
      %v861 = vadd.f32 %v775, %v846
      %v862 = vadd.f32 %v776, %v849
      %v863 = vadd.f32 %v777, %v852
      %v864 = vadd.f32 %v778, %v855
      %v866 = vperm.slane %v411, 0
      %v868 = vmul.f32 %v857, %v866
      %v869 = vmul.f32 %v858, %v866
      %v870 = vmul.f32 %v859, %v866
      %v871 = vmul.f32 %v860, %v866
      %v872 = vmul.f32 %v861, %v866
      %v873 = vmul.f32 %v862, %v866
      %v874 = vmul.f32 %v863, %v866
      %v875 = vmul.f32 %v864, %v866
      %v877 = vperm.slane %v412, 0
      %v879 = vadd.f32 %v868, %v877
      %v880 = vadd.f32 %v869, %v877
      %v881 = vadd.f32 %v870, %v877
      %v882 = vadd.f32 %v871, %v877
      %v883 = vadd.f32 %v872, %v877
      %v884 = vadd.f32 %v873, %v877
      %v885 = vadd.f32 %v874, %v877
      %v886 = vadd.f32 %v875, %v877
      %vm887 = vcmp.ge.f32.partialorder %v879, 0.0
      %vm888 = vcmp.ge.f32.partialorder %v880, 0.0
      %vm889 = vcmp.ge.f32.partialorder %v881, 0.0
      %vm890 = vcmp.ge.f32.partialorder %v882, 0.0
      %vm891 = vcmp.ge.f32.partialorder %v883, 0.0
      %vm892 = vcmp.ge.f32.partialorder %v884, 0.0
      %vm893 = vcmp.ge.f32.partialorder %v885, 0.0
      %vm894 = vcmp.ge.f32.partialorder %v886, 0.0
      %v895 = vmul.f32 %v879, 0.2
      %v896 = vmul.f32 %v880, 0.2
      %v897 = vmul.f32 %v881, 0.2
      %v898 = vmul.f32 %v882, 0.2
      %v899 = vmul.f32 %v883, 0.2
      %v900 = vmul.f32 %v884, 0.2
      %v901 = vmul.f32 %v885, 0.2
      %v902 = vmul.f32 %v886, 0.2
      %v903 = vsel %vm887, %v879, %v895
      %v904 = vsel %vm888, %v880, %v896
      %v905 = vsel %vm889, %v881, %v897
      %v906 = vsel %vm890, %v882, %v898
      %v907 = vsel %vm891, %v883, %v899
      %v908 = vsel %vm892, %v884, %v900
      %v909 = vsel %vm893, %v885, %v901
      %v910 = vsel %vm894, %v886, %v902
      %v911 = vmul.f32 %v903, 1.4142135
      %v912 = vmul.f32 %v904, 1.4142135
      %v913 = vmul.f32 %v905, 1.4142135
      %v914 = vmul.f32 %v906, 1.4142135
      %v915 = vmul.f32 %v907, 1.4142135
      %v916 = vmul.f32 %v908, 1.4142135
      %v917 = vmul.f32 %v909, 1.4142135
      %v918 = vmul.f32 %v910, 1.4142135
      %919 = vst.msk [vmem:[%s364] sm:$0xff] %vm540, %v911
      %920 = vst.msk [vmem:[%s364 + $0x8] sm:$0xff] %vm540, %v912
      %921 = vst.msk [vmem:[%s364 + $0x10] sm:$0xff] %vm540, %v913
      %922 = vst.msk [vmem:[%s364 + $0x18] sm:$0xff] %vm540, %v914
      %923 = vst.msk [vmem:[%s364 + $0x20] sm:$0xff] %vm540, %v915
      %924 = vst.msk [vmem:[%s364 + $0x28] sm:$0xff] %vm540, %v916
      %925 = vst.msk [vmem:[%s364 + $0x30] sm:$0xff] %vm540, %v917
      %926 = vst.msk [vmem:[%s364 + $0x38] sm:$0xff] %vm540, %v918
      %v928 = vperm.slane %v414, 0
      %v931 = vsel %vm540, %v911, 0
      %v934 = vsel %vm540, %v912, 0
      %v937 = vsel %vm540, %v913, 0
      %v940 = vsel %vm540, %v914, 0
      %v943 = vsel %vm540, %v915, 0
      %v946 = vsel %vm540, %v916, 0
      %v949 = vsel %vm540, %v917, 0
      %v952 = vsel %vm540, %v918, 0
      %954 = vmatpush.msra.mxu0 0.0
      %955 = vmatpush.msra.mxu0 0.0
      %956 = vmatpush.msra.mxu0 0.0
      %957 = vmatpush.msra.mxu0 0.0
      %958 = vmatpush.msra.mxu0 0.0
      %959 = vmatpush.msra.mxu0 0.0
      %960 = vmatpush.msra.mxu0 0.0
      %961 = vmatpush.msra.mxu0 0.0
      %962 = vmatpush.msra.mxu0 0.0
      %963 = vmatpush.msra.mxu0 0.0
      %964 = vmatpush.msra.mxu0 0.0
      %965 = vmatpush.msra.mxu0 0.0
      %966 = vmatpush.msra.mxu0 0.0
      %967 = vmatpush.msra.mxu0 0.0
      %968 = vmatpush.msra.mxu0 0.0
      %969 = vmatpush.msra.mxu0 %v413
      %970 = vmatmul.f32.gmra.mxu0 %v931
      %v971 = vpop.f32.mrf.mxu0
      %v972 = vadd.f32 %v928, %v971
      %973 = vmatmul.f32.gmra.mxu0 %v934
      %v974 = vpop.f32.mrf.mxu0
      %v975 = vadd.f32 %v928, %v974
      %976 = vmatmul.f32.gmra.mxu0 %v937
      %v977 = vpop.f32.mrf.mxu0
      %v978 = vadd.f32 %v928, %v977
      %979 = vmatmul.f32.gmra.mxu0 %v940
      %v980 = vpop.f32.mrf.mxu0
      %v981 = vadd.f32 %v928, %v980
      %982 = vmatmul.f32.gmra.mxu0 %v943
      %v983 = vpop.f32.mrf.mxu0
      %v984 = vadd.f32 %v928, %v983
      %985 = vmatmul.f32.gmra.mxu0 %v946
      %v986 = vpop.f32.mrf.mxu0
      %v987 = vadd.f32 %v928, %v986
      %988 = vmatmul.f32.gmra.mxu0 %v949
      %v989 = vpop.f32.mrf.mxu0
      %v990 = vadd.f32 %v928, %v989
      %991 = vmatmul.f32.gmra.mxu0 %v952
      %v992 = vpop.f32.mrf.mxu0
      %v993 = vadd.f32 %v928, %v992
      %994 = vdwg.mxu0
      %v995 = vld [vmem:[#allocation2] sm:$0xff]
      %v996 = vld [vmem:[#allocation2 + $0x10] sm:$0xff]
      %v997 = vld [vmem:[#allocation2 + $0x20] sm:$0xff]
      %v998 = vld [vmem:[#allocation2 + $0x30] sm:$0xff]
      %v999 = vld [vmem:[#allocation2 + $0x40] sm:$0xff]
      %v1000 = vld [vmem:[#allocation2 + $0x50] sm:$0xff]
      %v1001 = vld [vmem:[#allocation2 + $0x60] sm:$0xff]
      %v1002 = vld [vmem:[#allocation2 + $0x70] sm:$0xff]
      %v1003 = vmul.f32 %v995, 0.0625
      %v1004 = vmul.f32 %v996, 0.0625
      %v1005 = vmul.f32 %v997, 0.0625
      %v1006 = vmul.f32 %v998, 0.0625
      %v1007 = vmul.f32 %v999, 0.0625
      %v1008 = vmul.f32 %v1000, 0.0625
      %v1009 = vmul.f32 %v1001, 0.0625
      %v1010 = vmul.f32 %v1002, 0.0625
      %v1011 = vld [vmem:[#allocation2 + $0x1] sm:$0xff]
      %v1012 = vld [vmem:[#allocation2 + $0x11] sm:$0xff]
      %v1013 = vld [vmem:[#allocation2 + $0x21] sm:$0xff]
      %v1014 = vld [vmem:[#allocation2 + $0x31] sm:$0xff]
      %v1015 = vld [vmem:[#allocation2 + $0x41] sm:$0xff]
      %v1016 = vld [vmem:[#allocation2 + $0x51] sm:$0xff]
      %v1017 = vld [vmem:[#allocation2 + $0x61] sm:$0xff]
      %v1018 = vld [vmem:[#allocation2 + $0x71] sm:$0xff]
      %v1019 = vmul.f32 %v1011, 0.1875
      %v1020 = vmul.f32 %v1012, 0.1875
      %v1021 = vmul.f32 %v1013, 0.1875
      %v1022 = vmul.f32 %v1014, 0.1875
      %v1023 = vmul.f32 %v1015, 0.1875
      %v1024 = vmul.f32 %v1016, 0.1875
      %v1025 = vmul.f32 %v1017, 0.1875
      %v1026 = vmul.f32 %v1018, 0.1875
      %v1027 = vadd.f32 %v1003, %v1019
      %v1028 = vadd.f32 %v1004, %v1020
      %v1029 = vadd.f32 %v1005, %v1021
      %v1030 = vadd.f32 %v1006, %v1022
      %v1031 = vadd.f32 %v1007, %v1023
      %v1032 = vadd.f32 %v1008, %v1024
      %v1033 = vadd.f32 %v1009, %v1025
      %v1034 = vadd.f32 %v1010, %v1026
      %v1035 = vld [vmem:[%s377] sm:$0xff]
      %v1036 = vld [vmem:[%s377 + $0x10] sm:$0xff]
      %v1037 = vld [vmem:[%s377 + $0x20] sm:$0xff]
      %v1038 = vld [vmem:[%s377 + $0x30] sm:$0xff]
      %v1039 = vld [vmem:[%s377 + $0x40] sm:$0xff]
      %v1040 = vld [vmem:[%s377 + $0x50] sm:$0xff]
      %v1041 = vld [vmem:[%s377 + $0x60] sm:$0xff]
      %v1042 = vld [vmem:[%s377 + $0x70] sm:$0xff]
      %v1043 = vmul.f32 %v1035, 0.1875
      %v1044 = vmul.f32 %v1036, 0.1875
      %v1045 = vmul.f32 %v1037, 0.1875
      %v1046 = vmul.f32 %v1038, 0.1875
      %v1047 = vmul.f32 %v1039, 0.1875
      %v1048 = vmul.f32 %v1040, 0.1875
      %v1049 = vmul.f32 %v1041, 0.1875
      %v1050 = vmul.f32 %v1042, 0.1875
      %v1051 = vadd.f32 %v1027, %v1043
      %v1052 = vadd.f32 %v1028, %v1044
      %v1053 = vadd.f32 %v1029, %v1045
      %v1054 = vadd.f32 %v1030, %v1046
      %v1055 = vadd.f32 %v1031, %v1047
      %v1056 = vadd.f32 %v1032, %v1048
      %v1057 = vadd.f32 %v1033, %v1049
      %v1058 = vadd.f32 %v1034, %v1050
      %v1059 = vld [vmem:[%s377 + $0x1] sm:$0xff]
      %v1060 = vld [vmem:[%s377 + $0x11] sm:$0xff]
      %v1061 = vld [vmem:[%s377 + $0x21] sm:$0xff]
      %v1062 = vld [vmem:[%s377 + $0x31] sm:$0xff]
      %v1063 = vld [vmem:[%s377 + $0x41] sm:$0xff]
      %v1064 = vld [vmem:[%s377 + $0x51] sm:$0xff]
      %v1065 = vld [vmem:[%s377 + $0x61] sm:$0xff]
      %v1066 = vld [vmem:[%s377 + $0x71] sm:$0xff]
      %v1067 = vmul.f32 %v1059, 0.5625
      %v1068 = vmul.f32 %v1060, 0.5625
      %v1069 = vmul.f32 %v1061, 0.5625
      %v1070 = vmul.f32 %v1062, 0.5625
      %v1071 = vmul.f32 %v1063, 0.5625
      %v1072 = vmul.f32 %v1064, 0.5625
      %v1073 = vmul.f32 %v1065, 0.5625
      %v1074 = vmul.f32 %v1066, 0.5625
      %v1075 = vadd.f32 %v1051, %v1067
      %v1076 = vadd.f32 %v1052, %v1068
      %v1077 = vadd.f32 %v1053, %v1069
      %v1078 = vadd.f32 %v1054, %v1070
      %v1079 = vadd.f32 %v1055, %v1071
      %v1080 = vadd.f32 %v1056, %v1072
      %v1081 = vadd.f32 %v1057, %v1073
      %v1082 = vadd.f32 %v1058, %v1074
      %v1083 = vadd.f32 %v972, %v1075
      %v1084 = vadd.f32 %v975, %v1076
      %v1085 = vadd.f32 %v978, %v1077
      %v1086 = vadd.f32 %v981, %v1078
      %v1087 = vadd.f32 %v984, %v1079
      %v1088 = vadd.f32 %v987, %v1080
      %v1089 = vadd.f32 %v990, %v1081
      %v1090 = vadd.f32 %v993, %v1082
      %1091 = vst.msk [vmem:[%s369] sm:$0xff] %vm370, %v1083
      %1092 = vst.msk [vmem:[%s369 + $0x8] sm:$0xff] %vm370, %v1084
      %1093 = vst.msk [vmem:[%s369 + $0x10] sm:$0xff] %vm370, %v1085
      %1094 = vst.msk [vmem:[%s369 + $0x18] sm:$0xff] %vm370, %v1086
      %1095 = vst.msk [vmem:[%s369 + $0x20] sm:$0xff] %vm370, %v1087
      %1096 = vst.msk [vmem:[%s369 + $0x28] sm:$0xff] %vm370, %v1088
      %1097 = vst.msk [vmem:[%s369 + $0x30] sm:$0xff] %vm370, %v1089
      %1098 = vst.msk [vmem:[%s369 + $0x38] sm:$0xff] %vm370, %v1090
      %v1099 = vld [vmem:[%s350 + $0x1] sm:$0xff]
      %v1100 = vld [vmem:[%s350 + $0x11] sm:$0xff]
      %v1101 = vld [vmem:[%s350 + $0x21] sm:$0xff]
      %v1102 = vld [vmem:[%s350 + $0x31] sm:$0xff]
      %v1103 = vld [vmem:[%s350 + $0x41] sm:$0xff]
      %v1104 = vld [vmem:[%s350 + $0x51] sm:$0xff]
      %v1105 = vld [vmem:[%s350 + $0x61] sm:$0xff]
      %v1106 = vld [vmem:[%s350 + $0x71] sm:$0xff]
      %v1107 = vld [vmem:[%s2 + $0x48] sm:$0xff]
      %v1108 = vld [vmem:[%s2 + $0x50] sm:$0xff]
      %v1109 = vld [vmem:[%s350 + $0x2] sm:$0xff]
      %v1110 = vld [vmem:[%s350 + $0x12] sm:$0xff]
      %v1111 = vld [vmem:[%s350 + $0x22] sm:$0xff]
      %v1112 = vld [vmem:[%s350 + $0x32] sm:$0xff]
      %v1113 = vld [vmem:[%s350 + $0x42] sm:$0xff]
      %v1114 = vld [vmem:[%s350 + $0x52] sm:$0xff]
      %v1115 = vld [vmem:[%s350 + $0x62] sm:$0xff]
      %v1116 = vld [vmem:[%s350 + $0x72] sm:$0xff]
      %v1117 = vld [vmem:[%s2 + $0x58] sm:$0xff]
      %1126 = vrot.lane.b32.xlu0 %v1109, 112
      %v1127 = vpop.permute.xlu0 %1126
      %1128 = vrot.lane.b32.xlu0 %v1110, 112
      %v1129 = vpop.permute.xlu0 %1128
      %1130 = vrot.lane.b32.xlu0 %v1111, 112
      %v1131 = vpop.permute.xlu0 %1130
      %1132 = vrot.lane.b32.xlu0 %v1112, 112
      %v1133 = vpop.permute.xlu0 %1132
      %1134 = vrot.lane.b32.xlu0 %v1113, 112
      %v1135 = vpop.permute.xlu0 %1134
      %1136 = vrot.lane.b32.xlu0 %v1114, 112
      %v1137 = vpop.permute.xlu0 %1136
      %1138 = vrot.lane.b32.xlu0 %v1115, 112
      %v1139 = vpop.permute.xlu0 %1138
      %1140 = vrot.lane.b32.xlu0 %v1116, 112
      %v1141 = vpop.permute.xlu0 %1140
      %v1142 = vsel %vm540, %v1127, 0
      %v1144 = vsel %vm540, %v1129, 0
      %v1146 = vsel %vm540, %v1131, 0
      %v1148 = vsel %vm540, %v1133, 0
      %v1150 = vsel %vm540, %v1135, 0
      %v1152 = vsel %vm540, %v1137, 0
      %v1154 = vsel %vm540, %v1139, 0
      %v1156 = vsel %vm540, %v1141, 0
      %1158 = vmatpush.msra.mxu0 0.0
      %1159 = vmatpush.msra.mxu0 0.0
      %1160 = vmatpush.msra.mxu0 0.0
      %1161 = vmatpush.msra.mxu0 0.0
      %1162 = vmatpush.msra.mxu0 0.0
      %1163 = vmatpush.msra.mxu0 0.0
      %1164 = vmatpush.msra.mxu0 0.0
      %1165 = vmatpush.msra.mxu0 0.0
      %1166 = vmatpush.msra.mxu0 0.0
      %1167 = vmatpush.msra.mxu0 0.0
      %1168 = vmatpush.msra.mxu0 0.0
      %1169 = vmatpush.msra.mxu0 0.0
      %1170 = vmatpush.msra.mxu0 0.0
      %1171 = vmatpush.msra.mxu0 0.0
      %1172 = vmatpush.msra.mxu0 0.0
      %1173 = vmatpush.msra.mxu0 %v1117
      %1174 = vmatmul.f32.gmra.mxu0 %v1142
      %v1175 = vpop.f32.mrf.mxu0
      %v1176 = vadd.f32 0.0, %v1175
      %1177 = vmatmul.f32.gmra.mxu0 %v1144
      %v1178 = vpop.f32.mrf.mxu0
      %v1179 = vadd.f32 0.0, %v1178
      %1180 = vmatmul.f32.gmra.mxu0 %v1146
      %v1181 = vpop.f32.mrf.mxu0
      %v1182 = vadd.f32 0.0, %v1181
      %1183 = vmatmul.f32.gmra.mxu0 %v1148
      %v1184 = vpop.f32.mrf.mxu0
      %v1185 = vadd.f32 0.0, %v1184
      %1186 = vmatmul.f32.gmra.mxu0 %v1150
      %v1187 = vpop.f32.mrf.mxu0
      %v1188 = vadd.f32 0.0, %v1187
      %1189 = vmatmul.f32.gmra.mxu0 %v1152
      %v1190 = vpop.f32.mrf.mxu0
      %v1191 = vadd.f32 0.0, %v1190
      %1192 = vmatmul.f32.gmra.mxu0 %v1154
      %v1193 = vpop.f32.mrf.mxu0
      %v1194 = vadd.f32 0.0, %v1193
      %1195 = vmatmul.f32.gmra.mxu0 %v1156
      %v1196 = vpop.f32.mrf.mxu0
      %v1197 = vadd.f32 0.0, %v1196
      %1198 = vdwg.mxu0
      %1207 = vrot.lane.b32.xlu0 %v1099, 112
      %v1208 = vpop.permute.xlu0 %1207
      %1209 = vrot.lane.b32.xlu0 %v1100, 112
      %v1210 = vpop.permute.xlu0 %1209
      %1211 = vrot.lane.b32.xlu0 %v1101, 112
      %v1212 = vpop.permute.xlu0 %1211
      %1213 = vrot.lane.b32.xlu0 %v1102, 112
      %v1214 = vpop.permute.xlu0 %1213
      %1215 = vrot.lane.b32.xlu0 %v1103, 112
      %v1216 = vpop.permute.xlu0 %1215
      %1217 = vrot.lane.b32.xlu0 %v1104, 112
      %v1218 = vpop.permute.xlu0 %1217
      %1219 = vrot.lane.b32.xlu0 %v1105, 112
      %v1220 = vpop.permute.xlu0 %1219
      %1221 = vrot.lane.b32.xlu0 %v1106, 112
      %v1222 = vpop.permute.xlu0 %1221
      %v1223 = vsel %vm458, %v1208, 0
      %v1225 = vsel %vm458, %v1210, 0
      %v1227 = vsel %vm458, %v1212, 0
      %v1229 = vsel %vm458, %v1214, 0
      %v1231 = vsel %vm458, %v1216, 0
      %v1233 = vsel %vm458, %v1218, 0
      %v1235 = vsel %vm458, %v1220, 0
      %v1237 = vsel %vm458, %v1222, 0
      %1239 = vmatpush.msra.mxu0 0.0
      %1240 = vmatpush.msra.mxu0 0.0
      %1241 = vmatpush.msra.mxu0 0.0
      %1242 = vmatpush.msra.mxu0 0.0
      %1243 = vmatpush.msra.mxu0 0.0
      %1244 = vmatpush.msra.mxu0 0.0
      %1245 = vmatpush.msra.mxu0 0.0
      %1246 = vmatpush.msra.mxu0 0.0
      %1247 = vmatpush.msra.mxu0 0.0
      %1248 = vmatpush.msra.mxu0 0.0
      %1249 = vmatpush.msra.mxu0 0.0
      %1250 = vmatpush.msra.mxu0 0.0
      %1251 = vmatpush.msra.mxu0 0.0
      %1252 = vmatpush.msra.mxu0 0.0
      %1253 = vmatpush.msra.mxu0 %v1108
      %1254 = vmatpush.msra.mxu0 %v1107
      %1255 = vmatmul.f32.gmra.mxu0 %v1223
      %v1256 = vpop.f32.mrf.mxu0
      %v1257 = vadd.f32 %v1176, %v1256
      %1258 = vmatmul.f32.gmra.mxu0 %v1225
      %v1259 = vpop.f32.mrf.mxu0
      %v1260 = vadd.f32 %v1179, %v1259
      %1261 = vmatmul.f32.gmra.mxu0 %v1227
      %v1262 = vpop.f32.mrf.mxu0
      %v1263 = vadd.f32 %v1182, %v1262
      %1264 = vmatmul.f32.gmra.mxu0 %v1229
      %v1265 = vpop.f32.mrf.mxu0
      %v1266 = vadd.f32 %v1185, %v1265
      %1267 = vmatmul.f32.gmra.mxu0 %v1231
      %v1268 = vpop.f32.mrf.mxu0
      %v1269 = vadd.f32 %v1188, %v1268
      %1270 = vmatmul.f32.gmra.mxu0 %v1233
      %v1271 = vpop.f32.mrf.mxu0
      %v1272 = vadd.f32 %v1191, %v1271
      %1273 = vmatmul.f32.gmra.mxu0 %v1235
      %v1274 = vpop.f32.mrf.mxu0
      %v1275 = vadd.f32 %v1194, %v1274
      %1276 = vmatmul.f32.gmra.mxu0 %v1237
      %v1277 = vpop.f32.mrf.mxu0
      %v1278 = vadd.f32 %v1197, %v1277
      %1279 = vdwg.mxu0
      %v1280 = vld [vmem:[%s598 + $0x1] sm:$0xff]
      %v1281 = vld [vmem:[%s598 + $0x11] sm:$0xff]
      %v1282 = vld [vmem:[%s598 + $0x21] sm:$0xff]
      %v1283 = vld [vmem:[%s598 + $0x31] sm:$0xff]
      %v1284 = vld [vmem:[%s598 + $0x41] sm:$0xff]
      %v1285 = vld [vmem:[%s598 + $0x51] sm:$0xff]
      %v1286 = vld [vmem:[%s598 + $0x61] sm:$0xff]
      %v1287 = vld [vmem:[%s598 + $0x71] sm:$0xff]
      %v1288 = vld [vmem:[%s2 + $0x60] sm:$0xff]
      %v1289 = vld [vmem:[%s2 + $0x68] sm:$0xff]
      %v1290 = vld [vmem:[%s2 + $0x70] sm:$0xff]
      %v1291 = vld [vmem:[%s2 + $0x78] sm:$0xff]
      %v1293 = vsel %vm791, %v1280, 0
      %v1296 = vsel %vm791, %v1281, 0
      %v1299 = vsel %vm791, %v1282, 0
      %v1302 = vsel %vm791, %v1283, 0
      %v1305 = vsel %vm791, %v1284, 0
      %v1308 = vsel %vm791, %v1285, 0
      %v1311 = vsel %vm791, %v1286, 0
      %v1314 = vsel %vm791, %v1287, 0
      %1316 = vmatpush.msra.mxu0 0.0
      %1317 = vmatpush.msra.mxu0 0.0
      %1318 = vmatpush.msra.mxu0 0.0
      %1319 = vmatpush.msra.mxu0 0.0
      %1320 = vmatpush.msra.mxu0 0.0
      %1321 = vmatpush.msra.mxu0 0.0
      %1322 = vmatpush.msra.mxu0 0.0
      %1323 = vmatpush.msra.mxu0 0.0
      %1324 = vmatpush.msra.mxu0 0.0
      %1325 = vmatpush.msra.mxu0 0.0
      %1326 = vmatpush.msra.mxu0 0.0
      %1327 = vmatpush.msra.mxu0 0.0
      %1328 = vmatpush.msra.mxu0 %v1291
      %1329 = vmatpush.msra.mxu0 %v1290
      %1330 = vmatpush.msra.mxu0 %v1289
      %1331 = vmatpush.msra.mxu0 %v1288
      %1332 = vmatmul.f32.gmra.mxu0 %v1293
      %v1333 = vpop.f32.mrf.mxu0
      %v1334 = vadd.f32 0.0, %v1333
      %1335 = vmatmul.f32.gmra.mxu0 %v1296
      %v1336 = vpop.f32.mrf.mxu0
      %v1337 = vadd.f32 0.0, %v1336
      %1338 = vmatmul.f32.gmra.mxu0 %v1299
      %v1339 = vpop.f32.mrf.mxu0
      %v1340 = vadd.f32 0.0, %v1339
      %1341 = vmatmul.f32.gmra.mxu0 %v1302
      %v1342 = vpop.f32.mrf.mxu0
      %v1343 = vadd.f32 0.0, %v1342
      %1344 = vmatmul.f32.gmra.mxu0 %v1305
      %v1345 = vpop.f32.mrf.mxu0
      %v1346 = vadd.f32 0.0, %v1345
      %1347 = vmatmul.f32.gmra.mxu0 %v1308
      %v1348 = vpop.f32.mrf.mxu0
      %v1349 = vadd.f32 0.0, %v1348
      %1350 = vmatmul.f32.gmra.mxu0 %v1311
      %v1351 = vpop.f32.mrf.mxu0
      %v1352 = vadd.f32 0.0, %v1351
      %1353 = vmatmul.f32.gmra.mxu0 %v1314
      %v1354 = vpop.f32.mrf.mxu0
      %v1355 = vadd.f32 0.0, %v1354
      %1356 = vdwg.mxu0
      %v1357 = vadd.f32 %v1257, %v1334
      %v1358 = vadd.f32 %v1260, %v1337
      %v1359 = vadd.f32 %v1263, %v1340
      %v1360 = vadd.f32 %v1266, %v1343
      %v1361 = vadd.f32 %v1269, %v1346
      %v1362 = vadd.f32 %v1272, %v1349
      %v1363 = vadd.f32 %v1275, %v1352
      %v1364 = vadd.f32 %v1278, %v1355
      %v1365 = vld [vmem:[%s598 + $0x2] sm:$0xff]
      %v1366 = vld [vmem:[%s598 + $0x12] sm:$0xff]
      %v1367 = vld [vmem:[%s598 + $0x22] sm:$0xff]
      %v1368 = vld [vmem:[%s598 + $0x32] sm:$0xff]
      %v1369 = vld [vmem:[%s598 + $0x42] sm:$0xff]
      %v1370 = vld [vmem:[%s598 + $0x52] sm:$0xff]
      %v1371 = vld [vmem:[%s598 + $0x62] sm:$0xff]
      %v1372 = vld [vmem:[%s598 + $0x72] sm:$0xff]
      %v1373 = vld [vmem:[%s2 + $0x80] sm:$0xff]
      %v1375 = vsel %vm540, %v1365, 0
      %v1378 = vsel %vm540, %v1366, 0
      %v1381 = vsel %vm540, %v1367, 0
      %v1384 = vsel %vm540, %v1368, 0
      %v1387 = vsel %vm540, %v1369, 0
      %v1390 = vsel %vm540, %v1370, 0
      %v1393 = vsel %vm540, %v1371, 0
      %v1396 = vsel %vm540, %v1372, 0
      %1398 = vmatpush.msra.mxu0 0.0
      %1399 = vmatpush.msra.mxu0 0.0
      %1400 = vmatpush.msra.mxu0 0.0
      %1401 = vmatpush.msra.mxu0 0.0
      %1402 = vmatpush.msra.mxu0 0.0
      %1403 = vmatpush.msra.mxu0 0.0
      %1404 = vmatpush.msra.mxu0 0.0
      %1405 = vmatpush.msra.mxu0 0.0
      %1406 = vmatpush.msra.mxu0 0.0
      %1407 = vmatpush.msra.mxu0 0.0
      %1408 = vmatpush.msra.mxu0 0.0
      %1409 = vmatpush.msra.mxu0 0.0
      %1410 = vmatpush.msra.mxu0 0.0
      %1411 = vmatpush.msra.mxu0 0.0
      %1412 = vmatpush.msra.mxu0 0.0
      %1413 = vmatpush.msra.mxu0 %v1373
      %1414 = vmatmul.f32.gmra.mxu0 %v1375
      %v1415 = vpop.f32.mrf.mxu0
      %v1416 = vadd.f32 0.0, %v1415
      %1417 = vmatmul.f32.gmra.mxu0 %v1378
      %v1418 = vpop.f32.mrf.mxu0
      %v1419 = vadd.f32 0.0, %v1418
      %1420 = vmatmul.f32.gmra.mxu0 %v1381
      %v1421 = vpop.f32.mrf.mxu0
      %v1422 = vadd.f32 0.0, %v1421
      %1423 = vmatmul.f32.gmra.mxu0 %v1384
      %v1424 = vpop.f32.mrf.mxu0
      %v1425 = vadd.f32 0.0, %v1424
      %1426 = vmatmul.f32.gmra.mxu0 %v1387
      %v1427 = vpop.f32.mrf.mxu0
      %v1428 = vadd.f32 0.0, %v1427
      %1429 = vmatmul.f32.gmra.mxu0 %v1390
      %v1430 = vpop.f32.mrf.mxu0
      %v1431 = vadd.f32 0.0, %v1430
      %1432 = vmatmul.f32.gmra.mxu0 %v1393
      %v1433 = vpop.f32.mrf.mxu0
      %v1434 = vadd.f32 0.0, %v1433
      %1435 = vmatmul.f32.gmra.mxu0 %v1396
      %v1436 = vpop.f32.mrf.mxu0
      %v1437 = vadd.f32 0.0, %v1436
      %1438 = vdwg.mxu0
      %v1439 = vadd.f32 %v1357, %v1416
      %v1440 = vadd.f32 %v1358, %v1419
      %v1441 = vadd.f32 %v1359, %v1422
      %v1442 = vadd.f32 %v1360, %v1425
      %v1443 = vadd.f32 %v1361, %v1428
      %v1444 = vadd.f32 %v1362, %v1431
      %v1445 = vadd.f32 %v1363, %v1434
      %v1446 = vadd.f32 %v1364, %v1437
      %v1447 = vld [vmem:[%s2 + $0x88] sm:$0xff]
      %1448 = vrot.lane.b32.xlu0 %v1365, 112
      %v1449 = vpop.permute.xlu0 %1448
      %1450 = vrot.lane.b32.xlu0 %v1366, 112
      %v1451 = vpop.permute.xlu0 %1450
      %1452 = vrot.lane.b32.xlu0 %v1367, 112
      %v1453 = vpop.permute.xlu0 %1452
      %1454 = vrot.lane.b32.xlu0 %v1368, 112
      %v1455 = vpop.permute.xlu0 %1454
      %1456 = vrot.lane.b32.xlu0 %v1369, 112
      %v1457 = vpop.permute.xlu0 %1456
      %1458 = vrot.lane.b32.xlu0 %v1370, 112
      %v1459 = vpop.permute.xlu0 %1458
      %1460 = vrot.lane.b32.xlu0 %v1371, 112
      %v1461 = vpop.permute.xlu0 %1460
      %1462 = vrot.lane.b32.xlu0 %v1372, 112
      %v1463 = vpop.permute.xlu0 %1462
      %v1464 = vsel %vm540, %v1449, 0
      %v1466 = vsel %vm540, %v1451, 0
      %v1468 = vsel %vm540, %v1453, 0
      %v1470 = vsel %vm540, %v1455, 0
      %v1472 = vsel %vm540, %v1457, 0
      %v1474 = vsel %vm540, %v1459, 0
      %v1476 = vsel %vm540, %v1461, 0
      %v1478 = vsel %vm540, %v1463, 0
      %1480 = vmatpush.msra.mxu0 0.0
      %1481 = vmatpush.msra.mxu0 0.0
      %1482 = vmatpush.msra.mxu0 0.0
      %1483 = vmatpush.msra.mxu0 0.0
      %1484 = vmatpush.msra.mxu0 0.0
      %1485 = vmatpush.msra.mxu0 0.0
      %1486 = vmatpush.msra.mxu0 0.0
      %1487 = vmatpush.msra.mxu0 0.0
      %1488 = vmatpush.msra.mxu0 0.0
      %1489 = vmatpush.msra.mxu0 0.0
      %1490 = vmatpush.msra.mxu0 0.0
      %1491 = vmatpush.msra.mxu0 0.0
      %1492 = vmatpush.msra.mxu0 0.0
      %1493 = vmatpush.msra.mxu0 0.0
      %1494 = vmatpush.msra.mxu0 0.0
      %1495 = vmatpush.msra.mxu0 %v1447
      %1496 = vmatmul.f32.gmra.mxu0 %v1464
      %v1497 = vpop.f32.mrf.mxu0
      %v1498 = vadd.f32 0.0, %v1497
      %1499 = vmatmul.f32.gmra.mxu0 %v1466
      %v1500 = vpop.f32.mrf.mxu0
      %v1501 = vadd.f32 0.0, %v1500
      %1502 = vmatmul.f32.gmra.mxu0 %v1468
      %v1503 = vpop.f32.mrf.mxu0
      %v1504 = vadd.f32 0.0, %v1503
      %1505 = vmatmul.f32.gmra.mxu0 %v1470
      %v1506 = vpop.f32.mrf.mxu0
      %v1507 = vadd.f32 0.0, %v1506
      %1508 = vmatmul.f32.gmra.mxu0 %v1472
      %v1509 = vpop.f32.mrf.mxu0
      %v1510 = vadd.f32 0.0, %v1509
      %1511 = vmatmul.f32.gmra.mxu0 %v1474
      %v1512 = vpop.f32.mrf.mxu0
      %v1513 = vadd.f32 0.0, %v1512
      %1514 = vmatmul.f32.gmra.mxu0 %v1476
      %v1515 = vpop.f32.mrf.mxu0
      %v1516 = vadd.f32 0.0, %v1515
      %1517 = vmatmul.f32.gmra.mxu0 %v1478
      %v1518 = vpop.f32.mrf.mxu0
      %v1519 = vadd.f32 0.0, %v1518
      %1520 = vdwg.mxu0
      %v1521 = vadd.f32 %v1439, %v1498
      %v1522 = vadd.f32 %v1440, %v1501
      %v1523 = vadd.f32 %v1441, %v1504
      %v1524 = vadd.f32 %v1442, %v1507
      %v1525 = vadd.f32 %v1443, %v1510
      %v1526 = vadd.f32 %v1444, %v1513
      %v1527 = vadd.f32 %v1445, %v1516
      %v1528 = vadd.f32 %v1446, %v1519
      %v1529 = vmul.f32 %v1521, %v866
      %v1530 = vmul.f32 %v1522, %v866
      %v1531 = vmul.f32 %v1523, %v866
      %v1532 = vmul.f32 %v1524, %v866
      %v1533 = vmul.f32 %v1525, %v866
      %v1534 = vmul.f32 %v1526, %v866
      %v1535 = vmul.f32 %v1527, %v866
      %v1536 = vmul.f32 %v1528, %v866
      %v1537 = vadd.f32 %v1529, %v877
      %v1538 = vadd.f32 %v1530, %v877
      %v1539 = vadd.f32 %v1531, %v877
      %v1540 = vadd.f32 %v1532, %v877
      %v1541 = vadd.f32 %v1533, %v877
      %v1542 = vadd.f32 %v1534, %v877
      %v1543 = vadd.f32 %v1535, %v877
      %v1544 = vadd.f32 %v1536, %v877
      %vm1545 = vcmp.ge.f32.partialorder %v1537, 0.0
      %vm1546 = vcmp.ge.f32.partialorder %v1538, 0.0
      %vm1547 = vcmp.ge.f32.partialorder %v1539, 0.0
      %vm1548 = vcmp.ge.f32.partialorder %v1540, 0.0
      %vm1549 = vcmp.ge.f32.partialorder %v1541, 0.0
      %vm1550 = vcmp.ge.f32.partialorder %v1542, 0.0
      %vm1551 = vcmp.ge.f32.partialorder %v1543, 0.0
      %vm1552 = vcmp.ge.f32.partialorder %v1544, 0.0
      %v1553 = vmul.f32 %v1537, 0.2
      %v1554 = vmul.f32 %v1538, 0.2
      %v1555 = vmul.f32 %v1539, 0.2
      %v1556 = vmul.f32 %v1540, 0.2
      %v1557 = vmul.f32 %v1541, 0.2
      %v1558 = vmul.f32 %v1542, 0.2
      %v1559 = vmul.f32 %v1543, 0.2
      %v1560 = vmul.f32 %v1544, 0.2
      %v1561 = vsel %vm1545, %v1537, %v1553
      %v1562 = vsel %vm1546, %v1538, %v1554
      %v1563 = vsel %vm1547, %v1539, %v1555
      %v1564 = vsel %vm1548, %v1540, %v1556
      %v1565 = vsel %vm1549, %v1541, %v1557
      %v1566 = vsel %vm1550, %v1542, %v1558
      %v1567 = vsel %vm1551, %v1543, %v1559
      %v1568 = vsel %vm1552, %v1544, %v1560
      %v1569 = vmul.f32 %v1561, 1.4142135
      %v1570 = vmul.f32 %v1562, 1.4142135
      %v1571 = vmul.f32 %v1563, 1.4142135
      %v1572 = vmul.f32 %v1564, 1.4142135
      %v1573 = vmul.f32 %v1565, 1.4142135
      %v1574 = vmul.f32 %v1566, 1.4142135
      %v1575 = vmul.f32 %v1567, 1.4142135
      %v1576 = vmul.f32 %v1568, 1.4142135
      %1585 = vrot.lane.b32.xlu0 %v1569, 8
      %v1586 = vpop.permute.xlu0 %1585
      %1587 = vrot.lane.b32.xlu0 %v1570, 8
      %v1588 = vpop.permute.xlu0 %1587
      %1589 = vrot.lane.b32.xlu0 %v1571, 8
      %v1590 = vpop.permute.xlu0 %1589
      %1591 = vrot.lane.b32.xlu0 %v1572, 8
      %v1592 = vpop.permute.xlu0 %1591
      %1593 = vrot.lane.b32.xlu0 %v1573, 8
      %v1594 = vpop.permute.xlu0 %1593
      %1595 = vrot.lane.b32.xlu0 %v1574, 8
      %v1596 = vpop.permute.xlu0 %1595
      %1597 = vrot.lane.b32.xlu0 %v1575, 8
      %v1598 = vpop.permute.xlu0 %1597
      %1599 = vrot.lane.b32.xlu0 %v1576, 8
      %v1600 = vpop.permute.xlu0 %1599
      %vm1609 = vcmask 130112
      %1610 = vst.msk [vmem:[%s364] sm:$0xff] %vm1609, %v1586
      %1611 = vst.msk [vmem:[%s364 + $0x8] sm:$0xff] %vm1609, %v1588
      %1612 = vst.msk [vmem:[%s364 + $0x10] sm:$0xff] %vm1609, %v1590
      %1613 = vst.msk [vmem:[%s364 + $0x18] sm:$0xff] %vm1609, %v1592
      %1614 = vst.msk [vmem:[%s364 + $0x20] sm:$0xff] %vm1609, %v1594
      %1615 = vst.msk [vmem:[%s364 + $0x28] sm:$0xff] %vm1609, %v1596
      %1616 = vst.msk [vmem:[%s364 + $0x30] sm:$0xff] %vm1609, %v1598
      %1617 = vst.msk [vmem:[%s364 + $0x38] sm:$0xff] %vm1609, %v1600
      %v1618 = vsel %vm540, %v1569, 0
      %v1620 = vsel %vm540, %v1570, 0
      %v1622 = vsel %vm540, %v1571, 0
      %v1624 = vsel %vm540, %v1572, 0
      %v1626 = vsel %vm540, %v1573, 0
      %v1628 = vsel %vm540, %v1574, 0
      %v1630 = vsel %vm540, %v1575, 0
      %v1632 = vsel %vm540, %v1576, 0
      %1634 = vmatpush.msra.mxu0 0.0
      %1635 = vmatpush.msra.mxu0 0.0
      %1636 = vmatpush.msra.mxu0 0.0
      %1637 = vmatpush.msra.mxu0 0.0
      %1638 = vmatpush.msra.mxu0 0.0
      %1639 = vmatpush.msra.mxu0 0.0
      %1640 = vmatpush.msra.mxu0 0.0
      %1641 = vmatpush.msra.mxu0 0.0
      %1642 = vmatpush.msra.mxu0 0.0
      %1643 = vmatpush.msra.mxu0 0.0
      %1644 = vmatpush.msra.mxu0 0.0
      %1645 = vmatpush.msra.mxu0 0.0
      %1646 = vmatpush.msra.mxu0 0.0
      %1647 = vmatpush.msra.mxu0 0.0
      %1648 = vmatpush.msra.mxu0 0.0
      %1649 = vmatpush.msra.mxu0 %v413
      %1650 = vmatmul.f32.gmra.mxu0 %v1618
      %v1651 = vpop.f32.mrf.mxu0
      %v1652 = vadd.f32 %v928, %v1651
      %1653 = vmatmul.f32.gmra.mxu0 %v1620
      %v1654 = vpop.f32.mrf.mxu0
      %v1655 = vadd.f32 %v928, %v1654
      %1656 = vmatmul.f32.gmra.mxu0 %v1622
      %v1657 = vpop.f32.mrf.mxu0
      %v1658 = vadd.f32 %v928, %v1657
      %1659 = vmatmul.f32.gmra.mxu0 %v1624
      %v1660 = vpop.f32.mrf.mxu0
      %v1661 = vadd.f32 %v928, %v1660
      %1662 = vmatmul.f32.gmra.mxu0 %v1626
      %v1663 = vpop.f32.mrf.mxu0
      %v1664 = vadd.f32 %v928, %v1663
      %1665 = vmatmul.f32.gmra.mxu0 %v1628
      %v1666 = vpop.f32.mrf.mxu0
      %v1667 = vadd.f32 %v928, %v1666
      %1668 = vmatmul.f32.gmra.mxu0 %v1630
      %v1669 = vpop.f32.mrf.mxu0
      %v1670 = vadd.f32 %v928, %v1669
      %1671 = vmatmul.f32.gmra.mxu0 %v1632
      %v1672 = vpop.f32.mrf.mxu0
      %v1673 = vadd.f32 %v928, %v1672
      %1674 = vdwg.mxu0
      %v1675 = vld [vmem:[#allocation2 + $0x1] sm:$0xff]
      %v1676 = vld [vmem:[#allocation2 + $0x11] sm:$0xff]
      %v1677 = vld [vmem:[#allocation2 + $0x21] sm:$0xff]
      %v1678 = vld [vmem:[#allocation2 + $0x31] sm:$0xff]
      %v1679 = vld [vmem:[#allocation2 + $0x41] sm:$0xff]
      %v1680 = vld [vmem:[#allocation2 + $0x51] sm:$0xff]
      %v1681 = vld [vmem:[#allocation2 + $0x61] sm:$0xff]
      %v1682 = vld [vmem:[#allocation2 + $0x71] sm:$0xff]
      %v1683 = vmul.f32 %v1675, 0.1875
      %v1684 = vmul.f32 %v1676, 0.1875
      %v1685 = vmul.f32 %v1677, 0.1875
      %v1686 = vmul.f32 %v1678, 0.1875
      %v1687 = vmul.f32 %v1679, 0.1875
      %v1688 = vmul.f32 %v1680, 0.1875
      %v1689 = vmul.f32 %v1681, 0.1875
      %v1690 = vmul.f32 %v1682, 0.1875
      %v1691 = vld [vmem:[#allocation2 + $0x2] sm:$0xff]
      %v1692 = vld [vmem:[#allocation2 + $0x12] sm:$0xff]
      %v1693 = vld [vmem:[#allocation2 + $0x22] sm:$0xff]
      %v1694 = vld [vmem:[#allocation2 + $0x32] sm:$0xff]
      %v1695 = vld [vmem:[#allocation2 + $0x42] sm:$0xff]
      %v1696 = vld [vmem:[#allocation2 + $0x52] sm:$0xff]
      %v1697 = vld [vmem:[#allocation2 + $0x62] sm:$0xff]
      %v1698 = vld [vmem:[#allocation2 + $0x72] sm:$0xff]
      %v1699 = vmul.f32 %v1691, 0.0625
      %v1700 = vmul.f32 %v1692, 0.0625
      %v1701 = vmul.f32 %v1693, 0.0625
      %v1702 = vmul.f32 %v1694, 0.0625
      %v1703 = vmul.f32 %v1695, 0.0625
      %v1704 = vmul.f32 %v1696, 0.0625
      %v1705 = vmul.f32 %v1697, 0.0625
      %v1706 = vmul.f32 %v1698, 0.0625
      %v1707 = vadd.f32 %v1683, %v1699
      %v1708 = vadd.f32 %v1684, %v1700
      %v1709 = vadd.f32 %v1685, %v1701
      %v1710 = vadd.f32 %v1686, %v1702
      %v1711 = vadd.f32 %v1687, %v1703
      %v1712 = vadd.f32 %v1688, %v1704
      %v1713 = vadd.f32 %v1689, %v1705
      %v1714 = vadd.f32 %v1690, %v1706
      %v1715 = vld [vmem:[%s377 + $0x1] sm:$0xff]
      %v1716 = vld [vmem:[%s377 + $0x11] sm:$0xff]
      %v1717 = vld [vmem:[%s377 + $0x21] sm:$0xff]
      %v1718 = vld [vmem:[%s377 + $0x31] sm:$0xff]
      %v1719 = vld [vmem:[%s377 + $0x41] sm:$0xff]
      %v1720 = vld [vmem:[%s377 + $0x51] sm:$0xff]
      %v1721 = vld [vmem:[%s377 + $0x61] sm:$0xff]
      %v1722 = vld [vmem:[%s377 + $0x71] sm:$0xff]
      %v1723 = vmul.f32 %v1715, 0.5625
      %v1724 = vmul.f32 %v1716, 0.5625
      %v1725 = vmul.f32 %v1717, 0.5625
      %v1726 = vmul.f32 %v1718, 0.5625
      %v1727 = vmul.f32 %v1719, 0.5625
      %v1728 = vmul.f32 %v1720, 0.5625
      %v1729 = vmul.f32 %v1721, 0.5625
      %v1730 = vmul.f32 %v1722, 0.5625
      %v1731 = vadd.f32 %v1707, %v1723
      %v1732 = vadd.f32 %v1708, %v1724
      %v1733 = vadd.f32 %v1709, %v1725
      %v1734 = vadd.f32 %v1710, %v1726
      %v1735 = vadd.f32 %v1711, %v1727
      %v1736 = vadd.f32 %v1712, %v1728
      %v1737 = vadd.f32 %v1713, %v1729
      %v1738 = vadd.f32 %v1714, %v1730
      %v1739 = vld [vmem:[%s377 + $0x2] sm:$0xff]
      %v1740 = vld [vmem:[%s377 + $0x12] sm:$0xff]
      %v1741 = vld [vmem:[%s377 + $0x22] sm:$0xff]
      %v1742 = vld [vmem:[%s377 + $0x32] sm:$0xff]
      %v1743 = vld [vmem:[%s377 + $0x42] sm:$0xff]
      %v1744 = vld [vmem:[%s377 + $0x52] sm:$0xff]
      %v1745 = vld [vmem:[%s377 + $0x62] sm:$0xff]
      %v1746 = vld [vmem:[%s377 + $0x72] sm:$0xff]
      %v1747 = vmul.f32 %v1739, 0.1875
      %v1748 = vmul.f32 %v1740, 0.1875
      %v1749 = vmul.f32 %v1741, 0.1875
      %v1750 = vmul.f32 %v1742, 0.1875
      %v1751 = vmul.f32 %v1743, 0.1875
      %v1752 = vmul.f32 %v1744, 0.1875
      %v1753 = vmul.f32 %v1745, 0.1875
      %v1754 = vmul.f32 %v1746, 0.1875
      %v1755 = vadd.f32 %v1731, %v1747
      %v1756 = vadd.f32 %v1732, %v1748
      %v1757 = vadd.f32 %v1733, %v1749
      %v1758 = vadd.f32 %v1734, %v1750
      %v1759 = vadd.f32 %v1735, %v1751
      %v1760 = vadd.f32 %v1736, %v1752
      %v1761 = vadd.f32 %v1737, %v1753
      %v1762 = vadd.f32 %v1738, %v1754
      %v1763 = vadd.f32 %v1652, %v1755
      %v1764 = vadd.f32 %v1655, %v1756
      %v1765 = vadd.f32 %v1658, %v1757
      %v1766 = vadd.f32 %v1661, %v1758
      %v1767 = vadd.f32 %v1664, %v1759
      %v1768 = vadd.f32 %v1667, %v1760
      %v1769 = vadd.f32 %v1670, %v1761
      %v1770 = vadd.f32 %v1673, %v1762
      %1779 = vrot.lane.b32.xlu0 %v1763, 3
      %v1780 = vpop.permute.xlu0 %1779
      %1781 = vrot.lane.b32.xlu0 %v1764, 3
      %v1782 = vpop.permute.xlu0 %1781
      %1783 = vrot.lane.b32.xlu0 %v1765, 3
      %v1784 = vpop.permute.xlu0 %1783
      %1785 = vrot.lane.b32.xlu0 %v1766, 3
      %v1786 = vpop.permute.xlu0 %1785
      %1787 = vrot.lane.b32.xlu0 %v1767, 3
      %v1788 = vpop.permute.xlu0 %1787
      %1789 = vrot.lane.b32.xlu0 %v1768, 3
      %v1790 = vpop.permute.xlu0 %1789
      %1791 = vrot.lane.b32.xlu0 %v1769, 3
      %v1792 = vpop.permute.xlu0 %1791
      %1793 = vrot.lane.b32.xlu0 %v1770, 3
      %v1794 = vpop.permute.xlu0 %1793
      %vm1803 = vcmask 48152
      %1804 = vst.msk [vmem:[%s369] sm:$0xff] %vm1803, %v1780
      %1805 = vst.msk [vmem:[%s369 + $0x8] sm:$0xff] %vm1803, %v1782
      %1806 = vst.msk [vmem:[%s369 + $0x10] sm:$0xff] %vm1803, %v1784
      %1807 = vst.msk [vmem:[%s369 + $0x18] sm:$0xff] %vm1803, %v1786
      %1808 = vst.msk [vmem:[%s369 + $0x20] sm:$0xff] %vm1803, %v1788
      %1809 = vst.msk [vmem:[%s369 + $0x28] sm:$0xff] %vm1803, %v1790
      %1810 = vst.msk [vmem:[%s369 + $0x30] sm:$0xff] %vm1803, %v1792
      %1811 = vst.msk [vmem:[%s369 + $0x38] sm:$0xff] %vm1803, %v1794
      %v1812 = vld [vmem:[%s598] sm:$0xff]
      %v1813 = vld [vmem:[%s598 + $0x10] sm:$0xff]
      %v1814 = vld [vmem:[%s598 + $0x20] sm:$0xff]
      %v1815 = vld [vmem:[%s598 + $0x30] sm:$0xff]
      %v1816 = vld [vmem:[%s598 + $0x40] sm:$0xff]
      %v1817 = vld [vmem:[%s598 + $0x50] sm:$0xff]
      %v1818 = vld [vmem:[%s598 + $0x60] sm:$0xff]
      %v1819 = vld [vmem:[%s598 + $0x70] sm:$0xff]
      %v1820 = vld [vmem:[%s2 + $0x90] sm:$0xff]
      %v1821 = vld [vmem:[%s2 + $0x98] sm:$0xff]
      %1830 = vrot.lane.b32.xlu0 %v1812, 104
      %v1831 = vpop.permute.xlu0 %1830
      %1832 = vrot.lane.b32.xlu0 %v1813, 104
      %v1833 = vpop.permute.xlu0 %1832
      %1834 = vrot.lane.b32.xlu0 %v1814, 104
      %v1835 = vpop.permute.xlu0 %1834
      %1836 = vrot.lane.b32.xlu0 %v1815, 104
      %v1837 = vpop.permute.xlu0 %1836
      %1838 = vrot.lane.b32.xlu0 %v1816, 104
      %v1839 = vpop.permute.xlu0 %1838
      %1840 = vrot.lane.b32.xlu0 %v1817, 104
      %v1841 = vpop.permute.xlu0 %1840
      %1842 = vrot.lane.b32.xlu0 %v1818, 104
      %v1843 = vpop.permute.xlu0 %1842
      %1844 = vrot.lane.b32.xlu0 %v1819, 104
      %v1845 = vpop.permute.xlu0 %1844
      %v1846 = vsel %vm540, %v1831, 0
      %v1848 = vsel %vm540, %v1833, 0
      %v1850 = vsel %vm540, %v1835, 0
      %v1852 = vsel %vm540, %v1837, 0
      %v1854 = vsel %vm540, %v1839, 0
      %v1856 = vsel %vm540, %v1841, 0
      %v1858 = vsel %vm540, %v1843, 0
      %v1860 = vsel %vm540, %v1845, 0
      %1862 = vmatpush.msra.mxu0 0.0
      %1863 = vmatpush.msra.mxu0 0.0
      %1864 = vmatpush.msra.mxu0 0.0
      %1865 = vmatpush.msra.mxu0 0.0
      %1866 = vmatpush.msra.mxu0 0.0
      %1867 = vmatpush.msra.mxu0 0.0
      %1868 = vmatpush.msra.mxu0 0.0
      %1869 = vmatpush.msra.mxu0 0.0
      %1870 = vmatpush.msra.mxu0 0.0
      %1871 = vmatpush.msra.mxu0 0.0
      %1872 = vmatpush.msra.mxu0 0.0
      %1873 = vmatpush.msra.mxu0 0.0
      %1874 = vmatpush.msra.mxu0 0.0
      %1875 = vmatpush.msra.mxu0 0.0
      %1876 = vmatpush.msra.mxu0 0.0
      %1877 = vmatpush.msra.mxu0 %v1821
      %1878 = vmatmul.f32.gmra.mxu0 %v1846
      %v1879 = vpop.f32.mrf.mxu0
      %v1880 = vadd.f32 0.0, %v1879
      %1881 = vmatmul.f32.gmra.mxu0 %v1848
      %v1882 = vpop.f32.mrf.mxu0
      %v1883 = vadd.f32 0.0, %v1882
      %1884 = vmatmul.f32.gmra.mxu0 %v1850
      %v1885 = vpop.f32.mrf.mxu0
      %v1886 = vadd.f32 0.0, %v1885
      %1887 = vmatmul.f32.gmra.mxu0 %v1852
      %v1888 = vpop.f32.mrf.mxu0
      %v1889 = vadd.f32 0.0, %v1888
      %1890 = vmatmul.f32.gmra.mxu0 %v1854
      %v1891 = vpop.f32.mrf.mxu0
      %v1892 = vadd.f32 0.0, %v1891
      %1893 = vmatmul.f32.gmra.mxu0 %v1856
      %v1894 = vpop.f32.mrf.mxu0
      %v1895 = vadd.f32 0.0, %v1894
      %1896 = vmatmul.f32.gmra.mxu0 %v1858
      %v1897 = vpop.f32.mrf.mxu0
      %v1898 = vadd.f32 0.0, %v1897
      %1899 = vmatmul.f32.gmra.mxu0 %v1860
      %v1900 = vpop.f32.mrf.mxu0
      %v1901 = vadd.f32 0.0, %v1900
      %1902 = vdwg.mxu0
      %1903 = vrot.lane.b32.xlu0 %v1812, 120
      %v1904 = vpop.permute.xlu0 %1903
      %1905 = vrot.lane.b32.xlu0 %v1813, 120
      %v1906 = vpop.permute.xlu0 %1905
      %1907 = vrot.lane.b32.xlu0 %v1814, 120
      %v1908 = vpop.permute.xlu0 %1907
      %1909 = vrot.lane.b32.xlu0 %v1815, 120
      %v1910 = vpop.permute.xlu0 %1909
      %1911 = vrot.lane.b32.xlu0 %v1816, 120
      %v1912 = vpop.permute.xlu0 %1911
      %1913 = vrot.lane.b32.xlu0 %v1817, 120
      %v1914 = vpop.permute.xlu0 %1913
      %1915 = vrot.lane.b32.xlu0 %v1818, 120
      %v1916 = vpop.permute.xlu0 %1915
      %1917 = vrot.lane.b32.xlu0 %v1819, 120
      %v1918 = vpop.permute.xlu0 %1917
      %v1919 = vsel %vm540, %v1904, 0
      %v1921 = vsel %vm540, %v1906, 0
      %v1923 = vsel %vm540, %v1908, 0
      %v1925 = vsel %vm540, %v1910, 0
      %v1927 = vsel %vm540, %v1912, 0
      %v1929 = vsel %vm540, %v1914, 0
      %v1931 = vsel %vm540, %v1916, 0
      %v1933 = vsel %vm540, %v1918, 0
      %1935 = vmatpush.msra.mxu0 0.0
      %1936 = vmatpush.msra.mxu0 0.0
      %1937 = vmatpush.msra.mxu0 0.0
      %1938 = vmatpush.msra.mxu0 0.0
      %1939 = vmatpush.msra.mxu0 0.0
      %1940 = vmatpush.msra.mxu0 0.0
      %1941 = vmatpush.msra.mxu0 0.0
      %1942 = vmatpush.msra.mxu0 0.0
      %1943 = vmatpush.msra.mxu0 0.0
      %1944 = vmatpush.msra.mxu0 0.0
      %1945 = vmatpush.msra.mxu0 0.0
      %1946 = vmatpush.msra.mxu0 0.0
      %1947 = vmatpush.msra.mxu0 0.0
      %1948 = vmatpush.msra.mxu0 0.0
      %1949 = vmatpush.msra.mxu0 0.0
      %1950 = vmatpush.msra.mxu0 %v1820
      %1951 = vmatmul.f32.gmra.mxu0 %v1919
      %v1952 = vpop.f32.mrf.mxu0
      %v1953 = vadd.f32 %v1880, %v1952
      %1954 = vmatmul.f32.gmra.mxu0 %v1921
      %v1955 = vpop.f32.mrf.mxu0
      %v1956 = vadd.f32 %v1883, %v1955
      %1957 = vmatmul.f32.gmra.mxu0 %v1923
      %v1958 = vpop.f32.mrf.mxu0
      %v1959 = vadd.f32 %v1886, %v1958
      %1960 = vmatmul.f32.gmra.mxu0 %v1925
      %v1961 = vpop.f32.mrf.mxu0
      %v1962 = vadd.f32 %v1889, %v1961
      %1963 = vmatmul.f32.gmra.mxu0 %v1927
      %v1964 = vpop.f32.mrf.mxu0
      %v1965 = vadd.f32 %v1892, %v1964
      %1966 = vmatmul.f32.gmra.mxu0 %v1929
      %v1967 = vpop.f32.mrf.mxu0
      %v1968 = vadd.f32 %v1895, %v1967
      %1969 = vmatmul.f32.gmra.mxu0 %v1931
      %v1970 = vpop.f32.mrf.mxu0
      %v1971 = vadd.f32 %v1898, %v1970
      %1972 = vmatmul.f32.gmra.mxu0 %v1933
      %v1973 = vpop.f32.mrf.mxu0
      %v1974 = vadd.f32 %v1901, %v1973
      %1975 = vdwg.mxu0
      %v1976 = vld [vmem:[%s598 + $0x1] sm:$0xff]
      %v1977 = vld [vmem:[%s598 + $0x11] sm:$0xff]
      %v1978 = vld [vmem:[%s598 + $0x21] sm:$0xff]
      %v1979 = vld [vmem:[%s598 + $0x31] sm:$0xff]
      %v1980 = vld [vmem:[%s598 + $0x41] sm:$0xff]
      %v1981 = vld [vmem:[%s598 + $0x51] sm:$0xff]
      %v1982 = vld [vmem:[%s598 + $0x61] sm:$0xff]
      %v1983 = vld [vmem:[%s598 + $0x71] sm:$0xff]
      %v1984 = vld [vmem:[%s2 + $0xa0] sm:$0xff]
      %v1985 = vld [vmem:[%s2 + $0xa8] sm:$0xff]
      %v1986 = vld [vmem:[%s2 + $0xb0] sm:$0xff]
      %v1987 = vld [vmem:[%s2 + $0xb8] sm:$0xff]
      %v1989 = vsel %vm791, %v1976, 0
      %v1992 = vsel %vm791, %v1977, 0
      %v1995 = vsel %vm791, %v1978, 0
      %v1998 = vsel %vm791, %v1979, 0
      %v2001 = vsel %vm791, %v1980, 0
      %v2004 = vsel %vm791, %v1981, 0
      %v2007 = vsel %vm791, %v1982, 0
      %v2010 = vsel %vm791, %v1983, 0
      %2012 = vmatpush.msra.mxu0 0.0
      %2013 = vmatpush.msra.mxu0 0.0
      %2014 = vmatpush.msra.mxu0 0.0
      %2015 = vmatpush.msra.mxu0 0.0
      %2016 = vmatpush.msra.mxu0 0.0
      %2017 = vmatpush.msra.mxu0 0.0
      %2018 = vmatpush.msra.mxu0 0.0
      %2019 = vmatpush.msra.mxu0 0.0
      %2020 = vmatpush.msra.mxu0 0.0
      %2021 = vmatpush.msra.mxu0 0.0
      %2022 = vmatpush.msra.mxu0 0.0
      %2023 = vmatpush.msra.mxu0 0.0
      %2024 = vmatpush.msra.mxu0 %v1987
      %2025 = vmatpush.msra.mxu0 %v1986
      %2026 = vmatpush.msra.mxu0 %v1985
      %2027 = vmatpush.msra.mxu0 %v1984
      %2028 = vmatmul.f32.gmra.mxu0 %v1989
      %v2029 = vpop.f32.mrf.mxu0
      %v2030 = vadd.f32 0.0, %v2029
      %2031 = vmatmul.f32.gmra.mxu0 %v1992
      %v2032 = vpop.f32.mrf.mxu0
      %v2033 = vadd.f32 0.0, %v2032
      %2034 = vmatmul.f32.gmra.mxu0 %v1995
      %v2035 = vpop.f32.mrf.mxu0
      %v2036 = vadd.f32 0.0, %v2035
      %2037 = vmatmul.f32.gmra.mxu0 %v1998
      %v2038 = vpop.f32.mrf.mxu0
      %v2039 = vadd.f32 0.0, %v2038
      %2040 = vmatmul.f32.gmra.mxu0 %v2001
      %v2041 = vpop.f32.mrf.mxu0
      %v2042 = vadd.f32 0.0, %v2041
      %2043 = vmatmul.f32.gmra.mxu0 %v2004
      %v2044 = vpop.f32.mrf.mxu0
      %v2045 = vadd.f32 0.0, %v2044
      %2046 = vmatmul.f32.gmra.mxu0 %v2007
      %v2047 = vpop.f32.mrf.mxu0
      %v2048 = vadd.f32 0.0, %v2047
      %2049 = vmatmul.f32.gmra.mxu0 %v2010
      %v2050 = vpop.f32.mrf.mxu0
      %v2051 = vadd.f32 0.0, %v2050
      %2052 = vdwg.mxu0
      %v2053 = vadd.f32 %v1953, %v2030
      %v2054 = vadd.f32 %v1956, %v2033
      %v2055 = vadd.f32 %v1959, %v2036
      %v2056 = vadd.f32 %v1962, %v2039
      %v2057 = vadd.f32 %v1965, %v2042
      %v2058 = vadd.f32 %v1968, %v2045
      %v2059 = vadd.f32 %v1971, %v2048
      %v2060 = vadd.f32 %v1974, %v2051
      %s2061 = scalar_lea.vmem %s350, 32
      %v2062 = vld [vmem:[%s2061] sm:$0xff]
      %v2063 = vld [vmem:[%s2061 + $0x10] sm:$0xff]
      %v2064 = vld [vmem:[%s2061 + $0x20] sm:$0xff]
      %v2065 = vld [vmem:[%s2061 + $0x30] sm:$0xff]
      %v2066 = vld [vmem:[%s2061 + $0x40] sm:$0xff]
      %v2067 = vld [vmem:[%s2061 + $0x50] sm:$0xff]
      %v2068 = vld [vmem:[%s2061 + $0x60] sm:$0xff]
      %v2069 = vld [vmem:[%s2061 + $0x70] sm:$0xff]
      %v2070 = vld [vmem:[%s2 + $0xc0] sm:$0xff]
      %2079 = vrot.lane.b32.xlu0 %v2062, 120
      %v2080 = vpop.permute.xlu0 %2079
      %2081 = vrot.lane.b32.xlu0 %v2063, 120
      %v2082 = vpop.permute.xlu0 %2081
      %2083 = vrot.lane.b32.xlu0 %v2064, 120
      %v2084 = vpop.permute.xlu0 %2083
      %2085 = vrot.lane.b32.xlu0 %v2065, 120
      %v2086 = vpop.permute.xlu0 %2085
      %2087 = vrot.lane.b32.xlu0 %v2066, 120
      %v2088 = vpop.permute.xlu0 %2087
      %2089 = vrot.lane.b32.xlu0 %v2067, 120
      %v2090 = vpop.permute.xlu0 %2089
      %2091 = vrot.lane.b32.xlu0 %v2068, 120
      %v2092 = vpop.permute.xlu0 %2091
      %2093 = vrot.lane.b32.xlu0 %v2069, 120
      %v2094 = vpop.permute.xlu0 %2093
      %v2095 = vsel %vm540, %v2080, 0
      %v2097 = vsel %vm540, %v2082, 0
      %v2099 = vsel %vm540, %v2084, 0
      %v2101 = vsel %vm540, %v2086, 0
      %v2103 = vsel %vm540, %v2088, 0
      %v2105 = vsel %vm540, %v2090, 0
      %v2107 = vsel %vm540, %v2092, 0
      %v2109 = vsel %vm540, %v2094, 0
      %2111 = vmatpush.msra.mxu0 0.0
      %2112 = vmatpush.msra.mxu0 0.0
      %2113 = vmatpush.msra.mxu0 0.0
      %2114 = vmatpush.msra.mxu0 0.0
      %2115 = vmatpush.msra.mxu0 0.0
      %2116 = vmatpush.msra.mxu0 0.0
      %2117 = vmatpush.msra.mxu0 0.0
      %2118 = vmatpush.msra.mxu0 0.0
      %2119 = vmatpush.msra.mxu0 0.0
      %2120 = vmatpush.msra.mxu0 0.0
      %2121 = vmatpush.msra.mxu0 0.0
      %2122 = vmatpush.msra.mxu0 0.0
      %2123 = vmatpush.msra.mxu0 0.0
      %2124 = vmatpush.msra.mxu0 0.0
      %2125 = vmatpush.msra.mxu0 0.0
      %2126 = vmatpush.msra.mxu0 %v2070
      %2127 = vmatmul.f32.gmra.mxu0 %v2095
      %v2128 = vpop.f32.mrf.mxu0
      %v2129 = vadd.f32 0.0, %v2128
      %2130 = vmatmul.f32.gmra.mxu0 %v2097
      %v2131 = vpop.f32.mrf.mxu0
      %v2132 = vadd.f32 0.0, %v2131
      %2133 = vmatmul.f32.gmra.mxu0 %v2099
      %v2134 = vpop.f32.mrf.mxu0
      %v2135 = vadd.f32 0.0, %v2134
      %2136 = vmatmul.f32.gmra.mxu0 %v2101
      %v2137 = vpop.f32.mrf.mxu0
      %v2138 = vadd.f32 0.0, %v2137
      %2139 = vmatmul.f32.gmra.mxu0 %v2103
      %v2140 = vpop.f32.mrf.mxu0
      %v2141 = vadd.f32 0.0, %v2140
      %2142 = vmatmul.f32.gmra.mxu0 %v2105
      %v2143 = vpop.f32.mrf.mxu0
      %v2144 = vadd.f32 0.0, %v2143
      %2145 = vmatmul.f32.gmra.mxu0 %v2107
      %v2146 = vpop.f32.mrf.mxu0
      %v2147 = vadd.f32 0.0, %v2146
      %2148 = vmatmul.f32.gmra.mxu0 %v2109
      %v2149 = vpop.f32.mrf.mxu0
      %v2150 = vadd.f32 0.0, %v2149
      %2151 = vdwg.mxu0
      %v2152 = vadd.f32 %v2053, %v2129
      %v2153 = vadd.f32 %v2054, %v2132
      %v2154 = vadd.f32 %v2055, %v2135
      %v2155 = vadd.f32 %v2056, %v2138
      %v2156 = vadd.f32 %v2057, %v2141
      %v2157 = vadd.f32 %v2058, %v2144
      %v2158 = vadd.f32 %v2059, %v2147
      %v2159 = vadd.f32 %v2060, %v2150
      %v2160 = vld [vmem:[%s2061 + $0x1] sm:$0xff]
      %v2161 = vld [vmem:[%s2061 + $0x11] sm:$0xff]
      %v2162 = vld [vmem:[%s2061 + $0x21] sm:$0xff]
      %v2163 = vld [vmem:[%s2061 + $0x31] sm:$0xff]
      %v2164 = vld [vmem:[%s2061 + $0x41] sm:$0xff]
      %v2165 = vld [vmem:[%s2061 + $0x51] sm:$0xff]
      %v2166 = vld [vmem:[%s2061 + $0x61] sm:$0xff]
      %v2167 = vld [vmem:[%s2061 + $0x71] sm:$0xff]
      %v2168 = vld [vmem:[%s2 + $0xc8] sm:$0xff]
      %v2169 = vld [vmem:[%s2 + $0xd0] sm:$0xff]
      %v2171 = vsel %vm458, %v2160, 0
      %v2174 = vsel %vm458, %v2161, 0
      %v2177 = vsel %vm458, %v2162, 0
      %v2180 = vsel %vm458, %v2163, 0
      %v2183 = vsel %vm458, %v2164, 0
      %v2186 = vsel %vm458, %v2165, 0
      %v2189 = vsel %vm458, %v2166, 0
      %v2192 = vsel %vm458, %v2167, 0
      %2194 = vmatpush.msra.mxu0 0.0
      %2195 = vmatpush.msra.mxu0 0.0
      %2196 = vmatpush.msra.mxu0 0.0
      %2197 = vmatpush.msra.mxu0 0.0
      %2198 = vmatpush.msra.mxu0 0.0
      %2199 = vmatpush.msra.mxu0 0.0
      %2200 = vmatpush.msra.mxu0 0.0
      %2201 = vmatpush.msra.mxu0 0.0
      %2202 = vmatpush.msra.mxu0 0.0
      %2203 = vmatpush.msra.mxu0 0.0
      %2204 = vmatpush.msra.mxu0 0.0
      %2205 = vmatpush.msra.mxu0 0.0
      %2206 = vmatpush.msra.mxu0 0.0
      %2207 = vmatpush.msra.mxu0 0.0
      %2208 = vmatpush.msra.mxu0 %v2169
      %2209 = vmatpush.msra.mxu0 %v2168
      %2210 = vmatmul.f32.gmra.mxu0 %v2171
      %v2211 = vpop.f32.mrf.mxu0
      %v2212 = vadd.f32 0.0, %v2211
      %2213 = vmatmul.f32.gmra.mxu0 %v2174
      %v2214 = vpop.f32.mrf.mxu0
      %v2215 = vadd.f32 0.0, %v2214
      %2216 = vmatmul.f32.gmra.mxu0 %v2177
      %v2217 = vpop.f32.mrf.mxu0
      %v2218 = vadd.f32 0.0, %v2217
      %2219 = vmatmul.f32.gmra.mxu0 %v2180
      %v2220 = vpop.f32.mrf.mxu0
      %v2221 = vadd.f32 0.0, %v2220
      %2222 = vmatmul.f32.gmra.mxu0 %v2183
      %v2223 = vpop.f32.mrf.mxu0
      %v2224 = vadd.f32 0.0, %v2223
      %2225 = vmatmul.f32.gmra.mxu0 %v2186
      %v2226 = vpop.f32.mrf.mxu0
      %v2227 = vadd.f32 0.0, %v2226
      %2228 = vmatmul.f32.gmra.mxu0 %v2189
      %v2229 = vpop.f32.mrf.mxu0
      %v2230 = vadd.f32 0.0, %v2229
      %2231 = vmatmul.f32.gmra.mxu0 %v2192
      %v2232 = vpop.f32.mrf.mxu0
      %v2233 = vadd.f32 0.0, %v2232
      %2234 = vdwg.mxu0
      %v2235 = vadd.f32 %v2152, %v2212
      %v2236 = vadd.f32 %v2153, %v2215
      %v2237 = vadd.f32 %v2154, %v2218
      %v2238 = vadd.f32 %v2155, %v2221
      %v2239 = vadd.f32 %v2156, %v2224
      %v2240 = vadd.f32 %v2157, %v2227
      %v2241 = vadd.f32 %v2158, %v2230
      %v2242 = vadd.f32 %v2159, %v2233
      %v2243 = vmul.f32 %v2235, %v866
      %v2244 = vmul.f32 %v2236, %v866
      %v2245 = vmul.f32 %v2237, %v866
      %v2246 = vmul.f32 %v2238, %v866
      %v2247 = vmul.f32 %v2239, %v866
      %v2248 = vmul.f32 %v2240, %v866
      %v2249 = vmul.f32 %v2241, %v866
      %v2250 = vmul.f32 %v2242, %v866
      %v2251 = vadd.f32 %v2243, %v877
      %v2252 = vadd.f32 %v2244, %v877
      %v2253 = vadd.f32 %v2245, %v877
      %v2254 = vadd.f32 %v2246, %v877
      %v2255 = vadd.f32 %v2247, %v877
      %v2256 = vadd.f32 %v2248, %v877
      %v2257 = vadd.f32 %v2249, %v877
      %v2258 = vadd.f32 %v2250, %v877
      %vm2259 = vcmp.ge.f32.partialorder %v2251, 0.0
      %vm2260 = vcmp.ge.f32.partialorder %v2252, 0.0
      %vm2261 = vcmp.ge.f32.partialorder %v2253, 0.0
      %vm2262 = vcmp.ge.f32.partialorder %v2254, 0.0
      %vm2263 = vcmp.ge.f32.partialorder %v2255, 0.0
      %vm2264 = vcmp.ge.f32.partialorder %v2256, 0.0
      %vm2265 = vcmp.ge.f32.partialorder %v2257, 0.0
      %vm2266 = vcmp.ge.f32.partialorder %v2258, 0.0
      %v2267 = vmul.f32 %v2251, 0.2
      %v2268 = vmul.f32 %v2252, 0.2
      %v2269 = vmul.f32 %v2253, 0.2
      %v2270 = vmul.f32 %v2254, 0.2
      %v2271 = vmul.f32 %v2255, 0.2
      %v2272 = vmul.f32 %v2256, 0.2
      %v2273 = vmul.f32 %v2257, 0.2
      %v2274 = vmul.f32 %v2258, 0.2
      %v2275 = vsel %vm2259, %v2251, %v2267
      %v2276 = vsel %vm2260, %v2252, %v2268
      %v2277 = vsel %vm2261, %v2253, %v2269
      %v2278 = vsel %vm2262, %v2254, %v2270
      %v2279 = vsel %vm2263, %v2255, %v2271
      %v2280 = vsel %vm2264, %v2256, %v2272
      %v2281 = vsel %vm2265, %v2257, %v2273
      %v2282 = vsel %vm2266, %v2258, %v2274
      %v2283 = vmul.f32 %v2275, 1.4142135
      %v2284 = vmul.f32 %v2276, 1.4142135
      %v2285 = vmul.f32 %v2277, 1.4142135
      %v2286 = vmul.f32 %v2278, 1.4142135
      %v2287 = vmul.f32 %v2279, 1.4142135
      %v2288 = vmul.f32 %v2280, 1.4142135
      %v2289 = vmul.f32 %v2281, 1.4142135
      %v2290 = vmul.f32 %v2282, 1.4142135
      %2299 = vrot.lane.b32.xlu0 %v2283, 16
      %v2300 = vpop.permute.xlu0 %2299
      %2301 = vrot.lane.b32.xlu0 %v2284, 16
      %v2302 = vpop.permute.xlu0 %2301
      %2303 = vrot.lane.b32.xlu0 %v2285, 16
      %v2304 = vpop.permute.xlu0 %2303
      %2305 = vrot.lane.b32.xlu0 %v2286, 16
      %v2306 = vpop.permute.xlu0 %2305
      %2307 = vrot.lane.b32.xlu0 %v2287, 16
      %v2308 = vpop.permute.xlu0 %2307
      %2309 = vrot.lane.b32.xlu0 %v2288, 16
      %v2310 = vpop.permute.xlu0 %2309
      %2311 = vrot.lane.b32.xlu0 %v2289, 16
      %v2312 = vpop.permute.xlu0 %2311
      %2313 = vrot.lane.b32.xlu0 %v2290, 16
      %v2314 = vpop.permute.xlu0 %2313
      %vm2323 = vcmask 195712
      %2324 = vst.msk [vmem:[%s364] sm:$0xff] %vm2323, %v2300
      %2325 = vst.msk [vmem:[%s364 + $0x8] sm:$0xff] %vm2323, %v2302
      %2326 = vst.msk [vmem:[%s364 + $0x10] sm:$0xff] %vm2323, %v2304
      %2327 = vst.msk [vmem:[%s364 + $0x18] sm:$0xff] %vm2323, %v2306
      %2328 = vst.msk [vmem:[%s364 + $0x20] sm:$0xff] %vm2323, %v2308
      %2329 = vst.msk [vmem:[%s364 + $0x28] sm:$0xff] %vm2323, %v2310
      %2330 = vst.msk [vmem:[%s364 + $0x30] sm:$0xff] %vm2323, %v2312
      %2331 = vst.msk [vmem:[%s364 + $0x38] sm:$0xff] %vm2323, %v2314
      %v2332 = vsel %vm540, %v2283, 0
      %v2334 = vsel %vm540, %v2284, 0
      %v2336 = vsel %vm540, %v2285, 0
      %v2338 = vsel %vm540, %v2286, 0
      %v2340 = vsel %vm540, %v2287, 0
      %v2342 = vsel %vm540, %v2288, 0
      %v2344 = vsel %vm540, %v2289, 0
      %v2346 = vsel %vm540, %v2290, 0
      %2348 = vmatpush.msra.mxu0 0.0
      %2349 = vmatpush.msra.mxu0 0.0
      %2350 = vmatpush.msra.mxu0 0.0
      %2351 = vmatpush.msra.mxu0 0.0
      %2352 = vmatpush.msra.mxu0 0.0
      %2353 = vmatpush.msra.mxu0 0.0
      %2354 = vmatpush.msra.mxu0 0.0
      %2355 = vmatpush.msra.mxu0 0.0
      %2356 = vmatpush.msra.mxu0 0.0
      %2357 = vmatpush.msra.mxu0 0.0
      %2358 = vmatpush.msra.mxu0 0.0
      %2359 = vmatpush.msra.mxu0 0.0
      %2360 = vmatpush.msra.mxu0 0.0
      %2361 = vmatpush.msra.mxu0 0.0
      %2362 = vmatpush.msra.mxu0 0.0
      %2363 = vmatpush.msra.mxu0 %v413
      %2364 = vmatmul.f32.gmra.mxu0 %v2332
      %v2365 = vpop.f32.mrf.mxu0
      %v2366 = vadd.f32 %v928, %v2365
      %2367 = vmatmul.f32.gmra.mxu0 %v2334
      %v2368 = vpop.f32.mrf.mxu0
      %v2369 = vadd.f32 %v928, %v2368
      %2370 = vmatmul.f32.gmra.mxu0 %v2336
      %v2371 = vpop.f32.mrf.mxu0
      %v2372 = vadd.f32 %v928, %v2371
      %2373 = vmatmul.f32.gmra.mxu0 %v2338
      %v2374 = vpop.f32.mrf.mxu0
      %v2375 = vadd.f32 %v928, %v2374
      %2376 = vmatmul.f32.gmra.mxu0 %v2340
      %v2377 = vpop.f32.mrf.mxu0
      %v2378 = vadd.f32 %v928, %v2377
      %2379 = vmatmul.f32.gmra.mxu0 %v2342
      %v2380 = vpop.f32.mrf.mxu0
      %v2381 = vadd.f32 %v928, %v2380
      %2382 = vmatmul.f32.gmra.mxu0 %v2344
      %v2383 = vpop.f32.mrf.mxu0
      %v2384 = vadd.f32 %v928, %v2383
      %2385 = vmatmul.f32.gmra.mxu0 %v2346
      %v2386 = vpop.f32.mrf.mxu0
      %v2387 = vadd.f32 %v928, %v2386
      %2388 = vdwg.mxu0
      %v2389 = vld [vmem:[%s377] sm:$0xff]
      %v2390 = vld [vmem:[%s377 + $0x10] sm:$0xff]
      %v2391 = vld [vmem:[%s377 + $0x20] sm:$0xff]
      %v2392 = vld [vmem:[%s377 + $0x30] sm:$0xff]
      %v2393 = vld [vmem:[%s377 + $0x40] sm:$0xff]
      %v2394 = vld [vmem:[%s377 + $0x50] sm:$0xff]
      %v2395 = vld [vmem:[%s377 + $0x60] sm:$0xff]
      %v2396 = vld [vmem:[%s377 + $0x70] sm:$0xff]
      %v2397 = vmul.f32 %v2389, 0.1875
      %v2398 = vmul.f32 %v2390, 0.1875
      %v2399 = vmul.f32 %v2391, 0.1875
      %v2400 = vmul.f32 %v2392, 0.1875
      %v2401 = vmul.f32 %v2393, 0.1875
      %v2402 = vmul.f32 %v2394, 0.1875
      %v2403 = vmul.f32 %v2395, 0.1875
      %v2404 = vmul.f32 %v2396, 0.1875
      %v2405 = vld [vmem:[%s377 + $0x1] sm:$0xff]
      %v2406 = vld [vmem:[%s377 + $0x11] sm:$0xff]
      %v2407 = vld [vmem:[%s377 + $0x21] sm:$0xff]
      %v2408 = vld [vmem:[%s377 + $0x31] sm:$0xff]
      %v2409 = vld [vmem:[%s377 + $0x41] sm:$0xff]
      %v2410 = vld [vmem:[%s377 + $0x51] sm:$0xff]
      %v2411 = vld [vmem:[%s377 + $0x61] sm:$0xff]
      %v2412 = vld [vmem:[%s377 + $0x71] sm:$0xff]
      %v2413 = vmul.f32 %v2405, 0.5625
      %v2414 = vmul.f32 %v2406, 0.5625
      %v2415 = vmul.f32 %v2407, 0.5625
      %v2416 = vmul.f32 %v2408, 0.5625
      %v2417 = vmul.f32 %v2409, 0.5625
      %v2418 = vmul.f32 %v2410, 0.5625
      %v2419 = vmul.f32 %v2411, 0.5625
      %v2420 = vmul.f32 %v2412, 0.5625
      %v2421 = vadd.f32 %v2397, %v2413
      %v2422 = vadd.f32 %v2398, %v2414
      %v2423 = vadd.f32 %v2399, %v2415
      %v2424 = vadd.f32 %v2400, %v2416
      %v2425 = vadd.f32 %v2401, %v2417
      %v2426 = vadd.f32 %v2402, %v2418
      %v2427 = vadd.f32 %v2403, %v2419
      %v2428 = vadd.f32 %v2404, %v2420
      %s2429 = scalar_lea.vmem [#allocation2], 32
      %v2430 = vld [vmem:[%s2429] sm:$0xff]
      %v2431 = vld [vmem:[%s2429 + $0x10] sm:$0xff]
      %v2432 = vld [vmem:[%s2429 + $0x20] sm:$0xff]
      %v2433 = vld [vmem:[%s2429 + $0x30] sm:$0xff]
      %v2434 = vld [vmem:[%s2429 + $0x40] sm:$0xff]
      %v2435 = vld [vmem:[%s2429 + $0x50] sm:$0xff]
      %v2436 = vld [vmem:[%s2429 + $0x60] sm:$0xff]
      %v2437 = vld [vmem:[%s2429 + $0x70] sm:$0xff]
      %v2438 = vmul.f32 %v2430, 0.0625
      %v2439 = vmul.f32 %v2431, 0.0625
      %v2440 = vmul.f32 %v2432, 0.0625
      %v2441 = vmul.f32 %v2433, 0.0625
      %v2442 = vmul.f32 %v2434, 0.0625
      %v2443 = vmul.f32 %v2435, 0.0625
      %v2444 = vmul.f32 %v2436, 0.0625
      %v2445 = vmul.f32 %v2437, 0.0625
      %v2446 = vadd.f32 %v2421, %v2438
      %v2447 = vadd.f32 %v2422, %v2439
      %v2448 = vadd.f32 %v2423, %v2440
      %v2449 = vadd.f32 %v2424, %v2441
      %v2450 = vadd.f32 %v2425, %v2442
      %v2451 = vadd.f32 %v2426, %v2443
      %v2452 = vadd.f32 %v2427, %v2444
      %v2453 = vadd.f32 %v2428, %v2445
      %v2454 = vld [vmem:[%s2429 + $0x1] sm:$0xff]
      %v2455 = vld [vmem:[%s2429 + $0x11] sm:$0xff]
      %v2456 = vld [vmem:[%s2429 + $0x21] sm:$0xff]
      %v2457 = vld [vmem:[%s2429 + $0x31] sm:$0xff]
      %v2458 = vld [vmem:[%s2429 + $0x41] sm:$0xff]
      %v2459 = vld [vmem:[%s2429 + $0x51] sm:$0xff]
      %v2460 = vld [vmem:[%s2429 + $0x61] sm:$0xff]
      %v2461 = vld [vmem:[%s2429 + $0x71] sm:$0xff]
      %v2462 = vmul.f32 %v2454, 0.1875
      %v2463 = vmul.f32 %v2455, 0.1875
      %v2464 = vmul.f32 %v2456, 0.1875
      %v2465 = vmul.f32 %v2457, 0.1875
      %v2466 = vmul.f32 %v2458, 0.1875
      %v2467 = vmul.f32 %v2459, 0.1875
      %v2468 = vmul.f32 %v2460, 0.1875
      %v2469 = vmul.f32 %v2461, 0.1875
      %v2470 = vadd.f32 %v2446, %v2462
      %v2471 = vadd.f32 %v2447, %v2463
      %v2472 = vadd.f32 %v2448, %v2464
      %v2473 = vadd.f32 %v2449, %v2465
      %v2474 = vadd.f32 %v2450, %v2466
      %v2475 = vadd.f32 %v2451, %v2467
      %v2476 = vadd.f32 %v2452, %v2468
      %v2477 = vadd.f32 %v2453, %v2469
      %v2478 = vadd.f32 %v2366, %v2470
      %v2479 = vadd.f32 %v2369, %v2471
      %v2480 = vadd.f32 %v2372, %v2472
      %v2481 = vadd.f32 %v2375, %v2473
      %v2482 = vadd.f32 %v2378, %v2474
      %v2483 = vadd.f32 %v2381, %v2475
      %v2484 = vadd.f32 %v2384, %v2476
      %v2485 = vadd.f32 %v2387, %v2477
      %2494 = vrot.lane.b32.xlu0 %v2478, 6
      %v2495 = vpop.permute.xlu0 %2494
      %2496 = vrot.lane.b32.xlu0 %v2479, 6
      %v2497 = vpop.permute.xlu0 %2496
      %2498 = vrot.lane.b32.xlu0 %v2480, 6
      %v2499 = vpop.permute.xlu0 %2498
      %2500 = vrot.lane.b32.xlu0 %v2481, 6
      %v2501 = vpop.permute.xlu0 %2500
      %2502 = vrot.lane.b32.xlu0 %v2482, 6
      %v2503 = vpop.permute.xlu0 %2502
      %2504 = vrot.lane.b32.xlu0 %v2483, 6
      %v2505 = vpop.permute.xlu0 %2504
      %2506 = vrot.lane.b32.xlu0 %v2484, 6
      %v2507 = vpop.permute.xlu0 %2506
      %2508 = vrot.lane.b32.xlu0 %v2485, 6
      %v2509 = vpop.permute.xlu0 %2508
      %vm2518 = vcmask 72752
      %2519 = vst.msk [vmem:[%s369] sm:$0xff] %vm2518, %v2495
      %2520 = vst.msk [vmem:[%s369 + $0x8] sm:$0xff] %vm2518, %v2497
      %2521 = vst.msk [vmem:[%s369 + $0x10] sm:$0xff] %vm2518, %v2499
      %2522 = vst.msk [vmem:[%s369 + $0x18] sm:$0xff] %vm2518, %v2501
      %2523 = vst.msk [vmem:[%s369 + $0x20] sm:$0xff] %vm2518, %v2503
      %2524 = vst.msk [vmem:[%s369 + $0x28] sm:$0xff] %vm2518, %v2505
      %2525 = vst.msk [vmem:[%s369 + $0x30] sm:$0xff] %vm2518, %v2507
      %2526 = vst.msk [vmem:[%s369 + $0x38] sm:$0xff] %vm2518, %v2509
      %v2527 = vld [vmem:[%s598 + $0x1] sm:$0xff]
      %v2528 = vld [vmem:[%s598 + $0x11] sm:$0xff]
      %v2529 = vld [vmem:[%s598 + $0x21] sm:$0xff]
      %v2530 = vld [vmem:[%s598 + $0x31] sm:$0xff]
      %v2531 = vld [vmem:[%s598 + $0x41] sm:$0xff]
      %v2532 = vld [vmem:[%s598 + $0x51] sm:$0xff]
      %v2533 = vld [vmem:[%s598 + $0x61] sm:$0xff]
      %v2534 = vld [vmem:[%s598 + $0x71] sm:$0xff]
      %v2535 = vld [vmem:[%s2 + $0xd8] sm:$0xff]
      %v2536 = vld [vmem:[%s2 + $0xe0] sm:$0xff]
      %v2537 = vld [vmem:[%s2 + $0xe8] sm:$0xff]
      %v2538 = vld [vmem:[%s2 + $0xf0] sm:$0xff]
      %v2539 = vld [vmem:[%s598 + $0x2] sm:$0xff]
      %v2540 = vld [vmem:[%s598 + $0x12] sm:$0xff]
      %v2541 = vld [vmem:[%s598 + $0x22] sm:$0xff]
      %v2542 = vld [vmem:[%s598 + $0x32] sm:$0xff]
      %v2543 = vld [vmem:[%s598 + $0x42] sm:$0xff]
      %v2544 = vld [vmem:[%s598 + $0x52] sm:$0xff]
      %v2545 = vld [vmem:[%s598 + $0x62] sm:$0xff]
      %v2546 = vld [vmem:[%s598 + $0x72] sm:$0xff]
      %v2547 = vld [vmem:[%s2 + $0xf8] sm:$0xff]
      %v2549 = vsel %vm540, %v2539, 0
      %v2552 = vsel %vm540, %v2540, 0
      %v2555 = vsel %vm540, %v2541, 0
      %v2558 = vsel %vm540, %v2542, 0
      %v2561 = vsel %vm540, %v2543, 0
      %v2564 = vsel %vm540, %v2544, 0
      %v2567 = vsel %vm540, %v2545, 0
      %v2570 = vsel %vm540, %v2546, 0
      %2572 = vmatpush.msra.mxu0 0.0
      %2573 = vmatpush.msra.mxu0 0.0
      %2574 = vmatpush.msra.mxu0 0.0
      %2575 = vmatpush.msra.mxu0 0.0
      %2576 = vmatpush.msra.mxu0 0.0
      %2577 = vmatpush.msra.mxu0 0.0
      %2578 = vmatpush.msra.mxu0 0.0
      %2579 = vmatpush.msra.mxu0 0.0
      %2580 = vmatpush.msra.mxu0 0.0
      %2581 = vmatpush.msra.mxu0 0.0
      %2582 = vmatpush.msra.mxu0 0.0
      %2583 = vmatpush.msra.mxu0 0.0
      %2584 = vmatpush.msra.mxu0 0.0
      %2585 = vmatpush.msra.mxu0 0.0
      %2586 = vmatpush.msra.mxu0 0.0
      %2587 = vmatpush.msra.mxu0 %v2547
      %2588 = vmatmul.f32.gmra.mxu0 %v2549
      %v2589 = vpop.f32.mrf.mxu0
      %v2590 = vadd.f32 0.0, %v2589
      %2591 = vmatmul.f32.gmra.mxu0 %v2552
      %v2592 = vpop.f32.mrf.mxu0
      %v2593 = vadd.f32 0.0, %v2592
      %2594 = vmatmul.f32.gmra.mxu0 %v2555
      %v2595 = vpop.f32.mrf.mxu0
      %v2596 = vadd.f32 0.0, %v2595
      %2597 = vmatmul.f32.gmra.mxu0 %v2558
      %v2598 = vpop.f32.mrf.mxu0
      %v2599 = vadd.f32 0.0, %v2598
      %2600 = vmatmul.f32.gmra.mxu0 %v2561
      %v2601 = vpop.f32.mrf.mxu0
      %v2602 = vadd.f32 0.0, %v2601
      %2603 = vmatmul.f32.gmra.mxu0 %v2564
      %v2604 = vpop.f32.mrf.mxu0
      %v2605 = vadd.f32 0.0, %v2604
      %2606 = vmatmul.f32.gmra.mxu0 %v2567
      %v2607 = vpop.f32.mrf.mxu0
      %v2608 = vadd.f32 0.0, %v2607
      %2609 = vmatmul.f32.gmra.mxu0 %v2570
      %v2610 = vpop.f32.mrf.mxu0
      %v2611 = vadd.f32 0.0, %v2610
      %2612 = vdwg.mxu0
      %v2614 = vsel %vm791, %v2527, 0
      %v2617 = vsel %vm791, %v2528, 0
      %v2620 = vsel %vm791, %v2529, 0
      %v2623 = vsel %vm791, %v2530, 0
      %v2626 = vsel %vm791, %v2531, 0
      %v2629 = vsel %vm791, %v2532, 0
      %v2632 = vsel %vm791, %v2533, 0
      %v2635 = vsel %vm791, %v2534, 0
      %2637 = vmatpush.msra.mxu0 0.0
      %2638 = vmatpush.msra.mxu0 0.0
      %2639 = vmatpush.msra.mxu0 0.0
      %2640 = vmatpush.msra.mxu0 0.0
      %2641 = vmatpush.msra.mxu0 0.0
      %2642 = vmatpush.msra.mxu0 0.0
      %2643 = vmatpush.msra.mxu0 0.0
      %2644 = vmatpush.msra.mxu0 0.0
      %2645 = vmatpush.msra.mxu0 0.0
      %2646 = vmatpush.msra.mxu0 0.0
      %2647 = vmatpush.msra.mxu0 0.0
      %2648 = vmatpush.msra.mxu0 0.0
      %2649 = vmatpush.msra.mxu0 %v2538
      %2650 = vmatpush.msra.mxu0 %v2537
      %2651 = vmatpush.msra.mxu0 %v2536
      %2652 = vmatpush.msra.mxu0 %v2535
      %2653 = vmatmul.f32.gmra.mxu0 %v2614
      %v2654 = vpop.f32.mrf.mxu0
      %v2655 = vadd.f32 %v2590, %v2654
      %2656 = vmatmul.f32.gmra.mxu0 %v2617
      %v2657 = vpop.f32.mrf.mxu0
      %v2658 = vadd.f32 %v2593, %v2657
      %2659 = vmatmul.f32.gmra.mxu0 %v2620
      %v2660 = vpop.f32.mrf.mxu0
      %v2661 = vadd.f32 %v2596, %v2660
      %2662 = vmatmul.f32.gmra.mxu0 %v2623
      %v2663 = vpop.f32.mrf.mxu0
      %v2664 = vadd.f32 %v2599, %v2663
      %2665 = vmatmul.f32.gmra.mxu0 %v2626
      %v2666 = vpop.f32.mrf.mxu0
      %v2667 = vadd.f32 %v2602, %v2666
      %2668 = vmatmul.f32.gmra.mxu0 %v2629
      %v2669 = vpop.f32.mrf.mxu0
      %v2670 = vadd.f32 %v2605, %v2669
      %2671 = vmatmul.f32.gmra.mxu0 %v2632
      %v2672 = vpop.f32.mrf.mxu0
      %v2673 = vadd.f32 %v2608, %v2672
      %2674 = vmatmul.f32.gmra.mxu0 %v2635
      %v2675 = vpop.f32.mrf.mxu0
      %v2676 = vadd.f32 %v2611, %v2675
      %2677 = vdwg.mxu0
      %v2678 = vld [vmem:[%s2 + $0x100] sm:$0xff]
      %2679 = vrot.lane.b32.xlu0 %v2539, 112
      %v2680 = vpop.permute.xlu0 %2679
      %2681 = vrot.lane.b32.xlu0 %v2540, 112
      %v2682 = vpop.permute.xlu0 %2681
      %2683 = vrot.lane.b32.xlu0 %v2541, 112
      %v2684 = vpop.permute.xlu0 %2683
      %2685 = vrot.lane.b32.xlu0 %v2542, 112
      %v2686 = vpop.permute.xlu0 %2685
      %2687 = vrot.lane.b32.xlu0 %v2543, 112
      %v2688 = vpop.permute.xlu0 %2687
      %2689 = vrot.lane.b32.xlu0 %v2544, 112
      %v2690 = vpop.permute.xlu0 %2689
      %2691 = vrot.lane.b32.xlu0 %v2545, 112
      %v2692 = vpop.permute.xlu0 %2691
      %2693 = vrot.lane.b32.xlu0 %v2546, 112
      %v2694 = vpop.permute.xlu0 %2693
      %v2695 = vsel %vm540, %v2680, 0
      %v2697 = vsel %vm540, %v2682, 0
      %v2699 = vsel %vm540, %v2684, 0
      %v2701 = vsel %vm540, %v2686, 0
      %v2703 = vsel %vm540, %v2688, 0
      %v2705 = vsel %vm540, %v2690, 0
      %v2707 = vsel %vm540, %v2692, 0
      %v2709 = vsel %vm540, %v2694, 0
      %2711 = vmatpush.msra.mxu0 0.0
      %2712 = vmatpush.msra.mxu0 0.0
      %2713 = vmatpush.msra.mxu0 0.0
      %2714 = vmatpush.msra.mxu0 0.0
      %2715 = vmatpush.msra.mxu0 0.0
      %2716 = vmatpush.msra.mxu0 0.0
      %2717 = vmatpush.msra.mxu0 0.0
      %2718 = vmatpush.msra.mxu0 0.0
      %2719 = vmatpush.msra.mxu0 0.0
      %2720 = vmatpush.msra.mxu0 0.0
      %2721 = vmatpush.msra.mxu0 0.0
      %2722 = vmatpush.msra.mxu0 0.0
      %2723 = vmatpush.msra.mxu0 0.0
      %2724 = vmatpush.msra.mxu0 0.0
      %2725 = vmatpush.msra.mxu0 0.0
      %2726 = vmatpush.msra.mxu0 %v2678
      %2727 = vmatmul.f32.gmra.mxu0 %v2695
      %v2728 = vpop.f32.mrf.mxu0
      %v2729 = vadd.f32 0.0, %v2728
      %2730 = vmatmul.f32.gmra.mxu0 %v2697
      %v2731 = vpop.f32.mrf.mxu0
      %v2732 = vadd.f32 0.0, %v2731
      %2733 = vmatmul.f32.gmra.mxu0 %v2699
      %v2734 = vpop.f32.mrf.mxu0
      %v2735 = vadd.f32 0.0, %v2734
      %2736 = vmatmul.f32.gmra.mxu0 %v2701
      %v2737 = vpop.f32.mrf.mxu0
      %v2738 = vadd.f32 0.0, %v2737
      %2739 = vmatmul.f32.gmra.mxu0 %v2703
      %v2740 = vpop.f32.mrf.mxu0
      %v2741 = vadd.f32 0.0, %v2740
      %2742 = vmatmul.f32.gmra.mxu0 %v2705
      %v2743 = vpop.f32.mrf.mxu0
      %v2744 = vadd.f32 0.0, %v2743
      %2745 = vmatmul.f32.gmra.mxu0 %v2707
      %v2746 = vpop.f32.mrf.mxu0
      %v2747 = vadd.f32 0.0, %v2746
      %2748 = vmatmul.f32.gmra.mxu0 %v2709
      %v2749 = vpop.f32.mrf.mxu0
      %v2750 = vadd.f32 0.0, %v2749
      %2751 = vdwg.mxu0
      %v2752 = vadd.f32 %v2655, %v2729
      %v2753 = vadd.f32 %v2658, %v2732
      %v2754 = vadd.f32 %v2661, %v2735
      %v2755 = vadd.f32 %v2664, %v2738
      %v2756 = vadd.f32 %v2667, %v2741
      %v2757 = vadd.f32 %v2670, %v2744
      %v2758 = vadd.f32 %v2673, %v2747
      %v2759 = vadd.f32 %v2676, %v2750
      %v2760 = vld [vmem:[%s2061 + $0x1] sm:$0xff]
      %v2761 = vld [vmem:[%s2061 + $0x11] sm:$0xff]
      %v2762 = vld [vmem:[%s2061 + $0x21] sm:$0xff]
      %v2763 = vld [vmem:[%s2061 + $0x31] sm:$0xff]
      %v2764 = vld [vmem:[%s2061 + $0x41] sm:$0xff]
      %v2765 = vld [vmem:[%s2061 + $0x51] sm:$0xff]
      %v2766 = vld [vmem:[%s2061 + $0x61] sm:$0xff]
      %v2767 = vld [vmem:[%s2061 + $0x71] sm:$0xff]
      %v2768 = vld [vmem:[%s2 + $0x108] sm:$0xff]
      %v2769 = vld [vmem:[%s2 + $0x110] sm:$0xff]
      %v2771 = vsel %vm458, %v2760, 0
      %v2774 = vsel %vm458, %v2761, 0
      %v2777 = vsel %vm458, %v2762, 0
      %v2780 = vsel %vm458, %v2763, 0
      %v2783 = vsel %vm458, %v2764, 0
      %v2786 = vsel %vm458, %v2765, 0
      %v2789 = vsel %vm458, %v2766, 0
      %v2792 = vsel %vm458, %v2767, 0
      %2794 = vmatpush.msra.mxu0 0.0
      %2795 = vmatpush.msra.mxu0 0.0
      %2796 = vmatpush.msra.mxu0 0.0
      %2797 = vmatpush.msra.mxu0 0.0
      %2798 = vmatpush.msra.mxu0 0.0
      %2799 = vmatpush.msra.mxu0 0.0
      %2800 = vmatpush.msra.mxu0 0.0
      %2801 = vmatpush.msra.mxu0 0.0
      %2802 = vmatpush.msra.mxu0 0.0
      %2803 = vmatpush.msra.mxu0 0.0
      %2804 = vmatpush.msra.mxu0 0.0
      %2805 = vmatpush.msra.mxu0 0.0
      %2806 = vmatpush.msra.mxu0 0.0
      %2807 = vmatpush.msra.mxu0 0.0
      %2808 = vmatpush.msra.mxu0 %v2769
      %2809 = vmatpush.msra.mxu0 %v2768
      %2810 = vmatmul.f32.gmra.mxu0 %v2771
      %v2811 = vpop.f32.mrf.mxu0
      %v2812 = vadd.f32 0.0, %v2811
      %2813 = vmatmul.f32.gmra.mxu0 %v2774
      %v2814 = vpop.f32.mrf.mxu0
      %v2815 = vadd.f32 0.0, %v2814
      %2816 = vmatmul.f32.gmra.mxu0 %v2777
      %v2817 = vpop.f32.mrf.mxu0
      %v2818 = vadd.f32 0.0, %v2817
      %2819 = vmatmul.f32.gmra.mxu0 %v2780
      %v2820 = vpop.f32.mrf.mxu0
      %v2821 = vadd.f32 0.0, %v2820
      %2822 = vmatmul.f32.gmra.mxu0 %v2783
      %v2823 = vpop.f32.mrf.mxu0
      %v2824 = vadd.f32 0.0, %v2823
      %2825 = vmatmul.f32.gmra.mxu0 %v2786
      %v2826 = vpop.f32.mrf.mxu0
      %v2827 = vadd.f32 0.0, %v2826
      %2828 = vmatmul.f32.gmra.mxu0 %v2789
      %v2829 = vpop.f32.mrf.mxu0
      %v2830 = vadd.f32 0.0, %v2829
      %2831 = vmatmul.f32.gmra.mxu0 %v2792
      %v2832 = vpop.f32.mrf.mxu0
      %v2833 = vadd.f32 0.0, %v2832
      %2834 = vdwg.mxu0
      %v2835 = vadd.f32 %v2752, %v2812
      %v2836 = vadd.f32 %v2753, %v2815
      %v2837 = vadd.f32 %v2754, %v2818
      %v2838 = vadd.f32 %v2755, %v2821
      %v2839 = vadd.f32 %v2756, %v2824
      %v2840 = vadd.f32 %v2757, %v2827
      %v2841 = vadd.f32 %v2758, %v2830
      %v2842 = vadd.f32 %v2759, %v2833
      %v2843 = vld [vmem:[%s2061 + $0x2] sm:$0xff]
      %v2844 = vld [vmem:[%s2061 + $0x12] sm:$0xff]
      %v2845 = vld [vmem:[%s2061 + $0x22] sm:$0xff]
      %v2846 = vld [vmem:[%s2061 + $0x32] sm:$0xff]
      %v2847 = vld [vmem:[%s2061 + $0x42] sm:$0xff]
      %v2848 = vld [vmem:[%s2061 + $0x52] sm:$0xff]
      %v2849 = vld [vmem:[%s2061 + $0x62] sm:$0xff]
      %v2850 = vld [vmem:[%s2061 + $0x72] sm:$0xff]
      %v2851 = vld [vmem:[%s2 + $0x118] sm:$0xff]
      %v2853 = vsel %vm540, %v2843, 0
      %v2856 = vsel %vm540, %v2844, 0
      %v2859 = vsel %vm540, %v2845, 0
      %v2862 = vsel %vm540, %v2846, 0
      %v2865 = vsel %vm540, %v2847, 0
      %v2868 = vsel %vm540, %v2848, 0
      %v2871 = vsel %vm540, %v2849, 0
      %v2874 = vsel %vm540, %v2850, 0
      %2876 = vmatpush.msra.mxu0 0.0
      %2877 = vmatpush.msra.mxu0 0.0
      %2878 = vmatpush.msra.mxu0 0.0
      %2879 = vmatpush.msra.mxu0 0.0
      %2880 = vmatpush.msra.mxu0 0.0
      %2881 = vmatpush.msra.mxu0 0.0
      %2882 = vmatpush.msra.mxu0 0.0
      %2883 = vmatpush.msra.mxu0 0.0
      %2884 = vmatpush.msra.mxu0 0.0
      %2885 = vmatpush.msra.mxu0 0.0
      %2886 = vmatpush.msra.mxu0 0.0
      %2887 = vmatpush.msra.mxu0 0.0
      %2888 = vmatpush.msra.mxu0 0.0
      %2889 = vmatpush.msra.mxu0 0.0
      %2890 = vmatpush.msra.mxu0 0.0
      %2891 = vmatpush.msra.mxu0 %v2851
      %2892 = vmatmul.f32.gmra.mxu0 %v2853
      %v2893 = vpop.f32.mrf.mxu0
      %v2894 = vadd.f32 0.0, %v2893
      %2895 = vmatmul.f32.gmra.mxu0 %v2856
      %v2896 = vpop.f32.mrf.mxu0
      %v2897 = vadd.f32 0.0, %v2896
      %2898 = vmatmul.f32.gmra.mxu0 %v2859
      %v2899 = vpop.f32.mrf.mxu0
      %v2900 = vadd.f32 0.0, %v2899
      %2901 = vmatmul.f32.gmra.mxu0 %v2862
      %v2902 = vpop.f32.mrf.mxu0
      %v2903 = vadd.f32 0.0, %v2902
      %2904 = vmatmul.f32.gmra.mxu0 %v2865
      %v2905 = vpop.f32.mrf.mxu0
      %v2906 = vadd.f32 0.0, %v2905
      %2907 = vmatmul.f32.gmra.mxu0 %v2868
      %v2908 = vpop.f32.mrf.mxu0
      %v2909 = vadd.f32 0.0, %v2908
      %2910 = vmatmul.f32.gmra.mxu0 %v2871
      %v2911 = vpop.f32.mrf.mxu0
      %v2912 = vadd.f32 0.0, %v2911
      %2913 = vmatmul.f32.gmra.mxu0 %v2874
      %v2914 = vpop.f32.mrf.mxu0
      %v2915 = vadd.f32 0.0, %v2914
      %2916 = vdwg.mxu0
      %v2917 = vadd.f32 %v2835, %v2894
      %v2918 = vadd.f32 %v2836, %v2897
      %v2919 = vadd.f32 %v2837, %v2900
      %v2920 = vadd.f32 %v2838, %v2903
      %v2921 = vadd.f32 %v2839, %v2906
      %v2922 = vadd.f32 %v2840, %v2909
      %v2923 = vadd.f32 %v2841, %v2912
      %v2924 = vadd.f32 %v2842, %v2915
      %v2925 = vmul.f32 %v2917, %v866
      %v2926 = vmul.f32 %v2918, %v866
      %v2927 = vmul.f32 %v2919, %v866
      %v2928 = vmul.f32 %v2920, %v866
      %v2929 = vmul.f32 %v2921, %v866
      %v2930 = vmul.f32 %v2922, %v866
      %v2931 = vmul.f32 %v2923, %v866
      %v2932 = vmul.f32 %v2924, %v866
      %v2933 = vadd.f32 %v2925, %v877
      %v2934 = vadd.f32 %v2926, %v877
      %v2935 = vadd.f32 %v2927, %v877
      %v2936 = vadd.f32 %v2928, %v877
      %v2937 = vadd.f32 %v2929, %v877
      %v2938 = vadd.f32 %v2930, %v877
      %v2939 = vadd.f32 %v2931, %v877
      %v2940 = vadd.f32 %v2932, %v877
      %vm2941 = vcmp.ge.f32.partialorder %v2933, 0.0
      %vm2942 = vcmp.ge.f32.partialorder %v2934, 0.0
      %vm2943 = vcmp.ge.f32.partialorder %v2935, 0.0
      %vm2944 = vcmp.ge.f32.partialorder %v2936, 0.0
      %vm2945 = vcmp.ge.f32.partialorder %v2937, 0.0
      %vm2946 = vcmp.ge.f32.partialorder %v2938, 0.0
      %vm2947 = vcmp.ge.f32.partialorder %v2939, 0.0
      %vm2948 = vcmp.ge.f32.partialorder %v2940, 0.0
      %v2949 = vmul.f32 %v2933, 0.2
      %v2950 = vmul.f32 %v2934, 0.2
      %v2951 = vmul.f32 %v2935, 0.2
      %v2952 = vmul.f32 %v2936, 0.2
      %v2953 = vmul.f32 %v2937, 0.2
      %v2954 = vmul.f32 %v2938, 0.2
      %v2955 = vmul.f32 %v2939, 0.2
      %v2956 = vmul.f32 %v2940, 0.2
      %v2957 = vsel %vm2941, %v2933, %v2949
      %v2958 = vsel %vm2942, %v2934, %v2950
      %v2959 = vsel %vm2943, %v2935, %v2951
      %v2960 = vsel %vm2944, %v2936, %v2952
      %v2961 = vsel %vm2945, %v2937, %v2953
      %v2962 = vsel %vm2946, %v2938, %v2954
      %v2963 = vsel %vm2947, %v2939, %v2955
      %v2964 = vsel %vm2948, %v2940, %v2956
      %v2965 = vmul.f32 %v2957, 1.4142135
      %v2966 = vmul.f32 %v2958, 1.4142135
      %v2967 = vmul.f32 %v2959, 1.4142135
      %v2968 = vmul.f32 %v2960, 1.4142135
      %v2969 = vmul.f32 %v2961, 1.4142135
      %v2970 = vmul.f32 %v2962, 1.4142135
      %v2971 = vmul.f32 %v2963, 1.4142135
      %v2972 = vmul.f32 %v2964, 1.4142135
      %2981 = vrot.lane.b32.xlu0 %v2965, 24
      %v2982 = vpop.permute.xlu0 %2981
      %2983 = vrot.lane.b32.xlu0 %v2966, 24
      %v2984 = vpop.permute.xlu0 %2983
      %2985 = vrot.lane.b32.xlu0 %v2967, 24
      %v2986 = vpop.permute.xlu0 %2985
      %2987 = vrot.lane.b32.xlu0 %v2968, 24
      %v2988 = vpop.permute.xlu0 %2987
      %2989 = vrot.lane.b32.xlu0 %v2969, 24
      %v2990 = vpop.permute.xlu0 %2989
      %2991 = vrot.lane.b32.xlu0 %v2970, 24
      %v2992 = vpop.permute.xlu0 %2991
      %2993 = vrot.lane.b32.xlu0 %v2971, 24
      %v2994 = vpop.permute.xlu0 %2993
      %2995 = vrot.lane.b32.xlu0 %v2972, 24
      %v2996 = vpop.permute.xlu0 %2995
      %vm3005 = vcmask 261312
      %3006 = vst.msk [vmem:[%s364] sm:$0xff] %vm3005, %v2982
      %3007 = vst.msk [vmem:[%s364 + $0x8] sm:$0xff] %vm3005, %v2984
      %3008 = vst.msk [vmem:[%s364 + $0x10] sm:$0xff] %vm3005, %v2986
      %3009 = vst.msk [vmem:[%s364 + $0x18] sm:$0xff] %vm3005, %v2988
      %3010 = vst.msk [vmem:[%s364 + $0x20] sm:$0xff] %vm3005, %v2990
      %3011 = vst.msk [vmem:[%s364 + $0x28] sm:$0xff] %vm3005, %v2992
      %3012 = vst.msk [vmem:[%s364 + $0x30] sm:$0xff] %vm3005, %v2994
      %3013 = vst.msk [vmem:[%s364 + $0x38] sm:$0xff] %vm3005, %v2996
      %v3014 = vsel %vm540, %v2965, 0
      %v3016 = vsel %vm540, %v2966, 0
      %v3018 = vsel %vm540, %v2967, 0
      %v3020 = vsel %vm540, %v2968, 0
      %v3022 = vsel %vm540, %v2969, 0
      %v3024 = vsel %vm540, %v2970, 0
      %v3026 = vsel %vm540, %v2971, 0
      %v3028 = vsel %vm540, %v2972, 0
      %3030 = vmatpush.msra.mxu0 0.0
      %3031 = vmatpush.msra.mxu0 0.0
      %3032 = vmatpush.msra.mxu0 0.0
      %3033 = vmatpush.msra.mxu0 0.0
      %3034 = vmatpush.msra.mxu0 0.0
      %3035 = vmatpush.msra.mxu0 0.0
      %3036 = vmatpush.msra.mxu0 0.0
      %3037 = vmatpush.msra.mxu0 0.0
      %3038 = vmatpush.msra.mxu0 0.0
      %3039 = vmatpush.msra.mxu0 0.0
      %3040 = vmatpush.msra.mxu0 0.0
      %3041 = vmatpush.msra.mxu0 0.0
      %3042 = vmatpush.msra.mxu0 0.0
      %3043 = vmatpush.msra.mxu0 0.0
      %3044 = vmatpush.msra.mxu0 0.0
      %3045 = vmatpush.msra.mxu0 %v413
      %3046 = vmatmul.f32.gmra.mxu0 %v3014
      %v3047 = vpop.f32.mrf.mxu0
      %v3048 = vadd.f32 %v928, %v3047
      %3049 = vmatmul.f32.gmra.mxu0 %v3016
      %v3050 = vpop.f32.mrf.mxu0
      %v3051 = vadd.f32 %v928, %v3050
      %3052 = vmatmul.f32.gmra.mxu0 %v3018
      %v3053 = vpop.f32.mrf.mxu0
      %v3054 = vadd.f32 %v928, %v3053
      %3055 = vmatmul.f32.gmra.mxu0 %v3020
      %v3056 = vpop.f32.mrf.mxu0
      %v3057 = vadd.f32 %v928, %v3056
      %3058 = vmatmul.f32.gmra.mxu0 %v3022
      %v3059 = vpop.f32.mrf.mxu0
      %v3060 = vadd.f32 %v928, %v3059
      %3061 = vmatmul.f32.gmra.mxu0 %v3024
      %v3062 = vpop.f32.mrf.mxu0
      %v3063 = vadd.f32 %v928, %v3062
      %3064 = vmatmul.f32.gmra.mxu0 %v3026
      %v3065 = vpop.f32.mrf.mxu0
      %v3066 = vadd.f32 %v928, %v3065
      %3067 = vmatmul.f32.gmra.mxu0 %v3028
      %v3068 = vpop.f32.mrf.mxu0
      %v3069 = vadd.f32 %v928, %v3068
      %3070 = vdwg.mxu0
      %v3071 = vld [vmem:[%s377 + $0x1] sm:$0xff]
      %v3072 = vld [vmem:[%s377 + $0x11] sm:$0xff]
      %v3073 = vld [vmem:[%s377 + $0x21] sm:$0xff]
      %v3074 = vld [vmem:[%s377 + $0x31] sm:$0xff]
      %v3075 = vld [vmem:[%s377 + $0x41] sm:$0xff]
      %v3076 = vld [vmem:[%s377 + $0x51] sm:$0xff]
      %v3077 = vld [vmem:[%s377 + $0x61] sm:$0xff]
      %v3078 = vld [vmem:[%s377 + $0x71] sm:$0xff]
      %v3079 = vmul.f32 %v3071, 0.5625
      %v3080 = vmul.f32 %v3072, 0.5625
      %v3081 = vmul.f32 %v3073, 0.5625
      %v3082 = vmul.f32 %v3074, 0.5625
      %v3083 = vmul.f32 %v3075, 0.5625
      %v3084 = vmul.f32 %v3076, 0.5625
      %v3085 = vmul.f32 %v3077, 0.5625
      %v3086 = vmul.f32 %v3078, 0.5625
      %v3087 = vld [vmem:[%s377 + $0x2] sm:$0xff]
      %v3088 = vld [vmem:[%s377 + $0x12] sm:$0xff]
      %v3089 = vld [vmem:[%s377 + $0x22] sm:$0xff]
      %v3090 = vld [vmem:[%s377 + $0x32] sm:$0xff]
      %v3091 = vld [vmem:[%s377 + $0x42] sm:$0xff]
      %v3092 = vld [vmem:[%s377 + $0x52] sm:$0xff]
      %v3093 = vld [vmem:[%s377 + $0x62] sm:$0xff]
      %v3094 = vld [vmem:[%s377 + $0x72] sm:$0xff]
      %v3095 = vmul.f32 %v3087, 0.1875
      %v3096 = vmul.f32 %v3088, 0.1875
      %v3097 = vmul.f32 %v3089, 0.1875
      %v3098 = vmul.f32 %v3090, 0.1875
      %v3099 = vmul.f32 %v3091, 0.1875
      %v3100 = vmul.f32 %v3092, 0.1875
      %v3101 = vmul.f32 %v3093, 0.1875
      %v3102 = vmul.f32 %v3094, 0.1875
      %v3103 = vadd.f32 %v3079, %v3095
      %v3104 = vadd.f32 %v3080, %v3096
      %v3105 = vadd.f32 %v3081, %v3097
      %v3106 = vadd.f32 %v3082, %v3098
      %v3107 = vadd.f32 %v3083, %v3099
      %v3108 = vadd.f32 %v3084, %v3100
      %v3109 = vadd.f32 %v3085, %v3101
      %v3110 = vadd.f32 %v3086, %v3102
      %v3111 = vld [vmem:[%s2429 + $0x1] sm:$0xff]
      %v3112 = vld [vmem:[%s2429 + $0x11] sm:$0xff]
      %v3113 = vld [vmem:[%s2429 + $0x21] sm:$0xff]
      %v3114 = vld [vmem:[%s2429 + $0x31] sm:$0xff]
      %v3115 = vld [vmem:[%s2429 + $0x41] sm:$0xff]
      %v3116 = vld [vmem:[%s2429 + $0x51] sm:$0xff]
      %v3117 = vld [vmem:[%s2429 + $0x61] sm:$0xff]
      %v3118 = vld [vmem:[%s2429 + $0x71] sm:$0xff]
      %v3119 = vmul.f32 %v3111, 0.1875
      %v3120 = vmul.f32 %v3112, 0.1875
      %v3121 = vmul.f32 %v3113, 0.1875
      %v3122 = vmul.f32 %v3114, 0.1875
      %v3123 = vmul.f32 %v3115, 0.1875
      %v3124 = vmul.f32 %v3116, 0.1875
      %v3125 = vmul.f32 %v3117, 0.1875
      %v3126 = vmul.f32 %v3118, 0.1875
      %v3127 = vadd.f32 %v3103, %v3119
      %v3128 = vadd.f32 %v3104, %v3120
      %v3129 = vadd.f32 %v3105, %v3121
      %v3130 = vadd.f32 %v3106, %v3122
      %v3131 = vadd.f32 %v3107, %v3123
      %v3132 = vadd.f32 %v3108, %v3124
      %v3133 = vadd.f32 %v3109, %v3125
      %v3134 = vadd.f32 %v3110, %v3126
      %v3135 = vld [vmem:[%s2429 + $0x2] sm:$0xff]
      %v3136 = vld [vmem:[%s2429 + $0x12] sm:$0xff]
      %v3137 = vld [vmem:[%s2429 + $0x22] sm:$0xff]
      %v3138 = vld [vmem:[%s2429 + $0x32] sm:$0xff]
      %v3139 = vld [vmem:[%s2429 + $0x42] sm:$0xff]
      %v3140 = vld [vmem:[%s2429 + $0x52] sm:$0xff]
      %v3141 = vld [vmem:[%s2429 + $0x62] sm:$0xff]
      %v3142 = vld [vmem:[%s2429 + $0x72] sm:$0xff]
      %v3143 = vmul.f32 %v3135, 0.0625
      %v3144 = vmul.f32 %v3136, 0.0625
      %v3145 = vmul.f32 %v3137, 0.0625
      %v3146 = vmul.f32 %v3138, 0.0625
      %v3147 = vmul.f32 %v3139, 0.0625
      %v3148 = vmul.f32 %v3140, 0.0625
      %v3149 = vmul.f32 %v3141, 0.0625
      %v3150 = vmul.f32 %v3142, 0.0625
      %v3151 = vadd.f32 %v3127, %v3143
      %v3152 = vadd.f32 %v3128, %v3144
      %v3153 = vadd.f32 %v3129, %v3145
      %v3154 = vadd.f32 %v3130, %v3146
      %v3155 = vadd.f32 %v3131, %v3147
      %v3156 = vadd.f32 %v3132, %v3148
      %v3157 = vadd.f32 %v3133, %v3149
      %v3158 = vadd.f32 %v3134, %v3150
      %v3159 = vadd.f32 %v3048, %v3151
      %v3160 = vadd.f32 %v3051, %v3152
      %v3161 = vadd.f32 %v3054, %v3153
      %v3162 = vadd.f32 %v3057, %v3154
      %v3163 = vadd.f32 %v3060, %v3155
      %v3164 = vadd.f32 %v3063, %v3156
      %v3165 = vadd.f32 %v3066, %v3157
      %v3166 = vadd.f32 %v3069, %v3158
      %3175 = vrot.lane.b32.xlu0 %v3159, 9
      %v3176 = vpop.permute.xlu0 %3175
      %3177 = vrot.lane.b32.xlu0 %v3160, 9
      %v3178 = vpop.permute.xlu0 %3177
      %3179 = vrot.lane.b32.xlu0 %v3161, 9
      %v3180 = vpop.permute.xlu0 %3179
      %3181 = vrot.lane.b32.xlu0 %v3162, 9
      %v3182 = vpop.permute.xlu0 %3181
      %3183 = vrot.lane.b32.xlu0 %v3163, 9
      %v3184 = vpop.permute.xlu0 %3183
      %3185 = vrot.lane.b32.xlu0 %v3164, 9
      %v3186 = vpop.permute.xlu0 %3185
      %3187 = vrot.lane.b32.xlu0 %v3165, 9
      %v3188 = vpop.permute.xlu0 %3187
      %3189 = vrot.lane.b32.xlu0 %v3166, 9
      %v3190 = vpop.permute.xlu0 %3189
      %vm3199 = vcmask 97352
      %3200 = vst.msk [vmem:[%s369] sm:$0xff] %vm3199, %v3176
      %3201 = vst.msk [vmem:[%s369 + $0x8] sm:$0xff] %vm3199, %v3178
      %3202 = vst.msk [vmem:[%s369 + $0x10] sm:$0xff] %vm3199, %v3180
      %3203 = vst.msk [vmem:[%s369 + $0x18] sm:$0xff] %vm3199, %v3182
      %3204 = vst.msk [vmem:[%s369 + $0x20] sm:$0xff] %vm3199, %v3184
      %3205 = vst.msk [vmem:[%s369 + $0x28] sm:$0xff] %vm3199, %v3186
      %3206 = vst.msk [vmem:[%s369 + $0x30] sm:$0xff] %vm3199, %v3188
      %3207 = vst.msk [vmem:[%s369 + $0x38] sm:$0xff] %vm3199, %v3190
      %p3208 = scmp.lt.s32.totalorder %s20, 1
      %s3209 = scalar_select %p3208, %s20, 1
      %s3210 = smul.addr %s3209, 8
      %s3211 = smul.addr %s3210, 8
      %s3212 = scalar_lea.vmem %s7, %s3211
      %p3213 = scmp.lt.s32.totalorder %s20, 1
      %s3214 = scalar_select %p3213, %s20, 1
      %s3215 = smul.addr %s3214, 8
      %s3216 = smul.addr %s3215, 8
      %s3217 = scalar_lea.vmem %s8, %s3216
      // Predicated region
      $region49: #{blend_synthesis_block.3} parent=47 // pred_check
        %p3218 = pneg %p205
      $region50: #{blend_synthesis_block.3} parent=47 // pred_check_branch
        %3220 = sbr.rel (%p3218) target = $region52
      $region51: #{blend_synthesis_block.3} parent=47 // pred_region
        _
      $region52: #{blend_synthesis_block.3} parent=47 // pred_fallthru
        _
      // Predicated region
      $region53: #{blend_synthesis_block.3} parent=47 // pred_check
        %p3221 = pneg %p231
      $region54: #{blend_synthesis_block.3} parent=47 // pred_check_branch
        %3223 = sbr.rel (%p3221) target = $region56
      $region55: #{blend_synthesis_block.3} parent=47 // pred_region
        _
      $region56: #{blend_synthesis_block.3} parent=47 // pred_fallthru
        _
    $region48: #{blend_synthesis_block.3} parent=5 // pred_fallthru
      _
    %p3224 = scmp.le.s32.totalorder 2, %s15
    // Predicated region
    $region57: #{blend_synthesis_block.3} parent=5 // pred_check
      %p3225 = pneg %p3224
    $region58: #{blend_synthesis_block.3} parent=5 // pred_check_branch
      %3227 = sbr.rel (%p3225) target = $region60
    $region59: #{blend_synthesis_block.3} parent=5 // pred_region
      %s3228 = ssub.s32 %s15, 2
      // Predicated region
      $region61: #{blend_synthesis_block.3} parent=59 // pred_check
        %p3229 = pneg %p211
      $region62: #{blend_synthesis_block.3} parent=59 // pred_check_branch
        %3231 = sbr.rel (%p3229) target = $region64
      $region63: #{blend_synthesis_block.3} parent=59 // pred_region
        %p3232 = scmp.lt.s32.totalorder %s21, 1
        %s3233 = scalar_select %p3232, %s21, 1
        %s3234 = smul.addr %s3233, 8
        %s3235 = smul.addr %s3234, 8
        %s3236 = scalar_lea.vmem %s7, %s3235
      $region64: #{blend_synthesis_block.3} parent=59 // pred_fallthru
        _
      // Predicated region
      $region65: #{blend_synthesis_block.3} parent=59 // pred_check
        %p3237 = pneg %p237
      $region66: #{blend_synthesis_block.3} parent=59 // pred_check_branch
        %3239 = sbr.rel (%p3237) target = $region68
      $region67: #{blend_synthesis_block.3} parent=59 // pred_region
        %p3240 = scmp.lt.s32.totalorder %s21, 1
        %s3241 = scalar_select %p3240, %s21, 1
        %s3242 = smul.addr %s3241, 8
        %s3243 = smul.addr %s3242, 8
        %s3244 = scalar_lea.vmem %s8, %s3243
      $region68: #{blend_synthesis_block.3} parent=59 // pred_fallthru
        _
    $region60: #{blend_synthesis_block.3} parent=5 // pred_fallthru
      _
  $region6: #{blend_synthesis_block.3} parent=0 // loop_footer
    %s19 = sadd.s32 1, %s15
  $region7: #{blend_synthesis_block.3} parent=0 // loop_footer_branch
    %14 = sbr.rel target = $region3
  $region8: #{blend_synthesis_block.3} parent=0 // loop_exit
    _

</llo_original>
